<compile_context>
chip_gen: v7x
topology: tpu7x:2x2x1
jax: 0.10.0
libtpu: 0.0.40
codegen_flags: <defaults>
</compile_context>

<pallas_src>
import functools
import math

import jax
import jax.numpy as jnp
from jax.experimental import pallas as pl
from jax.experimental.pallas import tpu as pltpu


def _layernorm_tf(x, w, b, eps=1e-12):
    # TF-style LayerNorm (eps inside the sqrt), computed in float32.
    u = jnp.mean(x, axis=-1, keepdims=True)
    s = jnp.mean((x - u) ** 2, axis=-1, keepdims=True)
    return w * ((x - u) / jnp.sqrt(s + eps)) + b


def _block_kernel(
    x_ref,                         # (Bt, S, D) f32  input batch block
    bias_ref,                      # (R, R) f32      block-diag additive mask
    ln1w_ref, ln1b_ref,            # (1, D) f32
    wqkv_ref, bqkv_ref,            # (D, 3D) bf16, (1, 3D) f32  fused QKV
    wo_ref, bo_ref,                # (D, D) bf16, (1, D) f32
    ln2w_ref, ln2b_ref,            # (1, D) f32
    wfc_ref, bfc_ref,              # (D, th) bf16, (1, th) f32  hidden tile
    wpr_ref, bpr_ref,              # (th, D) bf16, (1, D) f32   hidden tile
    o_ref,                         # (Bt, S, D)
    x1_s, xn2_s, acc_s,            # scratch (R, D): f32, bf16, f32
    *, n_head: int,
):
    h = pl.program_id(1)
    n_h = pl.num_programs(1)
    Bt, S, D = x_ref.shape
    R = Bt * S
    hd = D // n_head
    scale = 1.0 / math.sqrt(hd)

    # ---- first hidden step: LN1 -> attention -> residual -> LN2 ----
    @pl.when(h == 0)
    def _attention_and_init():
        x = x_ref[...].reshape(R, D).astype(jnp.float32)         # (R, D)
        xn = _layernorm_tf(x, ln1w_ref[...], ln1b_ref[...])

        # fused QKV projection on all R = Bt*S rows, f32 accumulation
        qkv = jnp.dot(xn.astype(jnp.bfloat16), wqkv_ref[...],
                      preferred_element_type=jnp.float32) + bqkv_ref[...]
        q = qkv[:, :D] * scale                                    # fold 1/sqrt(hd)
        k = qkv[:, D:2 * D]
        v = qkv[:, 2 * D:]

        # heads as a leading batch dim: (n_head, R, hd)
        q3 = q.reshape(R, n_head, hd).swapaxes(0, 1).astype(jnp.bfloat16)
        k3 = k.reshape(R, n_head, hd).swapaxes(0, 1).astype(jnp.bfloat16)
        v3 = v.reshape(R, n_head, hd).swapaxes(0, 1).astype(jnp.bfloat16)

        sc = jnp.einsum("nqd,nkd->nqk", q3, k3,
                        preferred_element_type=jnp.float32)       # (nh, R, R)
        if Bt > 1:
            # block-diagonal mask: no attention across batch elements
            sc = sc + bias_ref[...][None, :, :]
        sc = sc - jnp.max(sc, axis=-1, keepdims=True)
        p = jnp.exp(sc)
        p = p * pl.reciprocal(jnp.sum(p, axis=-1, keepdims=True), approx=True)

        ctx = jnp.einsum("nqk,nkd->nqd", p.astype(jnp.bfloat16), v3,
                         preferred_element_type=jnp.float32)      # (nh, R, hd)
        ctx = ctx.swapaxes(0, 1).reshape(R, D)
        attn = jnp.dot(ctx.astype(jnp.bfloat16), wo_ref[...],
                       preferred_element_type=jnp.float32) + bo_ref[...]

        x1 = x + attn                                             # residual 1
        x1_s[...] = x1
        xn2_s[...] = _layernorm_tf(
            x1, ln2w_ref[...], ln2b_ref[...]).astype(jnp.bfloat16)
        acc_s[...] = jnp.broadcast_to(bpr_ref[...], (R, D))       # init with bias

    # ---- every step: one MLP hidden tile (QuickGELU), accumulate proj ----
    hmid = jnp.dot(xn2_s[...], wfc_ref[...],
                   preferred_element_type=jnp.float32) + bfc_ref[...]
    hmid = hmid * jax.nn.sigmoid(1.702 * hmid)                    # QuickGELU (f32)
    acc_s[...] += jnp.dot(hmid.astype(jnp.bfloat16), wpr_ref[...],
                          preferred_element_type=jnp.float32)

    # ---- last hidden step: residual 2 + writeback ----
    @pl.when(h == n_h - 1)
    def _finalize():
        o_ref[...] = (x1_s[...] + acc_s[...]).reshape(Bt, S, D).astype(o_ref.dtype)


# ---------------------------------------------------------------------------
# tile / VMEM-budget selection
# ---------------------------------------------------------------------------
def _vmem_capacity_bytes():
    try:
        return int(pltpu.get_tpu_info().vmem_capacity_bytes)
    except Exception:
        return 64 * 1024 * 1024          # conservative: v7x per-TensorCore VMEM


def _choose_batch_block(B, S, target_rows=256):
    divisors = [d for d in range(1, B + 1) if B % d == 0]
    for d in divisors:                    # fill the MXU rows, keep >=2 blocks
        if d * S >= target_rows and B // d >= 2:
            return d
    for d in divisors:                    # half the target, still >=2 blocks
        if d * S >= target_rows // 2 and B // d >= 2:
            return d
    return B                              # tiny problem: one fat block


def _vmem_bytes(Bt, S, D, th, n_head, single_buffer_weights):
    f4, b2 = 4, 2
    R = Bt * S
    wbuf = 1 if single_buffer_weights else 2
    io = 2 * 2 * R * D * f4                          # x + out, double-buffered
    weights = wbuf * ((D * 3 * D + D * D) * b2       # wqkv, wo (bf16)
                      + R * R * f4                   # attention bias
                      + 10 * D * f4)                 # LN params + biases
    mlp_w = 2 * ((D * th + th * D) * b2 + th * f4)   # wfc/wpr/bfc double-buffered
    scratch = R * D * (f4 + b2 + f4)
    attn_tmp = (R * 3 * D * f4 + 3 * R * D * (f4 + b2)
                + n_head * R * R * (f4 + b2) + 2 * R * D * f4)
    mlp_tmp = R * th * (f4 + b2)
    return io + weights + mlp_w + scratch + max(attn_tmp, mlp_tmp) + (2 << 20)


def _choose_tiles(B, S, D, n_head, budget, single_buffer_weights,
                  batch_block=None, mlp_block=None):
    H = 4 * D
    hidden_cands = []
    for c in (H, 4096, 2048, 1024, 512, 256, 128):
        if c <= H and H % c == 0 and c not in hidden_cands:
            hidden_cands.append(c)       # largest first: fewer grid steps
    bt = batch_block if batch_block is not None else _choose_batch_block(B, S)
    while True:
        for th in ([mlp_block] if mlp_block is not None else hidden_cands):
            if _vmem_bytes(bt, S, D, th, n_head, single_buffer_weights) <= budget:
                return bt, th
        if batch_block is None and bt > 1:
            bt = max(d for d in range(1, bt) if B % d == 0)
            continue
        return bt, (mlp_block if mlp_block is not None else hidden_cands[-1])


# ---------------------------------------------------------------------------
# public wrapper
# ---------------------------------------------------------------------------
def residual_attention_block(x_lne, params, n_head, *, batch_block=None,
                             mlp_block=None, single_buffer_weights=True):
    """x_lne: (L, N, E) float32 (nn.MultiheadAttention layout); returns (L, N, E)."""
    S, B, D = x_lne.shape
    H = 4 * D
    assert D % n_head == 0
    if mlp_block is not None:
        assert H % mlp_block == 0
    if batch_block is not None:
        assert B % batch_block == 0

    # Generation-aware VMEM budget (v5e/v6e: 128 MiB, v7x: 64 MiB per core).
    vmem_cap = _vmem_capacity_bytes()
    vmem_limit = int(0.80 * vmem_cap)
    budget = int(0.85 * vmem_limit)        # headroom for Mosaic internal scratch

    use_single = single_buffer_weights and hasattr(pl, "Buffered")
    Bt, th = _choose_tiles(B, S, D, n_head, budget, use_single,
                           batch_block=batch_block, mlp_block=mlp_block)
    nb = B // Bt
    n_h = H // th
    R = Bt * S

    x = jnp.transpose(x_lne, (1, 0, 2))    # (B, S, D)

    # Block-diagonal additive attention bias over the R = Bt*S rows of a batch
    # block: -1e30 where query/key rows belong to different batch elements.
    blk = jnp.arange(R, dtype=jnp.int32) // S
    attn_bias = jnp.where(blk[:, None] == blk[None, :], 0.0, -1e30
                          ).astype(jnp.float32)

    def spec(shape, index_map, *, single=False):
        if single and use_single:
            try:
                return pl.BlockSpec(shape, index_map,
                                    pipeline_mode=pl.Buffered(1))
            except Exception:              # older BlockSpec w/o pipeline_mode
                pass
        return pl.BlockSpec(shape, index_map)

    const = lambda b, h: (0, 0)
    mlp_const = (n_h == 1)                 # hidden tiles constant -> single-buffer

    in_specs = [
        pl.BlockSpec((Bt, S, D), lambda b, h: (b, 0, 0)),              # x
        spec((R, R), const, single=True),                              # attn bias
        spec((1, D), const, single=True), spec((1, D), const, single=True),  # ln1
        spec((D, 3 * D), const, single=True), spec((1, 3 * D), const, single=True),
        spec((D, D), const, single=True), spec((1, D), const, single=True),  # wo
        spec((1, D), const, single=True), spec((1, D), const, single=True),  # ln2
        spec((D, th), lambda b, h: (0, h), single=mlp_const),          # wfc tile
        spec((1, th), lambda b, h: (0, h), single=mlp_const),          # bfc tile
        spec((th, D), lambda b, h: (h, 0), single=mlp_const),          # wpr tile
        spec((1, D), const, single=True),                              # bpr
    ]

    out = pl.pallas_call(
        functools.partial(_block_kernel, n_head=n_head),
        out_shape=jax.ShapeDtypeStruct((B, S, D), x.dtype),
        grid=(nb, n_h),
        in_specs=in_specs,
        out_specs=pl.BlockSpec((Bt, S, D), lambda b, h: (b, 0, 0)),
        scratch_shapes=[
            pltpu.VMEM((R, D), jnp.float32),     # x1 (residual 1)
            pltpu.VMEM((R, D), jnp.bfloat16),    # LN2(x1) as matmul input
            pltpu.VMEM((R, D), jnp.float32),     # MLP projection accumulator
        ],
        compiler_params=pltpu.CompilerParams(
            dimension_semantics=("parallel", "arbitrary"),
            vmem_limit_bytes=vmem_limit,
        ),
    )(
        x, attn_bias,
        params["ln1_w"], params["ln1_b"],
        params["wqkv"], params["bqkv"],
        params["wo"], params["bo"],
        params["ln2_w"], params["ln2_b"],
        params["wfc"], params["bfc"],
        params["wpr"], params["bpr"],
    )
    return jnp.transpose(out, (1, 0, 2))   # back to (L, N, E)


# ---------------------------------------------------------------------------
# pure-JAX reference & synthetic params
# ---------------------------------------------------------------------------
def _reference(x_lne, params, n_head):
    """Mirrors the PyTorch module (same bf16 matmul inputs / f32 accumulation)."""
    bf16, f32 = jnp.bfloat16, jnp.float32

    def ln(v, w, b, eps=1e-12):
        u = jnp.mean(v, axis=-1, keepdims=True)
        s = jnp.mean((v - u) ** 2, axis=-1, keepdims=True)
        return w[0] * ((v - u) / jnp.sqrt(s + eps)) + b[0]

    S, B, D = x_lne.shape
    hd = D // n_head
    scale = 1.0 / math.sqrt(hd)
    x = jnp.transpose(x_lne, (1, 0, 2)).astype(f32)               # (B, S, D)

    xn = ln(x, params["ln1_w"], params["ln1_b"])
    qkv = jnp.dot(xn.astype(bf16), params["wqkv"],
                  preferred_element_type=f32) + params["bqkv"][0]
    q = (qkv[..., :D] * scale).reshape(B, S, n_head, hd).transpose(0, 2, 1, 3)
    k = qkv[..., D:2 * D].reshape(B, S, n_head, hd).transpose(0, 2, 1, 3)
    v = qkv[..., 2 * D:].reshape(B, S, n_head, hd).transpose(0, 2, 1, 3)
    sc = jnp.einsum("bnqd,bnkd->bnqk", q.astype(bf16), k.astype(bf16),
                    preferred_element_type=f32)
    p = jax.nn.softmax(sc, axis=-1)
    ctx = jnp.einsum("bnqk,bnkd->bnqd", p.astype(bf16), v.astype(bf16),
                     preferred_element_type=f32)
    ctx = ctx.transpose(0, 2, 1, 3).reshape(B, S, D)
    attn = jnp.dot(ctx.astype(bf16), params["wo"],
                   preferred_element_type=f32) + params["bo"][0]
    x1 = x + attn

    xn2 = ln(x1, params["ln2_w"], params["ln2_b"])
    hm = jnp.dot(xn2.astype(bf16), params["wfc"],
                 preferred_element_type=f32) + params["bfc"][0]
    hm = hm * jax.nn.sigmoid(1.702 * hm)
    mlp = jnp.dot(hm.astype(bf16), params["wpr"],
                  preferred_element_type=f32) + params["bpr"][0]
    return jnp.transpose(x1 + mlp, (1, 0, 2))


def make_params(key, d_model):
    """Synthetic parameters with the PyTorch module's shapes.  Matmul weights
    stored in bf16 (halves HBM/VMEM traffic, bf16 MXU rate); LN params and
    biases stay f32."""
    ks = jax.random.split(key, 8)
    D = d_model
    scale = 0.02
    bf16, f32 = jnp.bfloat16, jnp.float32
    return {
        "ln1_w": jnp.ones((1, D), f32),
        "ln1_b": jnp.zeros((1, D), f32),
        # nn.MultiheadAttention in_proj (3D, D) pre-transposed & fused -> (D, 3D)
        "wqkv": (scale * jax.random.normal(ks[0], (D, 3 * D), f32)).astype(bf16),
        "bqkv": scale * jax.random.normal(ks[1], (1, 3 * D), f32),
        "wo": (scale * jax.random.normal(ks[2], (D, D), f32)).astype(bf16),
        "bo": scale * jax.random.normal(ks[3], (1, D), f32),
        "ln2_w": jnp.ones((1, D), f32),
        "ln2_b": jnp.zeros((1, D), f32),
        "wfc": (scale * jax.random.normal(ks[4], (D, 4 * D), f32)).astype(bf16),
        "bfc": scale * jax.random.normal(ks[5], (1, 4 * D), f32),
        "wpr": (scale * jax.random.normal(ks[6], (4 * D, D), f32)).astype(bf16),
        "bpr": scale * jax.random.normal(ks[7], (1, D), f32),
    }


if __name__ == "__main__":
    # head_dim = 128 (lane-aligned), MLP hidden = 1024.
    SEQ, BATCH, D_MODEL, N_HEAD = 8, 2, 256, 2

    key = jax.random.PRNGKey(0)
    kx, kp = jax.random.split(key)
    x = jax.random.normal(kx, (SEQ, BATCH, D_MODEL), jnp.float32)   # (L, N, E)
    params = make_params(kp, D_MODEL)

    def run(**kw):
        try:
            return residual_attention_block(x, params, N_HEAD, **kw)
        except Exception:
            # pipeline_mode=pl.Buffered(1) unsupported on this jax build ->
            # retry with default double-buffered weight blocks.
            return residual_attention_block(
                x, params, N_HEAD, single_buffer_weights=False, **kw)

    ref = _reference(x, params, N_HEAD)

    # Default path: whole batch in one block, full 4D hidden tile (grid 1x1),
    # block-diagonal masked attention over Bt*S rows.
    out = jax.block_until_ready(run())
    assert out.shape == x.shape
    err = float(jnp.max(jnp.abs(out - ref)))
    assert jnp.allclose(out, ref, atol=2e-2, rtol=2e-2), err

    # Tiled path: 2 batch blocks x 2 hidden tiles (exercises the MLP
    # accumulator and the multi-block parallel axis used on larger shapes).
    out2 = jax.block_until_ready(run(batch_block=1, mlp_block=512))
    err2 = float(jnp.max(jnp.abs(out2 - ref)))
    assert jnp.allclose(out2, ref, atol=2e-2, rtol=2e-2), err2

    print("KERNEL_OK")
</pallas_src>

<mosaic_0001>
module attributes {stable_mosaic.version = 11 : i64} {
  func.func @_block_kernel(%arg0: i32, %arg1: i32, %arg2: memref<2x8x256xf32, #tpu.memory_space<vmem>>, %arg3: memref<16x16xf32, #tpu.memory_space<vmem>>, %arg4: memref<1x256xf32, #tpu.memory_space<vmem>>, %arg5: memref<1x256xf32, #tpu.memory_space<vmem>>, %arg6: memref<256x768xbf16, #tpu.memory_space<vmem>>, %arg7: memref<1x768xf32, #tpu.memory_space<vmem>>, %arg8: memref<256x256xbf16, #tpu.memory_space<vmem>>, %arg9: memref<1x256xf32, #tpu.memory_space<vmem>>, %arg10: memref<1x256xf32, #tpu.memory_space<vmem>>, %arg11: memref<1x256xf32, #tpu.memory_space<vmem>>, %arg12: memref<256x1024xbf16, #tpu.memory_space<vmem>>, %arg13: memref<1x1024xf32, #tpu.memory_space<vmem>>, %arg14: memref<1024x256xbf16, #tpu.memory_space<vmem>>, %arg15: memref<1x256xf32, #tpu.memory_space<vmem>>, %arg16: memref<2x8x256xf32, #tpu.memory_space<vmem>>, %arg17: memref<16x256xf32, #tpu.memory_space<vmem>>, %arg18: memref<16x256xbf16, #tpu.memory_space<vmem>>, %arg19: memref<16x256xf32, #tpu.memory_space<vmem>>) attributes {dimension_semantics = [#tpu.dimension_semantics<parallel>, #tpu.dimension_semantics<arbitrary>], iteration_bounds = array<i64: 1, 1>, scalar_prefetch = 0 : i64, scratch_operands = 3 : i64, tpu.core_type = #tpu.core_type<tc>, window_params = [{transform_indices = @transform_0, window_bounds = array<i64: 2, 8, 256>}, {pipeline_mode = #tpu.pipeline_mode<synchronous>, transform_indices = @transform_1, window_bounds = array<i64: 16, 16>}, {pipeline_mode = #tpu.pipeline_mode<synchronous>, transform_indices = @transform_2, window_bounds = array<i64: 1, 256>}, {pipeline_mode = #tpu.pipeline_mode<synchronous>, transform_indices = @transform_3, window_bounds = array<i64: 1, 256>}, {pipeline_mode = #tpu.pipeline_mode<synchronous>, transform_indices = @transform_4, window_bounds = array<i64: 256, 768>}, {pipeline_mode = #tpu.pipeline_mode<synchronous>, transform_indices = @transform_5, window_bounds = array<i64: 1, 768>}, {pipeline_mode = #tpu.pipeline_mode<synchronous>, transform_indices = @transform_6, window_bounds = array<i64: 256, 256>}, {pipeline_mode = #tpu.pipeline_mode<synchronous>, transform_indices = @transform_7, window_bounds = array<i64: 1, 256>}, {pipeline_mode = #tpu.pipeline_mode<synchronous>, transform_indices = @transform_8, window_bounds = array<i64: 1, 256>}, {pipeline_mode = #tpu.pipeline_mode<synchronous>, transform_indices = @transform_9, window_bounds = array<i64: 1, 256>}, {pipeline_mode = #tpu.pipeline_mode<synchronous>, transform_indices = @transform_10, window_bounds = array<i64: 256, 1024>}, {pipeline_mode = #tpu.pipeline_mode<synchronous>, transform_indices = @transform_11, window_bounds = array<i64: 1, 1024>}, {pipeline_mode = #tpu.pipeline_mode<synchronous>, transform_indices = @transform_12, window_bounds = array<i64: 1024, 256>}, {pipeline_mode = #tpu.pipeline_mode<synchronous>, transform_indices = @transform_13, window_bounds = array<i64: 1, 256>}, {transform_indices = @transform_14, window_bounds = array<i64: 2, 8, 256>}]} {
    %c0_i32 = arith.constant 0 : i32
    %0 = arith.cmpi eq, %arg1, %c0_i32 : i32
    %1 = arith.extui %0 : i1 to i32
    %c0_i32_0 = arith.constant 0 : i32
    %2 = arith.cmpi ne, %1, %c0_i32_0 : i32
    scf.if %2 {
      %c0_17 = arith.constant 0 : index
      %c0_18 = arith.constant 0 : index
      %c0_19 = arith.constant 0 : index
      %26 = vector.load %arg2[%c0_17, %c0_18, %c0_19] : memref<2x8x256xf32, #tpu.memory_space<vmem>>, vector<2x8x256xf32>
      %27 = vector.shape_cast %26 : vector<2x8x256xf32> to vector<16x256xf32>
      %c0_20 = arith.constant 0 : index
      %c0_21 = arith.constant 0 : index
      %28 = vector.load %arg4[%c0_20, %c0_21] : memref<1x256xf32, #tpu.memory_space<vmem>>, vector<1x256xf32>
      %c0_22 = arith.constant 0 : index
      %c0_23 = arith.constant 0 : index
      %29 = vector.load %arg5[%c0_22, %c0_23] : memref<1x256xf32, #tpu.memory_space<vmem>>, vector<1x256xf32>
      %cst_24 = arith.constant dense<0.000000e+00> : vector<16xf32>
      %30 = vector.multi_reduction <add>, %27, %cst_24 [1] : vector<16x256xf32> to vector<16xf32>
      %31 = vector.shape_cast %30 : vector<16xf32> to vector<16x1xf32>
      %cst_25 = arith.constant 2.560000e+02 : f32
      %32 = vector.broadcast %cst_25 : f32 to vector<16x1xf32>
      %33 = arith.divf %31, %32 : vector<16x1xf32>
      %34 = vector.broadcast %33 : vector<16x1xf32> to vector<16x256xf32>
      %35 = arith.subf %27, %34 : vector<16x256xf32>
      %36 = arith.mulf %35, %35 : vector<16x256xf32>
      %cst_26 = arith.constant dense<0.000000e+00> : vector<16xf32>
      %37 = vector.multi_reduction <add>, %36, %cst_26 [1] : vector<16x256xf32> to vector<16xf32>
      %38 = vector.shape_cast %37 : vector<16xf32> to vector<16x1xf32>
      %cst_27 = arith.constant 2.560000e+02 : f32
      %39 = vector.broadcast %cst_27 : f32 to vector<16x1xf32>
      %40 = arith.divf %38, %39 : vector<16x1xf32>
      %41 = vector.broadcast %33 : vector<16x1xf32> to vector<16x256xf32>
      %42 = arith.subf %27, %41 : vector<16x256xf32>
      %cst_28 = arith.constant 9.99999996E-13 : f32
      %43 = vector.broadcast %cst_28 : f32 to vector<16x1xf32>
      %44 = arith.addf %40, %43 : vector<16x1xf32>
      %45 = math.sqrt %44 : vector<16x1xf32>
      %46 = vector.broadcast %45 : vector<16x1xf32> to vector<16x256xf32>
      %47 = arith.divf %42, %46 : vector<16x256xf32>
      %48 = vector.broadcast %28 : vector<1x256xf32> to vector<16x256xf32>
      %49 = arith.mulf %48, %47 : vector<16x256xf32>
      %50 = vector.broadcast %29 : vector<1x256xf32> to vector<16x256xf32>
      %51 = arith.addf %49, %50 : vector<16x256xf32>
      %52 = arith.truncf %51 : vector<16x256xf32> to vector<16x256xbf16>
      %c0_29 = arith.constant 0 : index
      %c0_30 = arith.constant 0 : index
      %53 = vector.load %arg6[%c0_29, %c0_30] : memref<256x768xbf16, #tpu.memory_space<vmem>>, vector<256x768xbf16>
      %cst_31 = arith.constant dense<0.000000e+00> : vector<16x768xf32>
      %54 = tpu.matmul %52, %53, %cst_31 {dimension_numbers = #tpu.dot_dimension_numbers<[1], [0], [0], [1], [0, 0, 1, 1], [], []>} : vector<16x256xbf16>, vector<256x768xbf16>, vector<16x768xf32> -> vector<16x768xf32>
      %c0_32 = arith.constant 0 : index
      %c0_33 = arith.constant 0 : index
      %55 = vector.load %arg7[%c0_32, %c0_33] : memref<1x768xf32, #tpu.memory_space<vmem>>, vector<1x768xf32>
      %56 = vector.broadcast %55 : vector<1x768xf32> to vector<16x768xf32>
      %57 = arith.addf %54, %56 : vector<16x768xf32>
      %58 = vector.extract_strided_slice %57 {offsets = [0, 0], sizes = [16, 256], strides = [1, 1]} : vector<16x768xf32> to vector<16x256xf32>
      %cst_34 = arith.constant 0.0883883461 : f32
      %59 = vector.broadcast %cst_34 : f32 to vector<16x256xf32>
      %60 = arith.mulf %58, %59 : vector<16x256xf32>
      %61 = vector.extract_strided_slice %57 {offsets = [0, 256], sizes = [16, 256], strides = [1, 1]} : vector<16x768xf32> to vector<16x256xf32>
      %62 = vector.extract_strided_slice %57 {offsets = [0, 512], sizes = [16, 256], strides = [1, 1]} : vector<16x768xf32> to vector<16x256xf32>
      %63 = vector.shape_cast %60 : vector<16x256xf32> to vector<16x2x128xf32>
      %64 = tpu.transpose %63, [1, 0, 2] : vector<16x2x128xf32> -> vector<2x16x128xf32>
      %65 = arith.truncf %64 : vector<2x16x128xf32> to vector<2x16x128xbf16>
      %66 = vector.shape_cast %61 : vector<16x256xf32> to vector<16x2x128xf32>
      %67 = tpu.transpose %66, [1, 0, 2] : vector<16x2x128xf32> -> vector<2x16x128xf32>
      %68 = arith.truncf %67 : vector<2x16x128xf32> to vector<2x16x128xbf16>
      %69 = vector.shape_cast %62 : vector<16x256xf32> to vector<16x2x128xf32>
      %70 = tpu.transpose %69, [1, 0, 2] : vector<16x2x128xf32> -> vector<2x16x128xf32>
      %71 = arith.truncf %70 : vector<2x16x128xf32> to vector<2x16x128xbf16>
      "tpu.trace_start"() <{level = 10 : i32, message = "nqd,nkd->nqk"}> : () -> ()
      %cst_35 = arith.constant dense<0.000000e+00> : vector<2x16x16xf32>
      %72 = tpu.matmul %65, %68, %cst_35 {dimension_numbers = #tpu.dot_dimension_numbers<[2], [2], [1], [1], [0, 0, 0, 1, 1, 1], [0], [0]>} : vector<2x16x128xbf16>, vector<2x16x128xbf16>, vector<2x16x16xf32> -> vector<2x16x16xf32>
      "tpu.trace_stop"() : () -> ()
      %c0_36 = arith.constant 0 : index
      %c0_37 = arith.constant 0 : index
      %73 = vector.load %arg3[%c0_36, %c0_37] : memref<16x16xf32, #tpu.memory_space<vmem>>, vector<16x16xf32>
      %74 = vector.shape_cast %73 : vector<16x16xf32> to vector<1x16x16xf32>
      %75 = vector.broadcast %74 : vector<1x16x16xf32> to vector<2x16x16xf32>
      %76 = arith.addf %72, %75 : vector<2x16x16xf32>
      %cst_38 = arith.constant dense<0xFF800000> : vector<2x16xf32>
      %77 = vector.multi_reduction <maximumf>, %76, %cst_38 [2] : vector<2x16x16xf32> to vector<2x16xf32>
      %78 = vector.shape_cast %77 : vector<2x16xf32> to vector<2x16x1xf32>
      %79 = vector.broadcast %78 : vector<2x16x1xf32> to vector<2x16x16xf32>
      %80 = arith.subf %76, %79 : vector<2x16x16xf32>
      %81 = math.exp %80 : vector<2x16x16xf32>
      %cst_39 = arith.constant dense<0.000000e+00> : vector<2x16xf32>
      %82 = vector.multi_reduction <add>, %81, %cst_39 [2] : vector<2x16x16xf32> to vector<2x16xf32>
      %83 = vector.shape_cast %82 : vector<2x16xf32> to vector<2x16x1xf32>
      %84 = tpu.reciprocal %83 {approx = true} : vector<2x16x1xf32> -> vector<2x16x1xf32>
      %85 = vector.broadcast %84 : vector<2x16x1xf32> to vector<2x16x16xf32>
      %86 = arith.mulf %81, %85 : vector<2x16x16xf32>
      %87 = arith.truncf %86 : vector<2x16x16xf32> to vector<2x16x16xbf16>
      "tpu.trace_start"() <{level = 10 : i32, message = "nqk,nkd->nqd"}> : () -> ()
      %cst_40 = arith.constant dense<0.000000e+00> : vector<2x16x128xf32>
      %88 = tpu.matmul %87, %71, %cst_40 {dimension_numbers = #tpu.dot_dimension_numbers<[2], [1], [1], [2], [0, 0, 0, 1, 1, 2], [0], [0]>} : vector<2x16x16xbf16>, vector<2x16x128xbf16>, vector<2x16x128xf32> -> vector<2x16x128xf32>
      "tpu.trace_stop"() : () -> ()
      %89 = tpu.transpose %88, [1, 0, 2] : vector<2x16x128xf32> -> vector<16x2x128xf32>
      %90 = vector.shape_cast %89 : vector<16x2x128xf32> to vector<16x256xf32>
      %91 = arith.truncf %90 : vector<16x256xf32> to vector<16x256xbf16>
      %c0_41 = arith.constant 0 : index
      %c0_42 = arith.constant 0 : index
      %92 = vector.load %arg8[%c0_41, %c0_42] : memref<256x256xbf16, #tpu.memory_space<vmem>>, vector<256x256xbf16>
      %cst_43 = arith.constant dense<0.000000e+00> : vector<16x256xf32>
      %93 = tpu.matmul %91, %92, %cst_43 {dimension_numbers = #tpu.dot_dimension_numbers<[1], [0], [0], [1], [0, 0, 1, 1], [], []>} : vector<16x256xbf16>, vector<256x256xbf16>, vector<16x256xf32> -> vector<16x256xf32>
      %c0_44 = arith.constant 0 : index
      %c0_45 = arith.constant 0 : index
      %94 = vector.load %arg9[%c0_44, %c0_45] : memref<1x256xf32, #tpu.memory_space<vmem>>, vector<1x256xf32>
      %95 = vector.broadcast %94 : vector<1x256xf32> to vector<16x256xf32>
      %96 = arith.addf %93, %95 : vector<16x256xf32>
      %97 = arith.addf %27, %96 : vector<16x256xf32>
      %c0_46 = arith.constant 0 : index
      %c0_47 = arith.constant 0 : index
      %98 = vector.load %arg17[%c0_46, %c0_47] : memref<16x256xf32, #tpu.memory_space<vmem>>, vector<16x256xf32>
      tpu.vector_store %arg17[%c0_46, %c0_47], %97 {strides = array<i32>} : memref<16x256xf32, #tpu.memory_space<vmem>>, vector<16x256xf32>,
      %c0_48 = arith.constant 0 : index
      %c0_49 = arith.constant 0 : index
      %99 = vector.load %arg10[%c0_48, %c0_49] : memref<1x256xf32, #tpu.memory_space<vmem>>, vector<1x256xf32>
      %c0_50 = arith.constant 0 : index
      %c0_51 = arith.constant 0 : index
      %100 = vector.load %arg11[%c0_50, %c0_51] : memref<1x256xf32, #tpu.memory_space<vmem>>, vector<1x256xf32>
      %cst_52 = arith.constant dense<0.000000e+00> : vector<16xf32>
      %101 = vector.multi_reduction <add>, %97, %cst_52 [1] : vector<16x256xf32> to vector<16xf32>
      %102 = vector.shape_cast %101 : vector<16xf32> to vector<16x1xf32>
      %cst_53 = arith.constant 2.560000e+02 : f32
      %103 = vector.broadcast %cst_53 : f32 to vector<16x1xf32>
      %104 = arith.divf %102, %103 : vector<16x1xf32>
      %105 = vector.broadcast %104 : vector<16x1xf32> to vector<16x256xf32>
      %106 = arith.subf %97, %105 : vector<16x256xf32>
      %107 = arith.mulf %106, %106 : vector<16x256xf32>
      %cst_54 = arith.constant dense<0.000000e+00> : vector<16xf32>
      %108 = vector.multi_reduction <add>, %107, %cst_54 [1] : vector<16x256xf32> to vector<16xf32>
      %109 = vector.shape_cast %108 : vector<16xf32> to vector<16x1xf32>
      %cst_55 = arith.constant 2.560000e+02 : f32
      %110 = vector.broadcast %cst_55 : f32 to vector<16x1xf32>
      %111 = arith.divf %109, %110 : vector<16x1xf32>
      %112 = vector.broadcast %104 : vector<16x1xf32> to vector<16x256xf32>
      %113 = arith.subf %97, %112 : vector<16x256xf32>
      %cst_56 = arith.constant 9.99999996E-13 : f32
      %114 = vector.broadcast %cst_56 : f32 to vector<16x1xf32>
      %115 = arith.addf %111, %114 : vector<16x1xf32>
      %116 = math.sqrt %115 : vector<16x1xf32>
      %117 = vector.broadcast %116 : vector<16x1xf32> to vector<16x256xf32>
      %118 = arith.divf %113, %117 : vector<16x256xf32>
      %119 = vector.broadcast %99 : vector<1x256xf32> to vector<16x256xf32>
      %120 = arith.mulf %119, %118 : vector<16x256xf32>
      %121 = vector.broadcast %100 : vector<1x256xf32> to vector<16x256xf32>
      %122 = arith.addf %120, %121 : vector<16x256xf32>
      %123 = arith.truncf %122 : vector<16x256xf32> to vector<16x256xbf16>
      %c0_57 = arith.constant 0 : index
      %c0_58 = arith.constant 0 : index
      %124 = vector.load %arg18[%c0_57, %c0_58] : memref<16x256xbf16, #tpu.memory_space<vmem>>, vector<16x256xbf16>
      tpu.vector_store %arg18[%c0_57, %c0_58], %123 {strides = array<i32>} : memref<16x256xbf16, #tpu.memory_space<vmem>>, vector<16x256xbf16>,
      %c0_59 = arith.constant 0 : index
      %c0_60 = arith.constant 0 : index
      %125 = vector.load %arg15[%c0_59, %c0_60] : memref<1x256xf32, #tpu.memory_space<vmem>>, vector<1x256xf32>
      %126 = vector.shape_cast %125 : vector<1x256xf32> to vector<1x256xf32>
      %127 = vector.broadcast %126 : vector<1x256xf32> to vector<16x256xf32>
      %c0_61 = arith.constant 0 : index
      %c0_62 = arith.constant 0 : index
      %128 = vector.load %arg19[%c0_61, %c0_62] : memref<16x256xf32, #tpu.memory_space<vmem>>, vector<16x256xf32>
      tpu.vector_store %arg19[%c0_61, %c0_62], %127 {strides = array<i32>} : memref<16x256xf32, #tpu.memory_space<vmem>>, vector<16x256xf32>,
    } else {
    }
    %c0 = arith.constant 0 : index
    %c0_1 = arith.constant 0 : index
    %3 = vector.load %arg18[%c0, %c0_1] : memref<16x256xbf16, #tpu.memory_space<vmem>>, vector<16x256xbf16>
    %c0_2 = arith.constant 0 : index
    %c0_3 = arith.constant 0 : index
    %4 = vector.load %arg12[%c0_2, %c0_3] : memref<256x1024xbf16, #tpu.memory_space<vmem>>, vector<256x1024xbf16>
    %cst = arith.constant dense<0.000000e+00> : vector<16x1024xf32>
    %5 = tpu.matmul %3, %4, %cst {dimension_numbers = #tpu.dot_dimension_numbers<[1], [0], [0], [1], [0, 0, 1, 1], [], []>} : vector<16x256xbf16>, vector<256x1024xbf16>, vector<16x1024xf32> -> vector<16x1024xf32>
    %c0_4 = arith.constant 0 : index
    %c0_5 = arith.constant 0 : index
    %6 = vector.load %arg13[%c0_4, %c0_5] : memref<1x1024xf32, #tpu.memory_space<vmem>>, vector<1x1024xf32>
    %7 = vector.broadcast %6 : vector<1x1024xf32> to vector<16x1024xf32>
    %8 = arith.addf %5, %7 : vector<16x1024xf32>
    %cst_6 = arith.constant 1.702000e+00 : f32
    %9 = vector.broadcast %cst_6 : f32 to vector<16x1024xf32>
    %10 = arith.mulf %9, %8 : vector<16x1024xf32>
    %11 = arith.negf %10 : vector<16x1024xf32>
    %12 = math.exp %11 : vector<16x1024xf32>
    %cst_7 = arith.constant 1.000000e+00 : f32
    %13 = vector.broadcast %cst_7 : f32 to vector<16x1024xf32>
    %14 = arith.addf %13, %12 : vector<16x1024xf32>
    %15 = arith.divf %13, %14 : vector<16x1024xf32>
    %16 = arith.mulf %8, %15 : vector<16x1024xf32>
    %c0_8 = arith.constant 0 : index
    %c0_9 = arith.constant 0 : index
    %17 = vector.load %arg19[%c0_8, %c0_9] : memref<16x256xf32, #tpu.memory_space<vmem>>, vector<16x256xf32>
    %18 = arith.truncf %16 : vector<16x1024xf32> to vector<16x1024xbf16>
    %c0_10 = arith.constant 0 : index
    %c0_11 = arith.constant 0 : index
    %19 = vector.load %arg14[%c0_10, %c0_11] : memref<1024x256xbf16, #tpu.memory_space<vmem>>, vector<1024x256xbf16>
    %cst_12 = arith.constant dense<0.000000e+00> : vector<16x256xf32>
    %20 = tpu.matmul %18, %19, %cst_12 {dimension_numbers = #tpu.dot_dimension_numbers<[1], [0], [0], [1], [0, 0, 1, 1], [], []>} : vector<16x1024xbf16>, vector<1024x256xbf16>, vector<16x256xf32> -> vector<16x256xf32>
    %21 = arith.addf %17, %20 : vector<16x256xf32>
    %c0_13 = arith.constant 0 : index
    %c0_14 = arith.constant 0 : index
    %22 = vector.load %arg19[%c0_13, %c0_14] : memref<16x256xf32, #tpu.memory_space<vmem>>, vector<16x256xf32>
    tpu.vector_store %arg19[%c0_13, %c0_14], %21 {strides = array<i32>} : memref<16x256xf32, #tpu.memory_space<vmem>>, vector<16x256xf32>,
    %c0_i32_15 = arith.constant 0 : i32
    %23 = arith.cmpi eq, %arg1, %c0_i32_15 : i32
    %24 = arith.extui %23 : i1 to i32
    %c0_i32_16 = arith.constant 0 : i32
    %25 = arith.cmpi ne, %24, %c0_i32_16 : i32
    scf.if %25 {
      %c0_17 = arith.constant 0 : index
      %c0_18 = arith.constant 0 : index
      %26 = vector.load %arg17[%c0_17, %c0_18] : memref<16x256xf32, #tpu.memory_space<vmem>>, vector<16x256xf32>
      %c0_19 = arith.constant 0 : index
      %c0_20 = arith.constant 0 : index
      %27 = vector.load %arg19[%c0_19, %c0_20] : memref<16x256xf32, #tpu.memory_space<vmem>>, vector<16x256xf32>
      %28 = arith.addf %26, %27 : vector<16x256xf32>
      %29 = vector.shape_cast %28 : vector<16x256xf32> to vector<2x8x256xf32>
      %c0_21 = arith.constant 0 : index
      %c0_22 = arith.constant 0 : index
      %c0_23 = arith.constant 0 : index
      %30 = vector.load %arg16[%c0_21, %c0_22, %c0_23] : memref<2x8x256xf32, #tpu.memory_space<vmem>>, vector<2x8x256xf32>
      tpu.vector_store %arg16[%c0_21, %c0_22, %c0_23], %29 {strides = array<i32>} : memref<2x8x256xf32, #tpu.memory_space<vmem>>, vector<2x8x256xf32>,
    } else {
    }
    return
  }
  func.func @transform_0(%arg0: i32, %arg1: i32) -> (i32, i32, i32) {
    %c0_i32 = arith.constant 0 : i32
    %c0_i32_0 = arith.constant 0 : i32
    %c0_i32_1 = arith.constant 0 : i32
    return %arg0, %c0_i32, %c0_i32_0 : i32, i32, i32
  }
  func.func @transform_1(%arg0: i32, %arg1: i32) -> (i32, i32) {
    %c0_i32 = arith.constant 0 : i32
    %c0_i32_0 = arith.constant 0 : i32
    %c0_i32_1 = arith.constant 0 : i32
    return %c0_i32, %c0_i32_0 : i32, i32
  }
  func.func @transform_2(%arg0: i32, %arg1: i32) -> (i32, i32) {
    %c0_i32 = arith.constant 0 : i32
    %c0_i32_0 = arith.constant 0 : i32
    %c0_i32_1 = arith.constant 0 : i32
    return %c0_i32, %c0_i32_0 : i32, i32
  }
  func.func @transform_3(%arg0: i32, %arg1: i32) -> (i32, i32) {
    %c0_i32 = arith.constant 0 : i32
    %c0_i32_0 = arith.constant 0 : i32
    %c0_i32_1 = arith.constant 0 : i32
    return %c0_i32, %c0_i32_0 : i32, i32
  }
  func.func @transform_4(%arg0: i32, %arg1: i32) -> (i32, i32) {
    %c0_i32 = arith.constant 0 : i32
    %c0_i32_0 = arith.constant 0 : i32
    %c0_i32_1 = arith.constant 0 : i32
    return %c0_i32, %c0_i32_0 : i32, i32
  }
  func.func @transform_5(%arg0: i32, %arg1: i32) -> (i32, i32) {
    %c0_i32 = arith.constant 0 : i32
    %c0_i32_0 = arith.constant 0 : i32
    %c0_i32_1 = arith.constant 0 : i32
    return %c0_i32, %c0_i32_0 : i32, i32
  }
  func.func @transform_6(%arg0: i32, %arg1: i32) -> (i32, i32) {
    %c0_i32 = arith.constant 0 : i32
    %c0_i32_0 = arith.constant 0 : i32
    %c0_i32_1 = arith.constant 0 : i32
    return %c0_i32, %c0_i32_0 : i32, i32
  }
  func.func @transform_7(%arg0: i32, %arg1: i32) -> (i32, i32) {
    %c0_i32 = arith.constant 0 : i32
    %c0_i32_0 = arith.constant 0 : i32
    %c0_i32_1 = arith.constant 0 : i32
    return %c0_i32, %c0_i32_0 : i32, i32
  }
  func.func @transform_8(%arg0: i32, %arg1: i32) -> (i32, i32) {
    %c0_i32 = arith.constant 0 : i32
    %c0_i32_0 = arith.constant 0 : i32
    %c0_i32_1 = arith.constant 0 : i32
    return %c0_i32, %c0_i32_0 : i32, i32
  }
  func.func @transform_9(%arg0: i32, %arg1: i32) -> (i32, i32) {
    %c0_i32 = arith.constant 0 : i32
    %c0_i32_0 = arith.constant 0 : i32
    %c0_i32_1 = arith.constant 0 : i32
    return %c0_i32, %c0_i32_0 : i32, i32
  }
  func.func @transform_10(%arg0: i32, %arg1: i32) -> (i32, i32) {
    %c0_i32 = arith.constant 0 : i32
    %c0_i32_0 = arith.constant 0 : i32
    return %c0_i32, %arg1 : i32, i32
  }
  func.func @transform_11(%arg0: i32, %arg1: i32) -> (i32, i32) {
    %c0_i32 = arith.constant 0 : i32
    %c0_i32_0 = arith.constant 0 : i32
    return %c0_i32, %arg1 : i32, i32
  }
  func.func @transform_12(%arg0: i32, %arg1: i32) -> (i32, i32) {
    %c0_i32 = arith.constant 0 : i32
    %c0_i32_0 = arith.constant 0 : i32
    return %arg1, %c0_i32 : i32, i32
  }
  func.func @transform_13(%arg0: i32, %arg1: i32) -> (i32, i32) {
    %c0_i32 = arith.constant 0 : i32
    %c0_i32_0 = arith.constant 0 : i32
    %c0_i32_1 = arith.constant 0 : i32
    return %c0_i32, %c0_i32_0 : i32, i32
  }
  func.func @transform_14(%arg0: i32, %arg1: i32) -> (i32, i32, i32) {
    %c0_i32 = arith.constant 0 : i32
    %c0_i32_0 = arith.constant 0 : i32
    %c0_i32_1 = arith.constant 0 : i32
    return %arg0, %c0_i32, %c0_i32_0 : i32, i32, i32
  }
}

module attributes {stable_mosaic.version = 11 : i64} {
  func.func @_block_kernel(%arg0: i32, %arg1: i32, %arg2: memref<2x8x256xf32, #tpu.memory_space<vmem>>, %arg3: memref<16x16xf32, #tpu.memory_space<vmem>>, %arg4: memref<1x256xf32, #tpu.memory_space<vmem>>, %arg5: memref<1x256xf32, #tpu.memory_space<vmem>>, %arg6: memref<256x768xbf16, #tpu.memory_space<vmem>>, %arg7: memref<1x768xf32, #tpu.memory_space<vmem>>, %arg8: memref<256x256xbf16, #tpu.memory_space<vmem>>, %arg9: memref<1x256xf32, #tpu.memory_space<vmem>>, %arg10: memref<1x256xf32, #tpu.memory_space<vmem>>, %arg11: memref<1x256xf32, #tpu.memory_space<vmem>>, %arg12: memref<256x1024xbf16, #tpu.memory_space<vmem>>, %arg13: memref<1x1024xf32, #tpu.memory_space<vmem>>, %arg14: memref<1024x256xbf16, #tpu.memory_space<vmem>>, %arg15: memref<1x256xf32, #tpu.memory_space<vmem>>, %arg16: memref<2x8x256xf32, #tpu.memory_space<vmem>>, %arg17: memref<16x256xf32, #tpu.memory_space<vmem>>, %arg18: memref<16x256xbf16, #tpu.memory_space<vmem>>, %arg19: memref<16x256xf32, #tpu.memory_space<vmem>>) attributes {dimension_semantics = [#tpu.dimension_semantics<parallel>, #tpu.dimension_semantics<arbitrary>], iteration_bounds = array<i64: 1, 1>, scalar_prefetch = 0 : i64, scratch_operands = 3 : i64, tpu.core_type = #tpu.core_type<tc>, window_params = [{transform_indices = @transform_0, window_bounds = array<i64: 2, 8, 256>}, {pipeline_mode = #tpu.pipeline_mode<synchronous>, transform_indices = @transform_1, window_bounds = array<i64: 16, 16>}, {pipeline_mode = #tpu.pipeline_mode<synchronous>, transform_indices = @transform_2, window_bounds = array<i64: 1, 256>}, {pipeline_mode = #tpu.pipeline_mode<synchronous>, transform_indices = @transform_3, window_bounds = array<i64: 1, 256>}, {pipeline_mode = #tpu.pipeline_mode<synchronous>, transform_indices = @transform_4, window_bounds = array<i64: 256, 768>}, {pipeline_mode = #tpu.pipeline_mode<synchronous>, transform_indices = @transform_5, window_bounds = array<i64: 1, 768>}, {pipeline_mode = #tpu.pipeline_mode<synchronous>, transform_indices = @transform_6, window_bounds = array<i64: 256, 256>}, {pipeline_mode = #tpu.pipeline_mode<synchronous>, transform_indices = @transform_7, window_bounds = array<i64: 1, 256>}, {pipeline_mode = #tpu.pipeline_mode<synchronous>, transform_indices = @transform_8, window_bounds = array<i64: 1, 256>}, {pipeline_mode = #tpu.pipeline_mode<synchronous>, transform_indices = @transform_9, window_bounds = array<i64: 1, 256>}, {transform_indices = @transform_10, window_bounds = array<i64: 256, 1024>}, {transform_indices = @transform_11, window_bounds = array<i64: 1, 1024>}, {transform_indices = @transform_12, window_bounds = array<i64: 1024, 256>}, {pipeline_mode = #tpu.pipeline_mode<synchronous>, transform_indices = @transform_13, window_bounds = array<i64: 1, 256>}, {transform_indices = @transform_14, window_bounds = array<i64: 2, 8, 256>}]} {
    %c0_i32 = arith.constant 0 : i32
    %0 = arith.cmpi eq, %arg1, %c0_i32 : i32
    %1 = arith.extui %0 : i1 to i32
    %c0_i32_0 = arith.constant 0 : i32
    %2 = arith.cmpi ne, %1, %c0_i32_0 : i32
    scf.if %2 {
      %c0_17 = arith.constant 0 : index
      %c0_18 = arith.constant 0 : index
      %c0_19 = arith.constant 0 : index
      %26 = vector.load %arg2[%c0_17, %c0_18, %c0_19] : memref<2x8x256xf32, #tpu.memory_space<vmem>>, vector<2x8x256xf32>
      %27 = vector.shape_cast %26 : vector<2x8x256xf32> to vector<16x256xf32>
      %c0_20 = arith.constant 0 : index
      %c0_21 = arith.constant 0 : index
      %28 = vector.load %arg4[%c0_20, %c0_21] : memref<1x256xf32, #tpu.memory_space<vmem>>, vector<1x256xf32>
      %c0_22 = arith.constant 0 : index
      %c0_23 = arith.constant 0 : index
      %29 = vector.load %arg5[%c0_22, %c0_23] : memref<1x256xf32, #tpu.memory_space<vmem>>, vector<1x256xf32>
      %cst_24 = arith.constant dense<0.000000e+00> : vector<16xf32>
      %30 = vector.multi_reduction <add>, %27, %cst_24 [1] : vector<16x256xf32> to vector<16xf32>
      %31 = vector.shape_cast %30 : vector<16xf32> to vector<16x1xf32>
      %cst_25 = arith.constant 2.560000e+02 : f32
      %32 = vector.broadcast %cst_25 : f32 to vector<16x1xf32>
      %33 = arith.divf %31, %32 : vector<16x1xf32>
      %34 = vector.broadcast %33 : vector<16x1xf32> to vector<16x256xf32>
      %35 = arith.subf %27, %34 : vector<16x256xf32>
      %36 = arith.mulf %35, %35 : vector<16x256xf32>
      %cst_26 = arith.constant dense<0.000000e+00> : vector<16xf32>
      %37 = vector.multi_reduction <add>, %36, %cst_26 [1] : vector<16x256xf32> to vector<16xf32>
      %38 = vector.shape_cast %37 : vector<16xf32> to vector<16x1xf32>
      %cst_27 = arith.constant 2.560000e+02 : f32
      %39 = vector.broadcast %cst_27 : f32 to vector<16x1xf32>
      %40 = arith.divf %38, %39 : vector<16x1xf32>
      %41 = vector.broadcast %33 : vector<16x1xf32> to vector<16x256xf32>
      %42 = arith.subf %27, %41 : vector<16x256xf32>
      %cst_28 = arith.constant 9.99999996E-13 : f32
      %43 = vector.broadcast %cst_28 : f32 to vector<16x1xf32>
      %44 = arith.addf %40, %43 : vector<16x1xf32>
      %45 = math.sqrt %44 : vector<16x1xf32>
      %46 = vector.broadcast %45 : vector<16x1xf32> to vector<16x256xf32>
      %47 = arith.divf %42, %46 : vector<16x256xf32>
      %48 = vector.broadcast %28 : vector<1x256xf32> to vector<16x256xf32>
      %49 = arith.mulf %48, %47 : vector<16x256xf32>
      %50 = vector.broadcast %29 : vector<1x256xf32> to vector<16x256xf32>
      %51 = arith.addf %49, %50 : vector<16x256xf32>
      %52 = arith.truncf %51 : vector<16x256xf32> to vector<16x256xbf16>
      %c0_29 = arith.constant 0 : index
      %c0_30 = arith.constant 0 : index
      %53 = vector.load %arg6[%c0_29, %c0_30] : memref<256x768xbf16, #tpu.memory_space<vmem>>, vector<256x768xbf16>
      %cst_31 = arith.constant dense<0.000000e+00> : vector<16x768xf32>
      %54 = tpu.matmul %52, %53, %cst_31 {dimension_numbers = #tpu.dot_dimension_numbers<[1], [0], [0], [1], [0, 0, 1, 1], [], []>} : vector<16x256xbf16>, vector<256x768xbf16>, vector<16x768xf32> -> vector<16x768xf32>
      %c0_32 = arith.constant 0 : index
      %c0_33 = arith.constant 0 : index
      %55 = vector.load %arg7[%c0_32, %c0_33] : memref<1x768xf32, #tpu.memory_space<vmem>>, vector<1x768xf32>
      %56 = vector.broadcast %55 : vector<1x768xf32> to vector<16x768xf32>
      %57 = arith.addf %54, %56 : vector<16x768xf32>
      %58 = vector.extract_strided_slice %57 {offsets = [0, 0], sizes = [16, 256], strides = [1, 1]} : vector<16x768xf32> to vector<16x256xf32>
      %cst_34 = arith.constant 0.0883883461 : f32
      %59 = vector.broadcast %cst_34 : f32 to vector<16x256xf32>
      %60 = arith.mulf %58, %59 : vector<16x256xf32>
      %61 = vector.extract_strided_slice %57 {offsets = [0, 256], sizes = [16, 256], strides = [1, 1]} : vector<16x768xf32> to vector<16x256xf32>
      %62 = vector.extract_strided_slice %57 {offsets = [0, 512], sizes = [16, 256], strides = [1, 1]} : vector<16x768xf32> to vector<16x256xf32>
      %63 = vector.shape_cast %60 : vector<16x256xf32> to vector<16x2x128xf32>
      %64 = tpu.transpose %63, [1, 0, 2] : vector<16x2x128xf32> -> vector<2x16x128xf32>
      %65 = arith.truncf %64 : vector<2x16x128xf32> to vector<2x16x128xbf16>
      %66 = vector.shape_cast %61 : vector<16x256xf32> to vector<16x2x128xf32>
      %67 = tpu.transpose %66, [1, 0, 2] : vector<16x2x128xf32> -> vector<2x16x128xf32>
      %68 = arith.truncf %67 : vector<2x16x128xf32> to vector<2x16x128xbf16>
      %69 = vector.shape_cast %62 : vector<16x256xf32> to vector<16x2x128xf32>
      %70 = tpu.transpose %69, [1, 0, 2] : vector<16x2x128xf32> -> vector<2x16x128xf32>
      %71 = arith.truncf %70 : vector<2x16x128xf32> to vector<2x16x128xbf16>
      "tpu.trace_start"() <{level = 10 : i32, message = "nqd,nkd->nqk"}> : () -> ()
      %cst_35 = arith.constant dense<0.000000e+00> : vector<2x16x16xf32>
      %72 = tpu.matmul %65, %68, %cst_35 {dimension_numbers = #tpu.dot_dimension_numbers<[2], [2], [1], [1], [0, 0, 0, 1, 1, 1], [0], [0]>} : vector<2x16x128xbf16>, vector<2x16x128xbf16>, vector<2x16x16xf32> -> vector<2x16x16xf32>
      "tpu.trace_stop"() : () -> ()
      %c0_36 = arith.constant 0 : index
      %c0_37 = arith.constant 0 : index
      %73 = vector.load %arg3[%c0_36, %c0_37] : memref<16x16xf32, #tpu.memory_space<vmem>>, vector<16x16xf32>
      %74 = vector.shape_cast %73 : vector<16x16xf32> to vector<1x16x16xf32>
      %75 = vector.broadcast %74 : vector<1x16x16xf32> to vector<2x16x16xf32>
      %76 = arith.addf %72, %75 : vector<2x16x16xf32>
      %cst_38 = arith.constant dense<0xFF800000> : vector<2x16xf32>
      %77 = vector.multi_reduction <maximumf>, %76, %cst_38 [2] : vector<2x16x16xf32> to vector<2x16xf32>
      %78 = vector.shape_cast %77 : vector<2x16xf32> to vector<2x16x1xf32>
      %79 = vector.broadcast %78 : vector<2x16x1xf32> to vector<2x16x16xf32>
      %80 = arith.subf %76, %79 : vector<2x16x16xf32>
      %81 = math.exp %80 : vector<2x16x16xf32>
      %cst_39 = arith.constant dense<0.000000e+00> : vector<2x16xf32>
      %82 = vector.multi_reduction <add>, %81, %cst_39 [2] : vector<2x16x16xf32> to vector<2x16xf32>
      %83 = vector.shape_cast %82 : vector<2x16xf32> to vector<2x16x1xf32>
      %84 = tpu.reciprocal %83 {approx = true} : vector<2x16x1xf32> -> vector<2x16x1xf32>
      %85 = vector.broadcast %84 : vector<2x16x1xf32> to vector<2x16x16xf32>
      %86 = arith.mulf %81, %85 : vector<2x16x16xf32>
      %87 = arith.truncf %86 : vector<2x16x16xf32> to vector<2x16x16xbf16>
      "tpu.trace_start"() <{level = 10 : i32, message = "nqk,nkd->nqd"}> : () -> ()
      %cst_40 = arith.constant dense<0.000000e+00> : vector<2x16x128xf32>
      %88 = tpu.matmul %87, %71, %cst_40 {dimension_numbers = #tpu.dot_dimension_numbers<[2], [1], [1], [2], [0, 0, 0, 1, 1, 2], [0], [0]>} : vector<2x16x16xbf16>, vector<2x16x128xbf16>, vector<2x16x128xf32> -> vector<2x16x128xf32>
      "tpu.trace_stop"() : () -> ()
      %89 = tpu.transpose %88, [1, 0, 2] : vector<2x16x128xf32> -> vector<16x2x128xf32>
      %90 = vector.shape_cast %89 : vector<16x2x128xf32> to vector<16x256xf32>
      %91 = arith.truncf %90 : vector<16x256xf32> to vector<16x256xbf16>
      %c0_41 = arith.constant 0 : index
      %c0_42 = arith.constant 0 : index
      %92 = vector.load %arg8[%c0_41, %c0_42] : memref<256x256xbf16, #tpu.memory_space<vmem>>, vector<256x256xbf16>
      %cst_43 = arith.constant dense<0.000000e+00> : vector<16x256xf32>
      %93 = tpu.matmul %91, %92, %cst_43 {dimension_numbers = #tpu.dot_dimension_numbers<[1], [0], [0], [1], [0, 0, 1, 1], [], []>} : vector<16x256xbf16>, vector<256x256xbf16>, vector<16x256xf32> -> vector<16x256xf32>
      %c0_44 = arith.constant 0 : index
      %c0_45 = arith.constant 0 : index
      %94 = vector.load %arg9[%c0_44, %c0_45] : memref<1x256xf32, #tpu.memory_space<vmem>>, vector<1x256xf32>
      %95 = vector.broadcast %94 : vector<1x256xf32> to vector<16x256xf32>
      %96 = arith.addf %93, %95 : vector<16x256xf32>
      %97 = arith.addf %27, %96 : vector<16x256xf32>
      %c0_46 = arith.constant 0 : index
      %c0_47 = arith.constant 0 : index
      %98 = vector.load %arg17[%c0_46, %c0_47] : memref<16x256xf32, #tpu.memory_space<vmem>>, vector<16x256xf32>
      tpu.vector_store %arg17[%c0_46, %c0_47], %97 {strides = array<i32>} : memref<16x256xf32, #tpu.memory_space<vmem>>, vector<16x256xf32>,
      %c0_48 = arith.constant 0 : index
      %c0_49 = arith.constant 0 : index
      %99 = vector.load %arg10[%c0_48, %c0_49] : memref<1x256xf32, #tpu.memory_space<vmem>>, vector<1x256xf32>
      %c0_50 = arith.constant 0 : index
      %c0_51 = arith.constant 0 : index
      %100 = vector.load %arg11[%c0_50, %c0_51] : memref<1x256xf32, #tpu.memory_space<vmem>>, vector<1x256xf32>
      %cst_52 = arith.constant dense<0.000000e+00> : vector<16xf32>
      %101 = vector.multi_reduction <add>, %97, %cst_52 [1] : vector<16x256xf32> to vector<16xf32>
      %102 = vector.shape_cast %101 : vector<16xf32> to vector<16x1xf32>
      %cst_53 = arith.constant 2.560000e+02 : f32
      %103 = vector.broadcast %cst_53 : f32 to vector<16x1xf32>
      %104 = arith.divf %102, %103 : vector<16x1xf32>
      %105 = vector.broadcast %104 : vector<16x1xf32> to vector<16x256xf32>
      %106 = arith.subf %97, %105 : vector<16x256xf32>
      %107 = arith.mulf %106, %106 : vector<16x256xf32>
      %cst_54 = arith.constant dense<0.000000e+00> : vector<16xf32>
      %108 = vector.multi_reduction <add>, %107, %cst_54 [1] : vector<16x256xf32> to vector<16xf32>
      %109 = vector.shape_cast %108 : vector<16xf32> to vector<16x1xf32>
      %cst_55 = arith.constant 2.560000e+02 : f32
      %110 = vector.broadcast %cst_55 : f32 to vector<16x1xf32>
      %111 = arith.divf %109, %110 : vector<16x1xf32>
      %112 = vector.broadcast %104 : vector<16x1xf32> to vector<16x256xf32>
      %113 = arith.subf %97, %112 : vector<16x256xf32>
      %cst_56 = arith.constant 9.99999996E-13 : f32
      %114 = vector.broadcast %cst_56 : f32 to vector<16x1xf32>
      %115 = arith.addf %111, %114 : vector<16x1xf32>
      %116 = math.sqrt %115 : vector<16x1xf32>
      %117 = vector.broadcast %116 : vector<16x1xf32> to vector<16x256xf32>
      %118 = arith.divf %113, %117 : vector<16x256xf32>
      %119 = vector.broadcast %99 : vector<1x256xf32> to vector<16x256xf32>
      %120 = arith.mulf %119, %118 : vector<16x256xf32>
      %121 = vector.broadcast %100 : vector<1x256xf32> to vector<16x256xf32>
      %122 = arith.addf %120, %121 : vector<16x256xf32>
      %123 = arith.truncf %122 : vector<16x256xf32> to vector<16x256xbf16>
      %c0_57 = arith.constant 0 : index
      %c0_58 = arith.constant 0 : index
      %124 = vector.load %arg18[%c0_57, %c0_58] : memref<16x256xbf16, #tpu.memory_space<vmem>>, vector<16x256xbf16>
      tpu.vector_store %arg18[%c0_57, %c0_58], %123 {strides = array<i32>} : memref<16x256xbf16, #tpu.memory_space<vmem>>, vector<16x256xbf16>,
      %c0_59 = arith.constant 0 : index
      %c0_60 = arith.constant 0 : index
      %125 = vector.load %arg15[%c0_59, %c0_60] : memref<1x256xf32, #tpu.memory_space<vmem>>, vector<1x256xf32>
      %126 = vector.shape_cast %125 : vector<1x256xf32> to vector<1x256xf32>
      %127 = vector.broadcast %126 : vector<1x256xf32> to vector<16x256xf32>
      %c0_61 = arith.constant 0 : index
      %c0_62 = arith.constant 0 : index
      %128 = vector.load %arg19[%c0_61, %c0_62] : memref<16x256xf32, #tpu.memory_space<vmem>>, vector<16x256xf32>
      tpu.vector_store %arg19[%c0_61, %c0_62], %127 {strides = array<i32>} : memref<16x256xf32, #tpu.memory_space<vmem>>, vector<16x256xf32>,
    } else {
    }
    %c0 = arith.constant 0 : index
    %c0_1 = arith.constant 0 : index
    %3 = vector.load %arg18[%c0, %c0_1] : memref<16x256xbf16, #tpu.memory_space<vmem>>, vector<16x256xbf16>
    %c0_2 = arith.constant 0 : index
    %c0_3 = arith.constant 0 : index
    %4 = vector.load %arg12[%c0_2, %c0_3] : memref<256x1024xbf16, #tpu.memory_space<vmem>>, vector<256x1024xbf16>
    %cst = arith.constant dense<0.000000e+00> : vector<16x1024xf32>
    %5 = tpu.matmul %3, %4, %cst {dimension_numbers = #tpu.dot_dimension_numbers<[1], [0], [0], [1], [0, 0, 1, 1], [], []>} : vector<16x256xbf16>, vector<256x1024xbf16>, vector<16x1024xf32> -> vector<16x1024xf32>
    %c0_4 = arith.constant 0 : index
    %c0_5 = arith.constant 0 : index
    %6 = vector.load %arg13[%c0_4, %c0_5] : memref<1x1024xf32, #tpu.memory_space<vmem>>, vector<1x1024xf32>
    %7 = vector.broadcast %6 : vector<1x1024xf32> to vector<16x1024xf32>
    %8 = arith.addf %5, %7 : vector<16x1024xf32>
    %cst_6 = arith.constant 1.702000e+00 : f32
    %9 = vector.broadcast %cst_6 : f32 to vector<16x1024xf32>
    %10 = arith.mulf %9, %8 : vector<16x1024xf32>
    %11 = arith.negf %10 : vector<16x1024xf32>
    %12 = math.exp %11 : vector<16x1024xf32>
    %cst_7 = arith.constant 1.000000e+00 : f32
    %13 = vector.broadcast %cst_7 : f32 to vector<16x1024xf32>
    %14 = arith.addf %13, %12 : vector<16x1024xf32>
    %15 = arith.divf %13, %14 : vector<16x1024xf32>
    %16 = arith.mulf %8, %15 : vector<16x1024xf32>
    %c0_8 = arith.constant 0 : index
    %c0_9 = arith.constant 0 : index
    %17 = vector.load %arg19[%c0_8, %c0_9] : memref<16x256xf32, #tpu.memory_space<vmem>>, vector<16x256xf32>
    %18 = arith.truncf %16 : vector<16x1024xf32> to vector<16x1024xbf16>
    %c0_10 = arith.constant 0 : index
    %c0_11 = arith.constant 0 : index
    %19 = vector.load %arg14[%c0_10, %c0_11] : memref<1024x256xbf16, #tpu.memory_space<vmem>>, vector<1024x256xbf16>
    %cst_12 = arith.constant dense<0.000000e+00> : vector<16x256xf32>
    %20 = tpu.matmul %18, %19, %cst_12 {dimension_numbers = #tpu.dot_dimension_numbers<[1], [0], [0], [1], [0, 0, 1, 1], [], []>} : vector<16x1024xbf16>, vector<1024x256xbf16>, vector<16x256xf32> -> vector<16x256xf32>
    %21 = arith.addf %17, %20 : vector<16x256xf32>
    %c0_13 = arith.constant 0 : index
    %c0_14 = arith.constant 0 : index
    %22 = vector.load %arg19[%c0_13, %c0_14] : memref<16x256xf32, #tpu.memory_space<vmem>>, vector<16x256xf32>
    tpu.vector_store %arg19[%c0_13, %c0_14], %21 {strides = array<i32>} : memref<16x256xf32, #tpu.memory_space<vmem>>, vector<16x256xf32>,
    %c0_i32_15 = arith.constant 0 : i32
    %23 = arith.cmpi eq, %arg1, %c0_i32_15 : i32
    %24 = arith.extui %23 : i1 to i32
    %c0_i32_16 = arith.constant 0 : i32
    %25 = arith.cmpi ne, %24, %c0_i32_16 : i32
    scf.if %25 {
      %c0_17 = arith.constant 0 : index
      %c0_18 = arith.constant 0 : index
      %26 = vector.load %arg17[%c0_17, %c0_18] : memref<16x256xf32, #tpu.memory_space<vmem>>, vector<16x256xf32>
      %c0_19 = arith.constant 0 : index
      %c0_20 = arith.constant 0 : index
      %27 = vector.load %arg19[%c0_19, %c0_20] : memref<16x256xf32, #tpu.memory_space<vmem>>, vector<16x256xf32>
      %28 = arith.addf %26, %27 : vector<16x256xf32>
      %29 = vector.shape_cast %28 : vector<16x256xf32> to vector<2x8x256xf32>
      %c0_21 = arith.constant 0 : index
      %c0_22 = arith.constant 0 : index
      %c0_23 = arith.constant 0 : index
      %30 = vector.load %arg16[%c0_21, %c0_22, %c0_23] : memref<2x8x256xf32, #tpu.memory_space<vmem>>, vector<2x8x256xf32>
      tpu.vector_store %arg16[%c0_21, %c0_22, %c0_23], %29 {strides = array<i32>} : memref<2x8x256xf32, #tpu.memory_space<vmem>>, vector<2x8x256xf32>,
    } else {
    }
    return
  }
  func.func @transform_0(%arg0: i32, %arg1: i32) -> (i32, i32, i32) {
    %c0_i32 = arith.constant 0 : i32
    %c0_i32_0 = arith.constant 0 : i32
    %c0_i32_1 = arith.constant 0 : i32
    return %arg0, %c0_i32, %c0_i32_0 : i32, i32, i32
  }
  func.func @transform_1(%arg0: i32, %arg1: i32) -> (i32, i32) {
    %c0_i32 = arith.constant 0 : i32
    %c0_i32_0 = arith.constant 0 : i32
    %c0_i32_1 = arith.constant 0 : i32
    return %c0_i32, %c0_i32_0 : i32, i32
  }
  func.func @transform_2(%arg0: i32, %arg1: i32) -> (i32, i32) {
    %c0_i32 = arith.constant 0 : i32
    %c0_i32_0 = arith.constant 0 : i32
    %c0_i32_1 = arith.constant 0 : i32
    return %c0_i32, %c0_i32_0 : i32, i32
  }
  func.func @transform_3(%arg0: i32, %arg1: i32) -> (i32, i32) {
    %c0_i32 = arith.constant 0 : i32
    %c0_i32_0 = arith.constant 0 : i32
    %c0_i32_1 = arith.constant 0 : i32
    return %c0_i32, %c0_i32_0 : i32, i32
  }
  func.func @transform_4(%arg0: i32, %arg1: i32) -> (i32, i32) {
    %c0_i32 = arith.constant 0 : i32
    %c0_i32_0 = arith.constant 0 : i32
    %c0_i32_1 = arith.constant 0 : i32
    return %c0_i32, %c0_i32_0 : i32, i32
  }
  func.func @transform_5(%arg0: i32, %arg1: i32) -> (i32, i32) {
    %c0_i32 = arith.constant 0 : i32
    %c0_i32_0 = arith.constant 0 : i32
    %c0_i32_1 = arith.constant 0 : i32
    return %c0_i32, %c0_i32_0 : i32, i32
  }
  func.func @transform_6(%arg0: i32, %arg1: i32) -> (i32, i32) {
    %c0_i32 = arith.constant 0 : i32
    %c0_i32_0 = arith.constant 0 : i32
    %c0_i32_1 = arith.constant 0 : i32
    return %c0_i32, %c0_i32_0 : i32, i32
  }
  func.func @transform_7(%arg0: i32, %arg1: i32) -> (i32, i32) {
    %c0_i32 = arith.constant 0 : i32
    %c0_i32_0 = arith.constant 0 : i32
    %c0_i32_1 = arith.constant 0 : i32
    return %c0_i32, %c0_i32_0 : i32, i32
  }
  func.func @transform_8(%arg0: i32, %arg1: i32) -> (i32, i32) {
    %c0_i32 = arith.constant 0 : i32
    %c0_i32_0 = arith.constant 0 : i32
    %c0_i32_1 = arith.constant 0 : i32
    return %c0_i32, %c0_i32_0 : i32, i32
  }
  func.func @transform_9(%arg0: i32, %arg1: i32) -> (i32, i32) {
    %c0_i32 = arith.constant 0 : i32
    %c0_i32_0 = arith.constant 0 : i32
    %c0_i32_1 = arith.constant 0 : i32
    return %c0_i32, %c0_i32_0 : i32, i32
  }
  func.func @transform_10(%arg0: i32, %arg1: i32) -> (i32, i32) {
    %c0_i32 = arith.constant 0 : i32
    %c0_i32_0 = arith.constant 0 : i32
    return %c0_i32, %arg1 : i32, i32
  }
  func.func @transform_11(%arg0: i32, %arg1: i32) -> (i32, i32) {
    %c0_i32 = arith.constant 0 : i32
    %c0_i32_0 = arith.constant 0 : i32
    return %c0_i32, %arg1 : i32, i32
  }
  func.func @transform_12(%arg0: i32, %arg1: i32) -> (i32, i32) {
    %c0_i32 = arith.constant 0 : i32
    %c0_i32_0 = arith.constant 0 : i32
    return %arg1, %c0_i32 : i32, i32
  }
  func.func @transform_13(%arg0: i32, %arg1: i32) -> (i32, i32) {
    %c0_i32 = arith.constant 0 : i32
    %c0_i32_0 = arith.constant 0 : i32
    %c0_i32_1 = arith.constant 0 : i32
    return %c0_i32, %c0_i32_0 : i32, i32
  }
  func.func @transform_14(%arg0: i32, %arg1: i32) -> (i32, i32, i32) {
    %c0_i32 = arith.constant 0 : i32
    %c0_i32_0 = arith.constant 0 : i32
    %c0_i32_1 = arith.constant 0 : i32
    return %arg0, %c0_i32, %c0_i32_0 : i32, i32, i32
  }
}

</mosaic_0001>

<llo_original>
// kernel: tpu_custom_call.1
$region0: #{tpu_custom_call.1}
  #allocation0 [shape = 'u32[]', space=smem, size = 0x4, offset = 0x4, fixed_abs, tag = 'smem constant byte address 0x4 - core index']
  #allocation1 [shape = 'u32[144,128]{1,0:T(1,128)}', space=vmem, size = 0x12000, scoped, tag = 'internal scratch']
  #allocation2 [shape = 'f32[16,256]{1,0:T(8,128)}', space=vmem, size = 0x4000, scoped, tag = 'scratch operand']
  #allocation3 [shape = 'bf16[16,256]{1,0:T(16,128)(2,1)}', space=vmem, size = 0x2000, scoped, tag = 'scratch operand']
  #allocation4 [shape = 'f32[16,256]{1,0:T(8,128)}', space=vmem, size = 0x4000, scoped, tag = 'scratch operand']
  %s0 = inlined_call_operand.hbm [shape: f32[2,8,256], index: 0, kind: input, shape index: {}]
  %s1 = inlined_call_operand.hbm [shape: f32[16,16], index: 1, kind: input, shape index: {}]
  %s2 = inlined_call_operand.hbm [shape: f32[1,256], index: 2, kind: input, shape index: {}]
  %s3 = inlined_call_operand.hbm [shape: f32[1,256], index: 3, kind: input, shape index: {}]
  %s4 = inlined_call_operand.hbm [shape: bf16[256,768], index: 4, kind: input, shape index: {}]
  %s5 = inlined_call_operand.vmem [shape: f32[1,768], index: 5, kind: input, shape index: {}]
  %s6 = inlined_call_operand.hbm [shape: bf16[256,256], index: 6, kind: input, shape index: {}]
  %s7 = inlined_call_operand.vmem [shape: f32[1,256], index: 7, kind: input, shape index: {}]
  %s8 = inlined_call_operand.vmem [shape: f32[1,256], index: 8, kind: input, shape index: {}]
  %s9 = inlined_call_operand.vmem [shape: f32[1,256], index: 9, kind: input, shape index: {}]
  %s10 = inlined_call_operand.hbm [shape: bf16[256,1024], index: 10, kind: input, shape index: {}]
  %s11 = inlined_call_operand.vmem [shape: f32[1,1024], index: 11, kind: input, shape index: {}]
  %s12 = inlined_call_operand.hbm [shape: bf16[1024,256], index: 12, kind: input, shape index: {}]
  %s13 = inlined_call_operand.vmem [shape: f32[1,256], index: 13, kind: input, shape index: {}]
  %s14 = inlined_call_operand.hbm [shape: f32[2,8,256], index: 14, kind: output, shape index: {}]
  %s15 = sld [smem:[#allocation0]]
  $region106: #{tpu_custom_call.1} parent=0
    _
  %s17 = ssub.s32 1, %s15
  %s18 = scalar_select 0, %s17, %s15
  $region1: #{tpu_custom_call.1} parent=0
    #allocation5 [shape = 'u8[16384]{0}', space=vmem, size = 0x4000, scoped, tag = 'input window, operand 0, single buffered']
    #allocation6 [shape = 's32[1]{0}', space=sflag, size = 0x4, scoped, tag = 'scoped memory for tpu_custom_call.1']
    #allocation7 [shape = 's32[1]{0}', space=sflag, size = 0x4, scoped, tag = 'scoped memory for tpu_custom_call.1']
    #allocation8 [shape = 'u8[8192]{0}', space=vmem, size = 0x2000, scoped, tag = 'input window, operand 1, single buffered']
    #allocation9 [shape = 's32[1]{0}', space=sflag, size = 0x4, scoped, tag = 'scoped memory for tpu_custom_call.1']
    #allocation10 [shape = 'u8[1024]{0}', space=vmem, size = 0x400, scoped, tag = 'input window, operand 2, single buffered']
    #allocation11 [shape = 'u8[1024]{0}', space=vmem, size = 0x400, scoped, tag = 'input window, operand 3, single buffered']
    #allocation12 [shape = 's32[1]{0}', space=sflag, size = 0x4, scoped, tag = 'scoped memory for tpu_custom_call.1']
    #allocation13 [shape = 'u8[393216]{0}', space=vmem, size = 0x60000, scoped, tag = 'input window, operand 4, single buffered']
    #allocation14 [shape = 'u8[131072]{0}', space=vmem, size = 0x20000, scoped, tag = 'input window, operand 6, single buffered']
    #allocation15 [shape = 's32[1]{0}', space=sflag, size = 0x4, scoped, tag = 'scoped memory for tpu_custom_call.1']
    #allocation16 [shape = 'u8[524288]{0}', space=vmem, size = 0x80000, scoped, tag = 'input window, operand 10, single buffered']
    #allocation17 [shape = 'u8[524288]{0}', space=vmem, size = 0x80000, scoped, tag = 'input window, operand 12, single buffered']
    #allocation18 [shape = 's32[1]{0}', space=sflag, size = 0x4, scoped, tag = 'scoped memory for tpu_custom_call.1']
    #allocation19 [shape = 'u8[16384]{0}', space=vmem, size = 0x4000, scoped, tag = 'output window, operand 0, single buffered']
    %19 = vsyncpa [#allocation6], 0
    %20 = vsyncpa [#allocation9], 0
    %21 = vsyncpa [#allocation12], 0
    %22 = vsyncpa [#allocation15], 0
    %23 = vsyncpa [#allocation18], 0
    %24 = vsyncpa [#allocation7], 0
    // Predicated region
    $region2: #{tpu_custom_call.1} parent=1 // pred_check
      _
    $region3: #{tpu_custom_call.1} parent=1 // pred_check_branch
      %26 = sbr.rel (0) target = $region5
    $region4: #{tpu_custom_call.1} parent=1 // pred_region
      %s28 = ssub.s32 512, 512
      %29 = vsyncadd [#allocation6], %s28
      %s30 = sshll.u32 [#allocation5], 4
      %s31 = int_to_ptr.vmem [resolvable:$true] %s30
      %36 = dma.hbm_to_vmem [thread:$0]  %s0, 512, %s31, [#allocation6], 256, 256, 16
    $region5: #{tpu_custom_call.1} parent=1 // pred_fallthru
      _
    // Predicated region
    $region6: #{tpu_custom_call.1} parent=1 // pred_check
      _
    $region7: #{tpu_custom_call.1} parent=1 // pred_check_branch
      %38 = sbr.rel (0) target = $region9
    $region8: #{tpu_custom_call.1} parent=1 // pred_region
      %s40 = ssub.s32 256, 256
      %41 = vsyncadd [#allocation9], %s40
      %s42 = sshll.u32 [#allocation8], 4
      %s43 = int_to_ptr.vmem [resolvable:$true] %s42
      %48 = dma.hbm_to_vmem [thread:$0]  %s1, 256, %s43, [#allocation9], 128, 128, 8
    $region9: #{tpu_custom_call.1} parent=1 // pred_fallthru
      _
    // Predicated region
    $region10: #{tpu_custom_call.1} parent=1 // pred_check
      _
    $region11: #{tpu_custom_call.1} parent=1 // pred_check_branch
      %50 = sbr.rel (0) target = $region13
    $region12: #{tpu_custom_call.1} parent=1 // pred_region
      %s52 = ssub.s32 32, 32
      %53 = vsyncadd [#allocation9], %s52
      %s55 = sshll.u32 [#allocation10], 4
      %s56 = int_to_ptr.vmem [resolvable:$true] %s55
      %58 = dma.hbm_to_vmem [thread:$0]  %s2, 32, %s56, [#allocation9]
    $region13: #{tpu_custom_call.1} parent=1 // pred_fallthru
      _
    // Predicated region
    $region14: #{tpu_custom_call.1} parent=1 // pred_check
      _
    $region15: #{tpu_custom_call.1} parent=1 // pred_check_branch
      %60 = sbr.rel (0) target = $region17
    $region16: #{tpu_custom_call.1} parent=1 // pred_region
      %s62 = ssub.s32 32, 32
      %63 = vsyncadd [#allocation12], %s62
      %s65 = sshll.u32 [#allocation11], 4
      %s66 = int_to_ptr.vmem [resolvable:$true] %s65
      %68 = dma.hbm_to_vmem [thread:$0]  %s3, 32, %s66, [#allocation12]
    $region17: #{tpu_custom_call.1} parent=1 // pred_fallthru
      _
    // Predicated region
    $region18: #{tpu_custom_call.1} parent=1 // pred_check
      _
    $region19: #{tpu_custom_call.1} parent=1 // pred_check_branch
      %70 = sbr.rel (0) target = $region21
    $region20: #{tpu_custom_call.1} parent=1 // pred_region
      %s72 = ssub.s32 12288, 12288
      %73 = vsyncadd [#allocation12], %s72
      %s74 = sshll.u32 [#allocation13], 4
      %s75 = int_to_ptr.vmem [resolvable:$true] %s74
      %80 = dma.hbm_to_vmem [thread:$0]  %s4, 12288, %s75, [#allocation12], 384, 384, 24
    $region21: #{tpu_custom_call.1} parent=1 // pred_fallthru
      _
    // Predicated region
    $region22: #{tpu_custom_call.1} parent=1 // pred_check
      _
    $region23: #{tpu_custom_call.1} parent=1 // pred_check_branch
      %82 = sbr.rel (0) target = $region25
    $region24: #{tpu_custom_call.1} parent=1 // pred_region
      _
    $region25: #{tpu_custom_call.1} parent=1 // pred_fallthru
      _
    // Predicated region
    $region26: #{tpu_custom_call.1} parent=1 // pred_check
      _
    $region27: #{tpu_custom_call.1} parent=1 // pred_check_branch
      %84 = sbr.rel (0) target = $region29
    $region28: #{tpu_custom_call.1} parent=1 // pred_region
      %s86 = ssub.s32 4096, 4096
      %87 = vsyncadd [#allocation15], %s86
      %s88 = sshll.u32 [#allocation14], 4
      %s89 = int_to_ptr.vmem [resolvable:$true] %s88
      %94 = dma.hbm_to_vmem [thread:$0]  %s6, 4096, %s89, [#allocation15], 128, 128, 8
    $region29: #{tpu_custom_call.1} parent=1 // pred_fallthru
      _
    // Predicated region
    $region30: #{tpu_custom_call.1} parent=1 // pred_check
      _
    $region31: #{tpu_custom_call.1} parent=1 // pred_check_branch
      %96 = sbr.rel (0) target = $region33
    $region32: #{tpu_custom_call.1} parent=1 // pred_region
      _
    $region33: #{tpu_custom_call.1} parent=1 // pred_fallthru
      _
    // Predicated region
    $region34: #{tpu_custom_call.1} parent=1 // pred_check
      _
    $region35: #{tpu_custom_call.1} parent=1 // pred_check_branch
      %98 = sbr.rel (0) target = $region37
    $region36: #{tpu_custom_call.1} parent=1 // pred_region
      _
    $region37: #{tpu_custom_call.1} parent=1 // pred_fallthru
      _
    // Predicated region
    $region38: #{tpu_custom_call.1} parent=1 // pred_check
      _
    $region39: #{tpu_custom_call.1} parent=1 // pred_check_branch
      %100 = sbr.rel (0) target = $region41
    $region40: #{tpu_custom_call.1} parent=1 // pred_region
      _
    $region41: #{tpu_custom_call.1} parent=1 // pred_fallthru
      _
    // Predicated region
    $region42: #{tpu_custom_call.1} parent=1 // pred_check
      _
    $region43: #{tpu_custom_call.1} parent=1 // pred_check_branch
      %102 = sbr.rel (0) target = $region45
    $region44: #{tpu_custom_call.1} parent=1 // pred_region
      %s104 = ssub.s32 16384, 16384
      %105 = vsyncadd [#allocation15], %s104
      %s106 = sshll.u32 [#allocation16], 4
      %s107 = int_to_ptr.vmem [resolvable:$true] %s106
      %112 = dma.hbm_to_vmem [thread:$0]  %s10, 16384, %s107, [#allocation15], 512, 512, 32
    $region45: #{tpu_custom_call.1} parent=1 // pred_fallthru
      _
    // Predicated region
    $region46: #{tpu_custom_call.1} parent=1 // pred_check
      _
    $region47: #{tpu_custom_call.1} parent=1 // pred_check_branch
      %114 = sbr.rel (0) target = $region49
    $region48: #{tpu_custom_call.1} parent=1 // pred_region
      _
    $region49: #{tpu_custom_call.1} parent=1 // pred_fallthru
      _
    // Predicated region
    $region50: #{tpu_custom_call.1} parent=1 // pred_check
      _
    $region51: #{tpu_custom_call.1} parent=1 // pred_check_branch
      %116 = sbr.rel (0) target = $region53
    $region52: #{tpu_custom_call.1} parent=1 // pred_region
      %s118 = ssub.s32 16384, 16384
      %119 = vsyncadd [#allocation18], %s118
      %s120 = sshll.u32 [#allocation17], 4
      %s121 = int_to_ptr.vmem [resolvable:$true] %s120
      %126 = dma.hbm_to_vmem [thread:$0]  %s12, 16384, %s121, [#allocation18], 128, 128, 8
    $region53: #{tpu_custom_call.1} parent=1 // pred_fallthru
      _
    // Predicated region
    $region54: #{tpu_custom_call.1} parent=1 // pred_check
      _
    $region55: #{tpu_custom_call.1} parent=1 // pred_check_branch
      %128 = sbr.rel (0) target = $region57
    $region56: #{tpu_custom_call.1} parent=1 // pred_region
      _
    $region57: #{tpu_custom_call.1} parent=1 // pred_fallthru
      _
    // Predicated region
    $region58: #{tpu_custom_call.1} parent=1 // pred_check
      _
    $region59: #{tpu_custom_call.1} parent=1 // pred_check_branch
      %130 = sbr.rel (0) target = $region61
    $region60: #{tpu_custom_call.1} parent=1 // pred_region
      %131 = dma.done [#allocation6], 512
    $region61: #{tpu_custom_call.1} parent=1 // pred_fallthru
      _
    // Predicated region
    $region62: #{tpu_custom_call.1} parent=1 // pred_check
      _
    $region63: #{tpu_custom_call.1} parent=1 // pred_check_branch
      %133 = sbr.rel (0) target = $region65
    $region64: #{tpu_custom_call.1} parent=1 // pred_region
      %134 = dma.done [#allocation9], 256
    $region65: #{tpu_custom_call.1} parent=1 // pred_fallthru
      _
    // Predicated region
    $region66: #{tpu_custom_call.1} parent=1 // pred_check
      _
    $region67: #{tpu_custom_call.1} parent=1 // pred_check_branch
      %136 = sbr.rel (0) target = $region69
    $region68: #{tpu_custom_call.1} parent=1 // pred_region
      %137 = dma.done [#allocation9], 32
    $region69: #{tpu_custom_call.1} parent=1 // pred_fallthru
      _
    // Predicated region
    $region70: #{tpu_custom_call.1} parent=1 // pred_check
      _
    $region71: #{tpu_custom_call.1} parent=1 // pred_check_branch
      %139 = sbr.rel (0) target = $region73
    $region72: #{tpu_custom_call.1} parent=1 // pred_region
      %140 = dma.done [#allocation12], 32
    $region73: #{tpu_custom_call.1} parent=1 // pred_fallthru
      _
    // Predicated region
    $region74: #{tpu_custom_call.1} parent=1 // pred_check
      _
    $region75: #{tpu_custom_call.1} parent=1 // pred_check_branch
      %142 = sbr.rel (0) target = $region77
    $region76: #{tpu_custom_call.1} parent=1 // pred_region
      %143 = dma.done [#allocation12], 12288
    $region77: #{tpu_custom_call.1} parent=1 // pred_fallthru
      _
    // Predicated region
    $region78: #{tpu_custom_call.1} parent=1 // pred_check
      _
    $region79: #{tpu_custom_call.1} parent=1 // pred_check_branch
      %145 = sbr.rel (0) target = $region81
    $region80: #{tpu_custom_call.1} parent=1 // pred_region
      %146 = dma.done [#allocation15], 4096
    $region81: #{tpu_custom_call.1} parent=1 // pred_fallthru
      _
    // Predicated region
    $region82: #{tpu_custom_call.1} parent=1 // pred_check
      _
    $region83: #{tpu_custom_call.1} parent=1 // pred_check_branch
      %148 = sbr.rel (0) target = $region85
    $region84: #{tpu_custom_call.1} parent=1 // pred_region
      %149 = dma.done [#allocation15], 16384
    $region85: #{tpu_custom_call.1} parent=1 // pred_fallthru
      _
    // Predicated region
    $region86: #{tpu_custom_call.1} parent=1 // pred_check
      _
    $region87: #{tpu_custom_call.1} parent=1 // pred_check_branch
      %151 = sbr.rel (0) target = $region89
    $region88: #{tpu_custom_call.1} parent=1 // pred_region
      %152 = dma.done [#allocation18], 16384
    $region89: #{tpu_custom_call.1} parent=1 // pred_fallthru
      _
    %p154 = scmp.eq.s32.totalorder 0, 0
    // Predicated region
    $region90: #{tpu_custom_call.1} parent=1 // pred_check
      %p155 = pneg %p154
    $region91: #{tpu_custom_call.1} parent=1 // pred_check_branch
      %157 = sbr.rel (%p155) target = $region93
    $region92: #{tpu_custom_call.1} parent=1 // pred_region
      %v158 = vld [vmem:[#allocation5] sm:$0xff]
      %v159 = vld [vmem:[#allocation5 + $0x8] sm:$0xff]
      %v160 = vld [vmem:[#allocation5 + $0x10] sm:$0xff]
      %v161 = vld [vmem:[#allocation5 + $0x18] sm:$0xff]
      %v162 = vld [vmem:[#allocation10] sm:$0x3]
      %v163 = vld [vmem:[#allocation11] sm:$0x3]
      %v164 = vadd.f32 %v158, %v159
      %165 = vadd.xlane.f32.xlu0 %v164
      %v166 = vpop.xlane.xlu0 %165
      %v167 = vadd.f32 %v160, %v161
      %168 = vadd.xlane.f32.xlu0 %v167
      %v169 = vpop.xlane.xlu0 %168
      %v170 = vrcp.pop 256.0
      %v171 = vmul.f32 %v166, %v170
      %v172 = vmul.f32 %v169, %v170
      %v173 = vsub.f32 %v158, %v171
      %v174 = vsub.f32 %v159, %v171
      %v175 = vsub.f32 %v160, %v172
      %v176 = vsub.f32 %v161, %v172
      %v177 = vmul.f32 %v173, %v173
      %v178 = vmul.f32 %v174, %v174
      %v179 = vmul.f32 %v175, %v175
      %v180 = vmul.f32 %v176, %v176
      %v181 = vadd.f32 %v177, %v178
      %182 = vadd.xlane.f32.xlu0 %v181
      %v183 = vpop.xlane.xlu0 %182
      %v184 = vadd.f32 %v179, %v180
      %185 = vadd.xlane.f32.xlu0 %v184
      %v186 = vpop.xlane.xlu0 %185
      %v187 = vmul.f32 %v183, %v170
      %v188 = vmul.f32 %v186, %v170
      %v189 = vadd.f32 %v187, 1e-12
      %v190 = vadd.f32 %v188, 1e-12
      %v191 = vrsqrt.pop %v189
      %v192 = vmul.f32 %v189, %v191
      %vm193 = vcmp.eq.f32.partialorder %v189, inf
      %v194 = vsel %vm193, %v189, %v192
      %vm195 = vcmp.eq.f32.partialorder %v189, 0.0
      %v196 = vand.u32 %v189, 2147483648
      %v197 = vsel %vm195, %v196, %v194
      %v198 = vrsqrt.pop %v190
      %v199 = vmul.f32 %v190, %v198
      %vm200 = vcmp.eq.f32.partialorder %v190, inf
      %v201 = vsel %vm200, %v190, %v199
      %vm202 = vcmp.eq.f32.partialorder %v190, 0.0
      %v203 = vand.u32 %v190, 2147483648
      %v204 = vsel %vm202, %v203, %v201
      %v205 = vrcp.pop %v197
      %v206 = vmul.f32 %v173, %v205
      %v207 = vmul.f32 %v174, %v205
      %v208 = vrcp.pop %v204
      %v209 = vmul.f32 %v175, %v208
      %v210 = vmul.f32 %v176, %v208
      %v212 = vlaneseq
      %v213 = vshrl.u32 %v212, 7
      %v214 = vsub.s32 0, %v213
      %v215 = vrot.slane %v162, %v214
      %v216 = vlaneseq
      %v217 = vshrl.u32 %v216, 7
      %v218 = vsub.s32 1, %v217
      %v219 = vrot.slane %v162, %v218
      %v222 = vmul.f32 %v215, %v206
      %v223 = vmul.f32 %v219, %v207
      %v224 = vmul.f32 %v215, %v209
      %v225 = vmul.f32 %v219, %v210
      %v227 = vlaneseq
      %v228 = vshrl.u32 %v227, 7
      %v229 = vsub.s32 0, %v228
      %v230 = vrot.slane %v163, %v229
      %v231 = vlaneseq
      %v232 = vshrl.u32 %v231, 7
      %v233 = vsub.s32 1, %v232
      %v234 = vrot.slane %v163, %v233
      %v237 = vadd.f32 %v222, %v230
      %v238 = vadd.f32 %v223, %v234
      %v239 = vadd.f32 %v224, %v230
      %v240 = vadd.f32 %v225, %v234
      %v241 = vpack.c.bf16 %v239, %v237
      %v242 = vpack.c.bf16 %v240, %v238
      %v243 = vld [vmem:[#allocation13] sm:$0xff]
      %v244 = vld [vmem:[#allocation13 + $0x8] sm:$0xff]
      %v245 = vld [vmem:[#allocation13 + $0x10] sm:$0xff]
      %v246 = vld [vmem:[#allocation13 + $0x18] sm:$0xff]
      %v247 = vld [vmem:[#allocation13 + $0x20] sm:$0xff]
      %v248 = vld [vmem:[#allocation13 + $0x28] sm:$0xff]
      %v249 = vld [vmem:[#allocation13 + $0x30] sm:$0xff]
      %v250 = vld [vmem:[#allocation13 + $0x38] sm:$0xff]
      %v251 = vld [vmem:[#allocation13 + $0x40] sm:$0xff]
      %v252 = vld [vmem:[#allocation13 + $0x48] sm:$0xff]
      %v253 = vld [vmem:[#allocation13 + $0x50] sm:$0xff]
      %v254 = vld [vmem:[#allocation13 + $0x58] sm:$0xff]
      %v255 = vld [vmem:[#allocation13 + $0x60] sm:$0xff]
      %v256 = vld [vmem:[#allocation13 + $0x68] sm:$0xff]
      %v257 = vld [vmem:[#allocation13 + $0x70] sm:$0xff]
      %v258 = vld [vmem:[#allocation13 + $0x78] sm:$0xff]
      %v259 = vld [vmem:[#allocation13 + $0x80] sm:$0xff]
      %v260 = vld [vmem:[#allocation13 + $0x88] sm:$0xff]
      %v261 = vld [vmem:[#allocation13 + $0x90] sm:$0xff]
      %v262 = vld [vmem:[#allocation13 + $0x98] sm:$0xff]
      %v263 = vld [vmem:[#allocation13 + $0xa0] sm:$0xff]
      %v264 = vld [vmem:[#allocation13 + $0xa8] sm:$0xff]
      %v265 = vld [vmem:[#allocation13 + $0xb0] sm:$0xff]
      %v266 = vld [vmem:[#allocation13 + $0xb8] sm:$0xff]
      %v267 = vld [vmem:[#allocation13 + $0xc0] sm:$0xff]
      %v268 = vld [vmem:[#allocation13 + $0xc8] sm:$0xff]
      %v269 = vld [vmem:[#allocation13 + $0xd0] sm:$0xff]
      %v270 = vld [vmem:[#allocation13 + $0xd8] sm:$0xff]
      %v271 = vld [vmem:[#allocation13 + $0xe0] sm:$0xff]
      %v272 = vld [vmem:[#allocation13 + $0xe8] sm:$0xff]
      %v273 = vld [vmem:[#allocation13 + $0xf0] sm:$0xff]
      %v274 = vld [vmem:[#allocation13 + $0xf8] sm:$0xff]
      %v275 = vld [vmem:[#allocation13 + $0x100] sm:$0xff]
      %v276 = vld [vmem:[#allocation13 + $0x108] sm:$0xff]
      %v277 = vld [vmem:[#allocation13 + $0x110] sm:$0xff]
      %v278 = vld [vmem:[#allocation13 + $0x118] sm:$0xff]
      %v279 = vld [vmem:[#allocation13 + $0x120] sm:$0xff]
      %v280 = vld [vmem:[#allocation13 + $0x128] sm:$0xff]
      %v281 = vld [vmem:[#allocation13 + $0x130] sm:$0xff]
      %v282 = vld [vmem:[#allocation13 + $0x138] sm:$0xff]
      %v283 = vld [vmem:[#allocation13 + $0x140] sm:$0xff]
      %v284 = vld [vmem:[#allocation13 + $0x148] sm:$0xff]
      %v285 = vld [vmem:[#allocation13 + $0x150] sm:$0xff]
      %v286 = vld [vmem:[#allocation13 + $0x158] sm:$0xff]
      %v287 = vld [vmem:[#allocation13 + $0x160] sm:$0xff]
      %v288 = vld [vmem:[#allocation13 + $0x168] sm:$0xff]
      %v289 = vld [vmem:[#allocation13 + $0x170] sm:$0xff]
      %v290 = vld [vmem:[#allocation13 + $0x178] sm:$0xff]
      %v291 = vld [vmem:[#allocation13 + $0x180] sm:$0xff]
      %v292 = vld [vmem:[#allocation13 + $0x188] sm:$0xff]
      %v293 = vld [vmem:[#allocation13 + $0x190] sm:$0xff]
      %v294 = vld [vmem:[#allocation13 + $0x198] sm:$0xff]
      %v295 = vld [vmem:[#allocation13 + $0x1a0] sm:$0xff]
      %v296 = vld [vmem:[#allocation13 + $0x1a8] sm:$0xff]
      %v297 = vld [vmem:[#allocation13 + $0x1b0] sm:$0xff]
      %v298 = vld [vmem:[#allocation13 + $0x1b8] sm:$0xff]
      %v299 = vld [vmem:[#allocation13 + $0x1c0] sm:$0xff]
      %v300 = vld [vmem:[#allocation13 + $0x1c8] sm:$0xff]
      %v301 = vld [vmem:[#allocation13 + $0x1d0] sm:$0xff]
      %v302 = vld [vmem:[#allocation13 + $0x1d8] sm:$0xff]
      %v303 = vld [vmem:[#allocation13 + $0x1e0] sm:$0xff]
      %v304 = vld [vmem:[#allocation13 + $0x1e8] sm:$0xff]
      %v305 = vld [vmem:[#allocation13 + $0x1f0] sm:$0xff]
      %v306 = vld [vmem:[#allocation13 + $0x1f8] sm:$0xff]
      %v307 = vld [vmem:[#allocation13 + $0x200] sm:$0xff]
      %v308 = vld [vmem:[#allocation13 + $0x208] sm:$0xff]
      %v309 = vld [vmem:[#allocation13 + $0x210] sm:$0xff]
      %v310 = vld [vmem:[#allocation13 + $0x218] sm:$0xff]
      %v311 = vld [vmem:[#allocation13 + $0x220] sm:$0xff]
      %v312 = vld [vmem:[#allocation13 + $0x228] sm:$0xff]
      %v313 = vld [vmem:[#allocation13 + $0x230] sm:$0xff]
      %v314 = vld [vmem:[#allocation13 + $0x238] sm:$0xff]
      %v315 = vld [vmem:[#allocation13 + $0x240] sm:$0xff]
      %v316 = vld [vmem:[#allocation13 + $0x248] sm:$0xff]
      %v317 = vld [vmem:[#allocation13 + $0x250] sm:$0xff]
      %v318 = vld [vmem:[#allocation13 + $0x258] sm:$0xff]
      %v319 = vld [vmem:[#allocation13 + $0x260] sm:$0xff]
      %v320 = vld [vmem:[#allocation13 + $0x268] sm:$0xff]
      %v321 = vld [vmem:[#allocation13 + $0x270] sm:$0xff]
      %v322 = vld [vmem:[#allocation13 + $0x278] sm:$0xff]
      %v323 = vld [vmem:[#allocation13 + $0x280] sm:$0xff]
      %v324 = vld [vmem:[#allocation13 + $0x288] sm:$0xff]
      %v325 = vld [vmem:[#allocation13 + $0x290] sm:$0xff]
      %v326 = vld [vmem:[#allocation13 + $0x298] sm:$0xff]
      %v327 = vld [vmem:[#allocation13 + $0x2a0] sm:$0xff]
      %v328 = vld [vmem:[#allocation13 + $0x2a8] sm:$0xff]
      %v329 = vld [vmem:[#allocation13 + $0x2b0] sm:$0xff]
      %v330 = vld [vmem:[#allocation13 + $0x2b8] sm:$0xff]
      %v331 = vld [vmem:[#allocation13 + $0x2c0] sm:$0xff]
      %v332 = vld [vmem:[#allocation13 + $0x2c8] sm:$0xff]
      %v333 = vld [vmem:[#allocation13 + $0x2d0] sm:$0xff]
      %v334 = vld [vmem:[#allocation13 + $0x2d8] sm:$0xff]
      %v335 = vld [vmem:[#allocation13 + $0x2e0] sm:$0xff]
      %v336 = vld [vmem:[#allocation13 + $0x2e8] sm:$0xff]
      %v337 = vld [vmem:[#allocation13 + $0x2f0] sm:$0xff]
      %v338 = vld [vmem:[#allocation13 + $0x2f8] sm:$0xff]
      %v339 = vld [vmem:[%s5] sm:$0x3f]
      %v341 = vlaneseq
      %v342 = vshrl.u32 %v341, 7
      %v343 = vsub.s32 0, %v342
      %v344 = vrot.slane %v339, %v343
      %v345 = vlaneseq
      %v346 = vshrl.u32 %v345, 7
      %v347 = vsub.s32 1, %v346
      %v348 = vrot.slane %v339, %v347
      %v349 = vlaneseq
      %v350 = vshrl.u32 %v349, 7
      %v351 = vsub.s32 2, %v350
      %v352 = vrot.slane %v339, %v351
      %v353 = vlaneseq
      %v354 = vshrl.u32 %v353, 7
      %v355 = vsub.s32 3, %v354
      %v356 = vrot.slane %v339, %v355
      %v357 = vlaneseq
      %v358 = vshrl.u32 %v357, 7
      %v359 = vsub.s32 4, %v358
      %v360 = vrot.slane %v339, %v359
      %v361 = vlaneseq
      %v362 = vshrl.u32 %v361, 7
      %v363 = vsub.s32 5, %v362
      %v364 = vrot.slane %v339, %v363
      %v467 = vunpack.c.l.b16 %v243
      %v468 = vunpack.c.h.b16 %v243
      %v469 = vunpack.c.l.b16 %v244
      %v470 = vunpack.c.h.b16 %v244
      %v471 = vunpack.c.l.b16 %v245
      %v472 = vunpack.c.h.b16 %v245
      %v473 = vunpack.c.l.b16 %v246
      %v474 = vunpack.c.h.b16 %v246
      %v475 = vunpack.c.l.b16 %v247
      %v476 = vunpack.c.h.b16 %v247
      %v477 = vunpack.c.l.b16 %v248
      %v478 = vunpack.c.h.b16 %v248
      %v479 = vunpack.c.l.b16 %v249
      %v480 = vunpack.c.h.b16 %v249
      %v481 = vunpack.c.l.b16 %v250
      %v482 = vunpack.c.h.b16 %v250
      %v483 = vunpack.c.l.b16 %v251
      %v484 = vunpack.c.h.b16 %v251
      %v485 = vunpack.c.l.b16 %v252
      %v486 = vunpack.c.h.b16 %v252
      %v487 = vunpack.c.l.b16 %v253
      %v488 = vunpack.c.h.b16 %v253
      %v489 = vunpack.c.l.b16 %v254
      %v490 = vunpack.c.h.b16 %v254
      %v491 = vunpack.c.l.b16 %v255
      %v492 = vunpack.c.h.b16 %v255
      %v493 = vunpack.c.l.b16 %v256
      %v494 = vunpack.c.h.b16 %v256
      %v495 = vunpack.c.l.b16 %v257
      %v496 = vunpack.c.h.b16 %v257
      %v497 = vunpack.c.l.b16 %v258
      %v498 = vunpack.c.h.b16 %v258
      %v499 = vunpack.c.l.b16 %v259
      %v500 = vunpack.c.h.b16 %v259
      %v501 = vunpack.c.l.b16 %v260
      %v502 = vunpack.c.h.b16 %v260
      %v503 = vunpack.c.l.b16 %v261
      %v504 = vunpack.c.h.b16 %v261
      %v505 = vunpack.c.l.b16 %v262
      %v506 = vunpack.c.h.b16 %v262
      %v507 = vunpack.c.l.b16 %v263
      %v508 = vunpack.c.h.b16 %v263
      %v509 = vunpack.c.l.b16 %v264
      %v510 = vunpack.c.h.b16 %v264
      %v511 = vunpack.c.l.b16 %v265
      %v512 = vunpack.c.h.b16 %v265
      %v513 = vunpack.c.l.b16 %v266
      %v514 = vunpack.c.h.b16 %v266
      %v515 = vunpack.c.l.b16 %v267
      %v516 = vunpack.c.h.b16 %v267
      %v517 = vunpack.c.l.b16 %v268
      %v518 = vunpack.c.h.b16 %v268
      %v519 = vunpack.c.l.b16 %v269
      %v520 = vunpack.c.h.b16 %v269
      %v521 = vunpack.c.l.b16 %v270
      %v522 = vunpack.c.h.b16 %v270
      %v523 = vunpack.c.l.b16 %v271
      %v524 = vunpack.c.h.b16 %v271
      %v525 = vunpack.c.l.b16 %v272
      %v526 = vunpack.c.h.b16 %v272
      %v527 = vunpack.c.l.b16 %v273
      %v528 = vunpack.c.h.b16 %v273
      %v529 = vunpack.c.l.b16 %v274
      %v530 = vunpack.c.h.b16 %v274
      %v531 = vunpack.c.l.b16 %v275
      %v532 = vunpack.c.h.b16 %v275
      %v533 = vunpack.c.l.b16 %v276
      %v534 = vunpack.c.h.b16 %v276
      %v535 = vunpack.c.l.b16 %v277
      %v536 = vunpack.c.h.b16 %v277
      %v537 = vunpack.c.l.b16 %v278
      %v538 = vunpack.c.h.b16 %v278
      %v539 = vunpack.c.l.b16 %v279
      %v540 = vunpack.c.h.b16 %v279
      %v541 = vunpack.c.l.b16 %v280
      %v542 = vunpack.c.h.b16 %v280
      %v543 = vunpack.c.l.b16 %v281
      %v544 = vunpack.c.h.b16 %v281
      %v545 = vunpack.c.l.b16 %v282
      %v546 = vunpack.c.h.b16 %v282
      %v547 = vunpack.c.l.b16 %v283
      %v548 = vunpack.c.h.b16 %v283
      %v549 = vunpack.c.l.b16 %v284
      %v550 = vunpack.c.h.b16 %v284
      %v551 = vunpack.c.l.b16 %v285
      %v552 = vunpack.c.h.b16 %v285
      %v553 = vunpack.c.l.b16 %v286
      %v554 = vunpack.c.h.b16 %v286
      %v555 = vunpack.c.l.b16 %v287
      %v556 = vunpack.c.h.b16 %v287
      %v557 = vunpack.c.l.b16 %v288
      %v558 = vunpack.c.h.b16 %v288
      %v559 = vunpack.c.l.b16 %v289
      %v560 = vunpack.c.h.b16 %v289
      %v561 = vunpack.c.l.b16 %v290
      %v562 = vunpack.c.h.b16 %v290
      %v563 = vunpack.c.l.b16 %v291
      %v564 = vunpack.c.h.b16 %v291
      %v565 = vunpack.c.l.b16 %v292
      %v566 = vunpack.c.h.b16 %v292
      %v567 = vunpack.c.l.b16 %v293
      %v568 = vunpack.c.h.b16 %v293
      %v569 = vunpack.c.l.b16 %v294
      %v570 = vunpack.c.h.b16 %v294
      %v571 = vunpack.c.l.b16 %v295
      %v572 = vunpack.c.h.b16 %v295
      %v573 = vunpack.c.l.b16 %v296
      %v574 = vunpack.c.h.b16 %v296
      %v575 = vunpack.c.l.b16 %v297
      %v576 = vunpack.c.h.b16 %v297
      %v577 = vunpack.c.l.b16 %v298
      %v578 = vunpack.c.h.b16 %v298
      %v579 = vunpack.c.l.b16 %v299
      %v580 = vunpack.c.h.b16 %v299
      %v581 = vunpack.c.l.b16 %v300
      %v582 = vunpack.c.h.b16 %v300
      %v583 = vunpack.c.l.b16 %v301
      %v584 = vunpack.c.h.b16 %v301
      %v585 = vunpack.c.l.b16 %v302
      %v586 = vunpack.c.h.b16 %v302
      %v587 = vunpack.c.l.b16 %v303
      %v588 = vunpack.c.h.b16 %v303
      %v589 = vunpack.c.l.b16 %v304
      %v590 = vunpack.c.h.b16 %v304
      %v591 = vunpack.c.l.b16 %v305
      %v592 = vunpack.c.h.b16 %v305
      %v593 = vunpack.c.l.b16 %v306
      %v594 = vunpack.c.h.b16 %v306
      %v595 = vunpack.c.l.b16 %v307
      %v596 = vunpack.c.h.b16 %v307
      %v597 = vunpack.c.l.b16 %v308
      %v598 = vunpack.c.h.b16 %v308
      %v599 = vunpack.c.l.b16 %v309
      %v600 = vunpack.c.h.b16 %v309
      %v601 = vunpack.c.l.b16 %v310
      %v602 = vunpack.c.h.b16 %v310
      %v603 = vunpack.c.l.b16 %v311
      %v604 = vunpack.c.h.b16 %v311
      %v605 = vunpack.c.l.b16 %v312
      %v606 = vunpack.c.h.b16 %v312
      %v607 = vunpack.c.l.b16 %v313
      %v608 = vunpack.c.h.b16 %v313
      %v609 = vunpack.c.l.b16 %v314
      %v610 = vunpack.c.h.b16 %v314
      %v611 = vunpack.c.l.b16 %v315
      %v612 = vunpack.c.h.b16 %v315
      %v613 = vunpack.c.l.b16 %v316
      %v614 = vunpack.c.h.b16 %v316
      %v615 = vunpack.c.l.b16 %v317
      %v616 = vunpack.c.h.b16 %v317
      %v617 = vunpack.c.l.b16 %v318
      %v618 = vunpack.c.h.b16 %v318
      %v619 = vunpack.c.l.b16 %v319
      %v620 = vunpack.c.h.b16 %v319
      %v621 = vunpack.c.l.b16 %v320
      %v622 = vunpack.c.h.b16 %v320
      %v623 = vunpack.c.l.b16 %v321
      %v624 = vunpack.c.h.b16 %v321
      %v625 = vunpack.c.l.b16 %v322
      %v626 = vunpack.c.h.b16 %v322
      %v627 = vunpack.c.l.b16 %v323
      %v628 = vunpack.c.h.b16 %v323
      %v629 = vunpack.c.l.b16 %v324
      %v630 = vunpack.c.h.b16 %v324
      %v631 = vunpack.c.l.b16 %v325
      %v632 = vunpack.c.h.b16 %v325
      %v633 = vunpack.c.l.b16 %v326
      %v634 = vunpack.c.h.b16 %v326
      %v635 = vunpack.c.l.b16 %v327
      %v636 = vunpack.c.h.b16 %v327
      %v637 = vunpack.c.l.b16 %v328
      %v638 = vunpack.c.h.b16 %v328
      %v639 = vunpack.c.l.b16 %v329
      %v640 = vunpack.c.h.b16 %v329
      %v641 = vunpack.c.l.b16 %v330
      %v642 = vunpack.c.h.b16 %v330
      %v643 = vunpack.c.l.b16 %v331
      %v644 = vunpack.c.h.b16 %v331
      %v645 = vunpack.c.l.b16 %v332
      %v646 = vunpack.c.h.b16 %v332
      %v647 = vunpack.c.l.b16 %v333
      %v648 = vunpack.c.h.b16 %v333
      %v649 = vunpack.c.l.b16 %v334
      %v650 = vunpack.c.h.b16 %v334
      %v651 = vunpack.c.l.b16 %v335
      %v652 = vunpack.c.h.b16 %v335
      %v653 = vunpack.c.l.b16 %v336
      %v654 = vunpack.c.h.b16 %v336
      %v655 = vunpack.c.l.b16 %v337
      %v656 = vunpack.c.h.b16 %v337
      %v657 = vunpack.c.l.b16 %v338
      %v658 = vunpack.c.h.b16 %v338
      %v659 = vpack.c.b16 %v473, %v467
      %v660 = vpack.c.b16 %v474, %v468
      %v661 = vpack.c.b16 %v475, %v469
      %v662 = vpack.c.b16 %v476, %v470
      %v663 = vpack.c.b16 %v477, %v471
      %v664 = vpack.c.b16 %v478, %v472
      %v665 = vpack.c.b16 %v485, %v479
      %v666 = vpack.c.b16 %v486, %v480
      %v667 = vpack.c.b16 %v487, %v481
      %v668 = vpack.c.b16 %v488, %v482
      %v669 = vpack.c.b16 %v489, %v483
      %v670 = vpack.c.b16 %v490, %v484
      %v671 = vpack.c.b16 %v497, %v491
      %v672 = vpack.c.b16 %v498, %v492
      %v673 = vpack.c.b16 %v499, %v493
      %v674 = vpack.c.b16 %v500, %v494
      %v675 = vpack.c.b16 %v501, %v495
      %v676 = vpack.c.b16 %v502, %v496
      %v677 = vpack.c.b16 %v509, %v503
      %v678 = vpack.c.b16 %v510, %v504
      %v679 = vpack.c.b16 %v511, %v505
      %v680 = vpack.c.b16 %v512, %v506
      %v681 = vpack.c.b16 %v513, %v507
      %v682 = vpack.c.b16 %v514, %v508
      %v683 = vpack.c.b16 %v521, %v515
      %v684 = vpack.c.b16 %v522, %v516
      %v685 = vpack.c.b16 %v523, %v517
      %v686 = vpack.c.b16 %v524, %v518
      %v687 = vpack.c.b16 %v525, %v519
      %v688 = vpack.c.b16 %v526, %v520
      %v689 = vpack.c.b16 %v533, %v527
      %v690 = vpack.c.b16 %v534, %v528
      %v691 = vpack.c.b16 %v535, %v529
      %v692 = vpack.c.b16 %v536, %v530
      %v693 = vpack.c.b16 %v537, %v531
      %v694 = vpack.c.b16 %v538, %v532
      %v695 = vpack.c.b16 %v545, %v539
      %v696 = vpack.c.b16 %v546, %v540
      %v697 = vpack.c.b16 %v547, %v541
      %v698 = vpack.c.b16 %v548, %v542
      %v699 = vpack.c.b16 %v549, %v543
      %v700 = vpack.c.b16 %v550, %v544
      %v701 = vpack.c.b16 %v557, %v551
      %v702 = vpack.c.b16 %v558, %v552
      %v703 = vpack.c.b16 %v559, %v553
      %v704 = vpack.c.b16 %v560, %v554
      %v705 = vpack.c.b16 %v561, %v555
      %v706 = vpack.c.b16 %v562, %v556
      %v707 = vpack.c.b16 %v569, %v563
      %v708 = vpack.c.b16 %v570, %v564
      %v709 = vpack.c.b16 %v571, %v565
      %v710 = vpack.c.b16 %v572, %v566
      %v711 = vpack.c.b16 %v573, %v567
      %v712 = vpack.c.b16 %v574, %v568
      %v713 = vpack.c.b16 %v581, %v575
      %v714 = vpack.c.b16 %v582, %v576
      %v715 = vpack.c.b16 %v583, %v577
      %v716 = vpack.c.b16 %v584, %v578
      %v717 = vpack.c.b16 %v585, %v579
      %v718 = vpack.c.b16 %v586, %v580
      %v719 = vpack.c.b16 %v593, %v587
      %v720 = vpack.c.b16 %v594, %v588
      %v721 = vpack.c.b16 %v595, %v589
      %v722 = vpack.c.b16 %v596, %v590
      %v723 = vpack.c.b16 %v597, %v591
      %v724 = vpack.c.b16 %v598, %v592
      %v725 = vpack.c.b16 %v605, %v599
      %v726 = vpack.c.b16 %v606, %v600
      %v727 = vpack.c.b16 %v607, %v601
      %v728 = vpack.c.b16 %v608, %v602
      %v729 = vpack.c.b16 %v609, %v603
      %v730 = vpack.c.b16 %v610, %v604
      %v731 = vpack.c.b16 %v617, %v611
      %v732 = vpack.c.b16 %v618, %v612
      %v733 = vpack.c.b16 %v619, %v613
      %v734 = vpack.c.b16 %v620, %v614
      %v735 = vpack.c.b16 %v621, %v615
      %v736 = vpack.c.b16 %v622, %v616
      %v737 = vpack.c.b16 %v629, %v623
      %v738 = vpack.c.b16 %v630, %v624
      %v739 = vpack.c.b16 %v631, %v625
      %v740 = vpack.c.b16 %v632, %v626
      %v741 = vpack.c.b16 %v633, %v627
      %v742 = vpack.c.b16 %v634, %v628
      %v743 = vpack.c.b16 %v641, %v635
      %v744 = vpack.c.b16 %v642, %v636
      %v745 = vpack.c.b16 %v643, %v637
      %v746 = vpack.c.b16 %v644, %v638
      %v747 = vpack.c.b16 %v645, %v639
      %v748 = vpack.c.b16 %v646, %v640
      %v749 = vpack.c.b16 %v653, %v647
      %v750 = vpack.c.b16 %v654, %v648
      %v751 = vpack.c.b16 %v655, %v649
      %v752 = vpack.c.b16 %v656, %v650
      %v753 = vpack.c.b16 %v657, %v651
      %v754 = vpack.c.b16 %v658, %v652
      %851 = vmatprep.subr.bf16.mxu0 %v660
      %852 = vmatpush1.bf16.msra.mxu0 %v659
      %853 = vmatprep.subr.bf16.mxu0 %v666
      %854 = vmatpush1.bf16.msra.mxu0 %v665
      %855 = vmatprep.subr.bf16.mxu0 %v672
      %856 = vmatpush1.bf16.msra.mxu0 %v671
      %857 = vmatprep.subr.bf16.mxu0 %v678
      %858 = vmatpush1.bf16.msra.mxu0 %v677
      %859 = vmatprep.subr.bf16.mxu0 %v684
      %860 = vmatpush1.bf16.msra.mxu0 %v683
      %861 = vmatprep.subr.bf16.mxu0 %v690
      %862 = vmatpush1.bf16.msra.mxu0 %v689
      %863 = vmatprep.subr.bf16.mxu0 %v696
      %864 = vmatpush1.bf16.msra.mxu0 %v695
      %865 = vmatprep.subr.bf16.mxu0 %v702
      %866 = vmatpush1.bf16.msra.mxu0 %v701
      %867 = vmatprep.subr.bf16.mxu0 %v708
      %868 = vmatpush1.bf16.msra.mxu0 %v707
      %869 = vmatprep.subr.bf16.mxu0 %v714
      %870 = vmatpush1.bf16.msra.mxu0 %v713
      %871 = vmatprep.subr.bf16.mxu0 %v720
      %872 = vmatpush1.bf16.msra.mxu0 %v719
      %873 = vmatprep.subr.bf16.mxu0 %v726
      %874 = vmatpush1.bf16.msra.mxu0 %v725
      %875 = vmatprep.subr.bf16.mxu0 %v732
      %876 = vmatpush1.bf16.msra.mxu0 %v731
      %877 = vmatprep.subr.bf16.mxu0 %v738
      %878 = vmatpush1.bf16.msra.mxu0 %v737
      %879 = vmatprep.subr.bf16.mxu0 %v744
      %880 = vmatpush1.bf16.msra.mxu0 %v743
      %881 = vmatprep.subr.bf16.mxu0 %v750
      %882 = vmatpush1.bf16.msra.mxu0 %v749
      %883 = vmatprep.mubr.bf16.mxu0 %v242
      %884 = vmatmul.mubr.bf16.gmra.mrb[0].mxu0 %v241
      %v885 = vpop.f32.mrb[0].mxu0
      %v886 = vadd.f32 %v344, %v885
      %v887 = vpop.f32.mrb[0].mxu0
      %v888 = vadd.f32 %v348, %v887
      %v889 = vpop.f32.mrb[0].mxu0
      %v890 = vadd.f32 %v344, %v889
      %v891 = vpop.f32.mrb[0].mxu0
      %v892 = vadd.f32 %v348, %v891
      %893 = vdwg.mxu0
      %894 = vmatprep.subr.bf16.mxu0 %v662
      %895 = vmatpush1.bf16.msra.mxu0 %v661
      %896 = vmatprep.subr.bf16.mxu0 %v668
      %897 = vmatpush1.bf16.msra.mxu0 %v667
      %898 = vmatprep.subr.bf16.mxu0 %v674
      %899 = vmatpush1.bf16.msra.mxu0 %v673
      %900 = vmatprep.subr.bf16.mxu0 %v680
      %901 = vmatpush1.bf16.msra.mxu0 %v679
      %902 = vmatprep.subr.bf16.mxu0 %v686
      %903 = vmatpush1.bf16.msra.mxu0 %v685
      %904 = vmatprep.subr.bf16.mxu0 %v692
      %905 = vmatpush1.bf16.msra.mxu0 %v691
      %906 = vmatprep.subr.bf16.mxu0 %v698
      %907 = vmatpush1.bf16.msra.mxu0 %v697
      %908 = vmatprep.subr.bf16.mxu0 %v704
      %909 = vmatpush1.bf16.msra.mxu0 %v703
      %910 = vmatprep.subr.bf16.mxu0 %v710
      %911 = vmatpush1.bf16.msra.mxu0 %v709
      %912 = vmatprep.subr.bf16.mxu0 %v716
      %913 = vmatpush1.bf16.msra.mxu0 %v715
      %914 = vmatprep.subr.bf16.mxu0 %v722
      %915 = vmatpush1.bf16.msra.mxu0 %v721
      %916 = vmatprep.subr.bf16.mxu0 %v728
      %917 = vmatpush1.bf16.msra.mxu0 %v727
      %918 = vmatprep.subr.bf16.mxu0 %v734
      %919 = vmatpush1.bf16.msra.mxu0 %v733
      %920 = vmatprep.subr.bf16.mxu0 %v740
      %921 = vmatpush1.bf16.msra.mxu0 %v739
      %922 = vmatprep.subr.bf16.mxu0 %v746
      %923 = vmatpush1.bf16.msra.mxu0 %v745
      %924 = vmatprep.subr.bf16.mxu0 %v752
      %925 = vmatpush1.bf16.msra.mxu0 %v751
      %926 = vmatprep.mubr.bf16.mxu0 %v242
      %927 = vmatmul.mubr.bf16.gmra.mrb[0].mxu0 %v241
      %v928 = vpop.f32.mrb[0].mxu0
      %v929 = vadd.f32 %v352, %v928
      %v930 = vpop.f32.mrb[0].mxu0
      %v931 = vadd.f32 %v356, %v930
      %v932 = vpop.f32.mrb[0].mxu0
      %v933 = vadd.f32 %v352, %v932
      %v934 = vpop.f32.mrb[0].mxu0
      %v935 = vadd.f32 %v356, %v934
      %936 = vdwg.mxu0
      %937 = vmatprep.subr.bf16.mxu0 %v664
      %938 = vmatpush1.bf16.msra.mxu0 %v663
      %939 = vmatprep.subr.bf16.mxu0 %v670
      %940 = vmatpush1.bf16.msra.mxu0 %v669
      %941 = vmatprep.subr.bf16.mxu0 %v676
      %942 = vmatpush1.bf16.msra.mxu0 %v675
      %943 = vmatprep.subr.bf16.mxu0 %v682
      %944 = vmatpush1.bf16.msra.mxu0 %v681
      %945 = vmatprep.subr.bf16.mxu0 %v688
      %946 = vmatpush1.bf16.msra.mxu0 %v687
      %947 = vmatprep.subr.bf16.mxu0 %v694
      %948 = vmatpush1.bf16.msra.mxu0 %v693
      %949 = vmatprep.subr.bf16.mxu0 %v700
      %950 = vmatpush1.bf16.msra.mxu0 %v699
      %951 = vmatprep.subr.bf16.mxu0 %v706
      %952 = vmatpush1.bf16.msra.mxu0 %v705
      %953 = vmatprep.subr.bf16.mxu0 %v712
      %954 = vmatpush1.bf16.msra.mxu0 %v711
      %955 = vmatprep.subr.bf16.mxu0 %v718
      %956 = vmatpush1.bf16.msra.mxu0 %v717
      %957 = vmatprep.subr.bf16.mxu0 %v724
      %958 = vmatpush1.bf16.msra.mxu0 %v723
      %959 = vmatprep.subr.bf16.mxu0 %v730
      %960 = vmatpush1.bf16.msra.mxu0 %v729
      %961 = vmatprep.subr.bf16.mxu0 %v736
      %962 = vmatpush1.bf16.msra.mxu0 %v735
      %963 = vmatprep.subr.bf16.mxu0 %v742
      %964 = vmatpush1.bf16.msra.mxu0 %v741
      %965 = vmatprep.subr.bf16.mxu0 %v748
      %966 = vmatpush1.bf16.msra.mxu0 %v747
      %967 = vmatprep.subr.bf16.mxu0 %v754
      %968 = vmatpush1.bf16.msra.mxu0 %v753
      %969 = vmatprep.mubr.bf16.mxu0 %v242
      %970 = vmatmul.mubr.bf16.gmra.mrb[0].mxu0 %v241
      %v971 = vpop.f32.mrb[0].mxu0
      %v972 = vadd.f32 %v360, %v971
      %v973 = vpop.f32.mrb[0].mxu0
      %v974 = vadd.f32 %v364, %v973
      %v975 = vpop.f32.mrb[0].mxu0
      %v976 = vadd.f32 %v360, %v975
      %v977 = vpop.f32.mrb[0].mxu0
      %v978 = vadd.f32 %v364, %v977
      %979 = vdwg.mxu0
      %v980 = vmul.f32 %v886, 0.088388346
      %v981 = vmul.f32 %v888, 0.088388346
      %v982 = vmul.f32 %v890, 0.088388346
      %v983 = vmul.f32 %v892, 0.088388346
      %v984 = vcombine.high %v980, 0.0
      %v986 = vunpack.c.l.s4 1983009808
      %v987 = vunpack.c.0.s8 %v986
      %v988 = vlaneseq
      %v989 = vshrl.u32 %v988, 7
      %v990 = vsub.s32 %v987, %v989
      %v991 = vrot.slane %v980, %v990
      %v993 = vunpack.c.l.s4 1983009808
      %v994 = vunpack.c.0.s8 %v993
      %v995 = vlaneseq
      %v996 = vshrl.u32 %v995, 7
      %v997 = vsub.s32 %v994, %v996
      %v998 = vrot.slane %v984, %v997
      %v999 = vcombine.high %v981, 0.0
      %v1001 = vunpack.c.l.s4 1983009808
      %v1002 = vunpack.c.0.s8 %v1001
      %v1003 = vlaneseq
      %v1004 = vshrl.u32 %v1003, 7
      %v1005 = vsub.s32 %v1002, %v1004
      %v1006 = vrot.slane %v981, %v1005
      %v1008 = vunpack.c.l.s4 1983009808
      %v1009 = vunpack.c.0.s8 %v1008
      %v1010 = vlaneseq
      %v1011 = vshrl.u32 %v1010, 7
      %v1012 = vsub.s32 %v1009, %v1011
      %v1013 = vrot.slane %v999, %v1012
      %v1014 = vcombine.low %v991, %v1006
      %v1015 = vcombine.high %v991, %v1006
      %v1017 = vunpack.c.l.s4 1934713408
      %v1018 = vunpack.c.0.s8 %v1017
      %v1019 = vlaneseq
      %v1020 = vshrl.u32 %v1019, 7
      %v1021 = vsub.s32 %v1018, %v1020
      %v1022 = vrot.slane %v1014, %v1021
      %v1024 = vunpack.c.l.s4 1934713408
      %v1025 = vunpack.c.0.s8 %v1024
      %v1026 = vlaneseq
      %v1027 = vshrl.u32 %v1026, 7
      %v1028 = vsub.s32 %v1025, %v1027
      %v1029 = vrot.slane %v1015, %v1028
      %v1030 = vcombine.low %v998, %v1013
      %v1031 = vcombine.high %v998, %v1013
      %v1033 = vunpack.c.l.s4 1934713408
      %v1034 = vunpack.c.0.s8 %v1033
      %v1035 = vlaneseq
      %v1036 = vshrl.u32 %v1035, 7
      %v1037 = vsub.s32 %v1034, %v1036
      %v1038 = vrot.slane %v1030, %v1037
      %v1040 = vunpack.c.l.s4 1934713408
      %v1041 = vunpack.c.0.s8 %v1040
      %v1042 = vlaneseq
      %v1043 = vshrl.u32 %v1042, 7
      %v1044 = vsub.s32 %v1041, %v1043
      %v1045 = vrot.slane %v1031, %v1044
      %v1046 = vcombine.high %v1022, 0.0
      %v1047 = vcombine.high %v1029, 0.0
      %v1048 = vcombine.high %v1038, 0.0
      %v1049 = vcombine.high %v1045, 0.0
      %v1050 = vcombine.high %v982, 0.0
      %v1052 = vunpack.c.l.s4 1983009808
      %v1053 = vunpack.c.0.s8 %v1052
      %v1054 = vlaneseq
      %v1055 = vshrl.u32 %v1054, 7
      %v1056 = vsub.s32 %v1053, %v1055
      %v1057 = vrot.slane %v982, %v1056
      %v1059 = vunpack.c.l.s4 1983009808
      %v1060 = vunpack.c.0.s8 %v1059
      %v1061 = vlaneseq
      %v1062 = vshrl.u32 %v1061, 7
      %v1063 = vsub.s32 %v1060, %v1062
      %v1064 = vrot.slane %v1050, %v1063
      %v1065 = vcombine.high %v983, 0.0
      %v1067 = vunpack.c.l.s4 1983009808
      %v1068 = vunpack.c.0.s8 %v1067
      %v1069 = vlaneseq
      %v1070 = vshrl.u32 %v1069, 7
      %v1071 = vsub.s32 %v1068, %v1070
      %v1072 = vrot.slane %v983, %v1071
      %v1074 = vunpack.c.l.s4 1983009808
      %v1075 = vunpack.c.0.s8 %v1074
      %v1076 = vlaneseq
      %v1077 = vshrl.u32 %v1076, 7
      %v1078 = vsub.s32 %v1075, %v1077
      %v1079 = vrot.slane %v1065, %v1078
      %v1080 = vcombine.low %v1057, %v1072
      %v1081 = vcombine.high %v1057, %v1072
      %v1083 = vunpack.c.l.s4 1934713408
      %v1084 = vunpack.c.0.s8 %v1083
      %v1085 = vlaneseq
      %v1086 = vshrl.u32 %v1085, 7
      %v1087 = vsub.s32 %v1084, %v1086
      %v1088 = vrot.slane %v1080, %v1087
      %v1090 = vunpack.c.l.s4 1934713408
      %v1091 = vunpack.c.0.s8 %v1090
      %v1092 = vlaneseq
      %v1093 = vshrl.u32 %v1092, 7
      %v1094 = vsub.s32 %v1091, %v1093
      %v1095 = vrot.slane %v1081, %v1094
      %v1096 = vcombine.low %v1064, %v1079
      %v1097 = vcombine.high %v1064, %v1079
      %v1099 = vunpack.c.l.s4 1934713408
      %v1100 = vunpack.c.0.s8 %v1099
      %v1101 = vlaneseq
      %v1102 = vshrl.u32 %v1101, 7
      %v1103 = vsub.s32 %v1100, %v1102
      %v1104 = vrot.slane %v1096, %v1103
      %v1106 = vunpack.c.l.s4 1934713408
      %v1107 = vunpack.c.0.s8 %v1106
      %v1108 = vlaneseq
      %v1109 = vshrl.u32 %v1108, 7
      %v1110 = vsub.s32 %v1107, %v1109
      %v1111 = vrot.slane %v1097, %v1110
      %v1112 = vcombine.high %v1088, 0.0
      %v1113 = vcombine.high %v1095, 0.0
      %v1114 = vcombine.high %v1104, 0.0
      %v1115 = vcombine.high %v1111, 0.0
      %v1116 = vcombine.low %v1022, %v1029
      %v1118 = vunpack.c.l.s4 1983009808
      %v1119 = vunpack.c.0.s8 %v1118
      %v1120 = vlaneseq
      %v1121 = vshrl.u32 %v1120, 7
      %v1122 = vsub.s32 %v1119, %v1121
      %v1123 = vrot.slane %v1116, %v1122
      %v1124 = vcombine.low %v1046, %v1047
      %v1126 = vunpack.c.l.s4 1983009808
      %v1127 = vunpack.c.0.s8 %v1126
      %v1128 = vlaneseq
      %v1129 = vshrl.u32 %v1128, 7
      %v1130 = vsub.s32 %v1127, %v1129
      %v1131 = vrot.slane %v1124, %v1130
      %v1132 = vcombine.low %v1038, %v1045
      %v1134 = vunpack.c.l.s4 1983009808
      %v1135 = vunpack.c.0.s8 %v1134
      %v1136 = vlaneseq
      %v1137 = vshrl.u32 %v1136, 7
      %v1138 = vsub.s32 %v1135, %v1137
      %v1139 = vrot.slane %v1132, %v1138
      %v1140 = vcombine.low %v1048, %v1049
      %v1142 = vunpack.c.l.s4 1983009808
      %v1143 = vunpack.c.0.s8 %v1142
      %v1144 = vlaneseq
      %v1145 = vshrl.u32 %v1144, 7
      %v1146 = vsub.s32 %v1143, %v1145
      %v1147 = vrot.slane %v1140, %v1146
      %v1148 = vcombine.low %v1123, %v1131
      %v1150 = vunpack.c.l.s4 1934713408
      %v1151 = vunpack.c.0.s8 %v1150
      %v1152 = vlaneseq
      %v1153 = vshrl.u32 %v1152, 7
      %v1154 = vsub.s32 %v1151, %v1153
      %v1155 = vrot.slane %v1148, %v1154
      %v1156 = vcombine.low %v1139, %v1147
      %v1158 = vunpack.c.l.s4 1934713408
      %v1159 = vunpack.c.0.s8 %v1158
      %v1160 = vlaneseq
      %v1161 = vshrl.u32 %v1160, 7
      %v1162 = vsub.s32 %v1159, %v1161
      %v1163 = vrot.slane %v1156, %v1162
      %v1164 = vcombine.low %v1155, %v1163
      %v1165 = vcombine.high %v1155, %v1163
      %v1166 = vcombine.low %v1088, %v1095
      %v1168 = vunpack.c.l.s4 1983009808
      %v1169 = vunpack.c.0.s8 %v1168
      %v1170 = vlaneseq
      %v1171 = vshrl.u32 %v1170, 7
      %v1172 = vsub.s32 %v1169, %v1171
      %v1173 = vrot.slane %v1166, %v1172
      %v1174 = vcombine.low %v1112, %v1113
      %v1176 = vunpack.c.l.s4 1983009808
      %v1177 = vunpack.c.0.s8 %v1176
      %v1178 = vlaneseq
      %v1179 = vshrl.u32 %v1178, 7
      %v1180 = vsub.s32 %v1177, %v1179
      %v1181 = vrot.slane %v1174, %v1180
      %v1182 = vcombine.low %v1104, %v1111
      %v1184 = vunpack.c.l.s4 1983009808
      %v1185 = vunpack.c.0.s8 %v1184
      %v1186 = vlaneseq
      %v1187 = vshrl.u32 %v1186, 7
      %v1188 = vsub.s32 %v1185, %v1187
      %v1189 = vrot.slane %v1182, %v1188
      %v1190 = vcombine.low %v1114, %v1115
      %v1192 = vunpack.c.l.s4 1983009808
      %v1193 = vunpack.c.0.s8 %v1192
      %v1194 = vlaneseq
      %v1195 = vshrl.u32 %v1194, 7
      %v1196 = vsub.s32 %v1193, %v1195
      %v1197 = vrot.slane %v1190, %v1196
      %v1198 = vcombine.low %v1173, %v1181
      %v1200 = vunpack.c.l.s4 1934713408
      %v1201 = vunpack.c.0.s8 %v1200
      %v1202 = vlaneseq
      %v1203 = vshrl.u32 %v1202, 7
      %v1204 = vsub.s32 %v1201, %v1203
      %v1205 = vrot.slane %v1198, %v1204
      %v1206 = vcombine.low %v1189, %v1197
      %v1208 = vunpack.c.l.s4 1934713408
      %v1209 = vunpack.c.0.s8 %v1208
      %v1210 = vlaneseq
      %v1211 = vshrl.u32 %v1210, 7
      %v1212 = vsub.s32 %v1209, %v1211
      %v1213 = vrot.slane %v1206, %v1212
      %v1214 = vcombine.low %v1205, %v1213
      %v1215 = vcombine.high %v1205, %v1213
      %v1216 = vpack.c.bf16 %v1214, %v1164
      %v1217 = vpack.c.bf16 %v1215, %v1165
      %v1218 = vcombine.high %v929, 0.0
      %v1220 = vunpack.c.l.s4 1983009808
      %v1221 = vunpack.c.0.s8 %v1220
      %v1222 = vlaneseq
      %v1223 = vshrl.u32 %v1222, 7
      %v1224 = vsub.s32 %v1221, %v1223
      %v1225 = vrot.slane %v929, %v1224
      %v1227 = vunpack.c.l.s4 1983009808
      %v1228 = vunpack.c.0.s8 %v1227
      %v1229 = vlaneseq
      %v1230 = vshrl.u32 %v1229, 7
      %v1231 = vsub.s32 %v1228, %v1230
      %v1232 = vrot.slane %v1218, %v1231
      %v1233 = vcombine.high %v931, 0.0
      %v1235 = vunpack.c.l.s4 1983009808
      %v1236 = vunpack.c.0.s8 %v1235
      %v1237 = vlaneseq
      %v1238 = vshrl.u32 %v1237, 7
      %v1239 = vsub.s32 %v1236, %v1238
      %v1240 = vrot.slane %v931, %v1239
      %v1242 = vunpack.c.l.s4 1983009808
      %v1243 = vunpack.c.0.s8 %v1242
      %v1244 = vlaneseq
      %v1245 = vshrl.u32 %v1244, 7
      %v1246 = vsub.s32 %v1243, %v1245
      %v1247 = vrot.slane %v1233, %v1246
      %v1248 = vcombine.low %v1225, %v1240
      %v1249 = vcombine.high %v1225, %v1240
      %v1251 = vunpack.c.l.s4 1934713408
      %v1252 = vunpack.c.0.s8 %v1251
      %v1253 = vlaneseq
      %v1254 = vshrl.u32 %v1253, 7
      %v1255 = vsub.s32 %v1252, %v1254
      %v1256 = vrot.slane %v1248, %v1255
      %v1258 = vunpack.c.l.s4 1934713408
      %v1259 = vunpack.c.0.s8 %v1258
      %v1260 = vlaneseq
      %v1261 = vshrl.u32 %v1260, 7
      %v1262 = vsub.s32 %v1259, %v1261
      %v1263 = vrot.slane %v1249, %v1262
      %v1264 = vcombine.low %v1232, %v1247
      %v1265 = vcombine.high %v1232, %v1247
      %v1267 = vunpack.c.l.s4 1934713408
      %v1268 = vunpack.c.0.s8 %v1267
      %v1269 = vlaneseq
      %v1270 = vshrl.u32 %v1269, 7
      %v1271 = vsub.s32 %v1268, %v1270
      %v1272 = vrot.slane %v1264, %v1271
      %v1274 = vunpack.c.l.s4 1934713408
      %v1275 = vunpack.c.0.s8 %v1274
      %v1276 = vlaneseq
      %v1277 = vshrl.u32 %v1276, 7
      %v1278 = vsub.s32 %v1275, %v1277
      %v1279 = vrot.slane %v1265, %v1278
      %v1280 = vcombine.high %v1256, 0.0
      %v1281 = vcombine.high %v1263, 0.0
      %v1282 = vcombine.high %v1272, 0.0
      %v1283 = vcombine.high %v1279, 0.0
      %v1284 = vcombine.high %v933, 0.0
      %v1286 = vunpack.c.l.s4 1983009808
      %v1287 = vunpack.c.0.s8 %v1286
      %v1288 = vlaneseq
      %v1289 = vshrl.u32 %v1288, 7
      %v1290 = vsub.s32 %v1287, %v1289
      %v1291 = vrot.slane %v933, %v1290
      %v1293 = vunpack.c.l.s4 1983009808
      %v1294 = vunpack.c.0.s8 %v1293
      %v1295 = vlaneseq
      %v1296 = vshrl.u32 %v1295, 7
      %v1297 = vsub.s32 %v1294, %v1296
      %v1298 = vrot.slane %v1284, %v1297
      %v1299 = vcombine.high %v935, 0.0
      %v1301 = vunpack.c.l.s4 1983009808
      %v1302 = vunpack.c.0.s8 %v1301
      %v1303 = vlaneseq
      %v1304 = vshrl.u32 %v1303, 7
      %v1305 = vsub.s32 %v1302, %v1304
      %v1306 = vrot.slane %v935, %v1305
      %v1308 = vunpack.c.l.s4 1983009808
      %v1309 = vunpack.c.0.s8 %v1308
      %v1310 = vlaneseq
      %v1311 = vshrl.u32 %v1310, 7
      %v1312 = vsub.s32 %v1309, %v1311
      %v1313 = vrot.slane %v1299, %v1312
      %v1314 = vcombine.low %v1291, %v1306
      %v1315 = vcombine.high %v1291, %v1306
      %v1317 = vunpack.c.l.s4 1934713408
      %v1318 = vunpack.c.0.s8 %v1317
      %v1319 = vlaneseq
      %v1320 = vshrl.u32 %v1319, 7
      %v1321 = vsub.s32 %v1318, %v1320
      %v1322 = vrot.slane %v1314, %v1321
      %v1324 = vunpack.c.l.s4 1934713408
      %v1325 = vunpack.c.0.s8 %v1324
      %v1326 = vlaneseq
      %v1327 = vshrl.u32 %v1326, 7
      %v1328 = vsub.s32 %v1325, %v1327
      %v1329 = vrot.slane %v1315, %v1328
      %v1330 = vcombine.low %v1298, %v1313
      %v1331 = vcombine.high %v1298, %v1313
      %v1333 = vunpack.c.l.s4 1934713408
      %v1334 = vunpack.c.0.s8 %v1333
      %v1335 = vlaneseq
      %v1336 = vshrl.u32 %v1335, 7
      %v1337 = vsub.s32 %v1334, %v1336
      %v1338 = vrot.slane %v1330, %v1337
      %v1340 = vunpack.c.l.s4 1934713408
      %v1341 = vunpack.c.0.s8 %v1340
      %v1342 = vlaneseq
      %v1343 = vshrl.u32 %v1342, 7
      %v1344 = vsub.s32 %v1341, %v1343
      %v1345 = vrot.slane %v1331, %v1344
      %v1346 = vcombine.high %v1322, 0.0
      %v1347 = vcombine.high %v1329, 0.0
      %v1348 = vcombine.high %v1338, 0.0
      %v1349 = vcombine.high %v1345, 0.0
      %v1350 = vcombine.low %v1256, %v1263
      %v1352 = vunpack.c.l.s4 1983009808
      %v1353 = vunpack.c.0.s8 %v1352
      %v1354 = vlaneseq
      %v1355 = vshrl.u32 %v1354, 7
      %v1356 = vsub.s32 %v1353, %v1355
      %v1357 = vrot.slane %v1350, %v1356
      %v1358 = vcombine.low %v1280, %v1281
      %v1360 = vunpack.c.l.s4 1983009808
      %v1361 = vunpack.c.0.s8 %v1360
      %v1362 = vlaneseq
      %v1363 = vshrl.u32 %v1362, 7
      %v1364 = vsub.s32 %v1361, %v1363
      %v1365 = vrot.slane %v1358, %v1364
      %v1366 = vcombine.low %v1272, %v1279
      %v1368 = vunpack.c.l.s4 1983009808
      %v1369 = vunpack.c.0.s8 %v1368
      %v1370 = vlaneseq
      %v1371 = vshrl.u32 %v1370, 7
      %v1372 = vsub.s32 %v1369, %v1371
      %v1373 = vrot.slane %v1366, %v1372
      %v1374 = vcombine.low %v1282, %v1283
      %v1376 = vunpack.c.l.s4 1983009808
      %v1377 = vunpack.c.0.s8 %v1376
      %v1378 = vlaneseq
      %v1379 = vshrl.u32 %v1378, 7
      %v1380 = vsub.s32 %v1377, %v1379
      %v1381 = vrot.slane %v1374, %v1380
      %v1382 = vcombine.low %v1357, %v1365
      %v1384 = vunpack.c.l.s4 1934713408
      %v1385 = vunpack.c.0.s8 %v1384
      %v1386 = vlaneseq
      %v1387 = vshrl.u32 %v1386, 7
      %v1388 = vsub.s32 %v1385, %v1387
      %v1389 = vrot.slane %v1382, %v1388
      %v1390 = vcombine.low %v1373, %v1381
      %v1392 = vunpack.c.l.s4 1934713408
      %v1393 = vunpack.c.0.s8 %v1392
      %v1394 = vlaneseq
      %v1395 = vshrl.u32 %v1394, 7
      %v1396 = vsub.s32 %v1393, %v1395
      %v1397 = vrot.slane %v1390, %v1396
      %v1398 = vcombine.low %v1389, %v1397
      %v1399 = vcombine.high %v1389, %v1397
      %v1400 = vcombine.low %v1322, %v1329
      %v1402 = vunpack.c.l.s4 1983009808
      %v1403 = vunpack.c.0.s8 %v1402
      %v1404 = vlaneseq
      %v1405 = vshrl.u32 %v1404, 7
      %v1406 = vsub.s32 %v1403, %v1405
      %v1407 = vrot.slane %v1400, %v1406
      %v1408 = vcombine.low %v1346, %v1347
      %v1410 = vunpack.c.l.s4 1983009808
      %v1411 = vunpack.c.0.s8 %v1410
      %v1412 = vlaneseq
      %v1413 = vshrl.u32 %v1412, 7
      %v1414 = vsub.s32 %v1411, %v1413
      %v1415 = vrot.slane %v1408, %v1414
      %v1416 = vcombine.low %v1338, %v1345
      %v1418 = vunpack.c.l.s4 1983009808
      %v1419 = vunpack.c.0.s8 %v1418
      %v1420 = vlaneseq
      %v1421 = vshrl.u32 %v1420, 7
      %v1422 = vsub.s32 %v1419, %v1421
      %v1423 = vrot.slane %v1416, %v1422
      %v1424 = vcombine.low %v1348, %v1349
      %v1426 = vunpack.c.l.s4 1983009808
      %v1427 = vunpack.c.0.s8 %v1426
      %v1428 = vlaneseq
      %v1429 = vshrl.u32 %v1428, 7
      %v1430 = vsub.s32 %v1427, %v1429
      %v1431 = vrot.slane %v1424, %v1430
      %v1432 = vcombine.low %v1407, %v1415
      %v1434 = vunpack.c.l.s4 1934713408
      %v1435 = vunpack.c.0.s8 %v1434
      %v1436 = vlaneseq
      %v1437 = vshrl.u32 %v1436, 7
      %v1438 = vsub.s32 %v1435, %v1437
      %v1439 = vrot.slane %v1432, %v1438
      %v1440 = vcombine.low %v1423, %v1431
      %v1442 = vunpack.c.l.s4 1934713408
      %v1443 = vunpack.c.0.s8 %v1442
      %v1444 = vlaneseq
      %v1445 = vshrl.u32 %v1444, 7
      %v1446 = vsub.s32 %v1443, %v1445
      %v1447 = vrot.slane %v1440, %v1446
      %v1448 = vcombine.low %v1439, %v1447
      %v1449 = vcombine.high %v1439, %v1447
      %v1450 = vpack.c.bf16 %v1448, %v1398
      %v1451 = vpack.c.bf16 %v1449, %v1399
      %v1452 = vcombine.high %v972, 0.0
      %v1454 = vunpack.c.l.s4 1983009808
      %v1455 = vunpack.c.0.s8 %v1454
      %v1456 = vlaneseq
      %v1457 = vshrl.u32 %v1456, 7
      %v1458 = vsub.s32 %v1455, %v1457
      %v1459 = vrot.slane %v972, %v1458
      %v1461 = vunpack.c.l.s4 1983009808
      %v1462 = vunpack.c.0.s8 %v1461
      %v1463 = vlaneseq
      %v1464 = vshrl.u32 %v1463, 7
      %v1465 = vsub.s32 %v1462, %v1464
      %v1466 = vrot.slane %v1452, %v1465
      %v1467 = vcombine.high %v974, 0.0
      %v1469 = vunpack.c.l.s4 1983009808
      %v1470 = vunpack.c.0.s8 %v1469
      %v1471 = vlaneseq
      %v1472 = vshrl.u32 %v1471, 7
      %v1473 = vsub.s32 %v1470, %v1472
      %v1474 = vrot.slane %v974, %v1473
      %v1476 = vunpack.c.l.s4 1983009808
      %v1477 = vunpack.c.0.s8 %v1476
      %v1478 = vlaneseq
      %v1479 = vshrl.u32 %v1478, 7
      %v1480 = vsub.s32 %v1477, %v1479
      %v1481 = vrot.slane %v1467, %v1480
      %v1482 = vcombine.low %v1459, %v1474
      %v1483 = vcombine.high %v1459, %v1474
      %v1485 = vunpack.c.l.s4 1934713408
      %v1486 = vunpack.c.0.s8 %v1485
      %v1487 = vlaneseq
      %v1488 = vshrl.u32 %v1487, 7
      %v1489 = vsub.s32 %v1486, %v1488
      %v1490 = vrot.slane %v1482, %v1489
      %v1492 = vunpack.c.l.s4 1934713408
      %v1493 = vunpack.c.0.s8 %v1492
      %v1494 = vlaneseq
      %v1495 = vshrl.u32 %v1494, 7
      %v1496 = vsub.s32 %v1493, %v1495
      %v1497 = vrot.slane %v1483, %v1496
      %v1498 = vcombine.low %v1466, %v1481
      %v1499 = vcombine.high %v1466, %v1481
      %v1501 = vunpack.c.l.s4 1934713408
      %v1502 = vunpack.c.0.s8 %v1501
      %v1503 = vlaneseq
      %v1504 = vshrl.u32 %v1503, 7
      %v1505 = vsub.s32 %v1502, %v1504
      %v1506 = vrot.slane %v1498, %v1505
      %v1508 = vunpack.c.l.s4 1934713408
      %v1509 = vunpack.c.0.s8 %v1508
      %v1510 = vlaneseq
      %v1511 = vshrl.u32 %v1510, 7
      %v1512 = vsub.s32 %v1509, %v1511
      %v1513 = vrot.slane %v1499, %v1512
      %v1514 = vcombine.high %v1490, 0.0
      %v1515 = vcombine.high %v1497, 0.0
      %v1516 = vcombine.high %v1506, 0.0
      %v1517 = vcombine.high %v1513, 0.0
      %v1518 = vcombine.high %v976, 0.0
      %v1520 = vunpack.c.l.s4 1983009808
      %v1521 = vunpack.c.0.s8 %v1520
      %v1522 = vlaneseq
      %v1523 = vshrl.u32 %v1522, 7
      %v1524 = vsub.s32 %v1521, %v1523
      %v1525 = vrot.slane %v976, %v1524
      %v1527 = vunpack.c.l.s4 1983009808
      %v1528 = vunpack.c.0.s8 %v1527
      %v1529 = vlaneseq
      %v1530 = vshrl.u32 %v1529, 7
      %v1531 = vsub.s32 %v1528, %v1530
      %v1532 = vrot.slane %v1518, %v1531
      %v1533 = vcombine.high %v978, 0.0
      %v1535 = vunpack.c.l.s4 1983009808
      %v1536 = vunpack.c.0.s8 %v1535
      %v1537 = vlaneseq
      %v1538 = vshrl.u32 %v1537, 7
      %v1539 = vsub.s32 %v1536, %v1538
      %v1540 = vrot.slane %v978, %v1539
      %v1542 = vunpack.c.l.s4 1983009808
      %v1543 = vunpack.c.0.s8 %v1542
      %v1544 = vlaneseq
      %v1545 = vshrl.u32 %v1544, 7
      %v1546 = vsub.s32 %v1543, %v1545
      %v1547 = vrot.slane %v1533, %v1546
      %v1548 = vcombine.low %v1525, %v1540
      %v1549 = vcombine.high %v1525, %v1540
      %v1551 = vunpack.c.l.s4 1934713408
      %v1552 = vunpack.c.0.s8 %v1551
      %v1553 = vlaneseq
      %v1554 = vshrl.u32 %v1553, 7
      %v1555 = vsub.s32 %v1552, %v1554
      %v1556 = vrot.slane %v1548, %v1555
      %v1558 = vunpack.c.l.s4 1934713408
      %v1559 = vunpack.c.0.s8 %v1558
      %v1560 = vlaneseq
      %v1561 = vshrl.u32 %v1560, 7
      %v1562 = vsub.s32 %v1559, %v1561
      %v1563 = vrot.slane %v1549, %v1562
      %v1564 = vcombine.low %v1532, %v1547
      %v1565 = vcombine.high %v1532, %v1547
      %v1567 = vunpack.c.l.s4 1934713408
      %v1568 = vunpack.c.0.s8 %v1567
      %v1569 = vlaneseq
      %v1570 = vshrl.u32 %v1569, 7
      %v1571 = vsub.s32 %v1568, %v1570
      %v1572 = vrot.slane %v1564, %v1571
      %v1574 = vunpack.c.l.s4 1934713408
      %v1575 = vunpack.c.0.s8 %v1574
      %v1576 = vlaneseq
      %v1577 = vshrl.u32 %v1576, 7
      %v1578 = vsub.s32 %v1575, %v1577
      %v1579 = vrot.slane %v1565, %v1578
      %v1580 = vcombine.high %v1556, 0.0
      %v1581 = vcombine.high %v1563, 0.0
      %v1582 = vcombine.high %v1572, 0.0
      %v1583 = vcombine.high %v1579, 0.0
      %v1584 = vcombine.low %v1490, %v1497
      %v1586 = vunpack.c.l.s4 1983009808
      %v1587 = vunpack.c.0.s8 %v1586
      %v1588 = vlaneseq
      %v1589 = vshrl.u32 %v1588, 7
      %v1590 = vsub.s32 %v1587, %v1589
      %v1591 = vrot.slane %v1584, %v1590
      %v1592 = vcombine.low %v1514, %v1515
      %v1594 = vunpack.c.l.s4 1983009808
      %v1595 = vunpack.c.0.s8 %v1594
      %v1596 = vlaneseq
      %v1597 = vshrl.u32 %v1596, 7
      %v1598 = vsub.s32 %v1595, %v1597
      %v1599 = vrot.slane %v1592, %v1598
      %v1600 = vcombine.low %v1506, %v1513
      %v1602 = vunpack.c.l.s4 1983009808
      %v1603 = vunpack.c.0.s8 %v1602
      %v1604 = vlaneseq
      %v1605 = vshrl.u32 %v1604, 7
      %v1606 = vsub.s32 %v1603, %v1605
      %v1607 = vrot.slane %v1600, %v1606
      %v1608 = vcombine.low %v1516, %v1517
      %v1610 = vunpack.c.l.s4 1983009808
      %v1611 = vunpack.c.0.s8 %v1610
      %v1612 = vlaneseq
      %v1613 = vshrl.u32 %v1612, 7
      %v1614 = vsub.s32 %v1611, %v1613
      %v1615 = vrot.slane %v1608, %v1614
      %v1616 = vcombine.low %v1591, %v1599
      %v1618 = vunpack.c.l.s4 1934713408
      %v1619 = vunpack.c.0.s8 %v1618
      %v1620 = vlaneseq
      %v1621 = vshrl.u32 %v1620, 7
      %v1622 = vsub.s32 %v1619, %v1621
      %v1623 = vrot.slane %v1616, %v1622
      %v1624 = vcombine.low %v1607, %v1615
      %v1626 = vunpack.c.l.s4 1934713408
      %v1627 = vunpack.c.0.s8 %v1626
      %v1628 = vlaneseq
      %v1629 = vshrl.u32 %v1628, 7
      %v1630 = vsub.s32 %v1627, %v1629
      %v1631 = vrot.slane %v1624, %v1630
      %v1632 = vcombine.low %v1623, %v1631
      %v1633 = vcombine.high %v1623, %v1631
      %v1634 = vcombine.low %v1556, %v1563
      %v1636 = vunpack.c.l.s4 1983009808
      %v1637 = vunpack.c.0.s8 %v1636
      %v1638 = vlaneseq
      %v1639 = vshrl.u32 %v1638, 7
      %v1640 = vsub.s32 %v1637, %v1639
      %v1641 = vrot.slane %v1634, %v1640
      %v1642 = vcombine.low %v1580, %v1581
      %v1644 = vunpack.c.l.s4 1983009808
      %v1645 = vunpack.c.0.s8 %v1644
      %v1646 = vlaneseq
      %v1647 = vshrl.u32 %v1646, 7
      %v1648 = vsub.s32 %v1645, %v1647
      %v1649 = vrot.slane %v1642, %v1648
      %v1650 = vcombine.low %v1572, %v1579
      %v1652 = vunpack.c.l.s4 1983009808
      %v1653 = vunpack.c.0.s8 %v1652
      %v1654 = vlaneseq
      %v1655 = vshrl.u32 %v1654, 7
      %v1656 = vsub.s32 %v1653, %v1655
      %v1657 = vrot.slane %v1650, %v1656
      %v1658 = vcombine.low %v1582, %v1583
      %v1660 = vunpack.c.l.s4 1983009808
      %v1661 = vunpack.c.0.s8 %v1660
      %v1662 = vlaneseq
      %v1663 = vshrl.u32 %v1662, 7
      %v1664 = vsub.s32 %v1661, %v1663
      %v1665 = vrot.slane %v1658, %v1664
      %v1666 = vcombine.low %v1641, %v1649
      %v1668 = vunpack.c.l.s4 1934713408
      %v1669 = vunpack.c.0.s8 %v1668
      %v1670 = vlaneseq
      %v1671 = vshrl.u32 %v1670, 7
      %v1672 = vsub.s32 %v1669, %v1671
      %v1673 = vrot.slane %v1666, %v1672
      %v1674 = vcombine.low %v1657, %v1665
      %v1676 = vunpack.c.l.s4 1934713408
      %v1677 = vunpack.c.0.s8 %v1676
      %v1678 = vlaneseq
      %v1679 = vshrl.u32 %v1678, 7
      %v1680 = vsub.s32 %v1677, %v1679
      %v1681 = vrot.slane %v1674, %v1680
      %v1682 = vcombine.low %v1673, %v1681
      %v1683 = vcombine.high %v1673, %v1681
      %v1684 = vpack.c.bf16 %v1682, %v1632
      %v1685 = vpack.c.bf16 %v1683, %v1633
      %v1686 = vld [vmem:[#allocation8] sm:$0xff]
      %v1687 = vld [vmem:[#allocation8 + $0x8] sm:$0xff]
      %1688 = vmatprep.subr.bf16.mxu0 0
      %1689 = vmatpush1.bf16.xpose.msra.mxu0 %v1450
      %1690 = vmatprep.subr.bf16.mxu0 0
      %1691 = vmatpush1.bf16.xpose.msra.mxu0 0
      %1692 = vmatprep.subr.bf16.mxu0 0
      %1693 = vmatpush1.bf16.xpose.msra.mxu0 0
      %1694 = vmatprep.subr.bf16.mxu0 0
      %1695 = vmatpush1.bf16.xpose.msra.mxu0 0
      %1696 = vmatprep.subr.bf16.mxu0 0
      %1697 = vmatpush1.bf16.xpose.msra.mxu0 0
      %1698 = vmatprep.subr.bf16.mxu0 0
      %1699 = vmatpush1.bf16.xpose.msra.mxu0 0
      %1700 = vmatprep.subr.bf16.mxu0 0
      %1701 = vmatpush1.bf16.xpose.msra.mxu0 0
      %1702 = vmatprep.subr.bf16.mxu0 0
      %1703 = vmatpush1.bf16.xpose.msra.mxu0 0
      %1704 = vmatprep.subr.bf16.mxu0 0
      %1705 = vmatpush1.bf16.xpose.msra.mxu0 0
      %1706 = vmatprep.subr.bf16.mxu0 0
      %1707 = vmatpush1.bf16.xpose.msra.mxu0 0
      %1708 = vmatprep.subr.bf16.mxu0 0
      %1709 = vmatpush1.bf16.xpose.msra.mxu0 0
      %1710 = vmatprep.subr.bf16.mxu0 0
      %1711 = vmatpush1.bf16.xpose.msra.mxu0 0
      %1712 = vmatprep.subr.bf16.mxu0 0
      %1713 = vmatpush1.bf16.xpose.msra.mxu0 0
      %1714 = vmatprep.subr.bf16.mxu0 0
      %1715 = vmatpush1.bf16.xpose.msra.mxu0 0
      %1716 = vmatprep.subr.bf16.mxu0 0
      %1717 = vmatpush1.bf16.xpose.msra.mxu0 0
      %1718 = vmatprep.subr.bf16.mxu0 0
      %1719 = vmatpush1.bf16.xpose.msra.mxu0 0
      %1720 = vmatprep.mubr.bf16.mxu0 0
      %1721 = vmatmul.mubr.bf16.gmra.mrb[0].mxu0 %v1216
      %v1722 = vpop.f32.mrb[0].mxu0
      %v1723 = vadd.f32 %v1686, %v1722
      %v1724 = vpop.f32.mrb[0].mxu0
      %v1725 = vpop.f32.mrb[0].mxu0
      %v1726 = vadd.f32 %v1687, %v1725
      %v1727 = vpop.f32.mrb[0].mxu0
      %1728 = vdwg.mxu0
      %1729 = vmatprep.subr.bf16.mxu0 0
      %1730 = vmatpush1.bf16.xpose.msra.mxu0 %v1451
      %1731 = vmatprep.subr.bf16.mxu0 0
      %1732 = vmatpush1.bf16.xpose.msra.mxu0 0
      %1733 = vmatprep.subr.bf16.mxu0 0
      %1734 = vmatpush1.bf16.xpose.msra.mxu0 0
      %1735 = vmatprep.subr.bf16.mxu0 0
      %1736 = vmatpush1.bf16.xpose.msra.mxu0 0
      %1737 = vmatprep.subr.bf16.mxu0 0
      %1738 = vmatpush1.bf16.xpose.msra.mxu0 0
      %1739 = vmatprep.subr.bf16.mxu0 0
      %1740 = vmatpush1.bf16.xpose.msra.mxu0 0
      %1741 = vmatprep.subr.bf16.mxu0 0
      %1742 = vmatpush1.bf16.xpose.msra.mxu0 0
      %1743 = vmatprep.subr.bf16.mxu0 0
      %1744 = vmatpush1.bf16.xpose.msra.mxu0 0
      %1745 = vmatprep.subr.bf16.mxu0 0
      %1746 = vmatpush1.bf16.xpose.msra.mxu0 0
      %1747 = vmatprep.subr.bf16.mxu0 0
      %1748 = vmatpush1.bf16.xpose.msra.mxu0 0
      %1749 = vmatprep.subr.bf16.mxu0 0
      %1750 = vmatpush1.bf16.xpose.msra.mxu0 0
      %1751 = vmatprep.subr.bf16.mxu0 0
      %1752 = vmatpush1.bf16.xpose.msra.mxu0 0
      %1753 = vmatprep.subr.bf16.mxu0 0
      %1754 = vmatpush1.bf16.xpose.msra.mxu0 0
      %1755 = vmatprep.subr.bf16.mxu0 0
      %1756 = vmatpush1.bf16.xpose.msra.mxu0 0
      %1757 = vmatprep.subr.bf16.mxu0 0
      %1758 = vmatpush1.bf16.xpose.msra.mxu0 0
      %1759 = vmatprep.subr.bf16.mxu0 0
      %1760 = vmatpush1.bf16.xpose.msra.mxu0 0
      %1761 = vmatprep.mubr.bf16.mxu0 0
      %1762 = vmatmul.mubr.bf16.gmra.mrb[0].mxu0 %v1217
      %v1763 = vpop.f32.mrb[0].mxu0
      %v1764 = vadd.f32 %v1686, %v1763
      %v1765 = vpop.f32.mrb[0].mxu0
      %v1766 = vpop.f32.mrb[0].mxu0
      %v1767 = vadd.f32 %v1687, %v1766
      %v1768 = vpop.f32.mrb[0].mxu0
      %1769 = vdwg.mxu0
      %vm1770 = vcmask 130048
      %v1771 = vsel %vm1770, %v1723, -inf
      %1772 = vmax.xlane.f32.xlu0 %v1771
      %v1773 = vpop.xlane.xlu0 %1772
      %v1774 = vsel %vm1770, %v1726, -inf
      %1775 = vmax.xlane.f32.xlu0 %v1774
      %v1776 = vpop.xlane.xlu0 %1775
      %v1777 = vsel %vm1770, %v1764, -inf
      %1778 = vmax.xlane.f32.xlu0 %v1777
      %v1779 = vpop.xlane.xlu0 %1778
      %v1780 = vsel %vm1770, %v1767, -inf
      %1781 = vmax.xlane.f32.xlu0 %v1780
      %v1782 = vpop.xlane.xlu0 %1781
      %v1783 = vsub.f32 %v1723, %v1773
      %v1784 = vsub.f32 %v1726, %v1776
      %v1785 = vsub.f32 %v1764, %v1779
      %v1786 = vsub.f32 %v1767, %v1782
      %v1787 = vmul.f32 %v1783, 1.442695
      %v1788 = vpow.pop %v1787
      %v1789 = vmul.f32 %v1784, 1.442695
      %v1790 = vpow.pop %v1789
      %v1791 = vmul.f32 %v1785, 1.442695
      %v1792 = vpow.pop %v1791
      %v1793 = vmul.f32 %v1786, 1.442695
      %v1794 = vpow.pop %v1793
      %v1795 = vsel %vm1770, %v1788, 0.0
      %1796 = vadd.xlane.f32.xlu0 %v1795
      %v1797 = vpop.xlane.xlu0 %1796
      %v1798 = vsel %vm1770, %v1790, 0.0
      %1799 = vadd.xlane.f32.xlu0 %v1798
      %v1800 = vpop.xlane.xlu0 %1799
      %v1801 = vsel %vm1770, %v1792, 0.0
      %1802 = vadd.xlane.f32.xlu0 %v1801
      %v1803 = vpop.xlane.xlu0 %1802
      %v1804 = vsel %vm1770, %v1794, 0.0
      %1805 = vadd.xlane.f32.xlu0 %v1804
      %v1806 = vpop.xlane.xlu0 %1805
      %v1807 = vrcp.pop %v1797
      %v1808 = vrcp.pop %v1800
      %v1809 = vrcp.pop %v1803
      %v1810 = vrcp.pop %v1806
      %v1811 = vmul.f32 %v1788, %v1807
      %v1812 = vmul.f32 %v1790, %v1808
      %v1813 = vmul.f32 %v1792, %v1809
      %v1814 = vmul.f32 %v1794, %v1810
      %v1815 = vpack.c.bf16 %v1812, %v1811
      %v1816 = vpack.c.bf16 %v1814, %v1813
      %v1818 = vsel %vm1770, %v1815, 0
      %1820 = vmatprep.subr.bf16.mxu0 0
      %1821 = vmatpush1.bf16.msra.mxu0 %v1684
      %1822 = vmatprep.subr.bf16.mxu0 0
      %1823 = vmatpush1.bf16.msra.mxu0 0
      %1824 = vmatprep.subr.bf16.mxu0 0
      %1825 = vmatpush1.bf16.msra.mxu0 0
      %1826 = vmatprep.subr.bf16.mxu0 0
      %1827 = vmatpush1.bf16.msra.mxu0 0
      %1828 = vmatprep.subr.bf16.mxu0 0
      %1829 = vmatpush1.bf16.msra.mxu0 0
      %1830 = vmatprep.subr.bf16.mxu0 0
      %1831 = vmatpush1.bf16.msra.mxu0 0
      %1832 = vmatprep.subr.bf16.mxu0 0
      %1833 = vmatpush1.bf16.msra.mxu0 0
      %1834 = vmatprep.subr.bf16.mxu0 0
      %1835 = vmatpush1.bf16.msra.mxu0 0
      %1836 = vmatprep.subr.bf16.mxu0 0
      %1837 = vmatpush1.bf16.msra.mxu0 0
      %1838 = vmatprep.subr.bf16.mxu0 0
      %1839 = vmatpush1.bf16.msra.mxu0 0
      %1840 = vmatprep.subr.bf16.mxu0 0
      %1841 = vmatpush1.bf16.msra.mxu0 0
      %1842 = vmatprep.subr.bf16.mxu0 0
      %1843 = vmatpush1.bf16.msra.mxu0 0
      %1844 = vmatprep.subr.bf16.mxu0 0
      %1845 = vmatpush1.bf16.msra.mxu0 0
      %1846 = vmatprep.subr.bf16.mxu0 0
      %1847 = vmatpush1.bf16.msra.mxu0 0
      %1848 = vmatprep.subr.bf16.mxu0 0
      %1849 = vmatpush1.bf16.msra.mxu0 0
      %1850 = vmatprep.subr.bf16.mxu0 0
      %1851 = vmatpush1.bf16.msra.mxu0 0
      %1852 = vmatprep.mubr.bf16.mxu0 0
      %1853 = vmatmul.mubr.bf16.gmra.mrb[0].mxu0 %v1818
      %v1854 = vpop.f32.mrb[0].mxu0
      %v1855 = vadd.f32 0.0, %v1854
      %v1856 = vpop.f32.mrb[0].mxu0
      %v1857 = vpop.f32.mrb[0].mxu0
      %v1858 = vadd.f32 0.0, %v1857
      %v1859 = vpop.f32.mrb[0].mxu0
      %1860 = vdwg.mxu0
      %v1862 = vsel %vm1770, %v1816, 0
      %1864 = vmatprep.subr.bf16.mxu0 0
      %1865 = vmatpush1.bf16.msra.mxu0 %v1685
      %1866 = vmatprep.subr.bf16.mxu0 0
      %1867 = vmatpush1.bf16.msra.mxu0 0
      %1868 = vmatprep.subr.bf16.mxu0 0
      %1869 = vmatpush1.bf16.msra.mxu0 0
      %1870 = vmatprep.subr.bf16.mxu0 0
      %1871 = vmatpush1.bf16.msra.mxu0 0
      %1872 = vmatprep.subr.bf16.mxu0 0
      %1873 = vmatpush1.bf16.msra.mxu0 0
      %1874 = vmatprep.subr.bf16.mxu0 0
      %1875 = vmatpush1.bf16.msra.mxu0 0
      %1876 = vmatprep.subr.bf16.mxu0 0
      %1877 = vmatpush1.bf16.msra.mxu0 0
      %1878 = vmatprep.subr.bf16.mxu0 0
      %1879 = vmatpush1.bf16.msra.mxu0 0
      %1880 = vmatprep.subr.bf16.mxu0 0
      %1881 = vmatpush1.bf16.msra.mxu0 0
      %1882 = vmatprep.subr.bf16.mxu0 0
      %1883 = vmatpush1.bf16.msra.mxu0 0
      %1884 = vmatprep.subr.bf16.mxu0 0
      %1885 = vmatpush1.bf16.msra.mxu0 0
      %1886 = vmatprep.subr.bf16.mxu0 0
      %1887 = vmatpush1.bf16.msra.mxu0 0
      %1888 = vmatprep.subr.bf16.mxu0 0
      %1889 = vmatpush1.bf16.msra.mxu0 0
      %1890 = vmatprep.subr.bf16.mxu0 0
      %1891 = vmatpush1.bf16.msra.mxu0 0
      %1892 = vmatprep.subr.bf16.mxu0 0
      %1893 = vmatpush1.bf16.msra.mxu0 0
      %1894 = vmatprep.subr.bf16.mxu0 0
      %1895 = vmatpush1.bf16.msra.mxu0 0
      %1896 = vmatprep.mubr.bf16.mxu0 0
      %1897 = vmatmul.mubr.bf16.gmra.mrb[0].mxu0 %v1862
      %v1898 = vpop.f32.mrb[0].mxu0
      %v1899 = vadd.f32 0.0, %v1898
      %v1900 = vpop.f32.mrb[0].mxu0
      %v1901 = vpop.f32.mrb[0].mxu0
      %v1902 = vadd.f32 0.0, %v1901
      %v1903 = vpop.f32.mrb[0].mxu0
      %1904 = vdwg.mxu0
      %v1905 = vcombine.high %v1855, 0.0
      %v1907 = vunpack.c.l.s4 1983009808
      %v1908 = vunpack.c.0.s8 %v1907
      %v1909 = vlaneseq
      %v1910 = vshrl.u32 %v1909, 7
      %v1911 = vsub.s32 %v1908, %v1910
      %v1912 = vrot.slane %v1855, %v1911
      %v1914 = vunpack.c.l.s4 1983009808
      %v1915 = vunpack.c.0.s8 %v1914
      %v1916 = vlaneseq
      %v1917 = vshrl.u32 %v1916, 7
      %v1918 = vsub.s32 %v1915, %v1917
      %v1919 = vrot.slane %v1905, %v1918
      %v1920 = vcombine.high %v1899, 0.0
      %v1922 = vunpack.c.l.s4 1983009808
      %v1923 = vunpack.c.0.s8 %v1922
      %v1924 = vlaneseq
      %v1925 = vshrl.u32 %v1924, 7
      %v1926 = vsub.s32 %v1923, %v1925
      %v1927 = vrot.slane %v1899, %v1926
      %v1929 = vunpack.c.l.s4 1983009808
      %v1930 = vunpack.c.0.s8 %v1929
      %v1931 = vlaneseq
      %v1932 = vshrl.u32 %v1931, 7
      %v1933 = vsub.s32 %v1930, %v1932
      %v1934 = vrot.slane %v1920, %v1933
      %v1935 = vcombine.low %v1912, %v1927
      %v1936 = vcombine.high %v1912, %v1927
      %v1938 = vunpack.c.l.s4 1934713408
      %v1939 = vunpack.c.0.s8 %v1938
      %v1940 = vlaneseq
      %v1941 = vshrl.u32 %v1940, 7
      %v1942 = vsub.s32 %v1939, %v1941
      %v1943 = vrot.slane %v1935, %v1942
      %v1945 = vunpack.c.l.s4 1934713408
      %v1946 = vunpack.c.0.s8 %v1945
      %v1947 = vlaneseq
      %v1948 = vshrl.u32 %v1947, 7
      %v1949 = vsub.s32 %v1946, %v1948
      %v1950 = vrot.slane %v1936, %v1949
      %v1951 = vcombine.low %v1919, %v1934
      %v1952 = vcombine.high %v1919, %v1934
      %v1954 = vunpack.c.l.s4 1934713408
      %v1955 = vunpack.c.0.s8 %v1954
      %v1956 = vlaneseq
      %v1957 = vshrl.u32 %v1956, 7
      %v1958 = vsub.s32 %v1955, %v1957
      %v1959 = vrot.slane %v1951, %v1958
      %v1961 = vunpack.c.l.s4 1934713408
      %v1962 = vunpack.c.0.s8 %v1961
      %v1963 = vlaneseq
      %v1964 = vshrl.u32 %v1963, 7
      %v1965 = vsub.s32 %v1962, %v1964
      %v1966 = vrot.slane %v1952, %v1965
      %v1967 = vcombine.high %v1943, 0.0
      %v1968 = vcombine.high %v1950, 0.0
      %v1969 = vcombine.high %v1959, 0.0
      %v1970 = vcombine.high %v1966, 0.0
      %v1971 = vcombine.high %v1858, 0.0
      %v1973 = vunpack.c.l.s4 1983009808
      %v1974 = vunpack.c.0.s8 %v1973
      %v1975 = vlaneseq
      %v1976 = vshrl.u32 %v1975, 7
      %v1977 = vsub.s32 %v1974, %v1976
      %v1978 = vrot.slane %v1858, %v1977
      %v1980 = vunpack.c.l.s4 1983009808
      %v1981 = vunpack.c.0.s8 %v1980
      %v1982 = vlaneseq
      %v1983 = vshrl.u32 %v1982, 7
      %v1984 = vsub.s32 %v1981, %v1983
      %v1985 = vrot.slane %v1971, %v1984
      %v1986 = vcombine.high %v1902, 0.0
      %v1988 = vunpack.c.l.s4 1983009808
      %v1989 = vunpack.c.0.s8 %v1988
      %v1990 = vlaneseq
      %v1991 = vshrl.u32 %v1990, 7
      %v1992 = vsub.s32 %v1989, %v1991
      %v1993 = vrot.slane %v1902, %v1992
      %v1995 = vunpack.c.l.s4 1983009808
      %v1996 = vunpack.c.0.s8 %v1995
      %v1997 = vlaneseq
      %v1998 = vshrl.u32 %v1997, 7
      %v1999 = vsub.s32 %v1996, %v1998
      %v2000 = vrot.slane %v1986, %v1999
      %v2001 = vcombine.low %v1978, %v1993
      %v2002 = vcombine.high %v1978, %v1993
      %v2004 = vunpack.c.l.s4 1934713408
      %v2005 = vunpack.c.0.s8 %v2004
      %v2006 = vlaneseq
      %v2007 = vshrl.u32 %v2006, 7
      %v2008 = vsub.s32 %v2005, %v2007
      %v2009 = vrot.slane %v2001, %v2008
      %v2011 = vunpack.c.l.s4 1934713408
      %v2012 = vunpack.c.0.s8 %v2011
      %v2013 = vlaneseq
      %v2014 = vshrl.u32 %v2013, 7
      %v2015 = vsub.s32 %v2012, %v2014
      %v2016 = vrot.slane %v2002, %v2015
      %v2017 = vcombine.low %v1985, %v2000
      %v2018 = vcombine.high %v1985, %v2000
      %v2020 = vunpack.c.l.s4 1934713408
      %v2021 = vunpack.c.0.s8 %v2020
      %v2022 = vlaneseq
      %v2023 = vshrl.u32 %v2022, 7
      %v2024 = vsub.s32 %v2021, %v2023
      %v2025 = vrot.slane %v2017, %v2024
      %v2027 = vunpack.c.l.s4 1934713408
      %v2028 = vunpack.c.0.s8 %v2027
      %v2029 = vlaneseq
      %v2030 = vshrl.u32 %v2029, 7
      %v2031 = vsub.s32 %v2028, %v2030
      %v2032 = vrot.slane %v2018, %v2031
      %v2033 = vcombine.high %v2009, 0.0
      %v2034 = vcombine.high %v2016, 0.0
      %v2035 = vcombine.high %v2025, 0.0
      %v2036 = vcombine.high %v2032, 0.0
      %v2037 = vcombine.low %v1943, %v1950
      %v2039 = vunpack.c.l.s4 1983009808
      %v2040 = vunpack.c.0.s8 %v2039
      %v2041 = vlaneseq
      %v2042 = vshrl.u32 %v2041, 7
      %v2043 = vsub.s32 %v2040, %v2042
      %v2044 = vrot.slane %v2037, %v2043
      %v2045 = vcombine.low %v1967, %v1968
      %v2047 = vunpack.c.l.s4 1983009808
      %v2048 = vunpack.c.0.s8 %v2047
      %v2049 = vlaneseq
      %v2050 = vshrl.u32 %v2049, 7
      %v2051 = vsub.s32 %v2048, %v2050
      %v2052 = vrot.slane %v2045, %v2051
      %v2053 = vcombine.low %v1959, %v1966
      %v2055 = vunpack.c.l.s4 1983009808
      %v2056 = vunpack.c.0.s8 %v2055
      %v2057 = vlaneseq
      %v2058 = vshrl.u32 %v2057, 7
      %v2059 = vsub.s32 %v2056, %v2058
      %v2060 = vrot.slane %v2053, %v2059
      %v2061 = vcombine.low %v1969, %v1970
      %v2063 = vunpack.c.l.s4 1983009808
      %v2064 = vunpack.c.0.s8 %v2063
      %v2065 = vlaneseq
      %v2066 = vshrl.u32 %v2065, 7
      %v2067 = vsub.s32 %v2064, %v2066
      %v2068 = vrot.slane %v2061, %v2067
      %v2069 = vcombine.low %v2044, %v2052
      %v2071 = vunpack.c.l.s4 1934713408
      %v2072 = vunpack.c.0.s8 %v2071
      %v2073 = vlaneseq
      %v2074 = vshrl.u32 %v2073, 7
      %v2075 = vsub.s32 %v2072, %v2074
      %v2076 = vrot.slane %v2069, %v2075
      %v2077 = vcombine.low %v2060, %v2068
      %v2079 = vunpack.c.l.s4 1934713408
      %v2080 = vunpack.c.0.s8 %v2079
      %v2081 = vlaneseq
      %v2082 = vshrl.u32 %v2081, 7
      %v2083 = vsub.s32 %v2080, %v2082
      %v2084 = vrot.slane %v2077, %v2083
      %v2085 = vcombine.low %v2076, %v2084
      %v2086 = vcombine.high %v2076, %v2084
      %v2087 = vcombine.low %v2009, %v2016
      %v2089 = vunpack.c.l.s4 1983009808
      %v2090 = vunpack.c.0.s8 %v2089
      %v2091 = vlaneseq
      %v2092 = vshrl.u32 %v2091, 7
      %v2093 = vsub.s32 %v2090, %v2092
      %v2094 = vrot.slane %v2087, %v2093
      %v2095 = vcombine.low %v2033, %v2034
      %v2097 = vunpack.c.l.s4 1983009808
      %v2098 = vunpack.c.0.s8 %v2097
      %v2099 = vlaneseq
      %v2100 = vshrl.u32 %v2099, 7
      %v2101 = vsub.s32 %v2098, %v2100
      %v2102 = vrot.slane %v2095, %v2101
      %v2103 = vcombine.low %v2025, %v2032
      %v2105 = vunpack.c.l.s4 1983009808
      %v2106 = vunpack.c.0.s8 %v2105
      %v2107 = vlaneseq
      %v2108 = vshrl.u32 %v2107, 7
      %v2109 = vsub.s32 %v2106, %v2108
      %v2110 = vrot.slane %v2103, %v2109
      %v2111 = vcombine.low %v2035, %v2036
      %v2113 = vunpack.c.l.s4 1983009808
      %v2114 = vunpack.c.0.s8 %v2113
      %v2115 = vlaneseq
      %v2116 = vshrl.u32 %v2115, 7
      %v2117 = vsub.s32 %v2114, %v2116
      %v2118 = vrot.slane %v2111, %v2117
      %v2119 = vcombine.low %v2094, %v2102
      %v2121 = vunpack.c.l.s4 1934713408
      %v2122 = vunpack.c.0.s8 %v2121
      %v2123 = vlaneseq
      %v2124 = vshrl.u32 %v2123, 7
      %v2125 = vsub.s32 %v2122, %v2124
      %v2126 = vrot.slane %v2119, %v2125
      %v2127 = vcombine.low %v2110, %v2118
      %v2129 = vunpack.c.l.s4 1934713408
      %v2130 = vunpack.c.0.s8 %v2129
      %v2131 = vlaneseq
      %v2132 = vshrl.u32 %v2131, 7
      %v2133 = vsub.s32 %v2130, %v2132
      %v2134 = vrot.slane %v2127, %v2133
      %v2135 = vcombine.low %v2126, %v2134
      %v2136 = vcombine.high %v2126, %v2134
      %v2137 = vpack.c.bf16 %v2135, %v2085
      %v2138 = vpack.c.bf16 %v2136, %v2086
      %v2139 = vld [vmem:[#allocation14] sm:$0xff]
      %v2140 = vld [vmem:[#allocation14 + $0x8] sm:$0xff]
      %v2141 = vld [vmem:[#allocation14 + $0x10] sm:$0xff]
      %v2142 = vld [vmem:[#allocation14 + $0x18] sm:$0xff]
      %v2143 = vld [vmem:[#allocation14 + $0x20] sm:$0xff]
      %v2144 = vld [vmem:[#allocation14 + $0x28] sm:$0xff]
      %v2145 = vld [vmem:[#allocation14 + $0x30] sm:$0xff]
      %v2146 = vld [vmem:[#allocation14 + $0x38] sm:$0xff]
      %v2147 = vld [vmem:[#allocation14 + $0x40] sm:$0xff]
      %v2148 = vld [vmem:[#allocation14 + $0x48] sm:$0xff]
      %v2149 = vld [vmem:[#allocation14 + $0x50] sm:$0xff]
      %v2150 = vld [vmem:[#allocation14 + $0x58] sm:$0xff]
      %v2151 = vld [vmem:[#allocation14 + $0x60] sm:$0xff]
      %v2152 = vld [vmem:[#allocation14 + $0x68] sm:$0xff]
      %v2153 = vld [vmem:[#allocation14 + $0x70] sm:$0xff]
      %v2154 = vld [vmem:[#allocation14 + $0x78] sm:$0xff]
      %v2155 = vld [vmem:[#allocation14 + $0x80] sm:$0xff]
      %v2156 = vld [vmem:[#allocation14 + $0x88] sm:$0xff]
      %v2157 = vld [vmem:[#allocation14 + $0x90] sm:$0xff]
      %v2158 = vld [vmem:[#allocation14 + $0x98] sm:$0xff]
      %v2159 = vld [vmem:[#allocation14 + $0xa0] sm:$0xff]
      %v2160 = vld [vmem:[#allocation14 + $0xa8] sm:$0xff]
      %v2161 = vld [vmem:[#allocation14 + $0xb0] sm:$0xff]
      %v2162 = vld [vmem:[#allocation14 + $0xb8] sm:$0xff]
      %v2163 = vld [vmem:[#allocation14 + $0xc0] sm:$0xff]
      %v2164 = vld [vmem:[#allocation14 + $0xc8] sm:$0xff]
      %v2165 = vld [vmem:[#allocation14 + $0xd0] sm:$0xff]
      %v2166 = vld [vmem:[#allocation14 + $0xd8] sm:$0xff]
      %v2167 = vld [vmem:[#allocation14 + $0xe0] sm:$0xff]
      %v2168 = vld [vmem:[#allocation14 + $0xe8] sm:$0xff]
      %v2169 = vld [vmem:[#allocation14 + $0xf0] sm:$0xff]
      %v2170 = vld [vmem:[#allocation14 + $0xf8] sm:$0xff]
      %v2171 = vld [vmem:[%s7] sm:$0x3]
      %v2173 = vlaneseq
      %v2174 = vshrl.u32 %v2173, 7
      %v2175 = vsub.s32 0, %v2174
      %v2176 = vrot.slane %v2171, %v2175
      %v2177 = vlaneseq
      %v2178 = vshrl.u32 %v2177, 7
      %v2179 = vsub.s32 1, %v2178
      %v2180 = vrot.slane %v2171, %v2179
      %v2215 = vunpack.c.l.b16 %v2139
      %v2216 = vunpack.c.h.b16 %v2139
      %v2217 = vunpack.c.l.b16 %v2140
      %v2218 = vunpack.c.h.b16 %v2140
      %v2219 = vunpack.c.l.b16 %v2141
      %v2220 = vunpack.c.h.b16 %v2141
      %v2221 = vunpack.c.l.b16 %v2142
      %v2222 = vunpack.c.h.b16 %v2142
      %v2223 = vunpack.c.l.b16 %v2143
      %v2224 = vunpack.c.h.b16 %v2143
      %v2225 = vunpack.c.l.b16 %v2144
      %v2226 = vunpack.c.h.b16 %v2144
      %v2227 = vunpack.c.l.b16 %v2145
      %v2228 = vunpack.c.h.b16 %v2145
      %v2229 = vunpack.c.l.b16 %v2146
      %v2230 = vunpack.c.h.b16 %v2146
      %v2231 = vunpack.c.l.b16 %v2147
      %v2232 = vunpack.c.h.b16 %v2147
      %v2233 = vunpack.c.l.b16 %v2148
      %v2234 = vunpack.c.h.b16 %v2148
      %v2235 = vunpack.c.l.b16 %v2149
      %v2236 = vunpack.c.h.b16 %v2149
      %v2237 = vunpack.c.l.b16 %v2150
      %v2238 = vunpack.c.h.b16 %v2150
      %v2239 = vunpack.c.l.b16 %v2151
      %v2240 = vunpack.c.h.b16 %v2151
      %v2241 = vunpack.c.l.b16 %v2152
      %v2242 = vunpack.c.h.b16 %v2152
      %v2243 = vunpack.c.l.b16 %v2153
      %v2244 = vunpack.c.h.b16 %v2153
      %v2245 = vunpack.c.l.b16 %v2154
      %v2246 = vunpack.c.h.b16 %v2154
      %v2247 = vunpack.c.l.b16 %v2155
      %v2248 = vunpack.c.h.b16 %v2155
      %v2249 = vunpack.c.l.b16 %v2156
      %v2250 = vunpack.c.h.b16 %v2156
      %v2251 = vunpack.c.l.b16 %v2157
      %v2252 = vunpack.c.h.b16 %v2157
      %v2253 = vunpack.c.l.b16 %v2158
      %v2254 = vunpack.c.h.b16 %v2158
      %v2255 = vunpack.c.l.b16 %v2159
      %v2256 = vunpack.c.h.b16 %v2159
      %v2257 = vunpack.c.l.b16 %v2160
      %v2258 = vunpack.c.h.b16 %v2160
      %v2259 = vunpack.c.l.b16 %v2161
      %v2260 = vunpack.c.h.b16 %v2161
      %v2261 = vunpack.c.l.b16 %v2162
      %v2262 = vunpack.c.h.b16 %v2162
      %v2263 = vunpack.c.l.b16 %v2163
      %v2264 = vunpack.c.h.b16 %v2163
      %v2265 = vunpack.c.l.b16 %v2164
      %v2266 = vunpack.c.h.b16 %v2164
      %v2267 = vunpack.c.l.b16 %v2165
      %v2268 = vunpack.c.h.b16 %v2165
      %v2269 = vunpack.c.l.b16 %v2166
      %v2270 = vunpack.c.h.b16 %v2166
      %v2271 = vunpack.c.l.b16 %v2167
      %v2272 = vunpack.c.h.b16 %v2167
      %v2273 = vunpack.c.l.b16 %v2168
      %v2274 = vunpack.c.h.b16 %v2168
      %v2275 = vunpack.c.l.b16 %v2169
      %v2276 = vunpack.c.h.b16 %v2169
      %v2277 = vunpack.c.l.b16 %v2170
      %v2278 = vunpack.c.h.b16 %v2170
      %v2279 = vpack.c.b16 %v2217, %v2215
      %v2280 = vpack.c.b16 %v2218, %v2216
      %v2281 = vpack.c.b16 %v2221, %v2219
      %v2282 = vpack.c.b16 %v2222, %v2220
      %v2283 = vpack.c.b16 %v2225, %v2223
      %v2284 = vpack.c.b16 %v2226, %v2224
      %v2285 = vpack.c.b16 %v2229, %v2227
      %v2286 = vpack.c.b16 %v2230, %v2228
      %v2287 = vpack.c.b16 %v2233, %v2231
      %v2288 = vpack.c.b16 %v2234, %v2232
      %v2289 = vpack.c.b16 %v2237, %v2235
      %v2290 = vpack.c.b16 %v2238, %v2236
      %v2291 = vpack.c.b16 %v2241, %v2239
      %v2292 = vpack.c.b16 %v2242, %v2240
      %v2293 = vpack.c.b16 %v2245, %v2243
      %v2294 = vpack.c.b16 %v2246, %v2244
      %v2295 = vpack.c.b16 %v2249, %v2247
      %v2296 = vpack.c.b16 %v2250, %v2248
      %v2297 = vpack.c.b16 %v2253, %v2251
      %v2298 = vpack.c.b16 %v2254, %v2252
      %v2299 = vpack.c.b16 %v2257, %v2255
      %v2300 = vpack.c.b16 %v2258, %v2256
      %v2301 = vpack.c.b16 %v2261, %v2259
      %v2302 = vpack.c.b16 %v2262, %v2260
      %v2303 = vpack.c.b16 %v2265, %v2263
      %v2304 = vpack.c.b16 %v2266, %v2264
      %v2305 = vpack.c.b16 %v2269, %v2267
      %v2306 = vpack.c.b16 %v2270, %v2268
      %v2307 = vpack.c.b16 %v2273, %v2271
      %v2308 = vpack.c.b16 %v2274, %v2272
      %v2309 = vpack.c.b16 %v2277, %v2275
      %v2310 = vpack.c.b16 %v2278, %v2276
      %2343 = vmatprep.subr.bf16.mxu0 %v2280
      %2344 = vmatpush1.bf16.msra.mxu0 %v2279
      %2345 = vmatprep.subr.bf16.mxu0 %v2282
      %2346 = vmatpush1.bf16.msra.mxu0 %v2281
      %2347 = vmatprep.subr.bf16.mxu0 %v2284
      %2348 = vmatpush1.bf16.msra.mxu0 %v2283
      %2349 = vmatprep.subr.bf16.mxu0 %v2286
      %2350 = vmatpush1.bf16.msra.mxu0 %v2285
      %2351 = vmatprep.subr.bf16.mxu0 %v2288
      %2352 = vmatpush1.bf16.msra.mxu0 %v2287
      %2353 = vmatprep.subr.bf16.mxu0 %v2290
      %2354 = vmatpush1.bf16.msra.mxu0 %v2289
      %2355 = vmatprep.subr.bf16.mxu0 %v2292
      %2356 = vmatpush1.bf16.msra.mxu0 %v2291
      %2357 = vmatprep.subr.bf16.mxu0 %v2294
      %2358 = vmatpush1.bf16.msra.mxu0 %v2293
      %2359 = vmatprep.subr.bf16.mxu0 %v2296
      %2360 = vmatpush1.bf16.msra.mxu0 %v2295
      %2361 = vmatprep.subr.bf16.mxu0 %v2298
      %2362 = vmatpush1.bf16.msra.mxu0 %v2297
      %2363 = vmatprep.subr.bf16.mxu0 %v2300
      %2364 = vmatpush1.bf16.msra.mxu0 %v2299
      %2365 = vmatprep.subr.bf16.mxu0 %v2302
      %2366 = vmatpush1.bf16.msra.mxu0 %v2301
      %2367 = vmatprep.subr.bf16.mxu0 %v2304
      %2368 = vmatpush1.bf16.msra.mxu0 %v2303
      %2369 = vmatprep.subr.bf16.mxu0 %v2306
      %2370 = vmatpush1.bf16.msra.mxu0 %v2305
      %2371 = vmatprep.subr.bf16.mxu0 %v2308
      %2372 = vmatpush1.bf16.msra.mxu0 %v2307
      %2373 = vmatprep.subr.bf16.mxu0 %v2310
      %2374 = vmatpush1.bf16.msra.mxu0 %v2309
      %2375 = vmatprep.mubr.bf16.mxu0 %v2138
      %2376 = vmatmul.mubr.bf16.gmra.mrb[0].mxu0 %v2137
      %v2377 = vpop.f32.mrb[0].mxu0
      %v2378 = vadd.f32 %v2176, %v2377
      %v2379 = vpop.f32.mrb[0].mxu0
      %v2380 = vadd.f32 %v2180, %v2379
      %v2381 = vpop.f32.mrb[0].mxu0
      %v2382 = vadd.f32 %v2176, %v2381
      %v2383 = vpop.f32.mrb[0].mxu0
      %v2384 = vadd.f32 %v2180, %v2383
      %2385 = vdwg.mxu0
      %v2386 = vadd.f32 %v158, %v2378
      %v2387 = vadd.f32 %v159, %v2380
      %v2388 = vadd.f32 %v160, %v2382
      %v2389 = vadd.f32 %v161, %v2384
      %2390 = vst [vmem:[#allocation2] sm:$0xff] %v2386
      %2391 = vst [vmem:[#allocation2 + $0x8] sm:$0xff] %v2387
      %2392 = vst [vmem:[#allocation2 + $0x10] sm:$0xff] %v2388
      %2393 = vst [vmem:[#allocation2 + $0x18] sm:$0xff] %v2389
      %v2394 = vld [vmem:[%s8] sm:$0x3]
      %v2395 = vld [vmem:[%s9] sm:$0x3]
      %v2396 = vadd.f32 %v2386, %v2387
      %2397 = vadd.xlane.f32.xlu0 %v2396
      %v2398 = vpop.xlane.xlu0 %2397
      %v2399 = vadd.f32 %v2388, %v2389
      %2400 = vadd.xlane.f32.xlu0 %v2399
      %v2401 = vpop.xlane.xlu0 %2400
      %v2402 = vmul.f32 %v2398, %v170
      %v2403 = vmul.f32 %v2401, %v170
      %v2404 = vsub.f32 %v2386, %v2402
      %v2405 = vsub.f32 %v2387, %v2402
      %v2406 = vsub.f32 %v2388, %v2403
      %v2407 = vsub.f32 %v2389, %v2403
      %v2408 = vmul.f32 %v2404, %v2404
      %v2409 = vmul.f32 %v2405, %v2405
      %v2410 = vmul.f32 %v2406, %v2406
      %v2411 = vmul.f32 %v2407, %v2407
      %v2412 = vadd.f32 %v2408, %v2409
      %2413 = vadd.xlane.f32.xlu0 %v2412
      %v2414 = vpop.xlane.xlu0 %2413
      %v2415 = vadd.f32 %v2410, %v2411
      %2416 = vadd.xlane.f32.xlu0 %v2415
      %v2417 = vpop.xlane.xlu0 %2416
      %v2418 = vmul.f32 %v2414, %v170
      %v2419 = vmul.f32 %v2417, %v170
      %v2420 = vadd.f32 %v2418, 1e-12
      %v2421 = vadd.f32 %v2419, 1e-12
      %v2422 = vrsqrt.pop %v2420
      %v2423 = vmul.f32 %v2420, %v2422
      %vm2424 = vcmp.eq.f32.partialorder %v2420, inf
      %v2425 = vsel %vm2424, %v2420, %v2423
      %vm2426 = vcmp.eq.f32.partialorder %v2420, 0.0
      %v2427 = vand.u32 %v2420, 2147483648
      %v2428 = vsel %vm2426, %v2427, %v2425
      %v2429 = vrsqrt.pop %v2421
      %v2430 = vmul.f32 %v2421, %v2429
      %vm2431 = vcmp.eq.f32.partialorder %v2421, inf
      %v2432 = vsel %vm2431, %v2421, %v2430
      %vm2433 = vcmp.eq.f32.partialorder %v2421, 0.0
      %v2434 = vand.u32 %v2421, 2147483648
      %v2435 = vsel %vm2433, %v2434, %v2432
      %v2436 = vrcp.pop %v2428
      %v2437 = vmul.f32 %v2404, %v2436
      %v2438 = vmul.f32 %v2405, %v2436
      %v2439 = vrcp.pop %v2435
      %v2440 = vmul.f32 %v2406, %v2439
      %v2441 = vmul.f32 %v2407, %v2439
      %v2443 = vlaneseq
      %v2444 = vshrl.u32 %v2443, 7
      %v2445 = vsub.s32 0, %v2444
      %v2446 = vrot.slane %v2394, %v2445
      %v2447 = vlaneseq
      %v2448 = vshrl.u32 %v2447, 7
      %v2449 = vsub.s32 1, %v2448
      %v2450 = vrot.slane %v2394, %v2449
      %v2453 = vmul.f32 %v2446, %v2437
      %v2454 = vmul.f32 %v2450, %v2438
      %v2455 = vmul.f32 %v2446, %v2440
      %v2456 = vmul.f32 %v2450, %v2441
      %v2458 = vlaneseq
      %v2459 = vshrl.u32 %v2458, 7
      %v2460 = vsub.s32 0, %v2459
      %v2461 = vrot.slane %v2395, %v2460
      %v2462 = vlaneseq
      %v2463 = vshrl.u32 %v2462, 7
      %v2464 = vsub.s32 1, %v2463
      %v2465 = vrot.slane %v2395, %v2464
      %v2468 = vadd.f32 %v2453, %v2461
      %v2469 = vadd.f32 %v2454, %v2465
      %v2470 = vadd.f32 %v2455, %v2461
      %v2471 = vadd.f32 %v2456, %v2465
      %v2472 = vpack.c.bf16 %v2470, %v2468
      %v2473 = vpack.c.bf16 %v2471, %v2469
      %2474 = vst [vmem:[#allocation3] sm:$0xff] %v2472
      %2475 = vst [vmem:[#allocation3 + $0x8] sm:$0xff] %v2473
      %v2476 = vld [vmem:[%s13] sm:$0x3]
      %v2478 = vlaneseq
      %v2479 = vshrl.u32 %v2478, 7
      %v2480 = vsub.s32 0, %v2479
      %v2481 = vrot.slane %v2476, %v2480
      %v2482 = vlaneseq
      %v2483 = vshrl.u32 %v2482, 7
      %v2484 = vsub.s32 1, %v2483
      %v2485 = vrot.slane %v2476, %v2484
      %2488 = vst [vmem:[#allocation4] sm:$0xff] %v2481
      %2489 = vst [vmem:[#allocation4 + $0x8] sm:$0xff] %v2485
      %2490 = vst [vmem:[#allocation4 + $0x10] sm:$0xff] %v2481
      %2491 = vst [vmem:[#allocation4 + $0x18] sm:$0xff] %v2485
    $region93: #{tpu_custom_call.1} parent=1 // pred_fallthru
      _
    %v2492 = vld [vmem:[#allocation3] sm:$0xff]
    %v2493 = vld [vmem:[#allocation3 + $0x8] sm:$0xff]
    %v2494 = vld [vmem:[#allocation16] sm:$0xff]
    %v2495 = vld [vmem:[#allocation16 + $0x8] sm:$0xff]
    %v2496 = vld [vmem:[#allocation16 + $0x10] sm:$0xff]
    %v2497 = vld [vmem:[#allocation16 + $0x18] sm:$0xff]
    %v2498 = vld [vmem:[#allocation16 + $0x20] sm:$0xff]
    %v2499 = vld [vmem:[#allocation16 + $0x28] sm:$0xff]
    %v2500 = vld [vmem:[#allocation16 + $0x30] sm:$0xff]
    %v2501 = vld [vmem:[#allocation16 + $0x38] sm:$0xff]
    %v2502 = vld [vmem:[#allocation16 + $0x40] sm:$0xff]
    %v2503 = vld [vmem:[#allocation16 + $0x48] sm:$0xff]
    %v2504 = vld [vmem:[#allocation16 + $0x50] sm:$0xff]
    %v2505 = vld [vmem:[#allocation16 + $0x58] sm:$0xff]
    %v2506 = vld [vmem:[#allocation16 + $0x60] sm:$0xff]
    %v2507 = vld [vmem:[#allocation16 + $0x68] sm:$0xff]
    %v2508 = vld [vmem:[#allocation16 + $0x70] sm:$0xff]
    %v2509 = vld [vmem:[#allocation16 + $0x78] sm:$0xff]
    %v2510 = vld [vmem:[#allocation16 + $0x80] sm:$0xff]
    %v2511 = vld [vmem:[#allocation16 + $0x88] sm:$0xff]
    %v2512 = vld [vmem:[#allocation16 + $0x90] sm:$0xff]
    %v2513 = vld [vmem:[#allocation16 + $0x98] sm:$0xff]
    %v2514 = vld [vmem:[#allocation16 + $0xa0] sm:$0xff]
    %v2515 = vld [vmem:[#allocation16 + $0xa8] sm:$0xff]
    %v2516 = vld [vmem:[#allocation16 + $0xb0] sm:$0xff]
    %v2517 = vld [vmem:[#allocation16 + $0xb8] sm:$0xff]
    %v2518 = vld [vmem:[#allocation16 + $0xc0] sm:$0xff]
    %v2519 = vld [vmem:[#allocation16 + $0xc8] sm:$0xff]
    %v2520 = vld [vmem:[#allocation16 + $0xd0] sm:$0xff]
    %v2521 = vld [vmem:[#allocation16 + $0xd8] sm:$0xff]
    %v2522 = vld [vmem:[#allocation16 + $0xe0] sm:$0xff]
    %v2523 = vld [vmem:[#allocation16 + $0xe8] sm:$0xff]
    %v2524 = vld [vmem:[#allocation16 + $0xf0] sm:$0xff]
    %v2525 = vld [vmem:[#allocation16 + $0xf8] sm:$0xff]
    %v2526 = vld [vmem:[#allocation16 + $0x100] sm:$0xff]
    %v2527 = vld [vmem:[#allocation16 + $0x108] sm:$0xff]
    %v2528 = vld [vmem:[#allocation16 + $0x110] sm:$0xff]
    %v2529 = vld [vmem:[#allocation16 + $0x118] sm:$0xff]
    %v2530 = vld [vmem:[#allocation16 + $0x120] sm:$0xff]
    %v2531 = vld [vmem:[#allocation16 + $0x128] sm:$0xff]
    %v2532 = vld [vmem:[#allocation16 + $0x130] sm:$0xff]
    %v2533 = vld [vmem:[#allocation16 + $0x138] sm:$0xff]
    %v2534 = vld [vmem:[#allocation16 + $0x140] sm:$0xff]
    %v2535 = vld [vmem:[#allocation16 + $0x148] sm:$0xff]
    %v2536 = vld [vmem:[#allocation16 + $0x150] sm:$0xff]
    %v2537 = vld [vmem:[#allocation16 + $0x158] sm:$0xff]
    %v2538 = vld [vmem:[#allocation16 + $0x160] sm:$0xff]
    %v2539 = vld [vmem:[#allocation16 + $0x168] sm:$0xff]
    %v2540 = vld [vmem:[#allocation16 + $0x170] sm:$0xff]
    %v2541 = vld [vmem:[#allocation16 + $0x178] sm:$0xff]
    %v2542 = vld [vmem:[#allocation16 + $0x180] sm:$0xff]
    %v2543 = vld [vmem:[#allocation16 + $0x188] sm:$0xff]
    %v2544 = vld [vmem:[#allocation16 + $0x190] sm:$0xff]
    %v2545 = vld [vmem:[#allocation16 + $0x198] sm:$0xff]
    %v2546 = vld [vmem:[#allocation16 + $0x1a0] sm:$0xff]
    %v2547 = vld [vmem:[#allocation16 + $0x1a8] sm:$0xff]
    %v2548 = vld [vmem:[#allocation16 + $0x1b0] sm:$0xff]
    %v2549 = vld [vmem:[#allocation16 + $0x1b8] sm:$0xff]
    %v2550 = vld [vmem:[#allocation16 + $0x1c0] sm:$0xff]
    %v2551 = vld [vmem:[#allocation16 + $0x1c8] sm:$0xff]
    %v2552 = vld [vmem:[#allocation16 + $0x1d0] sm:$0xff]
    %v2553 = vld [vmem:[#allocation16 + $0x1d8] sm:$0xff]
    %v2554 = vld [vmem:[#allocation16 + $0x1e0] sm:$0xff]
    %v2555 = vld [vmem:[#allocation16 + $0x1e8] sm:$0xff]
    %v2556 = vld [vmem:[#allocation16 + $0x1f0] sm:$0xff]
    %v2557 = vld [vmem:[#allocation16 + $0x1f8] sm:$0xff]
    %v2558 = vld [vmem:[#allocation16 + $0x200] sm:$0xff]
    %v2559 = vld [vmem:[#allocation16 + $0x208] sm:$0xff]
    %v2560 = vld [vmem:[#allocation16 + $0x210] sm:$0xff]
    %v2561 = vld [vmem:[#allocation16 + $0x218] sm:$0xff]
    %v2562 = vld [vmem:[#allocation16 + $0x220] sm:$0xff]
    %v2563 = vld [vmem:[#allocation16 + $0x228] sm:$0xff]
    %v2564 = vld [vmem:[#allocation16 + $0x230] sm:$0xff]
    %v2565 = vld [vmem:[#allocation16 + $0x238] sm:$0xff]
    %v2566 = vld [vmem:[#allocation16 + $0x240] sm:$0xff]
    %v2567 = vld [vmem:[#allocation16 + $0x248] sm:$0xff]
    %v2568 = vld [vmem:[#allocation16 + $0x250] sm:$0xff]
    %v2569 = vld [vmem:[#allocation16 + $0x258] sm:$0xff]
    %v2570 = vld [vmem:[#allocation16 + $0x260] sm:$0xff]
    %v2571 = vld [vmem:[#allocation16 + $0x268] sm:$0xff]
    %v2572 = vld [vmem:[#allocation16 + $0x270] sm:$0xff]
    %v2573 = vld [vmem:[#allocation16 + $0x278] sm:$0xff]
    %v2574 = vld [vmem:[#allocation16 + $0x280] sm:$0xff]
    %v2575 = vld [vmem:[#allocation16 + $0x288] sm:$0xff]
    %v2576 = vld [vmem:[#allocation16 + $0x290] sm:$0xff]
    %v2577 = vld [vmem:[#allocation16 + $0x298] sm:$0xff]
    %v2578 = vld [vmem:[#allocation16 + $0x2a0] sm:$0xff]
    %v2579 = vld [vmem:[#allocation16 + $0x2a8] sm:$0xff]
    %v2580 = vld [vmem:[#allocation16 + $0x2b0] sm:$0xff]
    %v2581 = vld [vmem:[#allocation16 + $0x2b8] sm:$0xff]
    %v2582 = vld [vmem:[#allocation16 + $0x2c0] sm:$0xff]
    %v2583 = vld [vmem:[#allocation16 + $0x2c8] sm:$0xff]
    %v2584 = vld [vmem:[#allocation16 + $0x2d0] sm:$0xff]
    %v2585 = vld [vmem:[#allocation16 + $0x2d8] sm:$0xff]
    %v2586 = vld [vmem:[#allocation16 + $0x2e0] sm:$0xff]
    %v2587 = vld [vmem:[#allocation16 + $0x2e8] sm:$0xff]
    %v2588 = vld [vmem:[#allocation16 + $0x2f0] sm:$0xff]
    %v2589 = vld [vmem:[#allocation16 + $0x2f8] sm:$0xff]
    %v2590 = vld [vmem:[#allocation16 + $0x300] sm:$0xff]
    %v2591 = vld [vmem:[#allocation16 + $0x308] sm:$0xff]
    %v2592 = vld [vmem:[#allocation16 + $0x310] sm:$0xff]
    %v2593 = vld [vmem:[#allocation16 + $0x318] sm:$0xff]
    %v2594 = vld [vmem:[#allocation16 + $0x320] sm:$0xff]
    %v2595 = vld [vmem:[#allocation16 + $0x328] sm:$0xff]
    %v2596 = vld [vmem:[#allocation16 + $0x330] sm:$0xff]
    %v2597 = vld [vmem:[#allocation16 + $0x338] sm:$0xff]
    %v2598 = vld [vmem:[#allocation16 + $0x340] sm:$0xff]
    %v2599 = vld [vmem:[#allocation16 + $0x348] sm:$0xff]
    %v2600 = vld [vmem:[#allocation16 + $0x350] sm:$0xff]
    %v2601 = vld [vmem:[#allocation16 + $0x358] sm:$0xff]
    %v2602 = vld [vmem:[#allocation16 + $0x360] sm:$0xff]
    %v2603 = vld [vmem:[#allocation16 + $0x368] sm:$0xff]
    %v2604 = vld [vmem:[#allocation16 + $0x370] sm:$0xff]
    %v2605 = vld [vmem:[#allocation16 + $0x378] sm:$0xff]
    %v2606 = vld [vmem:[#allocation16 + $0x380] sm:$0xff]
    %v2607 = vld [vmem:[#allocation16 + $0x388] sm:$0xff]
    %v2608 = vld [vmem:[#allocation16 + $0x390] sm:$0xff]
    %v2609 = vld [vmem:[#allocation16 + $0x398] sm:$0xff]
    %v2610 = vld [vmem:[#allocation16 + $0x3a0] sm:$0xff]
    %v2611 = vld [vmem:[#allocation16 + $0x3a8] sm:$0xff]
    %v2612 = vld [vmem:[#allocation16 + $0x3b0] sm:$0xff]
    %v2613 = vld [vmem:[#allocation16 + $0x3b8] sm:$0xff]
    %v2614 = vld [vmem:[#allocation16 + $0x3c0] sm:$0xff]
    %v2615 = vld [vmem:[#allocation16 + $0x3c8] sm:$0xff]
    %v2616 = vld [vmem:[#allocation16 + $0x3d0] sm:$0xff]
    %v2617 = vld [vmem:[#allocation16 + $0x3d8] sm:$0xff]
    %v2618 = vld [vmem:[#allocation16 + $0x3e0] sm:$0xff]
    %v2619 = vld [vmem:[#allocation16 + $0x3e8] sm:$0xff]
    %v2620 = vld [vmem:[#allocation16 + $0x3f0] sm:$0xff]
    %v2621 = vld [vmem:[#allocation16 + $0x3f8] sm:$0xff]
    %v2622 = vld [vmem:[%s11] sm:$0xff]
    %v2624 = vlaneseq
    %v2625 = vshrl.u32 %v2624, 7
    %v2626 = vsub.s32 0, %v2625
    %v2627 = vrot.slane %v2622, %v2626
    %v2628 = vlaneseq
    %v2629 = vshrl.u32 %v2628, 7
    %v2630 = vsub.s32 1, %v2629
    %v2631 = vrot.slane %v2622, %v2630
    %v2632 = vlaneseq
    %v2633 = vshrl.u32 %v2632, 7
    %v2634 = vsub.s32 2, %v2633
    %v2635 = vrot.slane %v2622, %v2634
    %v2636 = vlaneseq
    %v2637 = vshrl.u32 %v2636, 7
    %v2638 = vsub.s32 3, %v2637
    %v2639 = vrot.slane %v2622, %v2638
    %v2640 = vlaneseq
    %v2641 = vshrl.u32 %v2640, 7
    %v2642 = vsub.s32 4, %v2641
    %v2643 = vrot.slane %v2622, %v2642
    %v2644 = vlaneseq
    %v2645 = vshrl.u32 %v2644, 7
    %v2646 = vsub.s32 5, %v2645
    %v2647 = vrot.slane %v2622, %v2646
    %v2648 = vlaneseq
    %v2649 = vshrl.u32 %v2648, 7
    %v2650 = vsub.s32 6, %v2649
    %v2651 = vrot.slane %v2622, %v2650
    %v2652 = vlaneseq
    %v2653 = vshrl.u32 %v2652, 7
    %v2654 = vsub.s32 7, %v2653
    %v2655 = vrot.slane %v2622, %v2654
    %v2792 = vunpack.c.l.b16 %v2494
    %v2793 = vunpack.c.h.b16 %v2494
    %v2794 = vunpack.c.l.b16 %v2495
    %v2795 = vunpack.c.h.b16 %v2495
    %v2796 = vunpack.c.l.b16 %v2496
    %v2797 = vunpack.c.h.b16 %v2496
    %v2798 = vunpack.c.l.b16 %v2497
    %v2799 = vunpack.c.h.b16 %v2497
    %v2800 = vunpack.c.l.b16 %v2498
    %v2801 = vunpack.c.h.b16 %v2498
    %v2802 = vunpack.c.l.b16 %v2499
    %v2803 = vunpack.c.h.b16 %v2499
    %v2804 = vunpack.c.l.b16 %v2500
    %v2805 = vunpack.c.h.b16 %v2500
    %v2806 = vunpack.c.l.b16 %v2501
    %v2807 = vunpack.c.h.b16 %v2501
    %v2808 = vunpack.c.l.b16 %v2502
    %v2809 = vunpack.c.h.b16 %v2502
    %v2810 = vunpack.c.l.b16 %v2503
    %v2811 = vunpack.c.h.b16 %v2503
    %v2812 = vunpack.c.l.b16 %v2504
    %v2813 = vunpack.c.h.b16 %v2504
    %v2814 = vunpack.c.l.b16 %v2505
    %v2815 = vunpack.c.h.b16 %v2505
    %v2816 = vunpack.c.l.b16 %v2506
    %v2817 = vunpack.c.h.b16 %v2506
    %v2818 = vunpack.c.l.b16 %v2507
    %v2819 = vunpack.c.h.b16 %v2507
    %v2820 = vunpack.c.l.b16 %v2508
    %v2821 = vunpack.c.h.b16 %v2508
    %v2822 = vunpack.c.l.b16 %v2509
    %v2823 = vunpack.c.h.b16 %v2509
    %v2824 = vunpack.c.l.b16 %v2510
    %v2825 = vunpack.c.h.b16 %v2510
    %v2826 = vunpack.c.l.b16 %v2511
    %v2827 = vunpack.c.h.b16 %v2511
    %v2828 = vunpack.c.l.b16 %v2512
    %v2829 = vunpack.c.h.b16 %v2512
    %v2830 = vunpack.c.l.b16 %v2513
    %v2831 = vunpack.c.h.b16 %v2513
    %v2832 = vunpack.c.l.b16 %v2514
    %v2833 = vunpack.c.h.b16 %v2514
    %v2834 = vunpack.c.l.b16 %v2515
    %v2835 = vunpack.c.h.b16 %v2515
    %v2836 = vunpack.c.l.b16 %v2516
    %v2837 = vunpack.c.h.b16 %v2516
    %v2838 = vunpack.c.l.b16 %v2517
    %v2839 = vunpack.c.h.b16 %v2517
    %v2840 = vunpack.c.l.b16 %v2518
    %v2841 = vunpack.c.h.b16 %v2518
    %v2842 = vunpack.c.l.b16 %v2519
    %v2843 = vunpack.c.h.b16 %v2519
    %v2844 = vunpack.c.l.b16 %v2520
    %v2845 = vunpack.c.h.b16 %v2520
    %v2846 = vunpack.c.l.b16 %v2521
    %v2847 = vunpack.c.h.b16 %v2521
    %v2848 = vunpack.c.l.b16 %v2522
    %v2849 = vunpack.c.h.b16 %v2522
    %v2850 = vunpack.c.l.b16 %v2523
    %v2851 = vunpack.c.h.b16 %v2523
    %v2852 = vunpack.c.l.b16 %v2524
    %v2853 = vunpack.c.h.b16 %v2524
    %v2854 = vunpack.c.l.b16 %v2525
    %v2855 = vunpack.c.h.b16 %v2525
    %v2856 = vunpack.c.l.b16 %v2526
    %v2857 = vunpack.c.h.b16 %v2526
    %v2858 = vunpack.c.l.b16 %v2527
    %v2859 = vunpack.c.h.b16 %v2527
    %v2860 = vunpack.c.l.b16 %v2528
    %v2861 = vunpack.c.h.b16 %v2528
    %v2862 = vunpack.c.l.b16 %v2529
    %v2863 = vunpack.c.h.b16 %v2529
    %v2864 = vunpack.c.l.b16 %v2530
    %v2865 = vunpack.c.h.b16 %v2530
    %v2866 = vunpack.c.l.b16 %v2531
    %v2867 = vunpack.c.h.b16 %v2531
    %v2868 = vunpack.c.l.b16 %v2532
    %v2869 = vunpack.c.h.b16 %v2532
    %v2870 = vunpack.c.l.b16 %v2533
    %v2871 = vunpack.c.h.b16 %v2533
    %v2872 = vunpack.c.l.b16 %v2534
    %v2873 = vunpack.c.h.b16 %v2534
    %v2874 = vunpack.c.l.b16 %v2535
    %v2875 = vunpack.c.h.b16 %v2535
    %v2876 = vunpack.c.l.b16 %v2536
    %v2877 = vunpack.c.h.b16 %v2536
    %v2878 = vunpack.c.l.b16 %v2537
    %v2879 = vunpack.c.h.b16 %v2537
    %v2880 = vunpack.c.l.b16 %v2538
    %v2881 = vunpack.c.h.b16 %v2538
    %v2882 = vunpack.c.l.b16 %v2539
    %v2883 = vunpack.c.h.b16 %v2539
    %v2884 = vunpack.c.l.b16 %v2540
    %v2885 = vunpack.c.h.b16 %v2540
    %v2886 = vunpack.c.l.b16 %v2541
    %v2887 = vunpack.c.h.b16 %v2541
    %v2888 = vunpack.c.l.b16 %v2542
    %v2889 = vunpack.c.h.b16 %v2542
    %v2890 = vunpack.c.l.b16 %v2543
    %v2891 = vunpack.c.h.b16 %v2543
    %v2892 = vunpack.c.l.b16 %v2544
    %v2893 = vunpack.c.h.b16 %v2544
    %v2894 = vunpack.c.l.b16 %v2545
    %v2895 = vunpack.c.h.b16 %v2545
    %v2896 = vunpack.c.l.b16 %v2546
    %v2897 = vunpack.c.h.b16 %v2546
    %v2898 = vunpack.c.l.b16 %v2547
    %v2899 = vunpack.c.h.b16 %v2547
    %v2900 = vunpack.c.l.b16 %v2548
    %v2901 = vunpack.c.h.b16 %v2548
    %v2902 = vunpack.c.l.b16 %v2549
    %v2903 = vunpack.c.h.b16 %v2549
    %v2904 = vunpack.c.l.b16 %v2550
    %v2905 = vunpack.c.h.b16 %v2550
    %v2906 = vunpack.c.l.b16 %v2551
    %v2907 = vunpack.c.h.b16 %v2551
    %v2908 = vunpack.c.l.b16 %v2552
    %v2909 = vunpack.c.h.b16 %v2552
    %v2910 = vunpack.c.l.b16 %v2553
    %v2911 = vunpack.c.h.b16 %v2553
    %v2912 = vunpack.c.l.b16 %v2554
    %v2913 = vunpack.c.h.b16 %v2554
    %v2914 = vunpack.c.l.b16 %v2555
    %v2915 = vunpack.c.h.b16 %v2555
    %v2916 = vunpack.c.l.b16 %v2556
    %v2917 = vunpack.c.h.b16 %v2556
    %v2918 = vunpack.c.l.b16 %v2557
    %v2919 = vunpack.c.h.b16 %v2557
    %v2920 = vunpack.c.l.b16 %v2558
    %v2921 = vunpack.c.h.b16 %v2558
    %v2922 = vunpack.c.l.b16 %v2559
    %v2923 = vunpack.c.h.b16 %v2559
    %v2924 = vunpack.c.l.b16 %v2560
    %v2925 = vunpack.c.h.b16 %v2560
    %v2926 = vunpack.c.l.b16 %v2561
    %v2927 = vunpack.c.h.b16 %v2561
    %v2928 = vunpack.c.l.b16 %v2562
    %v2929 = vunpack.c.h.b16 %v2562
    %v2930 = vunpack.c.l.b16 %v2563
    %v2931 = vunpack.c.h.b16 %v2563
    %v2932 = vunpack.c.l.b16 %v2564
    %v2933 = vunpack.c.h.b16 %v2564
    %v2934 = vunpack.c.l.b16 %v2565
    %v2935 = vunpack.c.h.b16 %v2565
    %v2936 = vunpack.c.l.b16 %v2566
    %v2937 = vunpack.c.h.b16 %v2566
    %v2938 = vunpack.c.l.b16 %v2567
    %v2939 = vunpack.c.h.b16 %v2567
    %v2940 = vunpack.c.l.b16 %v2568
    %v2941 = vunpack.c.h.b16 %v2568
    %v2942 = vunpack.c.l.b16 %v2569
    %v2943 = vunpack.c.h.b16 %v2569
    %v2944 = vunpack.c.l.b16 %v2570
    %v2945 = vunpack.c.h.b16 %v2570
    %v2946 = vunpack.c.l.b16 %v2571
    %v2947 = vunpack.c.h.b16 %v2571
    %v2948 = vunpack.c.l.b16 %v2572
    %v2949 = vunpack.c.h.b16 %v2572
    %v2950 = vunpack.c.l.b16 %v2573
    %v2951 = vunpack.c.h.b16 %v2573
    %v2952 = vunpack.c.l.b16 %v2574
    %v2953 = vunpack.c.h.b16 %v2574
    %v2954 = vunpack.c.l.b16 %v2575
    %v2955 = vunpack.c.h.b16 %v2575
    %v2956 = vunpack.c.l.b16 %v2576
    %v2957 = vunpack.c.h.b16 %v2576
    %v2958 = vunpack.c.l.b16 %v2577
    %v2959 = vunpack.c.h.b16 %v2577
    %v2960 = vunpack.c.l.b16 %v2578
    %v2961 = vunpack.c.h.b16 %v2578
    %v2962 = vunpack.c.l.b16 %v2579
    %v2963 = vunpack.c.h.b16 %v2579
    %v2964 = vunpack.c.l.b16 %v2580
    %v2965 = vunpack.c.h.b16 %v2580
    %v2966 = vunpack.c.l.b16 %v2581
    %v2967 = vunpack.c.h.b16 %v2581
    %v2968 = vunpack.c.l.b16 %v2582
    %v2969 = vunpack.c.h.b16 %v2582
    %v2970 = vunpack.c.l.b16 %v2583
    %v2971 = vunpack.c.h.b16 %v2583
    %v2972 = vunpack.c.l.b16 %v2584
    %v2973 = vunpack.c.h.b16 %v2584
    %v2974 = vunpack.c.l.b16 %v2585
    %v2975 = vunpack.c.h.b16 %v2585
    %v2976 = vunpack.c.l.b16 %v2586
    %v2977 = vunpack.c.h.b16 %v2586
    %v2978 = vunpack.c.l.b16 %v2587
    %v2979 = vunpack.c.h.b16 %v2587
    %v2980 = vunpack.c.l.b16 %v2588
    %v2981 = vunpack.c.h.b16 %v2588
    %v2982 = vunpack.c.l.b16 %v2589
    %v2983 = vunpack.c.h.b16 %v2589
    %v2984 = vunpack.c.l.b16 %v2590
    %v2985 = vunpack.c.h.b16 %v2590
    %v2986 = vunpack.c.l.b16 %v2591
    %v2987 = vunpack.c.h.b16 %v2591
    %v2988 = vunpack.c.l.b16 %v2592
    %v2989 = vunpack.c.h.b16 %v2592
    %v2990 = vunpack.c.l.b16 %v2593
    %v2991 = vunpack.c.h.b16 %v2593
    %v2992 = vunpack.c.l.b16 %v2594
    %v2993 = vunpack.c.h.b16 %v2594
    %v2994 = vunpack.c.l.b16 %v2595
    %v2995 = vunpack.c.h.b16 %v2595
    %v2996 = vunpack.c.l.b16 %v2596
    %v2997 = vunpack.c.h.b16 %v2596
    %v2998 = vunpack.c.l.b16 %v2597
    %v2999 = vunpack.c.h.b16 %v2597
    %v3000 = vunpack.c.l.b16 %v2598
    %v3001 = vunpack.c.h.b16 %v2598
    %v3002 = vunpack.c.l.b16 %v2599
    %v3003 = vunpack.c.h.b16 %v2599
    %v3004 = vunpack.c.l.b16 %v2600
    %v3005 = vunpack.c.h.b16 %v2600
    %v3006 = vunpack.c.l.b16 %v2601
    %v3007 = vunpack.c.h.b16 %v2601
    %v3008 = vunpack.c.l.b16 %v2602
    %v3009 = vunpack.c.h.b16 %v2602
    %v3010 = vunpack.c.l.b16 %v2603
    %v3011 = vunpack.c.h.b16 %v2603
    %v3012 = vunpack.c.l.b16 %v2604
    %v3013 = vunpack.c.h.b16 %v2604
    %v3014 = vunpack.c.l.b16 %v2605
    %v3015 = vunpack.c.h.b16 %v2605
    %v3016 = vunpack.c.l.b16 %v2606
    %v3017 = vunpack.c.h.b16 %v2606
    %v3018 = vunpack.c.l.b16 %v2607
    %v3019 = vunpack.c.h.b16 %v2607
    %v3020 = vunpack.c.l.b16 %v2608
    %v3021 = vunpack.c.h.b16 %v2608
    %v3022 = vunpack.c.l.b16 %v2609
    %v3023 = vunpack.c.h.b16 %v2609
    %v3024 = vunpack.c.l.b16 %v2610
    %v3025 = vunpack.c.h.b16 %v2610
    %v3026 = vunpack.c.l.b16 %v2611
    %v3027 = vunpack.c.h.b16 %v2611
    %v3028 = vunpack.c.l.b16 %v2612
    %v3029 = vunpack.c.h.b16 %v2612
    %v3030 = vunpack.c.l.b16 %v2613
    %v3031 = vunpack.c.h.b16 %v2613
    %v3032 = vunpack.c.l.b16 %v2614
    %v3033 = vunpack.c.h.b16 %v2614
    %v3034 = vunpack.c.l.b16 %v2615
    %v3035 = vunpack.c.h.b16 %v2615
    %v3036 = vunpack.c.l.b16 %v2616
    %v3037 = vunpack.c.h.b16 %v2616
    %v3038 = vunpack.c.l.b16 %v2617
    %v3039 = vunpack.c.h.b16 %v2617
    %v3040 = vunpack.c.l.b16 %v2618
    %v3041 = vunpack.c.h.b16 %v2618
    %v3042 = vunpack.c.l.b16 %v2619
    %v3043 = vunpack.c.h.b16 %v2619
    %v3044 = vunpack.c.l.b16 %v2620
    %v3045 = vunpack.c.h.b16 %v2620
    %v3046 = vunpack.c.l.b16 %v2621
    %v3047 = vunpack.c.h.b16 %v2621
    %v3048 = vpack.c.b16 %v2800, %v2792
    %v3049 = vpack.c.b16 %v2801, %v2793
    %v3050 = vpack.c.b16 %v2802, %v2794
    %v3051 = vpack.c.b16 %v2803, %v2795
    %v3052 = vpack.c.b16 %v2804, %v2796
    %v3053 = vpack.c.b16 %v2805, %v2797
    %v3054 = vpack.c.b16 %v2806, %v2798
    %v3055 = vpack.c.b16 %v2807, %v2799
    %v3056 = vpack.c.b16 %v2816, %v2808
    %v3057 = vpack.c.b16 %v2817, %v2809
    %v3058 = vpack.c.b16 %v2818, %v2810
    %v3059 = vpack.c.b16 %v2819, %v2811
    %v3060 = vpack.c.b16 %v2820, %v2812
    %v3061 = vpack.c.b16 %v2821, %v2813
    %v3062 = vpack.c.b16 %v2822, %v2814
    %v3063 = vpack.c.b16 %v2823, %v2815
    %v3064 = vpack.c.b16 %v2832, %v2824
    %v3065 = vpack.c.b16 %v2833, %v2825
    %v3066 = vpack.c.b16 %v2834, %v2826
    %v3067 = vpack.c.b16 %v2835, %v2827
    %v3068 = vpack.c.b16 %v2836, %v2828
    %v3069 = vpack.c.b16 %v2837, %v2829
    %v3070 = vpack.c.b16 %v2838, %v2830
    %v3071 = vpack.c.b16 %v2839, %v2831
    %v3072 = vpack.c.b16 %v2848, %v2840
    %v3073 = vpack.c.b16 %v2849, %v2841
    %v3074 = vpack.c.b16 %v2850, %v2842
    %v3075 = vpack.c.b16 %v2851, %v2843
    %v3076 = vpack.c.b16 %v2852, %v2844
    %v3077 = vpack.c.b16 %v2853, %v2845
    %v3078 = vpack.c.b16 %v2854, %v2846
    %v3079 = vpack.c.b16 %v2855, %v2847
    %v3080 = vpack.c.b16 %v2864, %v2856
    %v3081 = vpack.c.b16 %v2865, %v2857
    %v3082 = vpack.c.b16 %v2866, %v2858
    %v3083 = vpack.c.b16 %v2867, %v2859
    %v3084 = vpack.c.b16 %v2868, %v2860
    %v3085 = vpack.c.b16 %v2869, %v2861
    %v3086 = vpack.c.b16 %v2870, %v2862
    %v3087 = vpack.c.b16 %v2871, %v2863
    %v3088 = vpack.c.b16 %v2880, %v2872
    %v3089 = vpack.c.b16 %v2881, %v2873
    %v3090 = vpack.c.b16 %v2882, %v2874
    %v3091 = vpack.c.b16 %v2883, %v2875
    %v3092 = vpack.c.b16 %v2884, %v2876
    %v3093 = vpack.c.b16 %v2885, %v2877
    %v3094 = vpack.c.b16 %v2886, %v2878
    %v3095 = vpack.c.b16 %v2887, %v2879
    %v3096 = vpack.c.b16 %v2896, %v2888
    %v3097 = vpack.c.b16 %v2897, %v2889
    %v3098 = vpack.c.b16 %v2898, %v2890
    %v3099 = vpack.c.b16 %v2899, %v2891
    %v3100 = vpack.c.b16 %v2900, %v2892
    %v3101 = vpack.c.b16 %v2901, %v2893
    %v3102 = vpack.c.b16 %v2902, %v2894
    %v3103 = vpack.c.b16 %v2903, %v2895
    %v3104 = vpack.c.b16 %v2912, %v2904
    %v3105 = vpack.c.b16 %v2913, %v2905
    %v3106 = vpack.c.b16 %v2914, %v2906
    %v3107 = vpack.c.b16 %v2915, %v2907
    %v3108 = vpack.c.b16 %v2916, %v2908
    %v3109 = vpack.c.b16 %v2917, %v2909
    %v3110 = vpack.c.b16 %v2918, %v2910
    %v3111 = vpack.c.b16 %v2919, %v2911
    %v3112 = vpack.c.b16 %v2928, %v2920
    %v3113 = vpack.c.b16 %v2929, %v2921
    %v3114 = vpack.c.b16 %v2930, %v2922
    %v3115 = vpack.c.b16 %v2931, %v2923
    %v3116 = vpack.c.b16 %v2932, %v2924
    %v3117 = vpack.c.b16 %v2933, %v2925
    %v3118 = vpack.c.b16 %v2934, %v2926
    %v3119 = vpack.c.b16 %v2935, %v2927
    %v3120 = vpack.c.b16 %v2944, %v2936
    %v3121 = vpack.c.b16 %v2945, %v2937
    %v3122 = vpack.c.b16 %v2946, %v2938
    %v3123 = vpack.c.b16 %v2947, %v2939
    %v3124 = vpack.c.b16 %v2948, %v2940
    %v3125 = vpack.c.b16 %v2949, %v2941
    %v3126 = vpack.c.b16 %v2950, %v2942
    %v3127 = vpack.c.b16 %v2951, %v2943
    %v3128 = vpack.c.b16 %v2960, %v2952
    %v3129 = vpack.c.b16 %v2961, %v2953
    %v3130 = vpack.c.b16 %v2962, %v2954
    %v3131 = vpack.c.b16 %v2963, %v2955
    %v3132 = vpack.c.b16 %v2964, %v2956
    %v3133 = vpack.c.b16 %v2965, %v2957
    %v3134 = vpack.c.b16 %v2966, %v2958
    %v3135 = vpack.c.b16 %v2967, %v2959
    %v3136 = vpack.c.b16 %v2976, %v2968
    %v3137 = vpack.c.b16 %v2977, %v2969
    %v3138 = vpack.c.b16 %v2978, %v2970
    %v3139 = vpack.c.b16 %v2979, %v2971
    %v3140 = vpack.c.b16 %v2980, %v2972
    %v3141 = vpack.c.b16 %v2981, %v2973
    %v3142 = vpack.c.b16 %v2982, %v2974
    %v3143 = vpack.c.b16 %v2983, %v2975
    %v3144 = vpack.c.b16 %v2992, %v2984
    %v3145 = vpack.c.b16 %v2993, %v2985
    %v3146 = vpack.c.b16 %v2994, %v2986
    %v3147 = vpack.c.b16 %v2995, %v2987
    %v3148 = vpack.c.b16 %v2996, %v2988
    %v3149 = vpack.c.b16 %v2997, %v2989
    %v3150 = vpack.c.b16 %v2998, %v2990
    %v3151 = vpack.c.b16 %v2999, %v2991
    %v3152 = vpack.c.b16 %v3008, %v3000
    %v3153 = vpack.c.b16 %v3009, %v3001
    %v3154 = vpack.c.b16 %v3010, %v3002
    %v3155 = vpack.c.b16 %v3011, %v3003
    %v3156 = vpack.c.b16 %v3012, %v3004
    %v3157 = vpack.c.b16 %v3013, %v3005
    %v3158 = vpack.c.b16 %v3014, %v3006
    %v3159 = vpack.c.b16 %v3015, %v3007
    %v3160 = vpack.c.b16 %v3024, %v3016
    %v3161 = vpack.c.b16 %v3025, %v3017
    %v3162 = vpack.c.b16 %v3026, %v3018
    %v3163 = vpack.c.b16 %v3027, %v3019
    %v3164 = vpack.c.b16 %v3028, %v3020
    %v3165 = vpack.c.b16 %v3029, %v3021
    %v3166 = vpack.c.b16 %v3030, %v3022
    %v3167 = vpack.c.b16 %v3031, %v3023
    %v3168 = vpack.c.b16 %v3040, %v3032
    %v3169 = vpack.c.b16 %v3041, %v3033
    %v3170 = vpack.c.b16 %v3042, %v3034
    %v3171 = vpack.c.b16 %v3043, %v3035
    %v3172 = vpack.c.b16 %v3044, %v3036
    %v3173 = vpack.c.b16 %v3045, %v3037
    %v3174 = vpack.c.b16 %v3046, %v3038
    %v3175 = vpack.c.b16 %v3047, %v3039
    %3304 = vmatprep.subr.bf16.mxu0 %v3049
    %3305 = vmatpush1.bf16.msra.mxu0 %v3048
    %3306 = vmatprep.subr.bf16.mxu0 %v3057
    %3307 = vmatpush1.bf16.msra.mxu0 %v3056
    %3308 = vmatprep.subr.bf16.mxu0 %v3065
    %3309 = vmatpush1.bf16.msra.mxu0 %v3064
    %3310 = vmatprep.subr.bf16.mxu0 %v3073
    %3311 = vmatpush1.bf16.msra.mxu0 %v3072
    %3312 = vmatprep.subr.bf16.mxu0 %v3081
    %3313 = vmatpush1.bf16.msra.mxu0 %v3080
    %3314 = vmatprep.subr.bf16.mxu0 %v3089
    %3315 = vmatpush1.bf16.msra.mxu0 %v3088
    %3316 = vmatprep.subr.bf16.mxu0 %v3097
    %3317 = vmatpush1.bf16.msra.mxu0 %v3096
    %3318 = vmatprep.subr.bf16.mxu0 %v3105
    %3319 = vmatpush1.bf16.msra.mxu0 %v3104
    %3320 = vmatprep.subr.bf16.mxu0 %v3113
    %3321 = vmatpush1.bf16.msra.mxu0 %v3112
    %3322 = vmatprep.subr.bf16.mxu0 %v3121
    %3323 = vmatpush1.bf16.msra.mxu0 %v3120
    %3324 = vmatprep.subr.bf16.mxu0 %v3129
    %3325 = vmatpush1.bf16.msra.mxu0 %v3128
    %3326 = vmatprep.subr.bf16.mxu0 %v3137
    %3327 = vmatpush1.bf16.msra.mxu0 %v3136
    %3328 = vmatprep.subr.bf16.mxu0 %v3145
    %3329 = vmatpush1.bf16.msra.mxu0 %v3144
    %3330 = vmatprep.subr.bf16.mxu0 %v3153
    %3331 = vmatpush1.bf16.msra.mxu0 %v3152
    %3332 = vmatprep.subr.bf16.mxu0 %v3161
    %3333 = vmatpush1.bf16.msra.mxu0 %v3160
    %3334 = vmatprep.subr.bf16.mxu0 %v3169
    %3335 = vmatpush1.bf16.msra.mxu0 %v3168
    %3336 = vmatprep.mubr.bf16.mxu0 %v2493
    %3337 = vmatmul.mubr.bf16.gmra.mrb[0].mxu0 %v2492
    %v3338 = vpop.f32.mrb[0].mxu0
    %v3339 = vadd.f32 %v2627, %v3338
    %v3340 = vpop.f32.mrb[0].mxu0
    %v3341 = vadd.f32 %v2631, %v3340
    %v3342 = vpop.f32.mrb[0].mxu0
    %v3343 = vadd.f32 %v2627, %v3342
    %v3344 = vpop.f32.mrb[0].mxu0
    %v3345 = vadd.f32 %v2631, %v3344
    %3346 = vdwg.mxu0
    %3347 = vmatprep.subr.bf16.mxu0 %v3051
    %3348 = vmatpush1.bf16.msra.mxu0 %v3050
    %3349 = vmatprep.subr.bf16.mxu0 %v3059
    %3350 = vmatpush1.bf16.msra.mxu0 %v3058
    %3351 = vmatprep.subr.bf16.mxu0 %v3067
    %3352 = vmatpush1.bf16.msra.mxu0 %v3066
    %3353 = vmatprep.subr.bf16.mxu0 %v3075
    %3354 = vmatpush1.bf16.msra.mxu0 %v3074
    %3355 = vmatprep.subr.bf16.mxu0 %v3083
    %3356 = vmatpush1.bf16.msra.mxu0 %v3082
    %3357 = vmatprep.subr.bf16.mxu0 %v3091
    %3358 = vmatpush1.bf16.msra.mxu0 %v3090
    %3359 = vmatprep.subr.bf16.mxu0 %v3099
    %3360 = vmatpush1.bf16.msra.mxu0 %v3098
    %3361 = vmatprep.subr.bf16.mxu0 %v3107
    %3362 = vmatpush1.bf16.msra.mxu0 %v3106
    %3363 = vmatprep.subr.bf16.mxu0 %v3115
    %3364 = vmatpush1.bf16.msra.mxu0 %v3114
    %3365 = vmatprep.subr.bf16.mxu0 %v3123
    %3366 = vmatpush1.bf16.msra.mxu0 %v3122
    %3367 = vmatprep.subr.bf16.mxu0 %v3131
    %3368 = vmatpush1.bf16.msra.mxu0 %v3130
    %3369 = vmatprep.subr.bf16.mxu0 %v3139
    %3370 = vmatpush1.bf16.msra.mxu0 %v3138
    %3371 = vmatprep.subr.bf16.mxu0 %v3147
    %3372 = vmatpush1.bf16.msra.mxu0 %v3146
    %3373 = vmatprep.subr.bf16.mxu0 %v3155
    %3374 = vmatpush1.bf16.msra.mxu0 %v3154
    %3375 = vmatprep.subr.bf16.mxu0 %v3163
    %3376 = vmatpush1.bf16.msra.mxu0 %v3162
    %3377 = vmatprep.subr.bf16.mxu0 %v3171
    %3378 = vmatpush1.bf16.msra.mxu0 %v3170
    %3379 = vmatprep.mubr.bf16.mxu0 %v2493
    %3380 = vmatmul.mubr.bf16.gmra.mrb[0].mxu0 %v2492
    %v3381 = vpop.f32.mrb[0].mxu0
    %v3382 = vadd.f32 %v2635, %v3381
    %v3383 = vpop.f32.mrb[0].mxu0
    %v3384 = vadd.f32 %v2639, %v3383
    %v3385 = vpop.f32.mrb[0].mxu0
    %v3386 = vadd.f32 %v2635, %v3385
    %v3387 = vpop.f32.mrb[0].mxu0
    %v3388 = vadd.f32 %v2639, %v3387
    %3389 = vdwg.mxu0
    %3390 = vmatprep.subr.bf16.mxu0 %v3053
    %3391 = vmatpush1.bf16.msra.mxu0 %v3052
    %3392 = vmatprep.subr.bf16.mxu0 %v3061
    %3393 = vmatpush1.bf16.msra.mxu0 %v3060
    %3394 = vmatprep.subr.bf16.mxu0 %v3069
    %3395 = vmatpush1.bf16.msra.mxu0 %v3068
    %3396 = vmatprep.subr.bf16.mxu0 %v3077
    %3397 = vmatpush1.bf16.msra.mxu0 %v3076
    %3398 = vmatprep.subr.bf16.mxu0 %v3085
    %3399 = vmatpush1.bf16.msra.mxu0 %v3084
    %3400 = vmatprep.subr.bf16.mxu0 %v3093
    %3401 = vmatpush1.bf16.msra.mxu0 %v3092
    %3402 = vmatprep.subr.bf16.mxu0 %v3101
    %3403 = vmatpush1.bf16.msra.mxu0 %v3100
    %3404 = vmatprep.subr.bf16.mxu0 %v3109
    %3405 = vmatpush1.bf16.msra.mxu0 %v3108
    %3406 = vmatprep.subr.bf16.mxu0 %v3117
    %3407 = vmatpush1.bf16.msra.mxu0 %v3116
    %3408 = vmatprep.subr.bf16.mxu0 %v3125
    %3409 = vmatpush1.bf16.msra.mxu0 %v3124
    %3410 = vmatprep.subr.bf16.mxu0 %v3133
    %3411 = vmatpush1.bf16.msra.mxu0 %v3132
    %3412 = vmatprep.subr.bf16.mxu0 %v3141
    %3413 = vmatpush1.bf16.msra.mxu0 %v3140
    %3414 = vmatprep.subr.bf16.mxu0 %v3149
    %3415 = vmatpush1.bf16.msra.mxu0 %v3148
    %3416 = vmatprep.subr.bf16.mxu0 %v3157
    %3417 = vmatpush1.bf16.msra.mxu0 %v3156
    %3418 = vmatprep.subr.bf16.mxu0 %v3165
    %3419 = vmatpush1.bf16.msra.mxu0 %v3164
    %3420 = vmatprep.subr.bf16.mxu0 %v3173
    %3421 = vmatpush1.bf16.msra.mxu0 %v3172
    %3422 = vmatprep.mubr.bf16.mxu0 %v2493
    %3423 = vmatmul.mubr.bf16.gmra.mrb[0].mxu0 %v2492
    %v3424 = vpop.f32.mrb[0].mxu0
    %v3425 = vadd.f32 %v2643, %v3424
    %v3426 = vpop.f32.mrb[0].mxu0
    %v3427 = vadd.f32 %v2647, %v3426
    %v3428 = vpop.f32.mrb[0].mxu0
    %v3429 = vadd.f32 %v2643, %v3428
    %v3430 = vpop.f32.mrb[0].mxu0
    %v3431 = vadd.f32 %v2647, %v3430
    %3432 = vdwg.mxu0
    %3433 = vmatprep.subr.bf16.mxu0 %v3055
    %3434 = vmatpush1.bf16.msra.mxu0 %v3054
    %3435 = vmatprep.subr.bf16.mxu0 %v3063
    %3436 = vmatpush1.bf16.msra.mxu0 %v3062
    %3437 = vmatprep.subr.bf16.mxu0 %v3071
    %3438 = vmatpush1.bf16.msra.mxu0 %v3070
    %3439 = vmatprep.subr.bf16.mxu0 %v3079
    %3440 = vmatpush1.bf16.msra.mxu0 %v3078
    %3441 = vmatprep.subr.bf16.mxu0 %v3087
    %3442 = vmatpush1.bf16.msra.mxu0 %v3086
    %3443 = vmatprep.subr.bf16.mxu0 %v3095
    %3444 = vmatpush1.bf16.msra.mxu0 %v3094
    %3445 = vmatprep.subr.bf16.mxu0 %v3103
    %3446 = vmatpush1.bf16.msra.mxu0 %v3102
    %3447 = vmatprep.subr.bf16.mxu0 %v3111
    %3448 = vmatpush1.bf16.msra.mxu0 %v3110
    %3449 = vmatprep.subr.bf16.mxu0 %v3119
    %3450 = vmatpush1.bf16.msra.mxu0 %v3118
    %3451 = vmatprep.subr.bf16.mxu0 %v3127
    %3452 = vmatpush1.bf16.msra.mxu0 %v3126
    %3453 = vmatprep.subr.bf16.mxu0 %v3135
    %3454 = vmatpush1.bf16.msra.mxu0 %v3134
    %3455 = vmatprep.subr.bf16.mxu0 %v3143
    %3456 = vmatpush1.bf16.msra.mxu0 %v3142
    %3457 = vmatprep.subr.bf16.mxu0 %v3151
    %3458 = vmatpush1.bf16.msra.mxu0 %v3150
    %3459 = vmatprep.subr.bf16.mxu0 %v3159
    %3460 = vmatpush1.bf16.msra.mxu0 %v3158
    %3461 = vmatprep.subr.bf16.mxu0 %v3167
    %3462 = vmatpush1.bf16.msra.mxu0 %v3166
    %3463 = vmatprep.subr.bf16.mxu0 %v3175
    %3464 = vmatpush1.bf16.msra.mxu0 %v3174
    %3465 = vmatprep.mubr.bf16.mxu0 %v2493
    %3466 = vmatmul.mubr.bf16.gmra.mrb[0].mxu0 %v2492
    %v3467 = vpop.f32.mrb[0].mxu0
    %v3468 = vadd.f32 %v2651, %v3467
    %v3469 = vpop.f32.mrb[0].mxu0
    %v3470 = vadd.f32 %v2655, %v3469
    %v3471 = vpop.f32.mrb[0].mxu0
    %v3472 = vadd.f32 %v2651, %v3471
    %v3473 = vpop.f32.mrb[0].mxu0
    %v3474 = vadd.f32 %v2655, %v3473
    %3475 = vdwg.mxu0
    %v3476 = vmul.f32 %v3339, 1.702
    %v3477 = vmul.f32 %v3341, 1.702
    %v3478 = vmul.f32 %v3382, 1.702
    %v3479 = vmul.f32 %v3384, 1.702
    %v3480 = vmul.f32 %v3425, 1.702
    %v3481 = vmul.f32 %v3427, 1.702
    %v3482 = vmul.f32 %v3468, 1.702
    %v3483 = vmul.f32 %v3470, 1.702
    %v3484 = vmul.f32 %v3343, 1.702
    %v3485 = vmul.f32 %v3345, 1.702
    %v3486 = vmul.f32 %v3386, 1.702
    %v3487 = vmul.f32 %v3388, 1.702
    %v3488 = vmul.f32 %v3429, 1.702
    %v3489 = vmul.f32 %v3431, 1.702
    %v3490 = vmul.f32 %v3472, 1.702
    %v3491 = vmul.f32 %v3474, 1.702
    %v3492 = vxor.u32 %v3476, 2147483648
    %v3493 = vxor.u32 %v3477, 2147483648
    %v3494 = vxor.u32 %v3478, 2147483648
    %v3495 = vxor.u32 %v3479, 2147483648
    %v3496 = vxor.u32 %v3480, 2147483648
    %v3497 = vxor.u32 %v3481, 2147483648
    %v3498 = vxor.u32 %v3482, 2147483648
    %v3499 = vxor.u32 %v3483, 2147483648
    %v3500 = vxor.u32 %v3484, 2147483648
    %v3501 = vxor.u32 %v3485, 2147483648
    %v3502 = vxor.u32 %v3486, 2147483648
    %v3503 = vxor.u32 %v3487, 2147483648
    %v3504 = vxor.u32 %v3488, 2147483648
    %v3505 = vxor.u32 %v3489, 2147483648
    %v3506 = vxor.u32 %v3490, 2147483648
    %v3507 = vxor.u32 %v3491, 2147483648
    %v3508 = vmul.f32 %v3492, 1.442695
    %v3509 = vpow.pop %v3508
    %v3510 = vmul.f32 %v3493, 1.442695
    %v3511 = vpow.pop %v3510
    %v3512 = vmul.f32 %v3494, 1.442695
    %v3513 = vpow.pop %v3512
    %v3514 = vmul.f32 %v3495, 1.442695
    %v3515 = vpow.pop %v3514
    %v3516 = vmul.f32 %v3496, 1.442695
    %v3517 = vpow.pop %v3516
    %v3518 = vmul.f32 %v3497, 1.442695
    %v3519 = vpow.pop %v3518
    %v3520 = vmul.f32 %v3498, 1.442695
    %v3521 = vpow.pop %v3520
    %v3522 = vmul.f32 %v3499, 1.442695
    %v3523 = vpow.pop %v3522
    %v3524 = vmul.f32 %v3500, 1.442695
    %v3525 = vpow.pop %v3524
    %v3526 = vmul.f32 %v3501, 1.442695
    %v3527 = vpow.pop %v3526
    %v3528 = vmul.f32 %v3502, 1.442695
    %v3529 = vpow.pop %v3528
    %v3530 = vmul.f32 %v3503, 1.442695
    %v3531 = vpow.pop %v3530
    %v3532 = vmul.f32 %v3504, 1.442695
    %v3533 = vpow.pop %v3532
    %v3534 = vmul.f32 %v3505, 1.442695
    %v3535 = vpow.pop %v3534
    %v3536 = vmul.f32 %v3506, 1.442695
    %v3537 = vpow.pop %v3536
    %v3538 = vmul.f32 %v3507, 1.442695
    %v3539 = vpow.pop %v3538
    %v3540 = vadd.f32 %v3509, 1.0
    %v3541 = vadd.f32 %v3511, 1.0
    %v3542 = vadd.f32 %v3513, 1.0
    %v3543 = vadd.f32 %v3515, 1.0
    %v3544 = vadd.f32 %v3517, 1.0
    %v3545 = vadd.f32 %v3519, 1.0
    %v3546 = vadd.f32 %v3521, 1.0
    %v3547 = vadd.f32 %v3523, 1.0
    %v3548 = vadd.f32 %v3525, 1.0
    %v3549 = vadd.f32 %v3527, 1.0
    %v3550 = vadd.f32 %v3529, 1.0
    %v3551 = vadd.f32 %v3531, 1.0
    %v3552 = vadd.f32 %v3533, 1.0
    %v3553 = vadd.f32 %v3535, 1.0
    %v3554 = vadd.f32 %v3537, 1.0
    %v3555 = vadd.f32 %v3539, 1.0
    %v3556 = vrcp.pop %v3540
    %v3557 = vmul.f32 1.0, %v3556
    %v3558 = vrcp.pop %v3541
    %v3559 = vmul.f32 1.0, %v3558
    %v3560 = vrcp.pop %v3542
    %v3561 = vmul.f32 1.0, %v3560
    %v3562 = vrcp.pop %v3543
    %v3563 = vmul.f32 1.0, %v3562
    %v3564 = vrcp.pop %v3544
    %v3565 = vmul.f32 1.0, %v3564
    %v3566 = vrcp.pop %v3545
    %v3567 = vmul.f32 1.0, %v3566
    %v3568 = vrcp.pop %v3546
    %v3569 = vmul.f32 1.0, %v3568
    %v3570 = vrcp.pop %v3547
    %v3571 = vmul.f32 1.0, %v3570
    %v3572 = vrcp.pop %v3548
    %v3573 = vmul.f32 1.0, %v3572
    %v3574 = vrcp.pop %v3549
    %v3575 = vmul.f32 1.0, %v3574
    %v3576 = vrcp.pop %v3550
    %v3577 = vmul.f32 1.0, %v3576
    %v3578 = vrcp.pop %v3551
    %v3579 = vmul.f32 1.0, %v3578
    %v3580 = vrcp.pop %v3552
    %v3581 = vmul.f32 1.0, %v3580
    %v3582 = vrcp.pop %v3553
    %v3583 = vmul.f32 1.0, %v3582
    %v3584 = vrcp.pop %v3554
    %v3585 = vmul.f32 1.0, %v3584
    %v3586 = vrcp.pop %v3555
    %v3587 = vmul.f32 1.0, %v3586
    %v3588 = vmul.f32 %v3339, %v3557
    %v3589 = vmul.f32 %v3341, %v3559
    %v3590 = vmul.f32 %v3382, %v3561
    %v3591 = vmul.f32 %v3384, %v3563
    %v3592 = vmul.f32 %v3425, %v3565
    %v3593 = vmul.f32 %v3427, %v3567
    %v3594 = vmul.f32 %v3468, %v3569
    %v3595 = vmul.f32 %v3470, %v3571
    %v3596 = vmul.f32 %v3343, %v3573
    %v3597 = vmul.f32 %v3345, %v3575
    %v3598 = vmul.f32 %v3386, %v3577
    %v3599 = vmul.f32 %v3388, %v3579
    %v3600 = vmul.f32 %v3429, %v3581
    %v3601 = vmul.f32 %v3431, %v3583
    %v3602 = vmul.f32 %v3472, %v3585
    %v3603 = vmul.f32 %v3474, %v3587
    %v3604 = vld [vmem:[#allocation4] sm:$0xff]
    %v3605 = vld [vmem:[#allocation4 + $0x8] sm:$0xff]
    %v3606 = vld [vmem:[#allocation4 + $0x10] sm:$0xff]
    %v3607 = vld [vmem:[#allocation4 + $0x18] sm:$0xff]
    %v3608 = vpack.c.bf16 %v3596, %v3588
    %v3609 = vpack.c.bf16 %v3597, %v3589
    %v3610 = vpack.c.bf16 %v3598, %v3590
    %v3611 = vpack.c.bf16 %v3599, %v3591
    %v3612 = vpack.c.bf16 %v3600, %v3592
    %v3613 = vpack.c.bf16 %v3601, %v3593
    %v3614 = vpack.c.bf16 %v3602, %v3594
    %v3615 = vpack.c.bf16 %v3603, %v3595
    %v3616 = vld [vmem:[#allocation17] sm:$0xff]
    %v3617 = vld [vmem:[#allocation17 + $0x8] sm:$0xff]
    %v3618 = vld [vmem:[#allocation17 + $0x10] sm:$0xff]
    %v3619 = vld [vmem:[#allocation17 + $0x18] sm:$0xff]
    %v3620 = vld [vmem:[#allocation17 + $0x20] sm:$0xff]
    %v3621 = vld [vmem:[#allocation17 + $0x28] sm:$0xff]
    %v3622 = vld [vmem:[#allocation17 + $0x30] sm:$0xff]
    %v3623 = vld [vmem:[#allocation17 + $0x38] sm:$0xff]
    %v3624 = vld [vmem:[#allocation17 + $0x40] sm:$0xff]
    %v3625 = vld [vmem:[#allocation17 + $0x48] sm:$0xff]
    %v3626 = vld [vmem:[#allocation17 + $0x50] sm:$0xff]
    %v3627 = vld [vmem:[#allocation17 + $0x58] sm:$0xff]
    %v3628 = vld [vmem:[#allocation17 + $0x60] sm:$0xff]
    %v3629 = vld [vmem:[#allocation17 + $0x68] sm:$0xff]
    %v3630 = vld [vmem:[#allocation17 + $0x70] sm:$0xff]
    %v3631 = vld [vmem:[#allocation17 + $0x78] sm:$0xff]
    %v3632 = vld [vmem:[#allocation17 + $0x80] sm:$0xff]
    %v3633 = vld [vmem:[#allocation17 + $0x88] sm:$0xff]
    %v3634 = vld [vmem:[#allocation17 + $0x90] sm:$0xff]
    %v3635 = vld [vmem:[#allocation17 + $0x98] sm:$0xff]
    %v3636 = vld [vmem:[#allocation17 + $0xa0] sm:$0xff]
    %v3637 = vld [vmem:[#allocation17 + $0xa8] sm:$0xff]
    %v3638 = vld [vmem:[#allocation17 + $0xb0] sm:$0xff]
    %v3639 = vld [vmem:[#allocation17 + $0xb8] sm:$0xff]
    %v3640 = vld [vmem:[#allocation17 + $0xc0] sm:$0xff]
    %v3641 = vld [vmem:[#allocation17 + $0xc8] sm:$0xff]
    %v3642 = vld [vmem:[#allocation17 + $0xd0] sm:$0xff]
    %v3643 = vld [vmem:[#allocation17 + $0xd8] sm:$0xff]
    %v3644 = vld [vmem:[#allocation17 + $0xe0] sm:$0xff]
    %v3645 = vld [vmem:[#allocation17 + $0xe8] sm:$0xff]
    %v3646 = vld [vmem:[#allocation17 + $0xf0] sm:$0xff]
    %v3647 = vld [vmem:[#allocation17 + $0xf8] sm:$0xff]
    %v3648 = vld [vmem:[#allocation17 + $0x100] sm:$0xff]
    %v3649 = vld [vmem:[#allocation17 + $0x108] sm:$0xff]
    %v3650 = vld [vmem:[#allocation17 + $0x110] sm:$0xff]
    %v3651 = vld [vmem:[#allocation17 + $0x118] sm:$0xff]
    %v3652 = vld [vmem:[#allocation17 + $0x120] sm:$0xff]
    %v3653 = vld [vmem:[#allocation17 + $0x128] sm:$0xff]
    %v3654 = vld [vmem:[#allocation17 + $0x130] sm:$0xff]
    %v3655 = vld [vmem:[#allocation17 + $0x138] sm:$0xff]
    %v3656 = vld [vmem:[#allocation17 + $0x140] sm:$0xff]
    %v3657 = vld [vmem:[#allocation17 + $0x148] sm:$0xff]
    %v3658 = vld [vmem:[#allocation17 + $0x150] sm:$0xff]
    %v3659 = vld [vmem:[#allocation17 + $0x158] sm:$0xff]
    %v3660 = vld [vmem:[#allocation17 + $0x160] sm:$0xff]
    %v3661 = vld [vmem:[#allocation17 + $0x168] sm:$0xff]
    %v3662 = vld [vmem:[#allocation17 + $0x170] sm:$0xff]
    %v3663 = vld [vmem:[#allocation17 + $0x178] sm:$0xff]
    %v3664 = vld [vmem:[#allocation17 + $0x180] sm:$0xff]
    %v3665 = vld [vmem:[#allocation17 + $0x188] sm:$0xff]
    %v3666 = vld [vmem:[#allocation17 + $0x190] sm:$0xff]
    %v3667 = vld [vmem:[#allocation17 + $0x198] sm:$0xff]
    %v3668 = vld [vmem:[#allocation17 + $0x1a0] sm:$0xff]
    %v3669 = vld [vmem:[#allocation17 + $0x1a8] sm:$0xff]
    %v3670 = vld [vmem:[#allocation17 + $0x1b0] sm:$0xff]
    %v3671 = vld [vmem:[#allocation17 + $0x1b8] sm:$0xff]
    %v3672 = vld [vmem:[#allocation17 + $0x1c0] sm:$0xff]
    %v3673 = vld [vmem:[#allocation17 + $0x1c8] sm:$0xff]
    %v3674 = vld [vmem:[#allocation17 + $0x1d0] sm:$0xff]
    %v3675 = vld [vmem:[#allocation17 + $0x1d8] sm:$0xff]
    %v3676 = vld [vmem:[#allocation17 + $0x1e0] sm:$0xff]
    %v3677 = vld [vmem:[#allocation17 + $0x1e8] sm:$0xff]
    %v3678 = vld [vmem:[#allocation17 + $0x1f0] sm:$0xff]
    %v3679 = vld [vmem:[#allocation17 + $0x1f8] sm:$0xff]
    %v3680 = vld [vmem:[#allocation17 + $0x200] sm:$0xff]
    %v3681 = vld [vmem:[#allocation17 + $0x208] sm:$0xff]
    %v3682 = vld [vmem:[#allocation17 + $0x210] sm:$0xff]
    %v3683 = vld [vmem:[#allocation17 + $0x218] sm:$0xff]
    %v3684 = vld [vmem:[#allocation17 + $0x220] sm:$0xff]
    %v3685 = vld [vmem:[#allocation17 + $0x228] sm:$0xff]
    %v3686 = vld [vmem:[#allocation17 + $0x230] sm:$0xff]
    %v3687 = vld [vmem:[#allocation17 + $0x238] sm:$0xff]
    %v3688 = vld [vmem:[#allocation17 + $0x240] sm:$0xff]
    %v3689 = vld [vmem:[#allocation17 + $0x248] sm:$0xff]
    %v3690 = vld [vmem:[#allocation17 + $0x250] sm:$0xff]
    %v3691 = vld [vmem:[#allocation17 + $0x258] sm:$0xff]
    %v3692 = vld [vmem:[#allocation17 + $0x260] sm:$0xff]
    %v3693 = vld [vmem:[#allocation17 + $0x268] sm:$0xff]
    %v3694 = vld [vmem:[#allocation17 + $0x270] sm:$0xff]
    %v3695 = vld [vmem:[#allocation17 + $0x278] sm:$0xff]
    %v3696 = vld [vmem:[#allocation17 + $0x280] sm:$0xff]
    %v3697 = vld [vmem:[#allocation17 + $0x288] sm:$0xff]
    %v3698 = vld [vmem:[#allocation17 + $0x290] sm:$0xff]
    %v3699 = vld [vmem:[#allocation17 + $0x298] sm:$0xff]
    %v3700 = vld [vmem:[#allocation17 + $0x2a0] sm:$0xff]
    %v3701 = vld [vmem:[#allocation17 + $0x2a8] sm:$0xff]
    %v3702 = vld [vmem:[#allocation17 + $0x2b0] sm:$0xff]
    %v3703 = vld [vmem:[#allocation17 + $0x2b8] sm:$0xff]
    %v3704 = vld [vmem:[#allocation17 + $0x2c0] sm:$0xff]
    %v3705 = vld [vmem:[#allocation17 + $0x2c8] sm:$0xff]
    %v3706 = vld [vmem:[#allocation17 + $0x2d0] sm:$0xff]
    %v3707 = vld [vmem:[#allocation17 + $0x2d8] sm:$0xff]
    %v3708 = vld [vmem:[#allocation17 + $0x2e0] sm:$0xff]
    %v3709 = vld [vmem:[#allocation17 + $0x2e8] sm:$0xff]
    %v3710 = vld [vmem:[#allocation17 + $0x2f0] sm:$0xff]
    %v3711 = vld [vmem:[#allocation17 + $0x2f8] sm:$0xff]
    %v3712 = vld [vmem:[#allocation17 + $0x300] sm:$0xff]
    %v3713 = vld [vmem:[#allocation17 + $0x308] sm:$0xff]
    %v3714 = vld [vmem:[#allocation17 + $0x310] sm:$0xff]
    %v3715 = vld [vmem:[#allocation17 + $0x318] sm:$0xff]
    %v3716 = vld [vmem:[#allocation17 + $0x320] sm:$0xff]
    %v3717 = vld [vmem:[#allocation17 + $0x328] sm:$0xff]
    %v3718 = vld [vmem:[#allocation17 + $0x330] sm:$0xff]
    %v3719 = vld [vmem:[#allocation17 + $0x338] sm:$0xff]
    %v3720 = vld [vmem:[#allocation17 + $0x340] sm:$0xff]
    %v3721 = vld [vmem:[#allocation17 + $0x348] sm:$0xff]
    %v3722 = vld [vmem:[#allocation17 + $0x350] sm:$0xff]
    %v3723 = vld [vmem:[#allocation17 + $0x358] sm:$0xff]
    %v3724 = vld [vmem:[#allocation17 + $0x360] sm:$0xff]
    %v3725 = vld [vmem:[#allocation17 + $0x368] sm:$0xff]
    %v3726 = vld [vmem:[#allocation17 + $0x370] sm:$0xff]
    %v3727 = vld [vmem:[#allocation17 + $0x378] sm:$0xff]
    %v3728 = vld [vmem:[#allocation17 + $0x380] sm:$0xff]
    %v3729 = vld [vmem:[#allocation17 + $0x388] sm:$0xff]
    %v3730 = vld [vmem:[#allocation17 + $0x390] sm:$0xff]
    %v3731 = vld [vmem:[#allocation17 + $0x398] sm:$0xff]
    %v3732 = vld [vmem:[#allocation17 + $0x3a0] sm:$0xff]
    %v3733 = vld [vmem:[#allocation17 + $0x3a8] sm:$0xff]
    %v3734 = vld [vmem:[#allocation17 + $0x3b0] sm:$0xff]
    %v3735 = vld [vmem:[#allocation17 + $0x3b8] sm:$0xff]
    %v3736 = vld [vmem:[#allocation17 + $0x3c0] sm:$0xff]
    %v3737 = vld [vmem:[#allocation17 + $0x3c8] sm:$0xff]
    %v3738 = vld [vmem:[#allocation17 + $0x3d0] sm:$0xff]
    %v3739 = vld [vmem:[#allocation17 + $0x3d8] sm:$0xff]
    %v3740 = vld [vmem:[#allocation17 + $0x3e0] sm:$0xff]
    %v3741 = vld [vmem:[#allocation17 + $0x3e8] sm:$0xff]
    %v3742 = vld [vmem:[#allocation17 + $0x3f0] sm:$0xff]
    %v3743 = vld [vmem:[#allocation17 + $0x3f8] sm:$0xff]
    %v3872 = vunpack.c.l.b16 %v3616
    %v3873 = vunpack.c.h.b16 %v3616
    %v3874 = vunpack.c.l.b16 %v3617
    %v3875 = vunpack.c.h.b16 %v3617
    %v3876 = vunpack.c.l.b16 %v3618
    %v3877 = vunpack.c.h.b16 %v3618
    %v3878 = vunpack.c.l.b16 %v3619
    %v3879 = vunpack.c.h.b16 %v3619
    %v3880 = vunpack.c.l.b16 %v3620
    %v3881 = vunpack.c.h.b16 %v3620
    %v3882 = vunpack.c.l.b16 %v3621
    %v3883 = vunpack.c.h.b16 %v3621
    %v3884 = vunpack.c.l.b16 %v3622
    %v3885 = vunpack.c.h.b16 %v3622
    %v3886 = vunpack.c.l.b16 %v3623
    %v3887 = vunpack.c.h.b16 %v3623
    %v3888 = vunpack.c.l.b16 %v3624
    %v3889 = vunpack.c.h.b16 %v3624
    %v3890 = vunpack.c.l.b16 %v3625
    %v3891 = vunpack.c.h.b16 %v3625
    %v3892 = vunpack.c.l.b16 %v3626
    %v3893 = vunpack.c.h.b16 %v3626
    %v3894 = vunpack.c.l.b16 %v3627
    %v3895 = vunpack.c.h.b16 %v3627
    %v3896 = vunpack.c.l.b16 %v3628
    %v3897 = vunpack.c.h.b16 %v3628
    %v3898 = vunpack.c.l.b16 %v3629
    %v3899 = vunpack.c.h.b16 %v3629
    %v3900 = vunpack.c.l.b16 %v3630
    %v3901 = vunpack.c.h.b16 %v3630
    %v3902 = vunpack.c.l.b16 %v3631
    %v3903 = vunpack.c.h.b16 %v3631
    %v3904 = vunpack.c.l.b16 %v3632
    %v3905 = vunpack.c.h.b16 %v3632
    %v3906 = vunpack.c.l.b16 %v3633
    %v3907 = vunpack.c.h.b16 %v3633
    %v3908 = vunpack.c.l.b16 %v3634
    %v3909 = vunpack.c.h.b16 %v3634
    %v3910 = vunpack.c.l.b16 %v3635
    %v3911 = vunpack.c.h.b16 %v3635
    %v3912 = vunpack.c.l.b16 %v3636
    %v3913 = vunpack.c.h.b16 %v3636
    %v3914 = vunpack.c.l.b16 %v3637
    %v3915 = vunpack.c.h.b16 %v3637
    %v3916 = vunpack.c.l.b16 %v3638
    %v3917 = vunpack.c.h.b16 %v3638
    %v3918 = vunpack.c.l.b16 %v3639
    %v3919 = vunpack.c.h.b16 %v3639
    %v3920 = vunpack.c.l.b16 %v3640
    %v3921 = vunpack.c.h.b16 %v3640
    %v3922 = vunpack.c.l.b16 %v3641
    %v3923 = vunpack.c.h.b16 %v3641
    %v3924 = vunpack.c.l.b16 %v3642
    %v3925 = vunpack.c.h.b16 %v3642
    %v3926 = vunpack.c.l.b16 %v3643
    %v3927 = vunpack.c.h.b16 %v3643
    %v3928 = vunpack.c.l.b16 %v3644
    %v3929 = vunpack.c.h.b16 %v3644
    %v3930 = vunpack.c.l.b16 %v3645
    %v3931 = vunpack.c.h.b16 %v3645
    %v3932 = vunpack.c.l.b16 %v3646
    %v3933 = vunpack.c.h.b16 %v3646
    %v3934 = vunpack.c.l.b16 %v3647
    %v3935 = vunpack.c.h.b16 %v3647
    %v3936 = vunpack.c.l.b16 %v3648
    %v3937 = vunpack.c.h.b16 %v3648
    %v3938 = vunpack.c.l.b16 %v3649
    %v3939 = vunpack.c.h.b16 %v3649
    %v3940 = vunpack.c.l.b16 %v3650
    %v3941 = vunpack.c.h.b16 %v3650
    %v3942 = vunpack.c.l.b16 %v3651
    %v3943 = vunpack.c.h.b16 %v3651
    %v3944 = vunpack.c.l.b16 %v3652
    %v3945 = vunpack.c.h.b16 %v3652
    %v3946 = vunpack.c.l.b16 %v3653
    %v3947 = vunpack.c.h.b16 %v3653
    %v3948 = vunpack.c.l.b16 %v3654
    %v3949 = vunpack.c.h.b16 %v3654
    %v3950 = vunpack.c.l.b16 %v3655
    %v3951 = vunpack.c.h.b16 %v3655
    %v3952 = vunpack.c.l.b16 %v3656
    %v3953 = vunpack.c.h.b16 %v3656
    %v3954 = vunpack.c.l.b16 %v3657
    %v3955 = vunpack.c.h.b16 %v3657
    %v3956 = vunpack.c.l.b16 %v3658
    %v3957 = vunpack.c.h.b16 %v3658
    %v3958 = vunpack.c.l.b16 %v3659
    %v3959 = vunpack.c.h.b16 %v3659
    %v3960 = vunpack.c.l.b16 %v3660
    %v3961 = vunpack.c.h.b16 %v3660
    %v3962 = vunpack.c.l.b16 %v3661
    %v3963 = vunpack.c.h.b16 %v3661
    %v3964 = vunpack.c.l.b16 %v3662
    %v3965 = vunpack.c.h.b16 %v3662
    %v3966 = vunpack.c.l.b16 %v3663
    %v3967 = vunpack.c.h.b16 %v3663
    %v3968 = vunpack.c.l.b16 %v3664
    %v3969 = vunpack.c.h.b16 %v3664
    %v3970 = vunpack.c.l.b16 %v3665
    %v3971 = vunpack.c.h.b16 %v3665
    %v3972 = vunpack.c.l.b16 %v3666
    %v3973 = vunpack.c.h.b16 %v3666
    %v3974 = vunpack.c.l.b16 %v3667
    %v3975 = vunpack.c.h.b16 %v3667
    %v3976 = vunpack.c.l.b16 %v3668
    %v3977 = vunpack.c.h.b16 %v3668
    %v3978 = vunpack.c.l.b16 %v3669
    %v3979 = vunpack.c.h.b16 %v3669
    %v3980 = vunpack.c.l.b16 %v3670
    %v3981 = vunpack.c.h.b16 %v3670
    %v3982 = vunpack.c.l.b16 %v3671
    %v3983 = vunpack.c.h.b16 %v3671
    %v3984 = vunpack.c.l.b16 %v3672
    %v3985 = vunpack.c.h.b16 %v3672
    %v3986 = vunpack.c.l.b16 %v3673
    %v3987 = vunpack.c.h.b16 %v3673
    %v3988 = vunpack.c.l.b16 %v3674
    %v3989 = vunpack.c.h.b16 %v3674
    %v3990 = vunpack.c.l.b16 %v3675
    %v3991 = vunpack.c.h.b16 %v3675
    %v3992 = vunpack.c.l.b16 %v3676
    %v3993 = vunpack.c.h.b16 %v3676
    %v3994 = vunpack.c.l.b16 %v3677
    %v3995 = vunpack.c.h.b16 %v3677
    %v3996 = vunpack.c.l.b16 %v3678
    %v3997 = vunpack.c.h.b16 %v3678
    %v3998 = vunpack.c.l.b16 %v3679
    %v3999 = vunpack.c.h.b16 %v3679
    %v4000 = vunpack.c.l.b16 %v3680
    %v4001 = vunpack.c.h.b16 %v3680
    %v4002 = vunpack.c.l.b16 %v3681
    %v4003 = vunpack.c.h.b16 %v3681
    %v4004 = vunpack.c.l.b16 %v3682
    %v4005 = vunpack.c.h.b16 %v3682
    %v4006 = vunpack.c.l.b16 %v3683
    %v4007 = vunpack.c.h.b16 %v3683
    %v4008 = vunpack.c.l.b16 %v3684
    %v4009 = vunpack.c.h.b16 %v3684
    %v4010 = vunpack.c.l.b16 %v3685
    %v4011 = vunpack.c.h.b16 %v3685
    %v4012 = vunpack.c.l.b16 %v3686
    %v4013 = vunpack.c.h.b16 %v3686
    %v4014 = vunpack.c.l.b16 %v3687
    %v4015 = vunpack.c.h.b16 %v3687
    %v4016 = vunpack.c.l.b16 %v3688
    %v4017 = vunpack.c.h.b16 %v3688
    %v4018 = vunpack.c.l.b16 %v3689
    %v4019 = vunpack.c.h.b16 %v3689
    %v4020 = vunpack.c.l.b16 %v3690
    %v4021 = vunpack.c.h.b16 %v3690
    %v4022 = vunpack.c.l.b16 %v3691
    %v4023 = vunpack.c.h.b16 %v3691
    %v4024 = vunpack.c.l.b16 %v3692
    %v4025 = vunpack.c.h.b16 %v3692
    %v4026 = vunpack.c.l.b16 %v3693
    %v4027 = vunpack.c.h.b16 %v3693
    %v4028 = vunpack.c.l.b16 %v3694
    %v4029 = vunpack.c.h.b16 %v3694
    %v4030 = vunpack.c.l.b16 %v3695
    %v4031 = vunpack.c.h.b16 %v3695
    %v4032 = vunpack.c.l.b16 %v3696
    %v4033 = vunpack.c.h.b16 %v3696
    %v4034 = vunpack.c.l.b16 %v3697
    %v4035 = vunpack.c.h.b16 %v3697
    %v4036 = vunpack.c.l.b16 %v3698
    %v4037 = vunpack.c.h.b16 %v3698
    %v4038 = vunpack.c.l.b16 %v3699
    %v4039 = vunpack.c.h.b16 %v3699
    %v4040 = vunpack.c.l.b16 %v3700
    %v4041 = vunpack.c.h.b16 %v3700
    %v4042 = vunpack.c.l.b16 %v3701
    %v4043 = vunpack.c.h.b16 %v3701
    %v4044 = vunpack.c.l.b16 %v3702
    %v4045 = vunpack.c.h.b16 %v3702
    %v4046 = vunpack.c.l.b16 %v3703
    %v4047 = vunpack.c.h.b16 %v3703
    %v4048 = vunpack.c.l.b16 %v3704
    %v4049 = vunpack.c.h.b16 %v3704
    %v4050 = vunpack.c.l.b16 %v3705
    %v4051 = vunpack.c.h.b16 %v3705
    %v4052 = vunpack.c.l.b16 %v3706
    %v4053 = vunpack.c.h.b16 %v3706
    %v4054 = vunpack.c.l.b16 %v3707
    %v4055 = vunpack.c.h.b16 %v3707
    %v4056 = vunpack.c.l.b16 %v3708
    %v4057 = vunpack.c.h.b16 %v3708
    %v4058 = vunpack.c.l.b16 %v3709
    %v4059 = vunpack.c.h.b16 %v3709
    %v4060 = vunpack.c.l.b16 %v3710
    %v4061 = vunpack.c.h.b16 %v3710
    %v4062 = vunpack.c.l.b16 %v3711
    %v4063 = vunpack.c.h.b16 %v3711
    %v4064 = vunpack.c.l.b16 %v3712
    %v4065 = vunpack.c.h.b16 %v3712
    %v4066 = vunpack.c.l.b16 %v3713
    %v4067 = vunpack.c.h.b16 %v3713
    %v4068 = vunpack.c.l.b16 %v3714
    %v4069 = vunpack.c.h.b16 %v3714
    %v4070 = vunpack.c.l.b16 %v3715
    %v4071 = vunpack.c.h.b16 %v3715
    %v4072 = vunpack.c.l.b16 %v3716
    %v4073 = vunpack.c.h.b16 %v3716
    %v4074 = vunpack.c.l.b16 %v3717
    %v4075 = vunpack.c.h.b16 %v3717
    %v4076 = vunpack.c.l.b16 %v3718
    %v4077 = vunpack.c.h.b16 %v3718
    %v4078 = vunpack.c.l.b16 %v3719
    %v4079 = vunpack.c.h.b16 %v3719
    %v4080 = vunpack.c.l.b16 %v3720
    %v4081 = vunpack.c.h.b16 %v3720
    %v4082 = vunpack.c.l.b16 %v3721
    %v4083 = vunpack.c.h.b16 %v3721
    %v4084 = vunpack.c.l.b16 %v3722
    %v4085 = vunpack.c.h.b16 %v3722
    %v4086 = vunpack.c.l.b16 %v3723
    %v4087 = vunpack.c.h.b16 %v3723
    %v4088 = vunpack.c.l.b16 %v3724
    %v4089 = vunpack.c.h.b16 %v3724
    %v4090 = vunpack.c.l.b16 %v3725
    %v4091 = vunpack.c.h.b16 %v3725
    %v4092 = vunpack.c.l.b16 %v3726
    %v4093 = vunpack.c.h.b16 %v3726
    %v4094 = vunpack.c.l.b16 %v3727
    %v4095 = vunpack.c.h.b16 %v3727
    %v4096 = vunpack.c.l.b16 %v3728
    %v4097 = vunpack.c.h.b16 %v3728
    %v4098 = vunpack.c.l.b16 %v3729
    %v4099 = vunpack.c.h.b16 %v3729
    %v4100 = vunpack.c.l.b16 %v3730
    %v4101 = vunpack.c.h.b16 %v3730
    %v4102 = vunpack.c.l.b16 %v3731
    %v4103 = vunpack.c.h.b16 %v3731
    %v4104 = vunpack.c.l.b16 %v3732
    %v4105 = vunpack.c.h.b16 %v3732
    %v4106 = vunpack.c.l.b16 %v3733
    %v4107 = vunpack.c.h.b16 %v3733
    %v4108 = vunpack.c.l.b16 %v3734
    %v4109 = vunpack.c.h.b16 %v3734
    %v4110 = vunpack.c.l.b16 %v3735
    %v4111 = vunpack.c.h.b16 %v3735
    %v4112 = vunpack.c.l.b16 %v3736
    %v4113 = vunpack.c.h.b16 %v3736
    %v4114 = vunpack.c.l.b16 %v3737
    %v4115 = vunpack.c.h.b16 %v3737
    %v4116 = vunpack.c.l.b16 %v3738
    %v4117 = vunpack.c.h.b16 %v3738
    %v4118 = vunpack.c.l.b16 %v3739
    %v4119 = vunpack.c.h.b16 %v3739
    %v4120 = vunpack.c.l.b16 %v3740
    %v4121 = vunpack.c.h.b16 %v3740
    %v4122 = vunpack.c.l.b16 %v3741
    %v4123 = vunpack.c.h.b16 %v3741
    %v4124 = vunpack.c.l.b16 %v3742
    %v4125 = vunpack.c.h.b16 %v3742
    %v4126 = vunpack.c.l.b16 %v3743
    %v4127 = vunpack.c.h.b16 %v3743
    %v4128 = vpack.c.b16 %v3874, %v3872
    %v4129 = vpack.c.b16 %v3875, %v3873
    %v4130 = vpack.c.b16 %v3878, %v3876
    %v4131 = vpack.c.b16 %v3879, %v3877
    %v4132 = vpack.c.b16 %v3882, %v3880
    %v4133 = vpack.c.b16 %v3883, %v3881
    %v4134 = vpack.c.b16 %v3886, %v3884
    %v4135 = vpack.c.b16 %v3887, %v3885
    %v4136 = vpack.c.b16 %v3890, %v3888
    %v4137 = vpack.c.b16 %v3891, %v3889
    %v4138 = vpack.c.b16 %v3894, %v3892
    %v4139 = vpack.c.b16 %v3895, %v3893
    %v4140 = vpack.c.b16 %v3898, %v3896
    %v4141 = vpack.c.b16 %v3899, %v3897
    %v4142 = vpack.c.b16 %v3902, %v3900
    %v4143 = vpack.c.b16 %v3903, %v3901
    %v4144 = vpack.c.b16 %v3906, %v3904
    %v4145 = vpack.c.b16 %v3907, %v3905
    %v4146 = vpack.c.b16 %v3910, %v3908
    %v4147 = vpack.c.b16 %v3911, %v3909
    %v4148 = vpack.c.b16 %v3914, %v3912
    %v4149 = vpack.c.b16 %v3915, %v3913
    %v4150 = vpack.c.b16 %v3918, %v3916
    %v4151 = vpack.c.b16 %v3919, %v3917
    %v4152 = vpack.c.b16 %v3922, %v3920
    %v4153 = vpack.c.b16 %v3923, %v3921
    %v4154 = vpack.c.b16 %v3926, %v3924
    %v4155 = vpack.c.b16 %v3927, %v3925
    %v4156 = vpack.c.b16 %v3930, %v3928
    %v4157 = vpack.c.b16 %v3931, %v3929
    %v4158 = vpack.c.b16 %v3934, %v3932
    %v4159 = vpack.c.b16 %v3935, %v3933
    %v4160 = vpack.c.b16 %v3938, %v3936
    %v4161 = vpack.c.b16 %v3939, %v3937
    %v4162 = vpack.c.b16 %v3942, %v3940
    %v4163 = vpack.c.b16 %v3943, %v3941
    %v4164 = vpack.c.b16 %v3946, %v3944
    %v4165 = vpack.c.b16 %v3947, %v3945
    %v4166 = vpack.c.b16 %v3950, %v3948
    %v4167 = vpack.c.b16 %v3951, %v3949
    %v4168 = vpack.c.b16 %v3954, %v3952
    %v4169 = vpack.c.b16 %v3955, %v3953
    %v4170 = vpack.c.b16 %v3958, %v3956
    %v4171 = vpack.c.b16 %v3959, %v3957
    %v4172 = vpack.c.b16 %v3962, %v3960
    %v4173 = vpack.c.b16 %v3963, %v3961
    %v4174 = vpack.c.b16 %v3966, %v3964
    %v4175 = vpack.c.b16 %v3967, %v3965
    %v4176 = vpack.c.b16 %v3970, %v3968
    %v4177 = vpack.c.b16 %v3971, %v3969
    %v4178 = vpack.c.b16 %v3974, %v3972
    %v4179 = vpack.c.b16 %v3975, %v3973
    %v4180 = vpack.c.b16 %v3978, %v3976
    %v4181 = vpack.c.b16 %v3979, %v3977
    %v4182 = vpack.c.b16 %v3982, %v3980
    %v4183 = vpack.c.b16 %v3983, %v3981
    %v4184 = vpack.c.b16 %v3986, %v3984
    %v4185 = vpack.c.b16 %v3987, %v3985
    %v4186 = vpack.c.b16 %v3990, %v3988
    %v4187 = vpack.c.b16 %v3991, %v3989
    %v4188 = vpack.c.b16 %v3994, %v3992
    %v4189 = vpack.c.b16 %v3995, %v3993
    %v4190 = vpack.c.b16 %v3998, %v3996
    %v4191 = vpack.c.b16 %v3999, %v3997
    %v4192 = vpack.c.b16 %v4002, %v4000
    %v4193 = vpack.c.b16 %v4003, %v4001
    %v4194 = vpack.c.b16 %v4006, %v4004
    %v4195 = vpack.c.b16 %v4007, %v4005
    %v4196 = vpack.c.b16 %v4010, %v4008
    %v4197 = vpack.c.b16 %v4011, %v4009
    %v4198 = vpack.c.b16 %v4014, %v4012
    %v4199 = vpack.c.b16 %v4015, %v4013
    %v4200 = vpack.c.b16 %v4018, %v4016
    %v4201 = vpack.c.b16 %v4019, %v4017
    %v4202 = vpack.c.b16 %v4022, %v4020
    %v4203 = vpack.c.b16 %v4023, %v4021
    %v4204 = vpack.c.b16 %v4026, %v4024
    %v4205 = vpack.c.b16 %v4027, %v4025
    %v4206 = vpack.c.b16 %v4030, %v4028
    %v4207 = vpack.c.b16 %v4031, %v4029
    %v4208 = vpack.c.b16 %v4034, %v4032
    %v4209 = vpack.c.b16 %v4035, %v4033
    %v4210 = vpack.c.b16 %v4038, %v4036
    %v4211 = vpack.c.b16 %v4039, %v4037
    %v4212 = vpack.c.b16 %v4042, %v4040
    %v4213 = vpack.c.b16 %v4043, %v4041
    %v4214 = vpack.c.b16 %v4046, %v4044
    %v4215 = vpack.c.b16 %v4047, %v4045
    %v4216 = vpack.c.b16 %v4050, %v4048
    %v4217 = vpack.c.b16 %v4051, %v4049
    %v4218 = vpack.c.b16 %v4054, %v4052
    %v4219 = vpack.c.b16 %v4055, %v4053
    %v4220 = vpack.c.b16 %v4058, %v4056
    %v4221 = vpack.c.b16 %v4059, %v4057
    %v4222 = vpack.c.b16 %v4062, %v4060
    %v4223 = vpack.c.b16 %v4063, %v4061
    %v4224 = vpack.c.b16 %v4066, %v4064
    %v4225 = vpack.c.b16 %v4067, %v4065
    %v4226 = vpack.c.b16 %v4070, %v4068
    %v4227 = vpack.c.b16 %v4071, %v4069
    %v4228 = vpack.c.b16 %v4074, %v4072
    %v4229 = vpack.c.b16 %v4075, %v4073
    %v4230 = vpack.c.b16 %v4078, %v4076
    %v4231 = vpack.c.b16 %v4079, %v4077
    %v4232 = vpack.c.b16 %v4082, %v4080
    %v4233 = vpack.c.b16 %v4083, %v4081
    %v4234 = vpack.c.b16 %v4086, %v4084
    %v4235 = vpack.c.b16 %v4087, %v4085
    %v4236 = vpack.c.b16 %v4090, %v4088
    %v4237 = vpack.c.b16 %v4091, %v4089
    %v4238 = vpack.c.b16 %v4094, %v4092
    %v4239 = vpack.c.b16 %v4095, %v4093
    %v4240 = vpack.c.b16 %v4098, %v4096
    %v4241 = vpack.c.b16 %v4099, %v4097
    %v4242 = vpack.c.b16 %v4102, %v4100
    %v4243 = vpack.c.b16 %v4103, %v4101
    %v4244 = vpack.c.b16 %v4106, %v4104
    %v4245 = vpack.c.b16 %v4107, %v4105
    %v4246 = vpack.c.b16 %v4110, %v4108
    %v4247 = vpack.c.b16 %v4111, %v4109
    %v4248 = vpack.c.b16 %v4114, %v4112
    %v4249 = vpack.c.b16 %v4115, %v4113
    %v4250 = vpack.c.b16 %v4118, %v4116
    %v4251 = vpack.c.b16 %v4119, %v4117
    %v4252 = vpack.c.b16 %v4122, %v4120
    %v4253 = vpack.c.b16 %v4123, %v4121
    %v4254 = vpack.c.b16 %v4126, %v4124
    %v4255 = vpack.c.b16 %v4127, %v4125
    %4384 = vmatprep.subr.bf16.mxu0 %v4129
    %4385 = vmatpush1.bf16.msra.mxu0 %v4128
    %4386 = vmatprep.subr.bf16.mxu0 %v4131
    %4387 = vmatpush1.bf16.msra.mxu0 %v4130
    %4388 = vmatprep.subr.bf16.mxu0 %v4133
    %4389 = vmatpush1.bf16.msra.mxu0 %v4132
    %4390 = vmatprep.subr.bf16.mxu0 %v4135
    %4391 = vmatpush1.bf16.msra.mxu0 %v4134
    %4392 = vmatprep.subr.bf16.mxu0 %v4137
    %4393 = vmatpush1.bf16.msra.mxu0 %v4136
    %4394 = vmatprep.subr.bf16.mxu0 %v4139
    %4395 = vmatpush1.bf16.msra.mxu0 %v4138
    %4396 = vmatprep.subr.bf16.mxu0 %v4141
    %4397 = vmatpush1.bf16.msra.mxu0 %v4140
    %4398 = vmatprep.subr.bf16.mxu0 %v4143
    %4399 = vmatpush1.bf16.msra.mxu0 %v4142
    %4400 = vmatprep.subr.bf16.mxu0 %v4145
    %4401 = vmatpush1.bf16.msra.mxu0 %v4144
    %4402 = vmatprep.subr.bf16.mxu0 %v4147
    %4403 = vmatpush1.bf16.msra.mxu0 %v4146
    %4404 = vmatprep.subr.bf16.mxu0 %v4149
    %4405 = vmatpush1.bf16.msra.mxu0 %v4148
    %4406 = vmatprep.subr.bf16.mxu0 %v4151
    %4407 = vmatpush1.bf16.msra.mxu0 %v4150
    %4408 = vmatprep.subr.bf16.mxu0 %v4153
    %4409 = vmatpush1.bf16.msra.mxu0 %v4152
    %4410 = vmatprep.subr.bf16.mxu0 %v4155
    %4411 = vmatpush1.bf16.msra.mxu0 %v4154
    %4412 = vmatprep.subr.bf16.mxu0 %v4157
    %4413 = vmatpush1.bf16.msra.mxu0 %v4156
    %4414 = vmatprep.subr.bf16.mxu0 %v4159
    %4415 = vmatpush1.bf16.msra.mxu0 %v4158
    %4416 = vmatprep.mubr.bf16.mxu0 %v3609
    %4417 = vmatmul.mubr.bf16.gmra.mrb[0].mxu0 %v3608
    %v4418 = vpop.f32.mrb[0].mxu0
    %v4419 = vadd.f32 0.0, %v4418
    %v4420 = vpop.f32.mrb[0].mxu0
    %v4421 = vadd.f32 0.0, %v4420
    %v4422 = vpop.f32.mrb[0].mxu0
    %v4423 = vadd.f32 0.0, %v4422
    %v4424 = vpop.f32.mrb[0].mxu0
    %v4425 = vadd.f32 0.0, %v4424
    %4426 = vdwg.mxu0
    %4427 = vmatprep.subr.bf16.mxu0 %v4161
    %4428 = vmatpush1.bf16.msra.mxu0 %v4160
    %4429 = vmatprep.subr.bf16.mxu0 %v4163
    %4430 = vmatpush1.bf16.msra.mxu0 %v4162
    %4431 = vmatprep.subr.bf16.mxu0 %v4165
    %4432 = vmatpush1.bf16.msra.mxu0 %v4164
    %4433 = vmatprep.subr.bf16.mxu0 %v4167
    %4434 = vmatpush1.bf16.msra.mxu0 %v4166
    %4435 = vmatprep.subr.bf16.mxu0 %v4169
    %4436 = vmatpush1.bf16.msra.mxu0 %v4168
    %4437 = vmatprep.subr.bf16.mxu0 %v4171
    %4438 = vmatpush1.bf16.msra.mxu0 %v4170
    %4439 = vmatprep.subr.bf16.mxu0 %v4173
    %4440 = vmatpush1.bf16.msra.mxu0 %v4172
    %4441 = vmatprep.subr.bf16.mxu0 %v4175
    %4442 = vmatpush1.bf16.msra.mxu0 %v4174
    %4443 = vmatprep.subr.bf16.mxu0 %v4177
    %4444 = vmatpush1.bf16.msra.mxu0 %v4176
    %4445 = vmatprep.subr.bf16.mxu0 %v4179
    %4446 = vmatpush1.bf16.msra.mxu0 %v4178
    %4447 = vmatprep.subr.bf16.mxu0 %v4181
    %4448 = vmatpush1.bf16.msra.mxu0 %v4180
    %4449 = vmatprep.subr.bf16.mxu0 %v4183
    %4450 = vmatpush1.bf16.msra.mxu0 %v4182
    %4451 = vmatprep.subr.bf16.mxu0 %v4185
    %4452 = vmatpush1.bf16.msra.mxu0 %v4184
    %4453 = vmatprep.subr.bf16.mxu0 %v4187
    %4454 = vmatpush1.bf16.msra.mxu0 %v4186
    %4455 = vmatprep.subr.bf16.mxu0 %v4189
    %4456 = vmatpush1.bf16.msra.mxu0 %v4188
    %4457 = vmatprep.subr.bf16.mxu0 %v4191
    %4458 = vmatpush1.bf16.msra.mxu0 %v4190
    %4459 = vmatprep.mubr.bf16.mxu0 %v3611
    %4460 = vmatmul.mubr.bf16.gmra.mrb[0].mxu0 %v3610
    %v4461 = vpop.f32.mrb[0].mxu0
    %v4462 = vadd.f32 %v4419, %v4461
    %v4463 = vpop.f32.mrb[0].mxu0
    %v4464 = vadd.f32 %v4421, %v4463
    %v4465 = vpop.f32.mrb[0].mxu0
    %v4466 = vadd.f32 %v4423, %v4465
    %v4467 = vpop.f32.mrb[0].mxu0
    %v4468 = vadd.f32 %v4425, %v4467
    %4469 = vdwg.mxu0
    %4470 = vmatprep.subr.bf16.mxu0 %v4193
    %4471 = vmatpush1.bf16.msra.mxu0 %v4192
    %4472 = vmatprep.subr.bf16.mxu0 %v4195
    %4473 = vmatpush1.bf16.msra.mxu0 %v4194
    %4474 = vmatprep.subr.bf16.mxu0 %v4197
    %4475 = vmatpush1.bf16.msra.mxu0 %v4196
    %4476 = vmatprep.subr.bf16.mxu0 %v4199
    %4477 = vmatpush1.bf16.msra.mxu0 %v4198
    %4478 = vmatprep.subr.bf16.mxu0 %v4201
    %4479 = vmatpush1.bf16.msra.mxu0 %v4200
    %4480 = vmatprep.subr.bf16.mxu0 %v4203
    %4481 = vmatpush1.bf16.msra.mxu0 %v4202
    %4482 = vmatprep.subr.bf16.mxu0 %v4205
    %4483 = vmatpush1.bf16.msra.mxu0 %v4204
    %4484 = vmatprep.subr.bf16.mxu0 %v4207
    %4485 = vmatpush1.bf16.msra.mxu0 %v4206
    %4486 = vmatprep.subr.bf16.mxu0 %v4209
    %4487 = vmatpush1.bf16.msra.mxu0 %v4208
    %4488 = vmatprep.subr.bf16.mxu0 %v4211
    %4489 = vmatpush1.bf16.msra.mxu0 %v4210
    %4490 = vmatprep.subr.bf16.mxu0 %v4213
    %4491 = vmatpush1.bf16.msra.mxu0 %v4212
    %4492 = vmatprep.subr.bf16.mxu0 %v4215
    %4493 = vmatpush1.bf16.msra.mxu0 %v4214
    %4494 = vmatprep.subr.bf16.mxu0 %v4217
    %4495 = vmatpush1.bf16.msra.mxu0 %v4216
    %4496 = vmatprep.subr.bf16.mxu0 %v4219
    %4497 = vmatpush1.bf16.msra.mxu0 %v4218
    %4498 = vmatprep.subr.bf16.mxu0 %v4221
    %4499 = vmatpush1.bf16.msra.mxu0 %v4220
    %4500 = vmatprep.subr.bf16.mxu0 %v4223
    %4501 = vmatpush1.bf16.msra.mxu0 %v4222
    %4502 = vmatprep.mubr.bf16.mxu0 %v3613
    %4503 = vmatmul.mubr.bf16.gmra.mrb[0].mxu0 %v3612
    %v4504 = vpop.f32.mrb[0].mxu0
    %v4505 = vadd.f32 %v4462, %v4504
    %v4506 = vpop.f32.mrb[0].mxu0
    %v4507 = vadd.f32 %v4464, %v4506
    %v4508 = vpop.f32.mrb[0].mxu0
    %v4509 = vadd.f32 %v4466, %v4508
    %v4510 = vpop.f32.mrb[0].mxu0
    %v4511 = vadd.f32 %v4468, %v4510
    %4512 = vdwg.mxu0
    %4513 = vmatprep.subr.bf16.mxu0 %v4225
    %4514 = vmatpush1.bf16.msra.mxu0 %v4224
    %4515 = vmatprep.subr.bf16.mxu0 %v4227
    %4516 = vmatpush1.bf16.msra.mxu0 %v4226
    %4517 = vmatprep.subr.bf16.mxu0 %v4229
    %4518 = vmatpush1.bf16.msra.mxu0 %v4228
    %4519 = vmatprep.subr.bf16.mxu0 %v4231
    %4520 = vmatpush1.bf16.msra.mxu0 %v4230
    %4521 = vmatprep.subr.bf16.mxu0 %v4233
    %4522 = vmatpush1.bf16.msra.mxu0 %v4232
    %4523 = vmatprep.subr.bf16.mxu0 %v4235
    %4524 = vmatpush1.bf16.msra.mxu0 %v4234
    %4525 = vmatprep.subr.bf16.mxu0 %v4237
    %4526 = vmatpush1.bf16.msra.mxu0 %v4236
    %4527 = vmatprep.subr.bf16.mxu0 %v4239
    %4528 = vmatpush1.bf16.msra.mxu0 %v4238
    %4529 = vmatprep.subr.bf16.mxu0 %v4241
    %4530 = vmatpush1.bf16.msra.mxu0 %v4240
    %4531 = vmatprep.subr.bf16.mxu0 %v4243
    %4532 = vmatpush1.bf16.msra.mxu0 %v4242
    %4533 = vmatprep.subr.bf16.mxu0 %v4245
    %4534 = vmatpush1.bf16.msra.mxu0 %v4244
    %4535 = vmatprep.subr.bf16.mxu0 %v4247
    %4536 = vmatpush1.bf16.msra.mxu0 %v4246
    %4537 = vmatprep.subr.bf16.mxu0 %v4249
    %4538 = vmatpush1.bf16.msra.mxu0 %v4248
    %4539 = vmatprep.subr.bf16.mxu0 %v4251
    %4540 = vmatpush1.bf16.msra.mxu0 %v4250
    %4541 = vmatprep.subr.bf16.mxu0 %v4253
    %4542 = vmatpush1.bf16.msra.mxu0 %v4252
    %4543 = vmatprep.subr.bf16.mxu0 %v4255
    %4544 = vmatpush1.bf16.msra.mxu0 %v4254
    %4545 = vmatprep.mubr.bf16.mxu0 %v3615
    %4546 = vmatmul.mubr.bf16.gmra.mrb[0].mxu0 %v3614
    %v4547 = vpop.f32.mrb[0].mxu0
    %v4548 = vadd.f32 %v4505, %v4547
    %v4549 = vpop.f32.mrb[0].mxu0
    %v4550 = vadd.f32 %v4507, %v4549
    %v4551 = vpop.f32.mrb[0].mxu0
    %v4552 = vadd.f32 %v4509, %v4551
    %v4553 = vpop.f32.mrb[0].mxu0
    %v4554 = vadd.f32 %v4511, %v4553
    %4555 = vdwg.mxu0
    %v4556 = vadd.f32 %v3604, %v4548
    %v4557 = vadd.f32 %v3605, %v4550
    %v4558 = vadd.f32 %v3606, %v4552
    %v4559 = vadd.f32 %v3607, %v4554
    %4560 = vst [vmem:[#allocation4] sm:$0xff] %v4556
    %4561 = vst [vmem:[#allocation4 + $0x8] sm:$0xff] %v4557
    %4562 = vst [vmem:[#allocation4 + $0x10] sm:$0xff] %v4558
    %4563 = vst [vmem:[#allocation4 + $0x18] sm:$0xff] %v4559
    // Predicated region
    $region94: #{tpu_custom_call.1} parent=1 // pred_check
      %p4564 = pneg %p154
    $region95: #{tpu_custom_call.1} parent=1 // pred_check_branch
      %4566 = sbr.rel (%p4564) target = $region97
    $region96: #{tpu_custom_call.1} parent=1 // pred_region
      %v4567 = vld [vmem:[#allocation2] sm:$0xff]
      %v4568 = vld [vmem:[#allocation2 + $0x8] sm:$0xff]
      %v4569 = vld [vmem:[#allocation2 + $0x10] sm:$0xff]
      %v4570 = vld [vmem:[#allocation2 + $0x18] sm:$0xff]
      %v4571 = vld [vmem:[#allocation4] sm:$0xff]
      %v4572 = vld [vmem:[#allocation4 + $0x8] sm:$0xff]
      %v4573 = vld [vmem:[#allocation4 + $0x10] sm:$0xff]
      %v4574 = vld [vmem:[#allocation4 + $0x18] sm:$0xff]
      %v4575 = vadd.f32 %v4567, %v4571
      %v4576 = vadd.f32 %v4568, %v4572
      %v4577 = vadd.f32 %v4569, %v4573
      %v4578 = vadd.f32 %v4570, %v4574
      %4579 = vst [vmem:[#allocation19] sm:$0xff] %v4575
      %4580 = vst [vmem:[#allocation19 + $0x8] sm:$0xff] %v4576
      %4581 = vst [vmem:[#allocation19 + $0x10] sm:$0xff] %v4577
      %4582 = vst [vmem:[#allocation19 + $0x18] sm:$0xff] %v4578
    $region97: #{tpu_custom_call.1} parent=1 // pred_fallthru
      _
    // Predicated region
    $region98: #{tpu_custom_call.1} parent=1 // pred_check
      _
    $region99: #{tpu_custom_call.1} parent=1 // pred_check_branch
      %4584 = sbr.rel (0) target = $region101
    $region100: #{tpu_custom_call.1} parent=1 // pred_region
      %s4586 = ssub.s32 512, 512
      %4587 = vsyncadd [#allocation7], %s4586
      %s4588 = sshll.u32 [#allocation19], 4
      %s4589 = int_to_ptr.vmem [resolvable:$true] %s4588
      %4594 = dma.vmem_to_hbm [thread:$0]  %s4589, 512, %s14, [#allocation7], 256, 256, 16
    $region101: #{tpu_custom_call.1} parent=1 // pred_fallthru
      _
    // Predicated region
    $region102: #{tpu_custom_call.1} parent=1 // pred_check
      _
    $region103: #{tpu_custom_call.1} parent=1 // pred_check_branch
      %4596 = sbr.rel (0) target = $region105
    $region104: #{tpu_custom_call.1} parent=1 // pred_region
      %4597 = dma.done [#allocation7], 512
    $region105: #{tpu_custom_call.1} parent=1 // pred_fallthru
      _
    %4598 = vsyncpa [#allocation6], 1
    %4599 = vsyncpa [#allocation9], 1
    %4600 = vsyncpa [#allocation12], 1
    %4601 = vsyncpa [#allocation15], 1
    %4602 = vsyncpa [#allocation18], 1
    %4603 = vsyncpa [#allocation7], 1

// kernel: tpu_custom_call.1
$region0: #{tpu_custom_call.1}
  #allocation0 [shape = 'u32[]', space=smem, size = 0x4, offset = 0x4, fixed_abs, tag = 'smem constant byte address 0x4 - core index']
  #allocation1 [shape = 'u32[144,128]{1,0:T(1,128)}', space=vmem, size = 0x12000, scoped, tag = 'internal scratch']
  #allocation2 [shape = 'f32[16,256]{1,0:T(8,128)}', space=vmem, size = 0x4000, scoped, tag = 'scratch operand']
  #allocation3 [shape = 'bf16[16,256]{1,0:T(16,128)(2,1)}', space=vmem, size = 0x2000, scoped, tag = 'scratch operand']
  #allocation4 [shape = 'f32[16,256]{1,0:T(8,128)}', space=vmem, size = 0x4000, scoped, tag = 'scratch operand']
  %s0 = inlined_call_operand.hbm [shape: f32[2,8,256], index: 0, kind: input, shape index: {}]
  %s1 = inlined_call_operand.hbm [shape: f32[16,16], index: 1, kind: input, shape index: {}]
  %s2 = inlined_call_operand.hbm [shape: f32[1,256], index: 2, kind: input, shape index: {}]
  %s3 = inlined_call_operand.hbm [shape: f32[1,256], index: 3, kind: input, shape index: {}]
  %s4 = inlined_call_operand.hbm [shape: bf16[256,768], index: 4, kind: input, shape index: {}]
  %s5 = inlined_call_operand.vmem [shape: f32[1,768], index: 5, kind: input, shape index: {}]
  %s6 = inlined_call_operand.hbm [shape: bf16[256,256], index: 6, kind: input, shape index: {}]
  %s7 = inlined_call_operand.vmem [shape: f32[1,256], index: 7, kind: input, shape index: {}]
  %s8 = inlined_call_operand.vmem [shape: f32[1,256], index: 8, kind: input, shape index: {}]
  %s9 = inlined_call_operand.vmem [shape: f32[1,256], index: 9, kind: input, shape index: {}]
  %s10 = inlined_call_operand.hbm [shape: bf16[256,1024], index: 10, kind: input, shape index: {}]
  %s11 = inlined_call_operand.vmem [shape: f32[1,1024], index: 11, kind: input, shape index: {}]
  %s12 = inlined_call_operand.hbm [shape: bf16[1024,256], index: 12, kind: input, shape index: {}]
  %s13 = inlined_call_operand.vmem [shape: f32[1,256], index: 13, kind: input, shape index: {}]
  %s14 = inlined_call_operand.hbm [shape: f32[2,8,256], index: 14, kind: output, shape index: {}]
  %s15 = sld [smem:[#allocation0]]
  $region106: #{tpu_custom_call.1} parent=0
    _
  %s17 = ssub.s32 1, %s15
  %s18 = scalar_select 0, %s17, %s15
  $region1: #{tpu_custom_call.1} parent=0
    #allocation5 [shape = 'u8[16384]{0}', space=vmem, size = 0x4000, scoped, tag = 'input window, operand 0, single buffered']
    #allocation6 [shape = 's32[1]{0}', space=sflag, size = 0x4, scoped, tag = 'scoped memory for tpu_custom_call.1']
    #allocation7 [shape = 's32[1]{0}', space=sflag, size = 0x4, scoped, tag = 'scoped memory for tpu_custom_call.1']
    #allocation8 [shape = 'u8[8192]{0}', space=vmem, size = 0x2000, scoped, tag = 'input window, operand 1, single buffered']
    #allocation9 [shape = 's32[1]{0}', space=sflag, size = 0x4, scoped, tag = 'scoped memory for tpu_custom_call.1']
    #allocation10 [shape = 'u8[1024]{0}', space=vmem, size = 0x400, scoped, tag = 'input window, operand 2, single buffered']
    #allocation11 [shape = 'u8[1024]{0}', space=vmem, size = 0x400, scoped, tag = 'input window, operand 3, single buffered']
    #allocation12 [shape = 's32[1]{0}', space=sflag, size = 0x4, scoped, tag = 'scoped memory for tpu_custom_call.1']
    #allocation13 [shape = 'u8[393216]{0}', space=vmem, size = 0x60000, scoped, tag = 'input window, operand 4, single buffered']
    #allocation14 [shape = 'u8[131072]{0}', space=vmem, size = 0x20000, scoped, tag = 'input window, operand 6, single buffered']
    #allocation15 [shape = 's32[1]{0}', space=sflag, size = 0x4, scoped, tag = 'scoped memory for tpu_custom_call.1']
    #allocation16 [shape = 'u8[524288]{0}', space=vmem, size = 0x80000, scoped, tag = 'input window, operand 10, single buffered']
    #allocation17 [shape = 'u8[524288]{0}', space=vmem, size = 0x80000, scoped, tag = 'input window, operand 12, single buffered']
    #allocation18 [shape = 's32[1]{0}', space=sflag, size = 0x4, scoped, tag = 'scoped memory for tpu_custom_call.1']
    #allocation19 [shape = 'u8[16384]{0}', space=vmem, size = 0x4000, scoped, tag = 'output window, operand 0, single buffered']
    %19 = vsyncpa [#allocation6], 0
    %20 = vsyncpa [#allocation9], 0
    %21 = vsyncpa [#allocation12], 0
    %22 = vsyncpa [#allocation15], 0
    %23 = vsyncpa [#allocation18], 0
    %24 = vsyncpa [#allocation7], 0
    // Predicated region
    $region2: #{tpu_custom_call.1} parent=1 // pred_check
      _
    $region3: #{tpu_custom_call.1} parent=1 // pred_check_branch
      %26 = sbr.rel (0) target = $region5
    $region4: #{tpu_custom_call.1} parent=1 // pred_region
      %s28 = ssub.s32 512, 512
      %29 = vsyncadd [#allocation6], %s28
      %s30 = sshll.u32 [#allocation5], 4
      %s31 = int_to_ptr.vmem [resolvable:$true] %s30
      %36 = dma.hbm_to_vmem [thread:$0]  %s0, 512, %s31, [#allocation6], 256, 256, 16
    $region5: #{tpu_custom_call.1} parent=1 // pred_fallthru
      _
    // Predicated region
    $region6: #{tpu_custom_call.1} parent=1 // pred_check
      _
    $region7: #{tpu_custom_call.1} parent=1 // pred_check_branch
      %38 = sbr.rel (0) target = $region9
    $region8: #{tpu_custom_call.1} parent=1 // pred_region
      %s40 = ssub.s32 256, 256
      %41 = vsyncadd [#allocation9], %s40
      %s42 = sshll.u32 [#allocation8], 4
      %s43 = int_to_ptr.vmem [resolvable:$true] %s42
      %48 = dma.hbm_to_vmem [thread:$0]  %s1, 256, %s43, [#allocation9], 128, 128, 8
    $region9: #{tpu_custom_call.1} parent=1 // pred_fallthru
      _
    // Predicated region
    $region10: #{tpu_custom_call.1} parent=1 // pred_check
      _
    $region11: #{tpu_custom_call.1} parent=1 // pred_check_branch
      %50 = sbr.rel (0) target = $region13
    $region12: #{tpu_custom_call.1} parent=1 // pred_region
      %s52 = ssub.s32 32, 32
      %53 = vsyncadd [#allocation9], %s52
      %s55 = sshll.u32 [#allocation10], 4
      %s56 = int_to_ptr.vmem [resolvable:$true] %s55
      %58 = dma.hbm_to_vmem [thread:$0]  %s2, 32, %s56, [#allocation9]
    $region13: #{tpu_custom_call.1} parent=1 // pred_fallthru
      _
    // Predicated region
    $region14: #{tpu_custom_call.1} parent=1 // pred_check
      _
    $region15: #{tpu_custom_call.1} parent=1 // pred_check_branch
      %60 = sbr.rel (0) target = $region17
    $region16: #{tpu_custom_call.1} parent=1 // pred_region
      %s62 = ssub.s32 32, 32
      %63 = vsyncadd [#allocation12], %s62
      %s65 = sshll.u32 [#allocation11], 4
      %s66 = int_to_ptr.vmem [resolvable:$true] %s65
      %68 = dma.hbm_to_vmem [thread:$0]  %s3, 32, %s66, [#allocation12]
    $region17: #{tpu_custom_call.1} parent=1 // pred_fallthru
      _
    // Predicated region
    $region18: #{tpu_custom_call.1} parent=1 // pred_check
      _
    $region19: #{tpu_custom_call.1} parent=1 // pred_check_branch
      %70 = sbr.rel (0) target = $region21
    $region20: #{tpu_custom_call.1} parent=1 // pred_region
      %s72 = ssub.s32 12288, 12288
      %73 = vsyncadd [#allocation12], %s72
      %s74 = sshll.u32 [#allocation13], 4
      %s75 = int_to_ptr.vmem [resolvable:$true] %s74
      %80 = dma.hbm_to_vmem [thread:$0]  %s4, 12288, %s75, [#allocation12], 384, 384, 24
    $region21: #{tpu_custom_call.1} parent=1 // pred_fallthru
      _
    // Predicated region
    $region22: #{tpu_custom_call.1} parent=1 // pred_check
      _
    $region23: #{tpu_custom_call.1} parent=1 // pred_check_branch
      %82 = sbr.rel (0) target = $region25
    $region24: #{tpu_custom_call.1} parent=1 // pred_region
      _
    $region25: #{tpu_custom_call.1} parent=1 // pred_fallthru
      _
    // Predicated region
    $region26: #{tpu_custom_call.1} parent=1 // pred_check
      _
    $region27: #{tpu_custom_call.1} parent=1 // pred_check_branch
      %84 = sbr.rel (0) target = $region29
    $region28: #{tpu_custom_call.1} parent=1 // pred_region
      %s86 = ssub.s32 4096, 4096
      %87 = vsyncadd [#allocation15], %s86
      %s88 = sshll.u32 [#allocation14], 4
      %s89 = int_to_ptr.vmem [resolvable:$true] %s88
      %94 = dma.hbm_to_vmem [thread:$0]  %s6, 4096, %s89, [#allocation15], 128, 128, 8
    $region29: #{tpu_custom_call.1} parent=1 // pred_fallthru
      _
    // Predicated region
    $region30: #{tpu_custom_call.1} parent=1 // pred_check
      _
    $region31: #{tpu_custom_call.1} parent=1 // pred_check_branch
      %96 = sbr.rel (0) target = $region33
    $region32: #{tpu_custom_call.1} parent=1 // pred_region
      _
    $region33: #{tpu_custom_call.1} parent=1 // pred_fallthru
      _
    // Predicated region
    $region34: #{tpu_custom_call.1} parent=1 // pred_check
      _
    $region35: #{tpu_custom_call.1} parent=1 // pred_check_branch
      %98 = sbr.rel (0) target = $region37
    $region36: #{tpu_custom_call.1} parent=1 // pred_region
      _
    $region37: #{tpu_custom_call.1} parent=1 // pred_fallthru
      _
    // Predicated region
    $region38: #{tpu_custom_call.1} parent=1 // pred_check
      _
    $region39: #{tpu_custom_call.1} parent=1 // pred_check_branch
      %100 = sbr.rel (0) target = $region41
    $region40: #{tpu_custom_call.1} parent=1 // pred_region
      _
    $region41: #{tpu_custom_call.1} parent=1 // pred_fallthru
      _
    // Predicated region
    $region42: #{tpu_custom_call.1} parent=1 // pred_check
      _
    $region43: #{tpu_custom_call.1} parent=1 // pred_check_branch
      %102 = sbr.rel (0) target = $region45
    $region44: #{tpu_custom_call.1} parent=1 // pred_region
      %s104 = ssub.s32 16384, 16384
      %105 = vsyncadd [#allocation15], %s104
      %s106 = sshll.u32 [#allocation16], 4
      %s107 = int_to_ptr.vmem [resolvable:$true] %s106
      %112 = dma.hbm_to_vmem [thread:$0]  %s10, 16384, %s107, [#allocation15], 512, 512, 32
    $region45: #{tpu_custom_call.1} parent=1 // pred_fallthru
      _
    // Predicated region
    $region46: #{tpu_custom_call.1} parent=1 // pred_check
      _
    $region47: #{tpu_custom_call.1} parent=1 // pred_check_branch
      %114 = sbr.rel (0) target = $region49
    $region48: #{tpu_custom_call.1} parent=1 // pred_region
      _
    $region49: #{tpu_custom_call.1} parent=1 // pred_fallthru
      _
    // Predicated region
    $region50: #{tpu_custom_call.1} parent=1 // pred_check
      _
    $region51: #{tpu_custom_call.1} parent=1 // pred_check_branch
      %116 = sbr.rel (0) target = $region53
    $region52: #{tpu_custom_call.1} parent=1 // pred_region
      %s118 = ssub.s32 16384, 16384
      %119 = vsyncadd [#allocation18], %s118
      %s120 = sshll.u32 [#allocation17], 4
      %s121 = int_to_ptr.vmem [resolvable:$true] %s120
      %126 = dma.hbm_to_vmem [thread:$0]  %s12, 16384, %s121, [#allocation18], 128, 128, 8
    $region53: #{tpu_custom_call.1} parent=1 // pred_fallthru
      _
    // Predicated region
    $region54: #{tpu_custom_call.1} parent=1 // pred_check
      _
    $region55: #{tpu_custom_call.1} parent=1 // pred_check_branch
      %128 = sbr.rel (0) target = $region57
    $region56: #{tpu_custom_call.1} parent=1 // pred_region
      _
    $region57: #{tpu_custom_call.1} parent=1 // pred_fallthru
      _
    // Predicated region
    $region58: #{tpu_custom_call.1} parent=1 // pred_check
      _
    $region59: #{tpu_custom_call.1} parent=1 // pred_check_branch
      %130 = sbr.rel (0) target = $region61
    $region60: #{tpu_custom_call.1} parent=1 // pred_region
      %131 = dma.done [#allocation6], 512
    $region61: #{tpu_custom_call.1} parent=1 // pred_fallthru
      _
    // Predicated region
    $region62: #{tpu_custom_call.1} parent=1 // pred_check
      _
    $region63: #{tpu_custom_call.1} parent=1 // pred_check_branch
      %133 = sbr.rel (0) target = $region65
    $region64: #{tpu_custom_call.1} parent=1 // pred_region
      %134 = dma.done [#allocation9], 256
    $region65: #{tpu_custom_call.1} parent=1 // pred_fallthru
      _
    // Predicated region
    $region66: #{tpu_custom_call.1} parent=1 // pred_check
      _
    $region67: #{tpu_custom_call.1} parent=1 // pred_check_branch
      %136 = sbr.rel (0) target = $region69
    $region68: #{tpu_custom_call.1} parent=1 // pred_region
      %137 = dma.done [#allocation9], 32
    $region69: #{tpu_custom_call.1} parent=1 // pred_fallthru
      _
    // Predicated region
    $region70: #{tpu_custom_call.1} parent=1 // pred_check
      _
    $region71: #{tpu_custom_call.1} parent=1 // pred_check_branch
      %139 = sbr.rel (0) target = $region73
    $region72: #{tpu_custom_call.1} parent=1 // pred_region
      %140 = dma.done [#allocation12], 32
    $region73: #{tpu_custom_call.1} parent=1 // pred_fallthru
      _
    // Predicated region
    $region74: #{tpu_custom_call.1} parent=1 // pred_check
      _
    $region75: #{tpu_custom_call.1} parent=1 // pred_check_branch
      %142 = sbr.rel (0) target = $region77
    $region76: #{tpu_custom_call.1} parent=1 // pred_region
      %143 = dma.done [#allocation12], 12288
    $region77: #{tpu_custom_call.1} parent=1 // pred_fallthru
      _
    // Predicated region
    $region78: #{tpu_custom_call.1} parent=1 // pred_check
      _
    $region79: #{tpu_custom_call.1} parent=1 // pred_check_branch
      %145 = sbr.rel (0) target = $region81
    $region80: #{tpu_custom_call.1} parent=1 // pred_region
      %146 = dma.done [#allocation15], 4096
    $region81: #{tpu_custom_call.1} parent=1 // pred_fallthru
      _
    // Predicated region
    $region82: #{tpu_custom_call.1} parent=1 // pred_check
      _
    $region83: #{tpu_custom_call.1} parent=1 // pred_check_branch
      %148 = sbr.rel (0) target = $region85
    $region84: #{tpu_custom_call.1} parent=1 // pred_region
      %149 = dma.done [#allocation15], 16384
    $region85: #{tpu_custom_call.1} parent=1 // pred_fallthru
      _
    // Predicated region
    $region86: #{tpu_custom_call.1} parent=1 // pred_check
      _
    $region87: #{tpu_custom_call.1} parent=1 // pred_check_branch
      %151 = sbr.rel (0) target = $region89
    $region88: #{tpu_custom_call.1} parent=1 // pred_region
      %152 = dma.done [#allocation18], 16384
    $region89: #{tpu_custom_call.1} parent=1 // pred_fallthru
      _
    %p154 = scmp.eq.s32.totalorder 0, 0
    // Predicated region
    $region90: #{tpu_custom_call.1} parent=1 // pred_check
      %p155 = pneg %p154
    $region91: #{tpu_custom_call.1} parent=1 // pred_check_branch
      %157 = sbr.rel (%p155) target = $region93
    $region92: #{tpu_custom_call.1} parent=1 // pred_region
      %v158 = vld [vmem:[#allocation5] sm:$0xff]
      %v159 = vld [vmem:[#allocation5 + $0x8] sm:$0xff]
      %v160 = vld [vmem:[#allocation5 + $0x10] sm:$0xff]
      %v161 = vld [vmem:[#allocation5 + $0x18] sm:$0xff]
      %v162 = vld [vmem:[#allocation10] sm:$0x3]
      %v163 = vld [vmem:[#allocation11] sm:$0x3]
      %v164 = vadd.f32 %v158, %v159
      %165 = vadd.xlane.f32.xlu0 %v164
      %v166 = vpop.xlane.xlu0 %165
      %v167 = vadd.f32 %v160, %v161
      %168 = vadd.xlane.f32.xlu0 %v167
      %v169 = vpop.xlane.xlu0 %168
      %v170 = vrcp.pop 256.0
      %v171 = vmul.f32 %v166, %v170
      %v172 = vmul.f32 %v169, %v170
      %v173 = vsub.f32 %v158, %v171
      %v174 = vsub.f32 %v159, %v171
      %v175 = vsub.f32 %v160, %v172
      %v176 = vsub.f32 %v161, %v172
      %v177 = vmul.f32 %v173, %v173
      %v178 = vmul.f32 %v174, %v174
      %v179 = vmul.f32 %v175, %v175
      %v180 = vmul.f32 %v176, %v176
      %v181 = vadd.f32 %v177, %v178
      %182 = vadd.xlane.f32.xlu0 %v181
      %v183 = vpop.xlane.xlu0 %182
      %v184 = vadd.f32 %v179, %v180
      %185 = vadd.xlane.f32.xlu0 %v184
      %v186 = vpop.xlane.xlu0 %185
      %v187 = vmul.f32 %v183, %v170
      %v188 = vmul.f32 %v186, %v170
      %v189 = vadd.f32 %v187, 1e-12
      %v190 = vadd.f32 %v188, 1e-12
      %v191 = vrsqrt.pop %v189
      %v192 = vmul.f32 %v189, %v191
      %vm193 = vcmp.eq.f32.partialorder %v189, inf
      %v194 = vsel %vm193, %v189, %v192
      %vm195 = vcmp.eq.f32.partialorder %v189, 0.0
      %v196 = vand.u32 %v189, 2147483648
      %v197 = vsel %vm195, %v196, %v194
      %v198 = vrsqrt.pop %v190
      %v199 = vmul.f32 %v190, %v198
      %vm200 = vcmp.eq.f32.partialorder %v190, inf
      %v201 = vsel %vm200, %v190, %v199
      %vm202 = vcmp.eq.f32.partialorder %v190, 0.0
      %v203 = vand.u32 %v190, 2147483648
      %v204 = vsel %vm202, %v203, %v201
      %v205 = vrcp.pop %v197
      %v206 = vmul.f32 %v173, %v205
      %v207 = vmul.f32 %v174, %v205
      %v208 = vrcp.pop %v204
      %v209 = vmul.f32 %v175, %v208
      %v210 = vmul.f32 %v176, %v208
      %v212 = vlaneseq
      %v213 = vshrl.u32 %v212, 7
      %v214 = vsub.s32 0, %v213
      %v215 = vrot.slane %v162, %v214
      %v216 = vlaneseq
      %v217 = vshrl.u32 %v216, 7
      %v218 = vsub.s32 1, %v217
      %v219 = vrot.slane %v162, %v218
      %v222 = vmul.f32 %v215, %v206
      %v223 = vmul.f32 %v219, %v207
      %v224 = vmul.f32 %v215, %v209
      %v225 = vmul.f32 %v219, %v210
      %v227 = vlaneseq
      %v228 = vshrl.u32 %v227, 7
      %v229 = vsub.s32 0, %v228
      %v230 = vrot.slane %v163, %v229
      %v231 = vlaneseq
      %v232 = vshrl.u32 %v231, 7
      %v233 = vsub.s32 1, %v232
      %v234 = vrot.slane %v163, %v233
      %v237 = vadd.f32 %v222, %v230
      %v238 = vadd.f32 %v223, %v234
      %v239 = vadd.f32 %v224, %v230
      %v240 = vadd.f32 %v225, %v234
      %v241 = vpack.c.bf16 %v239, %v237
      %v242 = vpack.c.bf16 %v240, %v238
      %v243 = vld [vmem:[#allocation13] sm:$0xff]
      %v244 = vld [vmem:[#allocation13 + $0x8] sm:$0xff]
      %v245 = vld [vmem:[#allocation13 + $0x10] sm:$0xff]
      %v246 = vld [vmem:[#allocation13 + $0x18] sm:$0xff]
      %v247 = vld [vmem:[#allocation13 + $0x20] sm:$0xff]
      %v248 = vld [vmem:[#allocation13 + $0x28] sm:$0xff]
      %v249 = vld [vmem:[#allocation13 + $0x30] sm:$0xff]
      %v250 = vld [vmem:[#allocation13 + $0x38] sm:$0xff]
      %v251 = vld [vmem:[#allocation13 + $0x40] sm:$0xff]
      %v252 = vld [vmem:[#allocation13 + $0x48] sm:$0xff]
      %v253 = vld [vmem:[#allocation13 + $0x50] sm:$0xff]
      %v254 = vld [vmem:[#allocation13 + $0x58] sm:$0xff]
      %v255 = vld [vmem:[#allocation13 + $0x60] sm:$0xff]
      %v256 = vld [vmem:[#allocation13 + $0x68] sm:$0xff]
      %v257 = vld [vmem:[#allocation13 + $0x70] sm:$0xff]
      %v258 = vld [vmem:[#allocation13 + $0x78] sm:$0xff]
      %v259 = vld [vmem:[#allocation13 + $0x80] sm:$0xff]
      %v260 = vld [vmem:[#allocation13 + $0x88] sm:$0xff]
      %v261 = vld [vmem:[#allocation13 + $0x90] sm:$0xff]
      %v262 = vld [vmem:[#allocation13 + $0x98] sm:$0xff]
      %v263 = vld [vmem:[#allocation13 + $0xa0] sm:$0xff]
      %v264 = vld [vmem:[#allocation13 + $0xa8] sm:$0xff]
      %v265 = vld [vmem:[#allocation13 + $0xb0] sm:$0xff]
      %v266 = vld [vmem:[#allocation13 + $0xb8] sm:$0xff]
      %v267 = vld [vmem:[#allocation13 + $0xc0] sm:$0xff]
      %v268 = vld [vmem:[#allocation13 + $0xc8] sm:$0xff]
      %v269 = vld [vmem:[#allocation13 + $0xd0] sm:$0xff]
      %v270 = vld [vmem:[#allocation13 + $0xd8] sm:$0xff]
      %v271 = vld [vmem:[#allocation13 + $0xe0] sm:$0xff]
      %v272 = vld [vmem:[#allocation13 + $0xe8] sm:$0xff]
      %v273 = vld [vmem:[#allocation13 + $0xf0] sm:$0xff]
      %v274 = vld [vmem:[#allocation13 + $0xf8] sm:$0xff]
      %v275 = vld [vmem:[#allocation13 + $0x100] sm:$0xff]
      %v276 = vld [vmem:[#allocation13 + $0x108] sm:$0xff]
      %v277 = vld [vmem:[#allocation13 + $0x110] sm:$0xff]
      %v278 = vld [vmem:[#allocation13 + $0x118] sm:$0xff]
      %v279 = vld [vmem:[#allocation13 + $0x120] sm:$0xff]
      %v280 = vld [vmem:[#allocation13 + $0x128] sm:$0xff]
      %v281 = vld [vmem:[#allocation13 + $0x130] sm:$0xff]
      %v282 = vld [vmem:[#allocation13 + $0x138] sm:$0xff]
      %v283 = vld [vmem:[#allocation13 + $0x140] sm:$0xff]
      %v284 = vld [vmem:[#allocation13 + $0x148] sm:$0xff]
      %v285 = vld [vmem:[#allocation13 + $0x150] sm:$0xff]
      %v286 = vld [vmem:[#allocation13 + $0x158] sm:$0xff]
      %v287 = vld [vmem:[#allocation13 + $0x160] sm:$0xff]
      %v288 = vld [vmem:[#allocation13 + $0x168] sm:$0xff]
      %v289 = vld [vmem:[#allocation13 + $0x170] sm:$0xff]
      %v290 = vld [vmem:[#allocation13 + $0x178] sm:$0xff]
      %v291 = vld [vmem:[#allocation13 + $0x180] sm:$0xff]
      %v292 = vld [vmem:[#allocation13 + $0x188] sm:$0xff]
      %v293 = vld [vmem:[#allocation13 + $0x190] sm:$0xff]
      %v294 = vld [vmem:[#allocation13 + $0x198] sm:$0xff]
      %v295 = vld [vmem:[#allocation13 + $0x1a0] sm:$0xff]
      %v296 = vld [vmem:[#allocation13 + $0x1a8] sm:$0xff]
      %v297 = vld [vmem:[#allocation13 + $0x1b0] sm:$0xff]
      %v298 = vld [vmem:[#allocation13 + $0x1b8] sm:$0xff]
      %v299 = vld [vmem:[#allocation13 + $0x1c0] sm:$0xff]
      %v300 = vld [vmem:[#allocation13 + $0x1c8] sm:$0xff]
      %v301 = vld [vmem:[#allocation13 + $0x1d0] sm:$0xff]
      %v302 = vld [vmem:[#allocation13 + $0x1d8] sm:$0xff]
      %v303 = vld [vmem:[#allocation13 + $0x1e0] sm:$0xff]
      %v304 = vld [vmem:[#allocation13 + $0x1e8] sm:$0xff]
      %v305 = vld [vmem:[#allocation13 + $0x1f0] sm:$0xff]
      %v306 = vld [vmem:[#allocation13 + $0x1f8] sm:$0xff]
      %v307 = vld [vmem:[#allocation13 + $0x200] sm:$0xff]
      %v308 = vld [vmem:[#allocation13 + $0x208] sm:$0xff]
      %v309 = vld [vmem:[#allocation13 + $0x210] sm:$0xff]
      %v310 = vld [vmem:[#allocation13 + $0x218] sm:$0xff]
      %v311 = vld [vmem:[#allocation13 + $0x220] sm:$0xff]
      %v312 = vld [vmem:[#allocation13 + $0x228] sm:$0xff]
      %v313 = vld [vmem:[#allocation13 + $0x230] sm:$0xff]
      %v314 = vld [vmem:[#allocation13 + $0x238] sm:$0xff]
      %v315 = vld [vmem:[#allocation13 + $0x240] sm:$0xff]
      %v316 = vld [vmem:[#allocation13 + $0x248] sm:$0xff]
      %v317 = vld [vmem:[#allocation13 + $0x250] sm:$0xff]
      %v318 = vld [vmem:[#allocation13 + $0x258] sm:$0xff]
      %v319 = vld [vmem:[#allocation13 + $0x260] sm:$0xff]
      %v320 = vld [vmem:[#allocation13 + $0x268] sm:$0xff]
      %v321 = vld [vmem:[#allocation13 + $0x270] sm:$0xff]
      %v322 = vld [vmem:[#allocation13 + $0x278] sm:$0xff]
      %v323 = vld [vmem:[#allocation13 + $0x280] sm:$0xff]
      %v324 = vld [vmem:[#allocation13 + $0x288] sm:$0xff]
      %v325 = vld [vmem:[#allocation13 + $0x290] sm:$0xff]
      %v326 = vld [vmem:[#allocation13 + $0x298] sm:$0xff]
      %v327 = vld [vmem:[#allocation13 + $0x2a0] sm:$0xff]
      %v328 = vld [vmem:[#allocation13 + $0x2a8] sm:$0xff]
      %v329 = vld [vmem:[#allocation13 + $0x2b0] sm:$0xff]
      %v330 = vld [vmem:[#allocation13 + $0x2b8] sm:$0xff]
      %v331 = vld [vmem:[#allocation13 + $0x2c0] sm:$0xff]
      %v332 = vld [vmem:[#allocation13 + $0x2c8] sm:$0xff]
      %v333 = vld [vmem:[#allocation13 + $0x2d0] sm:$0xff]
      %v334 = vld [vmem:[#allocation13 + $0x2d8] sm:$0xff]
      %v335 = vld [vmem:[#allocation13 + $0x2e0] sm:$0xff]
      %v336 = vld [vmem:[#allocation13 + $0x2e8] sm:$0xff]
      %v337 = vld [vmem:[#allocation13 + $0x2f0] sm:$0xff]
      %v338 = vld [vmem:[#allocation13 + $0x2f8] sm:$0xff]
      %v339 = vld [vmem:[%s5] sm:$0x3f]
      %v341 = vlaneseq
      %v342 = vshrl.u32 %v341, 7
      %v343 = vsub.s32 0, %v342
      %v344 = vrot.slane %v339, %v343
      %v345 = vlaneseq
      %v346 = vshrl.u32 %v345, 7
      %v347 = vsub.s32 1, %v346
      %v348 = vrot.slane %v339, %v347
      %v349 = vlaneseq
      %v350 = vshrl.u32 %v349, 7
      %v351 = vsub.s32 2, %v350
      %v352 = vrot.slane %v339, %v351
      %v353 = vlaneseq
      %v354 = vshrl.u32 %v353, 7
      %v355 = vsub.s32 3, %v354
      %v356 = vrot.slane %v339, %v355
      %v357 = vlaneseq
      %v358 = vshrl.u32 %v357, 7
      %v359 = vsub.s32 4, %v358
      %v360 = vrot.slane %v339, %v359
      %v361 = vlaneseq
      %v362 = vshrl.u32 %v361, 7
      %v363 = vsub.s32 5, %v362
      %v364 = vrot.slane %v339, %v363
      %v467 = vunpack.c.l.b16 %v243
      %v468 = vunpack.c.h.b16 %v243
      %v469 = vunpack.c.l.b16 %v244
      %v470 = vunpack.c.h.b16 %v244
      %v471 = vunpack.c.l.b16 %v245
      %v472 = vunpack.c.h.b16 %v245
      %v473 = vunpack.c.l.b16 %v246
      %v474 = vunpack.c.h.b16 %v246
      %v475 = vunpack.c.l.b16 %v247
      %v476 = vunpack.c.h.b16 %v247
      %v477 = vunpack.c.l.b16 %v248
      %v478 = vunpack.c.h.b16 %v248
      %v479 = vunpack.c.l.b16 %v249
      %v480 = vunpack.c.h.b16 %v249
      %v481 = vunpack.c.l.b16 %v250
      %v482 = vunpack.c.h.b16 %v250
      %v483 = vunpack.c.l.b16 %v251
      %v484 = vunpack.c.h.b16 %v251
      %v485 = vunpack.c.l.b16 %v252
      %v486 = vunpack.c.h.b16 %v252
      %v487 = vunpack.c.l.b16 %v253
      %v488 = vunpack.c.h.b16 %v253
      %v489 = vunpack.c.l.b16 %v254
      %v490 = vunpack.c.h.b16 %v254
      %v491 = vunpack.c.l.b16 %v255
      %v492 = vunpack.c.h.b16 %v255
      %v493 = vunpack.c.l.b16 %v256
      %v494 = vunpack.c.h.b16 %v256
      %v495 = vunpack.c.l.b16 %v257
      %v496 = vunpack.c.h.b16 %v257
      %v497 = vunpack.c.l.b16 %v258
      %v498 = vunpack.c.h.b16 %v258
      %v499 = vunpack.c.l.b16 %v259
      %v500 = vunpack.c.h.b16 %v259
      %v501 = vunpack.c.l.b16 %v260
      %v502 = vunpack.c.h.b16 %v260
      %v503 = vunpack.c.l.b16 %v261
      %v504 = vunpack.c.h.b16 %v261
      %v505 = vunpack.c.l.b16 %v262
      %v506 = vunpack.c.h.b16 %v262
      %v507 = vunpack.c.l.b16 %v263
      %v508 = vunpack.c.h.b16 %v263
      %v509 = vunpack.c.l.b16 %v264
      %v510 = vunpack.c.h.b16 %v264
      %v511 = vunpack.c.l.b16 %v265
      %v512 = vunpack.c.h.b16 %v265
      %v513 = vunpack.c.l.b16 %v266
      %v514 = vunpack.c.h.b16 %v266
      %v515 = vunpack.c.l.b16 %v267
      %v516 = vunpack.c.h.b16 %v267
      %v517 = vunpack.c.l.b16 %v268
      %v518 = vunpack.c.h.b16 %v268
      %v519 = vunpack.c.l.b16 %v269
      %v520 = vunpack.c.h.b16 %v269
      %v521 = vunpack.c.l.b16 %v270
      %v522 = vunpack.c.h.b16 %v270
      %v523 = vunpack.c.l.b16 %v271
      %v524 = vunpack.c.h.b16 %v271
      %v525 = vunpack.c.l.b16 %v272
      %v526 = vunpack.c.h.b16 %v272
      %v527 = vunpack.c.l.b16 %v273
      %v528 = vunpack.c.h.b16 %v273
      %v529 = vunpack.c.l.b16 %v274
      %v530 = vunpack.c.h.b16 %v274
      %v531 = vunpack.c.l.b16 %v275
      %v532 = vunpack.c.h.b16 %v275
      %v533 = vunpack.c.l.b16 %v276
      %v534 = vunpack.c.h.b16 %v276
      %v535 = vunpack.c.l.b16 %v277
      %v536 = vunpack.c.h.b16 %v277
      %v537 = vunpack.c.l.b16 %v278
      %v538 = vunpack.c.h.b16 %v278
      %v539 = vunpack.c.l.b16 %v279
      %v540 = vunpack.c.h.b16 %v279
      %v541 = vunpack.c.l.b16 %v280
      %v542 = vunpack.c.h.b16 %v280
      %v543 = vunpack.c.l.b16 %v281
      %v544 = vunpack.c.h.b16 %v281
      %v545 = vunpack.c.l.b16 %v282
      %v546 = vunpack.c.h.b16 %v282
      %v547 = vunpack.c.l.b16 %v283
      %v548 = vunpack.c.h.b16 %v283
      %v549 = vunpack.c.l.b16 %v284
      %v550 = vunpack.c.h.b16 %v284
      %v551 = vunpack.c.l.b16 %v285
      %v552 = vunpack.c.h.b16 %v285
      %v553 = vunpack.c.l.b16 %v286
      %v554 = vunpack.c.h.b16 %v286
      %v555 = vunpack.c.l.b16 %v287
      %v556 = vunpack.c.h.b16 %v287
      %v557 = vunpack.c.l.b16 %v288
      %v558 = vunpack.c.h.b16 %v288
      %v559 = vunpack.c.l.b16 %v289
      %v560 = vunpack.c.h.b16 %v289
      %v561 = vunpack.c.l.b16 %v290
      %v562 = vunpack.c.h.b16 %v290
      %v563 = vunpack.c.l.b16 %v291
      %v564 = vunpack.c.h.b16 %v291
      %v565 = vunpack.c.l.b16 %v292
      %v566 = vunpack.c.h.b16 %v292
      %v567 = vunpack.c.l.b16 %v293
      %v568 = vunpack.c.h.b16 %v293
      %v569 = vunpack.c.l.b16 %v294
      %v570 = vunpack.c.h.b16 %v294
      %v571 = vunpack.c.l.b16 %v295
      %v572 = vunpack.c.h.b16 %v295
      %v573 = vunpack.c.l.b16 %v296
      %v574 = vunpack.c.h.b16 %v296
      %v575 = vunpack.c.l.b16 %v297
      %v576 = vunpack.c.h.b16 %v297
      %v577 = vunpack.c.l.b16 %v298
      %v578 = vunpack.c.h.b16 %v298
      %v579 = vunpack.c.l.b16 %v299
      %v580 = vunpack.c.h.b16 %v299
      %v581 = vunpack.c.l.b16 %v300
      %v582 = vunpack.c.h.b16 %v300
      %v583 = vunpack.c.l.b16 %v301
      %v584 = vunpack.c.h.b16 %v301
      %v585 = vunpack.c.l.b16 %v302
      %v586 = vunpack.c.h.b16 %v302
      %v587 = vunpack.c.l.b16 %v303
      %v588 = vunpack.c.h.b16 %v303
      %v589 = vunpack.c.l.b16 %v304
      %v590 = vunpack.c.h.b16 %v304
      %v591 = vunpack.c.l.b16 %v305
      %v592 = vunpack.c.h.b16 %v305
      %v593 = vunpack.c.l.b16 %v306
      %v594 = vunpack.c.h.b16 %v306
      %v595 = vunpack.c.l.b16 %v307
      %v596 = vunpack.c.h.b16 %v307
      %v597 = vunpack.c.l.b16 %v308
      %v598 = vunpack.c.h.b16 %v308
      %v599 = vunpack.c.l.b16 %v309
      %v600 = vunpack.c.h.b16 %v309
      %v601 = vunpack.c.l.b16 %v310
      %v602 = vunpack.c.h.b16 %v310
      %v603 = vunpack.c.l.b16 %v311
      %v604 = vunpack.c.h.b16 %v311
      %v605 = vunpack.c.l.b16 %v312
      %v606 = vunpack.c.h.b16 %v312
      %v607 = vunpack.c.l.b16 %v313
      %v608 = vunpack.c.h.b16 %v313
      %v609 = vunpack.c.l.b16 %v314
      %v610 = vunpack.c.h.b16 %v314
      %v611 = vunpack.c.l.b16 %v315
      %v612 = vunpack.c.h.b16 %v315
      %v613 = vunpack.c.l.b16 %v316
      %v614 = vunpack.c.h.b16 %v316
      %v615 = vunpack.c.l.b16 %v317
      %v616 = vunpack.c.h.b16 %v317
      %v617 = vunpack.c.l.b16 %v318
      %v618 = vunpack.c.h.b16 %v318
      %v619 = vunpack.c.l.b16 %v319
      %v620 = vunpack.c.h.b16 %v319
      %v621 = vunpack.c.l.b16 %v320
      %v622 = vunpack.c.h.b16 %v320
      %v623 = vunpack.c.l.b16 %v321
      %v624 = vunpack.c.h.b16 %v321
      %v625 = vunpack.c.l.b16 %v322
      %v626 = vunpack.c.h.b16 %v322
      %v627 = vunpack.c.l.b16 %v323
      %v628 = vunpack.c.h.b16 %v323
      %v629 = vunpack.c.l.b16 %v324
      %v630 = vunpack.c.h.b16 %v324
      %v631 = vunpack.c.l.b16 %v325
      %v632 = vunpack.c.h.b16 %v325
      %v633 = vunpack.c.l.b16 %v326
      %v634 = vunpack.c.h.b16 %v326
      %v635 = vunpack.c.l.b16 %v327
      %v636 = vunpack.c.h.b16 %v327
      %v637 = vunpack.c.l.b16 %v328
      %v638 = vunpack.c.h.b16 %v328
      %v639 = vunpack.c.l.b16 %v329
      %v640 = vunpack.c.h.b16 %v329
      %v641 = vunpack.c.l.b16 %v330
      %v642 = vunpack.c.h.b16 %v330
      %v643 = vunpack.c.l.b16 %v331
      %v644 = vunpack.c.h.b16 %v331
      %v645 = vunpack.c.l.b16 %v332
      %v646 = vunpack.c.h.b16 %v332
      %v647 = vunpack.c.l.b16 %v333
      %v648 = vunpack.c.h.b16 %v333
      %v649 = vunpack.c.l.b16 %v334
      %v650 = vunpack.c.h.b16 %v334
      %v651 = vunpack.c.l.b16 %v335
      %v652 = vunpack.c.h.b16 %v335
      %v653 = vunpack.c.l.b16 %v336
      %v654 = vunpack.c.h.b16 %v336
      %v655 = vunpack.c.l.b16 %v337
      %v656 = vunpack.c.h.b16 %v337
      %v657 = vunpack.c.l.b16 %v338
      %v658 = vunpack.c.h.b16 %v338
      %v659 = vpack.c.b16 %v473, %v467
      %v660 = vpack.c.b16 %v474, %v468
      %v661 = vpack.c.b16 %v475, %v469
      %v662 = vpack.c.b16 %v476, %v470
      %v663 = vpack.c.b16 %v477, %v471
      %v664 = vpack.c.b16 %v478, %v472
      %v665 = vpack.c.b16 %v485, %v479
      %v666 = vpack.c.b16 %v486, %v480
      %v667 = vpack.c.b16 %v487, %v481
      %v668 = vpack.c.b16 %v488, %v482
      %v669 = vpack.c.b16 %v489, %v483
      %v670 = vpack.c.b16 %v490, %v484
      %v671 = vpack.c.b16 %v497, %v491
      %v672 = vpack.c.b16 %v498, %v492
      %v673 = vpack.c.b16 %v499, %v493
      %v674 = vpack.c.b16 %v500, %v494
      %v675 = vpack.c.b16 %v501, %v495
      %v676 = vpack.c.b16 %v502, %v496
      %v677 = vpack.c.b16 %v509, %v503
      %v678 = vpack.c.b16 %v510, %v504
      %v679 = vpack.c.b16 %v511, %v505
      %v680 = vpack.c.b16 %v512, %v506
      %v681 = vpack.c.b16 %v513, %v507
      %v682 = vpack.c.b16 %v514, %v508
      %v683 = vpack.c.b16 %v521, %v515
      %v684 = vpack.c.b16 %v522, %v516
      %v685 = vpack.c.b16 %v523, %v517
      %v686 = vpack.c.b16 %v524, %v518
      %v687 = vpack.c.b16 %v525, %v519
      %v688 = vpack.c.b16 %v526, %v520
      %v689 = vpack.c.b16 %v533, %v527
      %v690 = vpack.c.b16 %v534, %v528
      %v691 = vpack.c.b16 %v535, %v529
      %v692 = vpack.c.b16 %v536, %v530
      %v693 = vpack.c.b16 %v537, %v531
      %v694 = vpack.c.b16 %v538, %v532
      %v695 = vpack.c.b16 %v545, %v539
      %v696 = vpack.c.b16 %v546, %v540
      %v697 = vpack.c.b16 %v547, %v541
      %v698 = vpack.c.b16 %v548, %v542
      %v699 = vpack.c.b16 %v549, %v543
      %v700 = vpack.c.b16 %v550, %v544
      %v701 = vpack.c.b16 %v557, %v551
      %v702 = vpack.c.b16 %v558, %v552
      %v703 = vpack.c.b16 %v559, %v553
      %v704 = vpack.c.b16 %v560, %v554
      %v705 = vpack.c.b16 %v561, %v555
      %v706 = vpack.c.b16 %v562, %v556
      %v707 = vpack.c.b16 %v569, %v563
      %v708 = vpack.c.b16 %v570, %v564
      %v709 = vpack.c.b16 %v571, %v565
      %v710 = vpack.c.b16 %v572, %v566
      %v711 = vpack.c.b16 %v573, %v567
      %v712 = vpack.c.b16 %v574, %v568
      %v713 = vpack.c.b16 %v581, %v575
      %v714 = vpack.c.b16 %v582, %v576
      %v715 = vpack.c.b16 %v583, %v577
      %v716 = vpack.c.b16 %v584, %v578
      %v717 = vpack.c.b16 %v585, %v579
      %v718 = vpack.c.b16 %v586, %v580
      %v719 = vpack.c.b16 %v593, %v587
      %v720 = vpack.c.b16 %v594, %v588
      %v721 = vpack.c.b16 %v595, %v589
      %v722 = vpack.c.b16 %v596, %v590
      %v723 = vpack.c.b16 %v597, %v591
      %v724 = vpack.c.b16 %v598, %v592
      %v725 = vpack.c.b16 %v605, %v599
      %v726 = vpack.c.b16 %v606, %v600
      %v727 = vpack.c.b16 %v607, %v601
      %v728 = vpack.c.b16 %v608, %v602
      %v729 = vpack.c.b16 %v609, %v603
      %v730 = vpack.c.b16 %v610, %v604
      %v731 = vpack.c.b16 %v617, %v611
      %v732 = vpack.c.b16 %v618, %v612
      %v733 = vpack.c.b16 %v619, %v613
      %v734 = vpack.c.b16 %v620, %v614
      %v735 = vpack.c.b16 %v621, %v615
      %v736 = vpack.c.b16 %v622, %v616
      %v737 = vpack.c.b16 %v629, %v623
      %v738 = vpack.c.b16 %v630, %v624
      %v739 = vpack.c.b16 %v631, %v625
      %v740 = vpack.c.b16 %v632, %v626
      %v741 = vpack.c.b16 %v633, %v627
      %v742 = vpack.c.b16 %v634, %v628
      %v743 = vpack.c.b16 %v641, %v635
      %v744 = vpack.c.b16 %v642, %v636
      %v745 = vpack.c.b16 %v643, %v637
      %v746 = vpack.c.b16 %v644, %v638
      %v747 = vpack.c.b16 %v645, %v639
      %v748 = vpack.c.b16 %v646, %v640
      %v749 = vpack.c.b16 %v653, %v647
      %v750 = vpack.c.b16 %v654, %v648
      %v751 = vpack.c.b16 %v655, %v649
      %v752 = vpack.c.b16 %v656, %v650
      %v753 = vpack.c.b16 %v657, %v651
      %v754 = vpack.c.b16 %v658, %v652
      %851 = vmatprep.subr.bf16.mxu0 %v660
      %852 = vmatpush1.bf16.msra.mxu0 %v659
      %853 = vmatprep.subr.bf16.mxu0 %v666
      %854 = vmatpush1.bf16.msra.mxu0 %v665
      %855 = vmatprep.subr.bf16.mxu0 %v672
      %856 = vmatpush1.bf16.msra.mxu0 %v671
      %857 = vmatprep.subr.bf16.mxu0 %v678
      %858 = vmatpush1.bf16.msra.mxu0 %v677
      %859 = vmatprep.subr.bf16.mxu0 %v684
      %860 = vmatpush1.bf16.msra.mxu0 %v683
      %861 = vmatprep.subr.bf16.mxu0 %v690
      %862 = vmatpush1.bf16.msra.mxu0 %v689
      %863 = vmatprep.subr.bf16.mxu0 %v696
      %864 = vmatpush1.bf16.msra.mxu0 %v695
      %865 = vmatprep.subr.bf16.mxu0 %v702
      %866 = vmatpush1.bf16.msra.mxu0 %v701
      %867 = vmatprep.subr.bf16.mxu0 %v708
      %868 = vmatpush1.bf16.msra.mxu0 %v707
      %869 = vmatprep.subr.bf16.mxu0 %v714
      %870 = vmatpush1.bf16.msra.mxu0 %v713
      %871 = vmatprep.subr.bf16.mxu0 %v720
      %872 = vmatpush1.bf16.msra.mxu0 %v719
      %873 = vmatprep.subr.bf16.mxu0 %v726
      %874 = vmatpush1.bf16.msra.mxu0 %v725
      %875 = vmatprep.subr.bf16.mxu0 %v732
      %876 = vmatpush1.bf16.msra.mxu0 %v731
      %877 = vmatprep.subr.bf16.mxu0 %v738
      %878 = vmatpush1.bf16.msra.mxu0 %v737
      %879 = vmatprep.subr.bf16.mxu0 %v744
      %880 = vmatpush1.bf16.msra.mxu0 %v743
      %881 = vmatprep.subr.bf16.mxu0 %v750
      %882 = vmatpush1.bf16.msra.mxu0 %v749
      %883 = vmatprep.mubr.bf16.mxu0 %v242
      %884 = vmatmul.mubr.bf16.gmra.mrb[0].mxu0 %v241
      %v885 = vpop.f32.mrb[0].mxu0
      %v886 = vadd.f32 %v344, %v885
      %v887 = vpop.f32.mrb[0].mxu0
      %v888 = vadd.f32 %v348, %v887
      %v889 = vpop.f32.mrb[0].mxu0
      %v890 = vadd.f32 %v344, %v889
      %v891 = vpop.f32.mrb[0].mxu0
      %v892 = vadd.f32 %v348, %v891
      %893 = vdwg.mxu0
      %894 = vmatprep.subr.bf16.mxu0 %v662
      %895 = vmatpush1.bf16.msra.mxu0 %v661
      %896 = vmatprep.subr.bf16.mxu0 %v668
      %897 = vmatpush1.bf16.msra.mxu0 %v667
      %898 = vmatprep.subr.bf16.mxu0 %v674
      %899 = vmatpush1.bf16.msra.mxu0 %v673
      %900 = vmatprep.subr.bf16.mxu0 %v680
      %901 = vmatpush1.bf16.msra.mxu0 %v679
      %902 = vmatprep.subr.bf16.mxu0 %v686
      %903 = vmatpush1.bf16.msra.mxu0 %v685
      %904 = vmatprep.subr.bf16.mxu0 %v692
      %905 = vmatpush1.bf16.msra.mxu0 %v691
      %906 = vmatprep.subr.bf16.mxu0 %v698
      %907 = vmatpush1.bf16.msra.mxu0 %v697
      %908 = vmatprep.subr.bf16.mxu0 %v704
      %909 = vmatpush1.bf16.msra.mxu0 %v703
      %910 = vmatprep.subr.bf16.mxu0 %v710
      %911 = vmatpush1.bf16.msra.mxu0 %v709
      %912 = vmatprep.subr.bf16.mxu0 %v716
      %913 = vmatpush1.bf16.msra.mxu0 %v715
      %914 = vmatprep.subr.bf16.mxu0 %v722
      %915 = vmatpush1.bf16.msra.mxu0 %v721
      %916 = vmatprep.subr.bf16.mxu0 %v728
      %917 = vmatpush1.bf16.msra.mxu0 %v727
      %918 = vmatprep.subr.bf16.mxu0 %v734
      %919 = vmatpush1.bf16.msra.mxu0 %v733
      %920 = vmatprep.subr.bf16.mxu0 %v740
      %921 = vmatpush1.bf16.msra.mxu0 %v739
      %922 = vmatprep.subr.bf16.mxu0 %v746
      %923 = vmatpush1.bf16.msra.mxu0 %v745
      %924 = vmatprep.subr.bf16.mxu0 %v752
      %925 = vmatpush1.bf16.msra.mxu0 %v751
      %926 = vmatprep.mubr.bf16.mxu0 %v242
      %927 = vmatmul.mubr.bf16.gmra.mrb[0].mxu0 %v241
      %v928 = vpop.f32.mrb[0].mxu0
      %v929 = vadd.f32 %v352, %v928
      %v930 = vpop.f32.mrb[0].mxu0
      %v931 = vadd.f32 %v356, %v930
      %v932 = vpop.f32.mrb[0].mxu0
      %v933 = vadd.f32 %v352, %v932
      %v934 = vpop.f32.mrb[0].mxu0
      %v935 = vadd.f32 %v356, %v934
      %936 = vdwg.mxu0
      %937 = vmatprep.subr.bf16.mxu0 %v664
      %938 = vmatpush1.bf16.msra.mxu0 %v663
      %939 = vmatprep.subr.bf16.mxu0 %v670
      %940 = vmatpush1.bf16.msra.mxu0 %v669
      %941 = vmatprep.subr.bf16.mxu0 %v676
      %942 = vmatpush1.bf16.msra.mxu0 %v675
      %943 = vmatprep.subr.bf16.mxu0 %v682
      %944 = vmatpush1.bf16.msra.mxu0 %v681
      %945 = vmatprep.subr.bf16.mxu0 %v688
      %946 = vmatpush1.bf16.msra.mxu0 %v687
      %947 = vmatprep.subr.bf16.mxu0 %v694
      %948 = vmatpush1.bf16.msra.mxu0 %v693
      %949 = vmatprep.subr.bf16.mxu0 %v700
      %950 = vmatpush1.bf16.msra.mxu0 %v699
      %951 = vmatprep.subr.bf16.mxu0 %v706
      %952 = vmatpush1.bf16.msra.mxu0 %v705
      %953 = vmatprep.subr.bf16.mxu0 %v712
      %954 = vmatpush1.bf16.msra.mxu0 %v711
      %955 = vmatprep.subr.bf16.mxu0 %v718
      %956 = vmatpush1.bf16.msra.mxu0 %v717
      %957 = vmatprep.subr.bf16.mxu0 %v724
      %958 = vmatpush1.bf16.msra.mxu0 %v723
      %959 = vmatprep.subr.bf16.mxu0 %v730
      %960 = vmatpush1.bf16.msra.mxu0 %v729
      %961 = vmatprep.subr.bf16.mxu0 %v736
      %962 = vmatpush1.bf16.msra.mxu0 %v735
      %963 = vmatprep.subr.bf16.mxu0 %v742
      %964 = vmatpush1.bf16.msra.mxu0 %v741
      %965 = vmatprep.subr.bf16.mxu0 %v748
      %966 = vmatpush1.bf16.msra.mxu0 %v747
      %967 = vmatprep.subr.bf16.mxu0 %v754
      %968 = vmatpush1.bf16.msra.mxu0 %v753
      %969 = vmatprep.mubr.bf16.mxu0 %v242
      %970 = vmatmul.mubr.bf16.gmra.mrb[0].mxu0 %v241
      %v971 = vpop.f32.mrb[0].mxu0
      %v972 = vadd.f32 %v360, %v971
      %v973 = vpop.f32.mrb[0].mxu0
      %v974 = vadd.f32 %v364, %v973
      %v975 = vpop.f32.mrb[0].mxu0
      %v976 = vadd.f32 %v360, %v975
      %v977 = vpop.f32.mrb[0].mxu0
      %v978 = vadd.f32 %v364, %v977
      %979 = vdwg.mxu0
      %v980 = vmul.f32 %v886, 0.088388346
      %v981 = vmul.f32 %v888, 0.088388346
      %v982 = vmul.f32 %v890, 0.088388346
      %v983 = vmul.f32 %v892, 0.088388346
      %v984 = vcombine.high %v980, 0.0
      %v986 = vunpack.c.l.s4 1983009808
      %v987 = vunpack.c.0.s8 %v986
      %v988 = vlaneseq
      %v989 = vshrl.u32 %v988, 7
      %v990 = vsub.s32 %v987, %v989
      %v991 = vrot.slane %v980, %v990
      %v993 = vunpack.c.l.s4 1983009808
      %v994 = vunpack.c.0.s8 %v993
      %v995 = vlaneseq
      %v996 = vshrl.u32 %v995, 7
      %v997 = vsub.s32 %v994, %v996
      %v998 = vrot.slane %v984, %v997
      %v999 = vcombine.high %v981, 0.0
      %v1001 = vunpack.c.l.s4 1983009808
      %v1002 = vunpack.c.0.s8 %v1001
      %v1003 = vlaneseq
      %v1004 = vshrl.u32 %v1003, 7
      %v1005 = vsub.s32 %v1002, %v1004
      %v1006 = vrot.slane %v981, %v1005
      %v1008 = vunpack.c.l.s4 1983009808
      %v1009 = vunpack.c.0.s8 %v1008
      %v1010 = vlaneseq
      %v1011 = vshrl.u32 %v1010, 7
      %v1012 = vsub.s32 %v1009, %v1011
      %v1013 = vrot.slane %v999, %v1012
      %v1014 = vcombine.low %v991, %v1006
      %v1015 = vcombine.high %v991, %v1006
      %v1017 = vunpack.c.l.s4 1934713408
      %v1018 = vunpack.c.0.s8 %v1017
      %v1019 = vlaneseq
      %v1020 = vshrl.u32 %v1019, 7
      %v1021 = vsub.s32 %v1018, %v1020
      %v1022 = vrot.slane %v1014, %v1021
      %v1024 = vunpack.c.l.s4 1934713408
      %v1025 = vunpack.c.0.s8 %v1024
      %v1026 = vlaneseq
      %v1027 = vshrl.u32 %v1026, 7
      %v1028 = vsub.s32 %v1025, %v1027
      %v1029 = vrot.slane %v1015, %v1028
      %v1030 = vcombine.low %v998, %v1013
      %v1031 = vcombine.high %v998, %v1013
      %v1033 = vunpack.c.l.s4 1934713408
      %v1034 = vunpack.c.0.s8 %v1033
      %v1035 = vlaneseq
      %v1036 = vshrl.u32 %v1035, 7
      %v1037 = vsub.s32 %v1034, %v1036
      %v1038 = vrot.slane %v1030, %v1037
      %v1040 = vunpack.c.l.s4 1934713408
      %v1041 = vunpack.c.0.s8 %v1040
      %v1042 = vlaneseq
      %v1043 = vshrl.u32 %v1042, 7
      %v1044 = vsub.s32 %v1041, %v1043
      %v1045 = vrot.slane %v1031, %v1044
      %v1046 = vcombine.high %v1022, 0.0
      %v1047 = vcombine.high %v1029, 0.0
      %v1048 = vcombine.high %v1038, 0.0
      %v1049 = vcombine.high %v1045, 0.0
      %v1050 = vcombine.high %v982, 0.0
      %v1052 = vunpack.c.l.s4 1983009808
      %v1053 = vunpack.c.0.s8 %v1052
      %v1054 = vlaneseq
      %v1055 = vshrl.u32 %v1054, 7
      %v1056 = vsub.s32 %v1053, %v1055
      %v1057 = vrot.slane %v982, %v1056
      %v1059 = vunpack.c.l.s4 1983009808
      %v1060 = vunpack.c.0.s8 %v1059
      %v1061 = vlaneseq
      %v1062 = vshrl.u32 %v1061, 7
      %v1063 = vsub.s32 %v1060, %v1062
      %v1064 = vrot.slane %v1050, %v1063
      %v1065 = vcombine.high %v983, 0.0
      %v1067 = vunpack.c.l.s4 1983009808
      %v1068 = vunpack.c.0.s8 %v1067
      %v1069 = vlaneseq
      %v1070 = vshrl.u32 %v1069, 7
      %v1071 = vsub.s32 %v1068, %v1070
      %v1072 = vrot.slane %v983, %v1071
      %v1074 = vunpack.c.l.s4 1983009808
      %v1075 = vunpack.c.0.s8 %v1074
      %v1076 = vlaneseq
      %v1077 = vshrl.u32 %v1076, 7
      %v1078 = vsub.s32 %v1075, %v1077
      %v1079 = vrot.slane %v1065, %v1078
      %v1080 = vcombine.low %v1057, %v1072
      %v1081 = vcombine.high %v1057, %v1072
      %v1083 = vunpack.c.l.s4 1934713408
      %v1084 = vunpack.c.0.s8 %v1083
      %v1085 = vlaneseq
      %v1086 = vshrl.u32 %v1085, 7
      %v1087 = vsub.s32 %v1084, %v1086
      %v1088 = vrot.slane %v1080, %v1087
      %v1090 = vunpack.c.l.s4 1934713408
      %v1091 = vunpack.c.0.s8 %v1090
      %v1092 = vlaneseq
      %v1093 = vshrl.u32 %v1092, 7
      %v1094 = vsub.s32 %v1091, %v1093
      %v1095 = vrot.slane %v1081, %v1094
      %v1096 = vcombine.low %v1064, %v1079
      %v1097 = vcombine.high %v1064, %v1079
      %v1099 = vunpack.c.l.s4 1934713408
      %v1100 = vunpack.c.0.s8 %v1099
      %v1101 = vlaneseq
      %v1102 = vshrl.u32 %v1101, 7
      %v1103 = vsub.s32 %v1100, %v1102
      %v1104 = vrot.slane %v1096, %v1103
      %v1106 = vunpack.c.l.s4 1934713408
      %v1107 = vunpack.c.0.s8 %v1106
      %v1108 = vlaneseq
      %v1109 = vshrl.u32 %v1108, 7
      %v1110 = vsub.s32 %v1107, %v1109
      %v1111 = vrot.slane %v1097, %v1110
      %v1112 = vcombine.high %v1088, 0.0
      %v1113 = vcombine.high %v1095, 0.0
      %v1114 = vcombine.high %v1104, 0.0
      %v1115 = vcombine.high %v1111, 0.0
      %v1116 = vcombine.low %v1022, %v1029
      %v1118 = vunpack.c.l.s4 1983009808
      %v1119 = vunpack.c.0.s8 %v1118
      %v1120 = vlaneseq
      %v1121 = vshrl.u32 %v1120, 7
      %v1122 = vsub.s32 %v1119, %v1121
      %v1123 = vrot.slane %v1116, %v1122
      %v1124 = vcombine.low %v1046, %v1047
      %v1126 = vunpack.c.l.s4 1983009808
      %v1127 = vunpack.c.0.s8 %v1126
      %v1128 = vlaneseq
      %v1129 = vshrl.u32 %v1128, 7
      %v1130 = vsub.s32 %v1127, %v1129
      %v1131 = vrot.slane %v1124, %v1130
      %v1132 = vcombine.low %v1038, %v1045
      %v1134 = vunpack.c.l.s4 1983009808
      %v1135 = vunpack.c.0.s8 %v1134
      %v1136 = vlaneseq
      %v1137 = vshrl.u32 %v1136, 7
      %v1138 = vsub.s32 %v1135, %v1137
      %v1139 = vrot.slane %v1132, %v1138
      %v1140 = vcombine.low %v1048, %v1049
      %v1142 = vunpack.c.l.s4 1983009808
      %v1143 = vunpack.c.0.s8 %v1142
      %v1144 = vlaneseq
      %v1145 = vshrl.u32 %v1144, 7
      %v1146 = vsub.s32 %v1143, %v1145
      %v1147 = vrot.slane %v1140, %v1146
      %v1148 = vcombine.low %v1123, %v1131
      %v1150 = vunpack.c.l.s4 1934713408
      %v1151 = vunpack.c.0.s8 %v1150
      %v1152 = vlaneseq
      %v1153 = vshrl.u32 %v1152, 7
      %v1154 = vsub.s32 %v1151, %v1153
      %v1155 = vrot.slane %v1148, %v1154
      %v1156 = vcombine.low %v1139, %v1147
      %v1158 = vunpack.c.l.s4 1934713408
      %v1159 = vunpack.c.0.s8 %v1158
      %v1160 = vlaneseq
      %v1161 = vshrl.u32 %v1160, 7
      %v1162 = vsub.s32 %v1159, %v1161
      %v1163 = vrot.slane %v1156, %v1162
      %v1164 = vcombine.low %v1155, %v1163
      %v1165 = vcombine.high %v1155, %v1163
      %v1166 = vcombine.low %v1088, %v1095
      %v1168 = vunpack.c.l.s4 1983009808
      %v1169 = vunpack.c.0.s8 %v1168
      %v1170 = vlaneseq
      %v1171 = vshrl.u32 %v1170, 7
      %v1172 = vsub.s32 %v1169, %v1171
      %v1173 = vrot.slane %v1166, %v1172
      %v1174 = vcombine.low %v1112, %v1113
      %v1176 = vunpack.c.l.s4 1983009808
      %v1177 = vunpack.c.0.s8 %v1176
      %v1178 = vlaneseq
      %v1179 = vshrl.u32 %v1178, 7
      %v1180 = vsub.s32 %v1177, %v1179
      %v1181 = vrot.slane %v1174, %v1180
      %v1182 = vcombine.low %v1104, %v1111
      %v1184 = vunpack.c.l.s4 1983009808
      %v1185 = vunpack.c.0.s8 %v1184
      %v1186 = vlaneseq
      %v1187 = vshrl.u32 %v1186, 7
      %v1188 = vsub.s32 %v1185, %v1187
      %v1189 = vrot.slane %v1182, %v1188
      %v1190 = vcombine.low %v1114, %v1115
      %v1192 = vunpack.c.l.s4 1983009808
      %v1193 = vunpack.c.0.s8 %v1192
      %v1194 = vlaneseq
      %v1195 = vshrl.u32 %v1194, 7
      %v1196 = vsub.s32 %v1193, %v1195
      %v1197 = vrot.slane %v1190, %v1196
      %v1198 = vcombine.low %v1173, %v1181
      %v1200 = vunpack.c.l.s4 1934713408
      %v1201 = vunpack.c.0.s8 %v1200
      %v1202 = vlaneseq
      %v1203 = vshrl.u32 %v1202, 7
      %v1204 = vsub.s32 %v1201, %v1203
      %v1205 = vrot.slane %v1198, %v1204
      %v1206 = vcombine.low %v1189, %v1197
      %v1208 = vunpack.c.l.s4 1934713408
      %v1209 = vunpack.c.0.s8 %v1208
      %v1210 = vlaneseq
      %v1211 = vshrl.u32 %v1210, 7
      %v1212 = vsub.s32 %v1209, %v1211
      %v1213 = vrot.slane %v1206, %v1212
      %v1214 = vcombine.low %v1205, %v1213
      %v1215 = vcombine.high %v1205, %v1213
      %v1216 = vpack.c.bf16 %v1214, %v1164
      %v1217 = vpack.c.bf16 %v1215, %v1165
      %v1218 = vcombine.high %v929, 0.0
      %v1220 = vunpack.c.l.s4 1983009808
      %v1221 = vunpack.c.0.s8 %v1220
      %v1222 = vlaneseq
      %v1223 = vshrl.u32 %v1222, 7
      %v1224 = vsub.s32 %v1221, %v1223
      %v1225 = vrot.slane %v929, %v1224
      %v1227 = vunpack.c.l.s4 1983009808
      %v1228 = vunpack.c.0.s8 %v1227
      %v1229 = vlaneseq
      %v1230 = vshrl.u32 %v1229, 7
      %v1231 = vsub.s32 %v1228, %v1230
      %v1232 = vrot.slane %v1218, %v1231
      %v1233 = vcombine.high %v931, 0.0
      %v1235 = vunpack.c.l.s4 1983009808
      %v1236 = vunpack.c.0.s8 %v1235
      %v1237 = vlaneseq
      %v1238 = vshrl.u32 %v1237, 7
      %v1239 = vsub.s32 %v1236, %v1238
      %v1240 = vrot.slane %v931, %v1239
      %v1242 = vunpack.c.l.s4 1983009808
      %v1243 = vunpack.c.0.s8 %v1242
      %v1244 = vlaneseq
      %v1245 = vshrl.u32 %v1244, 7
      %v1246 = vsub.s32 %v1243, %v1245
      %v1247 = vrot.slane %v1233, %v1246
      %v1248 = vcombine.low %v1225, %v1240
      %v1249 = vcombine.high %v1225, %v1240
      %v1251 = vunpack.c.l.s4 1934713408
      %v1252 = vunpack.c.0.s8 %v1251
      %v1253 = vlaneseq
      %v1254 = vshrl.u32 %v1253, 7
      %v1255 = vsub.s32 %v1252, %v1254
      %v1256 = vrot.slane %v1248, %v1255
      %v1258 = vunpack.c.l.s4 1934713408
      %v1259 = vunpack.c.0.s8 %v1258
      %v1260 = vlaneseq
      %v1261 = vshrl.u32 %v1260, 7
      %v1262 = vsub.s32 %v1259, %v1261
      %v1263 = vrot.slane %v1249, %v1262
      %v1264 = vcombine.low %v1232, %v1247
      %v1265 = vcombine.high %v1232, %v1247
      %v1267 = vunpack.c.l.s4 1934713408
      %v1268 = vunpack.c.0.s8 %v1267
      %v1269 = vlaneseq
      %v1270 = vshrl.u32 %v1269, 7
      %v1271 = vsub.s32 %v1268, %v1270
      %v1272 = vrot.slane %v1264, %v1271
      %v1274 = vunpack.c.l.s4 1934713408
      %v1275 = vunpack.c.0.s8 %v1274
      %v1276 = vlaneseq
      %v1277 = vshrl.u32 %v1276, 7
      %v1278 = vsub.s32 %v1275, %v1277
      %v1279 = vrot.slane %v1265, %v1278
      %v1280 = vcombine.high %v1256, 0.0
      %v1281 = vcombine.high %v1263, 0.0
      %v1282 = vcombine.high %v1272, 0.0
      %v1283 = vcombine.high %v1279, 0.0
      %v1284 = vcombine.high %v933, 0.0
      %v1286 = vunpack.c.l.s4 1983009808
      %v1287 = vunpack.c.0.s8 %v1286
      %v1288 = vlaneseq
      %v1289 = vshrl.u32 %v1288, 7
      %v1290 = vsub.s32 %v1287, %v1289
      %v1291 = vrot.slane %v933, %v1290
      %v1293 = vunpack.c.l.s4 1983009808
      %v1294 = vunpack.c.0.s8 %v1293
      %v1295 = vlaneseq
      %v1296 = vshrl.u32 %v1295, 7
      %v1297 = vsub.s32 %v1294, %v1296
      %v1298 = vrot.slane %v1284, %v1297
      %v1299 = vcombine.high %v935, 0.0
      %v1301 = vunpack.c.l.s4 1983009808
      %v1302 = vunpack.c.0.s8 %v1301
      %v1303 = vlaneseq
      %v1304 = vshrl.u32 %v1303, 7
      %v1305 = vsub.s32 %v1302, %v1304
      %v1306 = vrot.slane %v935, %v1305
      %v1308 = vunpack.c.l.s4 1983009808
      %v1309 = vunpack.c.0.s8 %v1308
      %v1310 = vlaneseq
      %v1311 = vshrl.u32 %v1310, 7
      %v1312 = vsub.s32 %v1309, %v1311
      %v1313 = vrot.slane %v1299, %v1312
      %v1314 = vcombine.low %v1291, %v1306
      %v1315 = vcombine.high %v1291, %v1306
      %v1317 = vunpack.c.l.s4 1934713408
      %v1318 = vunpack.c.0.s8 %v1317
      %v1319 = vlaneseq
      %v1320 = vshrl.u32 %v1319, 7
      %v1321 = vsub.s32 %v1318, %v1320
      %v1322 = vrot.slane %v1314, %v1321
      %v1324 = vunpack.c.l.s4 1934713408
      %v1325 = vunpack.c.0.s8 %v1324
      %v1326 = vlaneseq
      %v1327 = vshrl.u32 %v1326, 7
      %v1328 = vsub.s32 %v1325, %v1327
      %v1329 = vrot.slane %v1315, %v1328
      %v1330 = vcombine.low %v1298, %v1313
      %v1331 = vcombine.high %v1298, %v1313
      %v1333 = vunpack.c.l.s4 1934713408
      %v1334 = vunpack.c.0.s8 %v1333
      %v1335 = vlaneseq
      %v1336 = vshrl.u32 %v1335, 7
      %v1337 = vsub.s32 %v1334, %v1336
      %v1338 = vrot.slane %v1330, %v1337
      %v1340 = vunpack.c.l.s4 1934713408
      %v1341 = vunpack.c.0.s8 %v1340
      %v1342 = vlaneseq
      %v1343 = vshrl.u32 %v1342, 7
      %v1344 = vsub.s32 %v1341, %v1343
      %v1345 = vrot.slane %v1331, %v1344
      %v1346 = vcombine.high %v1322, 0.0
      %v1347 = vcombine.high %v1329, 0.0
      %v1348 = vcombine.high %v1338, 0.0
      %v1349 = vcombine.high %v1345, 0.0
      %v1350 = vcombine.low %v1256, %v1263
      %v1352 = vunpack.c.l.s4 1983009808
      %v1353 = vunpack.c.0.s8 %v1352
      %v1354 = vlaneseq
      %v1355 = vshrl.u32 %v1354, 7
      %v1356 = vsub.s32 %v1353, %v1355
      %v1357 = vrot.slane %v1350, %v1356
      %v1358 = vcombine.low %v1280, %v1281
      %v1360 = vunpack.c.l.s4 1983009808
      %v1361 = vunpack.c.0.s8 %v1360
      %v1362 = vlaneseq
      %v1363 = vshrl.u32 %v1362, 7
      %v1364 = vsub.s32 %v1361, %v1363
      %v1365 = vrot.slane %v1358, %v1364
      %v1366 = vcombine.low %v1272, %v1279
      %v1368 = vunpack.c.l.s4 1983009808
      %v1369 = vunpack.c.0.s8 %v1368
      %v1370 = vlaneseq
      %v1371 = vshrl.u32 %v1370, 7
      %v1372 = vsub.s32 %v1369, %v1371
      %v1373 = vrot.slane %v1366, %v1372
      %v1374 = vcombine.low %v1282, %v1283
      %v1376 = vunpack.c.l.s4 1983009808
      %v1377 = vunpack.c.0.s8 %v1376
      %v1378 = vlaneseq
      %v1379 = vshrl.u32 %v1378, 7
      %v1380 = vsub.s32 %v1377, %v1379
      %v1381 = vrot.slane %v1374, %v1380
      %v1382 = vcombine.low %v1357, %v1365
      %v1384 = vunpack.c.l.s4 1934713408
      %v1385 = vunpack.c.0.s8 %v1384
      %v1386 = vlaneseq
      %v1387 = vshrl.u32 %v1386, 7
      %v1388 = vsub.s32 %v1385, %v1387
      %v1389 = vrot.slane %v1382, %v1388
      %v1390 = vcombine.low %v1373, %v1381
      %v1392 = vunpack.c.l.s4 1934713408
      %v1393 = vunpack.c.0.s8 %v1392
      %v1394 = vlaneseq
      %v1395 = vshrl.u32 %v1394, 7
      %v1396 = vsub.s32 %v1393, %v1395
      %v1397 = vrot.slane %v1390, %v1396
      %v1398 = vcombine.low %v1389, %v1397
      %v1399 = vcombine.high %v1389, %v1397
      %v1400 = vcombine.low %v1322, %v1329
      %v1402 = vunpack.c.l.s4 1983009808
      %v1403 = vunpack.c.0.s8 %v1402
      %v1404 = vlaneseq
      %v1405 = vshrl.u32 %v1404, 7
      %v1406 = vsub.s32 %v1403, %v1405
      %v1407 = vrot.slane %v1400, %v1406
      %v1408 = vcombine.low %v1346, %v1347
      %v1410 = vunpack.c.l.s4 1983009808
      %v1411 = vunpack.c.0.s8 %v1410
      %v1412 = vlaneseq
      %v1413 = vshrl.u32 %v1412, 7
      %v1414 = vsub.s32 %v1411, %v1413
      %v1415 = vrot.slane %v1408, %v1414
      %v1416 = vcombine.low %v1338, %v1345
      %v1418 = vunpack.c.l.s4 1983009808
      %v1419 = vunpack.c.0.s8 %v1418
      %v1420 = vlaneseq
      %v1421 = vshrl.u32 %v1420, 7
      %v1422 = vsub.s32 %v1419, %v1421
      %v1423 = vrot.slane %v1416, %v1422
      %v1424 = vcombine.low %v1348, %v1349
      %v1426 = vunpack.c.l.s4 1983009808
      %v1427 = vunpack.c.0.s8 %v1426
      %v1428 = vlaneseq
      %v1429 = vshrl.u32 %v1428, 7
      %v1430 = vsub.s32 %v1427, %v1429
      %v1431 = vrot.slane %v1424, %v1430
      %v1432 = vcombine.low %v1407, %v1415
      %v1434 = vunpack.c.l.s4 1934713408
      %v1435 = vunpack.c.0.s8 %v1434
      %v1436 = vlaneseq
      %v1437 = vshrl.u32 %v1436, 7
      %v1438 = vsub.s32 %v1435, %v1437
      %v1439 = vrot.slane %v1432, %v1438
      %v1440 = vcombine.low %v1423, %v1431
      %v1442 = vunpack.c.l.s4 1934713408
      %v1443 = vunpack.c.0.s8 %v1442
      %v1444 = vlaneseq
      %v1445 = vshrl.u32 %v1444, 7
      %v1446 = vsub.s32 %v1443, %v1445
      %v1447 = vrot.slane %v1440, %v1446
      %v1448 = vcombine.low %v1439, %v1447
      %v1449 = vcombine.high %v1439, %v1447
      %v1450 = vpack.c.bf16 %v1448, %v1398
      %v1451 = vpack.c.bf16 %v1449, %v1399
      %v1452 = vcombine.high %v972, 0.0
      %v1454 = vunpack.c.l.s4 1983009808
      %v1455 = vunpack.c.0.s8 %v1454
      %v1456 = vlaneseq
      %v1457 = vshrl.u32 %v1456, 7
      %v1458 = vsub.s32 %v1455, %v1457
      %v1459 = vrot.slane %v972, %v1458
      %v1461 = vunpack.c.l.s4 1983009808
      %v1462 = vunpack.c.0.s8 %v1461
      %v1463 = vlaneseq
      %v1464 = vshrl.u32 %v1463, 7
      %v1465 = vsub.s32 %v1462, %v1464
      %v1466 = vrot.slane %v1452, %v1465
      %v1467 = vcombine.high %v974, 0.0
      %v1469 = vunpack.c.l.s4 1983009808
      %v1470 = vunpack.c.0.s8 %v1469
      %v1471 = vlaneseq
      %v1472 = vshrl.u32 %v1471, 7
      %v1473 = vsub.s32 %v1470, %v1472
      %v1474 = vrot.slane %v974, %v1473
      %v1476 = vunpack.c.l.s4 1983009808
      %v1477 = vunpack.c.0.s8 %v1476
      %v1478 = vlaneseq
      %v1479 = vshrl.u32 %v1478, 7
      %v1480 = vsub.s32 %v1477, %v1479
      %v1481 = vrot.slane %v1467, %v1480
      %v1482 = vcombine.low %v1459, %v1474
      %v1483 = vcombine.high %v1459, %v1474
      %v1485 = vunpack.c.l.s4 1934713408
      %v1486 = vunpack.c.0.s8 %v1485
      %v1487 = vlaneseq
      %v1488 = vshrl.u32 %v1487, 7
      %v1489 = vsub.s32 %v1486, %v1488
      %v1490 = vrot.slane %v1482, %v1489
      %v1492 = vunpack.c.l.s4 1934713408
      %v1493 = vunpack.c.0.s8 %v1492
      %v1494 = vlaneseq
      %v1495 = vshrl.u32 %v1494, 7
      %v1496 = vsub.s32 %v1493, %v1495
      %v1497 = vrot.slane %v1483, %v1496
      %v1498 = vcombine.low %v1466, %v1481
      %v1499 = vcombine.high %v1466, %v1481
      %v1501 = vunpack.c.l.s4 1934713408
      %v1502 = vunpack.c.0.s8 %v1501
      %v1503 = vlaneseq
      %v1504 = vshrl.u32 %v1503, 7
      %v1505 = vsub.s32 %v1502, %v1504
      %v1506 = vrot.slane %v1498, %v1505
      %v1508 = vunpack.c.l.s4 1934713408
      %v1509 = vunpack.c.0.s8 %v1508
      %v1510 = vlaneseq
      %v1511 = vshrl.u32 %v1510, 7
      %v1512 = vsub.s32 %v1509, %v1511
      %v1513 = vrot.slane %v1499, %v1512
      %v1514 = vcombine.high %v1490, 0.0
      %v1515 = vcombine.high %v1497, 0.0
      %v1516 = vcombine.high %v1506, 0.0
      %v1517 = vcombine.high %v1513, 0.0
      %v1518 = vcombine.high %v976, 0.0
      %v1520 = vunpack.c.l.s4 1983009808
      %v1521 = vunpack.c.0.s8 %v1520
      %v1522 = vlaneseq
      %v1523 = vshrl.u32 %v1522, 7
      %v1524 = vsub.s32 %v1521, %v1523
      %v1525 = vrot.slane %v976, %v1524
      %v1527 = vunpack.c.l.s4 1983009808
      %v1528 = vunpack.c.0.s8 %v1527
      %v1529 = vlaneseq
      %v1530 = vshrl.u32 %v1529, 7
      %v1531 = vsub.s32 %v1528, %v1530
      %v1532 = vrot.slane %v1518, %v1531
      %v1533 = vcombine.high %v978, 0.0
      %v1535 = vunpack.c.l.s4 1983009808
      %v1536 = vunpack.c.0.s8 %v1535
      %v1537 = vlaneseq
      %v1538 = vshrl.u32 %v1537, 7
      %v1539 = vsub.s32 %v1536, %v1538
      %v1540 = vrot.slane %v978, %v1539
      %v1542 = vunpack.c.l.s4 1983009808
      %v1543 = vunpack.c.0.s8 %v1542
      %v1544 = vlaneseq
      %v1545 = vshrl.u32 %v1544, 7
      %v1546 = vsub.s32 %v1543, %v1545
      %v1547 = vrot.slane %v1533, %v1546
      %v1548 = vcombine.low %v1525, %v1540
      %v1549 = vcombine.high %v1525, %v1540
      %v1551 = vunpack.c.l.s4 1934713408
      %v1552 = vunpack.c.0.s8 %v1551
      %v1553 = vlaneseq
      %v1554 = vshrl.u32 %v1553, 7
      %v1555 = vsub.s32 %v1552, %v1554
      %v1556 = vrot.slane %v1548, %v1555
      %v1558 = vunpack.c.l.s4 1934713408
      %v1559 = vunpack.c.0.s8 %v1558
      %v1560 = vlaneseq
      %v1561 = vshrl.u32 %v1560, 7
      %v1562 = vsub.s32 %v1559, %v1561
      %v1563 = vrot.slane %v1549, %v1562
      %v1564 = vcombine.low %v1532, %v1547
      %v1565 = vcombine.high %v1532, %v1547
      %v1567 = vunpack.c.l.s4 1934713408
      %v1568 = vunpack.c.0.s8 %v1567
      %v1569 = vlaneseq
      %v1570 = vshrl.u32 %v1569, 7
      %v1571 = vsub.s32 %v1568, %v1570
      %v1572 = vrot.slane %v1564, %v1571
      %v1574 = vunpack.c.l.s4 1934713408
      %v1575 = vunpack.c.0.s8 %v1574
      %v1576 = vlaneseq
      %v1577 = vshrl.u32 %v1576, 7
      %v1578 = vsub.s32 %v1575, %v1577
      %v1579 = vrot.slane %v1565, %v1578
      %v1580 = vcombine.high %v1556, 0.0
      %v1581 = vcombine.high %v1563, 0.0
      %v1582 = vcombine.high %v1572, 0.0
      %v1583 = vcombine.high %v1579, 0.0
      %v1584 = vcombine.low %v1490, %v1497
      %v1586 = vunpack.c.l.s4 1983009808
      %v1587 = vunpack.c.0.s8 %v1586
      %v1588 = vlaneseq
      %v1589 = vshrl.u32 %v1588, 7
      %v1590 = vsub.s32 %v1587, %v1589
      %v1591 = vrot.slane %v1584, %v1590
      %v1592 = vcombine.low %v1514, %v1515
      %v1594 = vunpack.c.l.s4 1983009808
      %v1595 = vunpack.c.0.s8 %v1594
      %v1596 = vlaneseq
      %v1597 = vshrl.u32 %v1596, 7
      %v1598 = vsub.s32 %v1595, %v1597
      %v1599 = vrot.slane %v1592, %v1598
      %v1600 = vcombine.low %v1506, %v1513
      %v1602 = vunpack.c.l.s4 1983009808
      %v1603 = vunpack.c.0.s8 %v1602
      %v1604 = vlaneseq
      %v1605 = vshrl.u32 %v1604, 7
      %v1606 = vsub.s32 %v1603, %v1605
      %v1607 = vrot.slane %v1600, %v1606
      %v1608 = vcombine.low %v1516, %v1517
      %v1610 = vunpack.c.l.s4 1983009808
      %v1611 = vunpack.c.0.s8 %v1610
      %v1612 = vlaneseq
      %v1613 = vshrl.u32 %v1612, 7
      %v1614 = vsub.s32 %v1611, %v1613
      %v1615 = vrot.slane %v1608, %v1614
      %v1616 = vcombine.low %v1591, %v1599
      %v1618 = vunpack.c.l.s4 1934713408
      %v1619 = vunpack.c.0.s8 %v1618
      %v1620 = vlaneseq
      %v1621 = vshrl.u32 %v1620, 7
      %v1622 = vsub.s32 %v1619, %v1621
      %v1623 = vrot.slane %v1616, %v1622
      %v1624 = vcombine.low %v1607, %v1615
      %v1626 = vunpack.c.l.s4 1934713408
      %v1627 = vunpack.c.0.s8 %v1626
      %v1628 = vlaneseq
      %v1629 = vshrl.u32 %v1628, 7
      %v1630 = vsub.s32 %v1627, %v1629
      %v1631 = vrot.slane %v1624, %v1630
      %v1632 = vcombine.low %v1623, %v1631
      %v1633 = vcombine.high %v1623, %v1631
      %v1634 = vcombine.low %v1556, %v1563
      %v1636 = vunpack.c.l.s4 1983009808
      %v1637 = vunpack.c.0.s8 %v1636
      %v1638 = vlaneseq
      %v1639 = vshrl.u32 %v1638, 7
      %v1640 = vsub.s32 %v1637, %v1639
      %v1641 = vrot.slane %v1634, %v1640
      %v1642 = vcombine.low %v1580, %v1581
      %v1644 = vunpack.c.l.s4 1983009808
      %v1645 = vunpack.c.0.s8 %v1644
      %v1646 = vlaneseq
      %v1647 = vshrl.u32 %v1646, 7
      %v1648 = vsub.s32 %v1645, %v1647
      %v1649 = vrot.slane %v1642, %v1648
      %v1650 = vcombine.low %v1572, %v1579
      %v1652 = vunpack.c.l.s4 1983009808
      %v1653 = vunpack.c.0.s8 %v1652
      %v1654 = vlaneseq
      %v1655 = vshrl.u32 %v1654, 7
      %v1656 = vsub.s32 %v1653, %v1655
      %v1657 = vrot.slane %v1650, %v1656
      %v1658 = vcombine.low %v1582, %v1583
      %v1660 = vunpack.c.l.s4 1983009808
      %v1661 = vunpack.c.0.s8 %v1660
      %v1662 = vlaneseq
      %v1663 = vshrl.u32 %v1662, 7
      %v1664 = vsub.s32 %v1661, %v1663
      %v1665 = vrot.slane %v1658, %v1664
      %v1666 = vcombine.low %v1641, %v1649
      %v1668 = vunpack.c.l.s4 1934713408
      %v1669 = vunpack.c.0.s8 %v1668
      %v1670 = vlaneseq
      %v1671 = vshrl.u32 %v1670, 7
      %v1672 = vsub.s32 %v1669, %v1671
      %v1673 = vrot.slane %v1666, %v1672
      %v1674 = vcombine.low %v1657, %v1665
      %v1676 = vunpack.c.l.s4 1934713408
      %v1677 = vunpack.c.0.s8 %v1676
      %v1678 = vlaneseq
      %v1679 = vshrl.u32 %v1678, 7
      %v1680 = vsub.s32 %v1677, %v1679
      %v1681 = vrot.slane %v1674, %v1680
      %v1682 = vcombine.low %v1673, %v1681
      %v1683 = vcombine.high %v1673, %v1681
      %v1684 = vpack.c.bf16 %v1682, %v1632
      %v1685 = vpack.c.bf16 %v1683, %v1633
      %v1686 = vld [vmem:[#allocation8] sm:$0xff]
      %v1687 = vld [vmem:[#allocation8 + $0x8] sm:$0xff]
      %1688 = vmatprep.subr.bf16.mxu0 0
      %1689 = vmatpush1.bf16.xpose.msra.mxu0 %v1450
      %1690 = vmatprep.subr.bf16.mxu0 0
      %1691 = vmatpush1.bf16.xpose.msra.mxu0 0
      %1692 = vmatprep.subr.bf16.mxu0 0
      %1693 = vmatpush1.bf16.xpose.msra.mxu0 0
      %1694 = vmatprep.subr.bf16.mxu0 0
      %1695 = vmatpush1.bf16.xpose.msra.mxu0 0
      %1696 = vmatprep.subr.bf16.mxu0 0
      %1697 = vmatpush1.bf16.xpose.msra.mxu0 0
      %1698 = vmatprep.subr.bf16.mxu0 0
      %1699 = vmatpush1.bf16.xpose.msra.mxu0 0
      %1700 = vmatprep.subr.bf16.mxu0 0
      %1701 = vmatpush1.bf16.xpose.msra.mxu0 0
      %1702 = vmatprep.subr.bf16.mxu0 0
      %1703 = vmatpush1.bf16.xpose.msra.mxu0 0
      %1704 = vmatprep.subr.bf16.mxu0 0
      %1705 = vmatpush1.bf16.xpose.msra.mxu0 0
      %1706 = vmatprep.subr.bf16.mxu0 0
      %1707 = vmatpush1.bf16.xpose.msra.mxu0 0
      %1708 = vmatprep.subr.bf16.mxu0 0
      %1709 = vmatpush1.bf16.xpose.msra.mxu0 0
      %1710 = vmatprep.subr.bf16.mxu0 0
      %1711 = vmatpush1.bf16.xpose.msra.mxu0 0
      %1712 = vmatprep.subr.bf16.mxu0 0
      %1713 = vmatpush1.bf16.xpose.msra.mxu0 0
      %1714 = vmatprep.subr.bf16.mxu0 0
      %1715 = vmatpush1.bf16.xpose.msra.mxu0 0
      %1716 = vmatprep.subr.bf16.mxu0 0
      %1717 = vmatpush1.bf16.xpose.msra.mxu0 0
      %1718 = vmatprep.subr.bf16.mxu0 0
      %1719 = vmatpush1.bf16.xpose.msra.mxu0 0
      %1720 = vmatprep.mubr.bf16.mxu0 0
      %1721 = vmatmul.mubr.bf16.gmra.mrb[0].mxu0 %v1216
      %v1722 = vpop.f32.mrb[0].mxu0
      %v1723 = vadd.f32 %v1686, %v1722
      %v1724 = vpop.f32.mrb[0].mxu0
      %v1725 = vpop.f32.mrb[0].mxu0
      %v1726 = vadd.f32 %v1687, %v1725
      %v1727 = vpop.f32.mrb[0].mxu0
      %1728 = vdwg.mxu0
      %1729 = vmatprep.subr.bf16.mxu0 0
      %1730 = vmatpush1.bf16.xpose.msra.mxu0 %v1451
      %1731 = vmatprep.subr.bf16.mxu0 0
      %1732 = vmatpush1.bf16.xpose.msra.mxu0 0
      %1733 = vmatprep.subr.bf16.mxu0 0
      %1734 = vmatpush1.bf16.xpose.msra.mxu0 0
      %1735 = vmatprep.subr.bf16.mxu0 0
      %1736 = vmatpush1.bf16.xpose.msra.mxu0 0
      %1737 = vmatprep.subr.bf16.mxu0 0
      %1738 = vmatpush1.bf16.xpose.msra.mxu0 0
      %1739 = vmatprep.subr.bf16.mxu0 0
      %1740 = vmatpush1.bf16.xpose.msra.mxu0 0
      %1741 = vmatprep.subr.bf16.mxu0 0
      %1742 = vmatpush1.bf16.xpose.msra.mxu0 0
      %1743 = vmatprep.subr.bf16.mxu0 0
      %1744 = vmatpush1.bf16.xpose.msra.mxu0 0
      %1745 = vmatprep.subr.bf16.mxu0 0
      %1746 = vmatpush1.bf16.xpose.msra.mxu0 0
      %1747 = vmatprep.subr.bf16.mxu0 0
      %1748 = vmatpush1.bf16.xpose.msra.mxu0 0
      %1749 = vmatprep.subr.bf16.mxu0 0
      %1750 = vmatpush1.bf16.xpose.msra.mxu0 0
      %1751 = vmatprep.subr.bf16.mxu0 0
      %1752 = vmatpush1.bf16.xpose.msra.mxu0 0
      %1753 = vmatprep.subr.bf16.mxu0 0
      %1754 = vmatpush1.bf16.xpose.msra.mxu0 0
      %1755 = vmatprep.subr.bf16.mxu0 0
      %1756 = vmatpush1.bf16.xpose.msra.mxu0 0
      %1757 = vmatprep.subr.bf16.mxu0 0
      %1758 = vmatpush1.bf16.xpose.msra.mxu0 0
      %1759 = vmatprep.subr.bf16.mxu0 0
      %1760 = vmatpush1.bf16.xpose.msra.mxu0 0
      %1761 = vmatprep.mubr.bf16.mxu0 0
      %1762 = vmatmul.mubr.bf16.gmra.mrb[0].mxu0 %v1217
      %v1763 = vpop.f32.mrb[0].mxu0
      %v1764 = vadd.f32 %v1686, %v1763
      %v1765 = vpop.f32.mrb[0].mxu0
      %v1766 = vpop.f32.mrb[0].mxu0
      %v1767 = vadd.f32 %v1687, %v1766
      %v1768 = vpop.f32.mrb[0].mxu0
      %1769 = vdwg.mxu0
      %vm1770 = vcmask 130048
      %v1771 = vsel %vm1770, %v1723, -inf
      %1772 = vmax.xlane.f32.xlu0 %v1771
      %v1773 = vpop.xlane.xlu0 %1772
      %v1774 = vsel %vm1770, %v1726, -inf
      %1775 = vmax.xlane.f32.xlu0 %v1774
      %v1776 = vpop.xlane.xlu0 %1775
      %v1777 = vsel %vm1770, %v1764, -inf
      %1778 = vmax.xlane.f32.xlu0 %v1777
      %v1779 = vpop.xlane.xlu0 %1778
      %v1780 = vsel %vm1770, %v1767, -inf
      %1781 = vmax.xlane.f32.xlu0 %v1780
      %v1782 = vpop.xlane.xlu0 %1781
      %v1783 = vsub.f32 %v1723, %v1773
      %v1784 = vsub.f32 %v1726, %v1776
      %v1785 = vsub.f32 %v1764, %v1779
      %v1786 = vsub.f32 %v1767, %v1782
      %v1787 = vmul.f32 %v1783, 1.442695
      %v1788 = vpow.pop %v1787
      %v1789 = vmul.f32 %v1784, 1.442695
      %v1790 = vpow.pop %v1789
      %v1791 = vmul.f32 %v1785, 1.442695
      %v1792 = vpow.pop %v1791
      %v1793 = vmul.f32 %v1786, 1.442695
      %v1794 = vpow.pop %v1793
      %v1795 = vsel %vm1770, %v1788, 0.0
      %1796 = vadd.xlane.f32.xlu0 %v1795
      %v1797 = vpop.xlane.xlu0 %1796
      %v1798 = vsel %vm1770, %v1790, 0.0
      %1799 = vadd.xlane.f32.xlu0 %v1798
      %v1800 = vpop.xlane.xlu0 %1799
      %v1801 = vsel %vm1770, %v1792, 0.0
      %1802 = vadd.xlane.f32.xlu0 %v1801
      %v1803 = vpop.xlane.xlu0 %1802
      %v1804 = vsel %vm1770, %v1794, 0.0
      %1805 = vadd.xlane.f32.xlu0 %v1804
      %v1806 = vpop.xlane.xlu0 %1805
      %v1807 = vrcp.pop %v1797
      %v1808 = vrcp.pop %v1800
      %v1809 = vrcp.pop %v1803
      %v1810 = vrcp.pop %v1806
      %v1811 = vmul.f32 %v1788, %v1807
      %v1812 = vmul.f32 %v1790, %v1808
      %v1813 = vmul.f32 %v1792, %v1809
      %v1814 = vmul.f32 %v1794, %v1810
      %v1815 = vpack.c.bf16 %v1812, %v1811
      %v1816 = vpack.c.bf16 %v1814, %v1813
      %v1818 = vsel %vm1770, %v1815, 0
      %1820 = vmatprep.subr.bf16.mxu0 0
      %1821 = vmatpush1.bf16.msra.mxu0 %v1684
      %1822 = vmatprep.subr.bf16.mxu0 0
      %1823 = vmatpush1.bf16.msra.mxu0 0
      %1824 = vmatprep.subr.bf16.mxu0 0
      %1825 = vmatpush1.bf16.msra.mxu0 0
      %1826 = vmatprep.subr.bf16.mxu0 0
      %1827 = vmatpush1.bf16.msra.mxu0 0
      %1828 = vmatprep.subr.bf16.mxu0 0
      %1829 = vmatpush1.bf16.msra.mxu0 0
      %1830 = vmatprep.subr.bf16.mxu0 0
      %1831 = vmatpush1.bf16.msra.mxu0 0
      %1832 = vmatprep.subr.bf16.mxu0 0
      %1833 = vmatpush1.bf16.msra.mxu0 0
      %1834 = vmatprep.subr.bf16.mxu0 0
      %1835 = vmatpush1.bf16.msra.mxu0 0
      %1836 = vmatprep.subr.bf16.mxu0 0
      %1837 = vmatpush1.bf16.msra.mxu0 0
      %1838 = vmatprep.subr.bf16.mxu0 0
      %1839 = vmatpush1.bf16.msra.mxu0 0
      %1840 = vmatprep.subr.bf16.mxu0 0
      %1841 = vmatpush1.bf16.msra.mxu0 0
      %1842 = vmatprep.subr.bf16.mxu0 0
      %1843 = vmatpush1.bf16.msra.mxu0 0
      %1844 = vmatprep.subr.bf16.mxu0 0
      %1845 = vmatpush1.bf16.msra.mxu0 0
      %1846 = vmatprep.subr.bf16.mxu0 0
      %1847 = vmatpush1.bf16.msra.mxu0 0
      %1848 = vmatprep.subr.bf16.mxu0 0
      %1849 = vmatpush1.bf16.msra.mxu0 0
      %1850 = vmatprep.subr.bf16.mxu0 0
      %1851 = vmatpush1.bf16.msra.mxu0 0
      %1852 = vmatprep.mubr.bf16.mxu0 0
      %1853 = vmatmul.mubr.bf16.gmra.mrb[0].mxu0 %v1818
      %v1854 = vpop.f32.mrb[0].mxu0
      %v1855 = vadd.f32 0.0, %v1854
      %v1856 = vpop.f32.mrb[0].mxu0
      %v1857 = vpop.f32.mrb[0].mxu0
      %v1858 = vadd.f32 0.0, %v1857
      %v1859 = vpop.f32.mrb[0].mxu0
      %1860 = vdwg.mxu0
      %v1862 = vsel %vm1770, %v1816, 0
      %1864 = vmatprep.subr.bf16.mxu0 0
      %1865 = vmatpush1.bf16.msra.mxu0 %v1685
      %1866 = vmatprep.subr.bf16.mxu0 0
      %1867 = vmatpush1.bf16.msra.mxu0 0
      %1868 = vmatprep.subr.bf16.mxu0 0
      %1869 = vmatpush1.bf16.msra.mxu0 0
      %1870 = vmatprep.subr.bf16.mxu0 0
      %1871 = vmatpush1.bf16.msra.mxu0 0
      %1872 = vmatprep.subr.bf16.mxu0 0
      %1873 = vmatpush1.bf16.msra.mxu0 0
      %1874 = vmatprep.subr.bf16.mxu0 0
      %1875 = vmatpush1.bf16.msra.mxu0 0
      %1876 = vmatprep.subr.bf16.mxu0 0
      %1877 = vmatpush1.bf16.msra.mxu0 0
      %1878 = vmatprep.subr.bf16.mxu0 0
      %1879 = vmatpush1.bf16.msra.mxu0 0
      %1880 = vmatprep.subr.bf16.mxu0 0
      %1881 = vmatpush1.bf16.msra.mxu0 0
      %1882 = vmatprep.subr.bf16.mxu0 0
      %1883 = vmatpush1.bf16.msra.mxu0 0
      %1884 = vmatprep.subr.bf16.mxu0 0
      %1885 = vmatpush1.bf16.msra.mxu0 0
      %1886 = vmatprep.subr.bf16.mxu0 0
      %1887 = vmatpush1.bf16.msra.mxu0 0
      %1888 = vmatprep.subr.bf16.mxu0 0
      %1889 = vmatpush1.bf16.msra.mxu0 0
      %1890 = vmatprep.subr.bf16.mxu0 0
      %1891 = vmatpush1.bf16.msra.mxu0 0
      %1892 = vmatprep.subr.bf16.mxu0 0
      %1893 = vmatpush1.bf16.msra.mxu0 0
      %1894 = vmatprep.subr.bf16.mxu0 0
      %1895 = vmatpush1.bf16.msra.mxu0 0
      %1896 = vmatprep.mubr.bf16.mxu0 0
      %1897 = vmatmul.mubr.bf16.gmra.mrb[0].mxu0 %v1862
      %v1898 = vpop.f32.mrb[0].mxu0
      %v1899 = vadd.f32 0.0, %v1898
      %v1900 = vpop.f32.mrb[0].mxu0
      %v1901 = vpop.f32.mrb[0].mxu0
      %v1902 = vadd.f32 0.0, %v1901
      %v1903 = vpop.f32.mrb[0].mxu0
      %1904 = vdwg.mxu0
      %v1905 = vcombine.high %v1855, 0.0
      %v1907 = vunpack.c.l.s4 1983009808
      %v1908 = vunpack.c.0.s8 %v1907
      %v1909 = vlaneseq
      %v1910 = vshrl.u32 %v1909, 7
      %v1911 = vsub.s32 %v1908, %v1910
      %v1912 = vrot.slane %v1855, %v1911
      %v1914 = vunpack.c.l.s4 1983009808
      %v1915 = vunpack.c.0.s8 %v1914
      %v1916 = vlaneseq
      %v1917 = vshrl.u32 %v1916, 7
      %v1918 = vsub.s32 %v1915, %v1917
      %v1919 = vrot.slane %v1905, %v1918
      %v1920 = vcombine.high %v1899, 0.0
      %v1922 = vunpack.c.l.s4 1983009808
      %v1923 = vunpack.c.0.s8 %v1922
      %v1924 = vlaneseq
      %v1925 = vshrl.u32 %v1924, 7
      %v1926 = vsub.s32 %v1923, %v1925
      %v1927 = vrot.slane %v1899, %v1926
      %v1929 = vunpack.c.l.s4 1983009808
      %v1930 = vunpack.c.0.s8 %v1929
      %v1931 = vlaneseq
      %v1932 = vshrl.u32 %v1931, 7
      %v1933 = vsub.s32 %v1930, %v1932
      %v1934 = vrot.slane %v1920, %v1933
      %v1935 = vcombine.low %v1912, %v1927
      %v1936 = vcombine.high %v1912, %v1927
      %v1938 = vunpack.c.l.s4 1934713408
      %v1939 = vunpack.c.0.s8 %v1938
      %v1940 = vlaneseq
      %v1941 = vshrl.u32 %v1940, 7
      %v1942 = vsub.s32 %v1939, %v1941
      %v1943 = vrot.slane %v1935, %v1942
      %v1945 = vunpack.c.l.s4 1934713408
      %v1946 = vunpack.c.0.s8 %v1945
      %v1947 = vlaneseq
      %v1948 = vshrl.u32 %v1947, 7
      %v1949 = vsub.s32 %v1946, %v1948
      %v1950 = vrot.slane %v1936, %v1949
      %v1951 = vcombine.low %v1919, %v1934
      %v1952 = vcombine.high %v1919, %v1934
      %v1954 = vunpack.c.l.s4 1934713408
      %v1955 = vunpack.c.0.s8 %v1954
      %v1956 = vlaneseq
      %v1957 = vshrl.u32 %v1956, 7
      %v1958 = vsub.s32 %v1955, %v1957
      %v1959 = vrot.slane %v1951, %v1958
      %v1961 = vunpack.c.l.s4 1934713408
      %v1962 = vunpack.c.0.s8 %v1961
      %v1963 = vlaneseq
      %v1964 = vshrl.u32 %v1963, 7
      %v1965 = vsub.s32 %v1962, %v1964
      %v1966 = vrot.slane %v1952, %v1965
      %v1967 = vcombine.high %v1943, 0.0
      %v1968 = vcombine.high %v1950, 0.0
      %v1969 = vcombine.high %v1959, 0.0
      %v1970 = vcombine.high %v1966, 0.0
      %v1971 = vcombine.high %v1858, 0.0
      %v1973 = vunpack.c.l.s4 1983009808
      %v1974 = vunpack.c.0.s8 %v1973
      %v1975 = vlaneseq
      %v1976 = vshrl.u32 %v1975, 7
      %v1977 = vsub.s32 %v1974, %v1976
      %v1978 = vrot.slane %v1858, %v1977
      %v1980 = vunpack.c.l.s4 1983009808
      %v1981 = vunpack.c.0.s8 %v1980
      %v1982 = vlaneseq
      %v1983 = vshrl.u32 %v1982, 7
      %v1984 = vsub.s32 %v1981, %v1983
      %v1985 = vrot.slane %v1971, %v1984
      %v1986 = vcombine.high %v1902, 0.0
      %v1988 = vunpack.c.l.s4 1983009808
      %v1989 = vunpack.c.0.s8 %v1988
      %v1990 = vlaneseq
      %v1991 = vshrl.u32 %v1990, 7
      %v1992 = vsub.s32 %v1989, %v1991
      %v1993 = vrot.slane %v1902, %v1992
      %v1995 = vunpack.c.l.s4 1983009808
      %v1996 = vunpack.c.0.s8 %v1995
      %v1997 = vlaneseq
      %v1998 = vshrl.u32 %v1997, 7
      %v1999 = vsub.s32 %v1996, %v1998
      %v2000 = vrot.slane %v1986, %v1999
      %v2001 = vcombine.low %v1978, %v1993
      %v2002 = vcombine.high %v1978, %v1993
      %v2004 = vunpack.c.l.s4 1934713408
      %v2005 = vunpack.c.0.s8 %v2004
      %v2006 = vlaneseq
      %v2007 = vshrl.u32 %v2006, 7
      %v2008 = vsub.s32 %v2005, %v2007
      %v2009 = vrot.slane %v2001, %v2008
      %v2011 = vunpack.c.l.s4 1934713408
      %v2012 = vunpack.c.0.s8 %v2011
      %v2013 = vlaneseq
      %v2014 = vshrl.u32 %v2013, 7
      %v2015 = vsub.s32 %v2012, %v2014
      %v2016 = vrot.slane %v2002, %v2015
      %v2017 = vcombine.low %v1985, %v2000
      %v2018 = vcombine.high %v1985, %v2000
      %v2020 = vunpack.c.l.s4 1934713408
      %v2021 = vunpack.c.0.s8 %v2020
      %v2022 = vlaneseq
      %v2023 = vshrl.u32 %v2022, 7
      %v2024 = vsub.s32 %v2021, %v2023
      %v2025 = vrot.slane %v2017, %v2024
      %v2027 = vunpack.c.l.s4 1934713408
      %v2028 = vunpack.c.0.s8 %v2027
      %v2029 = vlaneseq
      %v2030 = vshrl.u32 %v2029, 7
      %v2031 = vsub.s32 %v2028, %v2030
      %v2032 = vrot.slane %v2018, %v2031
      %v2033 = vcombine.high %v2009, 0.0
      %v2034 = vcombine.high %v2016, 0.0
      %v2035 = vcombine.high %v2025, 0.0
      %v2036 = vcombine.high %v2032, 0.0
      %v2037 = vcombine.low %v1943, %v1950
      %v2039 = vunpack.c.l.s4 1983009808
      %v2040 = vunpack.c.0.s8 %v2039
      %v2041 = vlaneseq
      %v2042 = vshrl.u32 %v2041, 7
      %v2043 = vsub.s32 %v2040, %v2042
      %v2044 = vrot.slane %v2037, %v2043
      %v2045 = vcombine.low %v1967, %v1968
      %v2047 = vunpack.c.l.s4 1983009808
      %v2048 = vunpack.c.0.s8 %v2047
      %v2049 = vlaneseq
      %v2050 = vshrl.u32 %v2049, 7
      %v2051 = vsub.s32 %v2048, %v2050
      %v2052 = vrot.slane %v2045, %v2051
      %v2053 = vcombine.low %v1959, %v1966
      %v2055 = vunpack.c.l.s4 1983009808
      %v2056 = vunpack.c.0.s8 %v2055
      %v2057 = vlaneseq
      %v2058 = vshrl.u32 %v2057, 7
      %v2059 = vsub.s32 %v2056, %v2058
      %v2060 = vrot.slane %v2053, %v2059
      %v2061 = vcombine.low %v1969, %v1970
      %v2063 = vunpack.c.l.s4 1983009808
      %v2064 = vunpack.c.0.s8 %v2063
      %v2065 = vlaneseq
      %v2066 = vshrl.u32 %v2065, 7
      %v2067 = vsub.s32 %v2064, %v2066
      %v2068 = vrot.slane %v2061, %v2067
      %v2069 = vcombine.low %v2044, %v2052
      %v2071 = vunpack.c.l.s4 1934713408
      %v2072 = vunpack.c.0.s8 %v2071
      %v2073 = vlaneseq
      %v2074 = vshrl.u32 %v2073, 7
      %v2075 = vsub.s32 %v2072, %v2074
      %v2076 = vrot.slane %v2069, %v2075
      %v2077 = vcombine.low %v2060, %v2068
      %v2079 = vunpack.c.l.s4 1934713408
      %v2080 = vunpack.c.0.s8 %v2079
      %v2081 = vlaneseq
      %v2082 = vshrl.u32 %v2081, 7
      %v2083 = vsub.s32 %v2080, %v2082
      %v2084 = vrot.slane %v2077, %v2083
      %v2085 = vcombine.low %v2076, %v2084
      %v2086 = vcombine.high %v2076, %v2084
      %v2087 = vcombine.low %v2009, %v2016
      %v2089 = vunpack.c.l.s4 1983009808
      %v2090 = vunpack.c.0.s8 %v2089
      %v2091 = vlaneseq
      %v2092 = vshrl.u32 %v2091, 7
      %v2093 = vsub.s32 %v2090, %v2092
      %v2094 = vrot.slane %v2087, %v2093
      %v2095 = vcombine.low %v2033, %v2034
      %v2097 = vunpack.c.l.s4 1983009808
      %v2098 = vunpack.c.0.s8 %v2097
      %v2099 = vlaneseq
      %v2100 = vshrl.u32 %v2099, 7
      %v2101 = vsub.s32 %v2098, %v2100
      %v2102 = vrot.slane %v2095, %v2101
      %v2103 = vcombine.low %v2025, %v2032
      %v2105 = vunpack.c.l.s4 1983009808
      %v2106 = vunpack.c.0.s8 %v2105
      %v2107 = vlaneseq
      %v2108 = vshrl.u32 %v2107, 7
      %v2109 = vsub.s32 %v2106, %v2108
      %v2110 = vrot.slane %v2103, %v2109
      %v2111 = vcombine.low %v2035, %v2036
      %v2113 = vunpack.c.l.s4 1983009808
      %v2114 = vunpack.c.0.s8 %v2113
      %v2115 = vlaneseq
      %v2116 = vshrl.u32 %v2115, 7
      %v2117 = vsub.s32 %v2114, %v2116
      %v2118 = vrot.slane %v2111, %v2117
      %v2119 = vcombine.low %v2094, %v2102
      %v2121 = vunpack.c.l.s4 1934713408
      %v2122 = vunpack.c.0.s8 %v2121
      %v2123 = vlaneseq
      %v2124 = vshrl.u32 %v2123, 7
      %v2125 = vsub.s32 %v2122, %v2124
      %v2126 = vrot.slane %v2119, %v2125
      %v2127 = vcombine.low %v2110, %v2118
      %v2129 = vunpack.c.l.s4 1934713408
      %v2130 = vunpack.c.0.s8 %v2129
      %v2131 = vlaneseq
      %v2132 = vshrl.u32 %v2131, 7
      %v2133 = vsub.s32 %v2130, %v2132
      %v2134 = vrot.slane %v2127, %v2133
      %v2135 = vcombine.low %v2126, %v2134
      %v2136 = vcombine.high %v2126, %v2134
      %v2137 = vpack.c.bf16 %v2135, %v2085
      %v2138 = vpack.c.bf16 %v2136, %v2086
      %v2139 = vld [vmem:[#allocation14] sm:$0xff]
      %v2140 = vld [vmem:[#allocation14 + $0x8] sm:$0xff]
      %v2141 = vld [vmem:[#allocation14 + $0x10] sm:$0xff]
      %v2142 = vld [vmem:[#allocation14 + $0x18] sm:$0xff]
      %v2143 = vld [vmem:[#allocation14 + $0x20] sm:$0xff]
      %v2144 = vld [vmem:[#allocation14 + $0x28] sm:$0xff]
      %v2145 = vld [vmem:[#allocation14 + $0x30] sm:$0xff]
      %v2146 = vld [vmem:[#allocation14 + $0x38] sm:$0xff]
      %v2147 = vld [vmem:[#allocation14 + $0x40] sm:$0xff]
      %v2148 = vld [vmem:[#allocation14 + $0x48] sm:$0xff]
      %v2149 = vld [vmem:[#allocation14 + $0x50] sm:$0xff]
      %v2150 = vld [vmem:[#allocation14 + $0x58] sm:$0xff]
      %v2151 = vld [vmem:[#allocation14 + $0x60] sm:$0xff]
      %v2152 = vld [vmem:[#allocation14 + $0x68] sm:$0xff]
      %v2153 = vld [vmem:[#allocation14 + $0x70] sm:$0xff]
      %v2154 = vld [vmem:[#allocation14 + $0x78] sm:$0xff]
      %v2155 = vld [vmem:[#allocation14 + $0x80] sm:$0xff]
      %v2156 = vld [vmem:[#allocation14 + $0x88] sm:$0xff]
      %v2157 = vld [vmem:[#allocation14 + $0x90] sm:$0xff]
      %v2158 = vld [vmem:[#allocation14 + $0x98] sm:$0xff]
      %v2159 = vld [vmem:[#allocation14 + $0xa0] sm:$0xff]
      %v2160 = vld [vmem:[#allocation14 + $0xa8] sm:$0xff]
      %v2161 = vld [vmem:[#allocation14 + $0xb0] sm:$0xff]
      %v2162 = vld [vmem:[#allocation14 + $0xb8] sm:$0xff]
      %v2163 = vld [vmem:[#allocation14 + $0xc0] sm:$0xff]
      %v2164 = vld [vmem:[#allocation14 + $0xc8] sm:$0xff]
      %v2165 = vld [vmem:[#allocation14 + $0xd0] sm:$0xff]
      %v2166 = vld [vmem:[#allocation14 + $0xd8] sm:$0xff]
      %v2167 = vld [vmem:[#allocation14 + $0xe0] sm:$0xff]
      %v2168 = vld [vmem:[#allocation14 + $0xe8] sm:$0xff]
      %v2169 = vld [vmem:[#allocation14 + $0xf0] sm:$0xff]
      %v2170 = vld [vmem:[#allocation14 + $0xf8] sm:$0xff]
      %v2171 = vld [vmem:[%s7] sm:$0x3]
      %v2173 = vlaneseq
      %v2174 = vshrl.u32 %v2173, 7
      %v2175 = vsub.s32 0, %v2174
      %v2176 = vrot.slane %v2171, %v2175
      %v2177 = vlaneseq
      %v2178 = vshrl.u32 %v2177, 7
      %v2179 = vsub.s32 1, %v2178
      %v2180 = vrot.slane %v2171, %v2179
      %v2215 = vunpack.c.l.b16 %v2139
      %v2216 = vunpack.c.h.b16 %v2139
      %v2217 = vunpack.c.l.b16 %v2140
      %v2218 = vunpack.c.h.b16 %v2140
      %v2219 = vunpack.c.l.b16 %v2141
      %v2220 = vunpack.c.h.b16 %v2141
      %v2221 = vunpack.c.l.b16 %v2142
      %v2222 = vunpack.c.h.b16 %v2142
      %v2223 = vunpack.c.l.b16 %v2143
      %v2224 = vunpack.c.h.b16 %v2143
      %v2225 = vunpack.c.l.b16 %v2144
      %v2226 = vunpack.c.h.b16 %v2144
      %v2227 = vunpack.c.l.b16 %v2145
      %v2228 = vunpack.c.h.b16 %v2145
      %v2229 = vunpack.c.l.b16 %v2146
      %v2230 = vunpack.c.h.b16 %v2146
      %v2231 = vunpack.c.l.b16 %v2147
      %v2232 = vunpack.c.h.b16 %v2147
      %v2233 = vunpack.c.l.b16 %v2148
      %v2234 = vunpack.c.h.b16 %v2148
      %v2235 = vunpack.c.l.b16 %v2149
      %v2236 = vunpack.c.h.b16 %v2149
      %v2237 = vunpack.c.l.b16 %v2150
      %v2238 = vunpack.c.h.b16 %v2150
      %v2239 = vunpack.c.l.b16 %v2151
      %v2240 = vunpack.c.h.b16 %v2151
      %v2241 = vunpack.c.l.b16 %v2152
      %v2242 = vunpack.c.h.b16 %v2152
      %v2243 = vunpack.c.l.b16 %v2153
      %v2244 = vunpack.c.h.b16 %v2153
      %v2245 = vunpack.c.l.b16 %v2154
      %v2246 = vunpack.c.h.b16 %v2154
      %v2247 = vunpack.c.l.b16 %v2155
      %v2248 = vunpack.c.h.b16 %v2155
      %v2249 = vunpack.c.l.b16 %v2156
      %v2250 = vunpack.c.h.b16 %v2156
      %v2251 = vunpack.c.l.b16 %v2157
      %v2252 = vunpack.c.h.b16 %v2157
      %v2253 = vunpack.c.l.b16 %v2158
      %v2254 = vunpack.c.h.b16 %v2158
      %v2255 = vunpack.c.l.b16 %v2159
      %v2256 = vunpack.c.h.b16 %v2159
      %v2257 = vunpack.c.l.b16 %v2160
      %v2258 = vunpack.c.h.b16 %v2160
      %v2259 = vunpack.c.l.b16 %v2161
      %v2260 = vunpack.c.h.b16 %v2161
      %v2261 = vunpack.c.l.b16 %v2162
      %v2262 = vunpack.c.h.b16 %v2162
      %v2263 = vunpack.c.l.b16 %v2163
      %v2264 = vunpack.c.h.b16 %v2163
      %v2265 = vunpack.c.l.b16 %v2164
      %v2266 = vunpack.c.h.b16 %v2164
      %v2267 = vunpack.c.l.b16 %v2165
      %v2268 = vunpack.c.h.b16 %v2165
      %v2269 = vunpack.c.l.b16 %v2166
      %v2270 = vunpack.c.h.b16 %v2166
      %v2271 = vunpack.c.l.b16 %v2167
      %v2272 = vunpack.c.h.b16 %v2167
      %v2273 = vunpack.c.l.b16 %v2168
      %v2274 = vunpack.c.h.b16 %v2168
      %v2275 = vunpack.c.l.b16 %v2169
      %v2276 = vunpack.c.h.b16 %v2169
      %v2277 = vunpack.c.l.b16 %v2170
      %v2278 = vunpack.c.h.b16 %v2170
      %v2279 = vpack.c.b16 %v2217, %v2215
      %v2280 = vpack.c.b16 %v2218, %v2216
      %v2281 = vpack.c.b16 %v2221, %v2219
      %v2282 = vpack.c.b16 %v2222, %v2220
      %v2283 = vpack.c.b16 %v2225, %v2223
      %v2284 = vpack.c.b16 %v2226, %v2224
      %v2285 = vpack.c.b16 %v2229, %v2227
      %v2286 = vpack.c.b16 %v2230, %v2228
      %v2287 = vpack.c.b16 %v2233, %v2231
      %v2288 = vpack.c.b16 %v2234, %v2232
      %v2289 = vpack.c.b16 %v2237, %v2235
      %v2290 = vpack.c.b16 %v2238, %v2236
      %v2291 = vpack.c.b16 %v2241, %v2239
      %v2292 = vpack.c.b16 %v2242, %v2240
      %v2293 = vpack.c.b16 %v2245, %v2243
      %v2294 = vpack.c.b16 %v2246, %v2244
      %v2295 = vpack.c.b16 %v2249, %v2247
      %v2296 = vpack.c.b16 %v2250, %v2248
      %v2297 = vpack.c.b16 %v2253, %v2251
      %v2298 = vpack.c.b16 %v2254, %v2252
      %v2299 = vpack.c.b16 %v2257, %v2255
      %v2300 = vpack.c.b16 %v2258, %v2256
      %v2301 = vpack.c.b16 %v2261, %v2259
      %v2302 = vpack.c.b16 %v2262, %v2260
      %v2303 = vpack.c.b16 %v2265, %v2263
      %v2304 = vpack.c.b16 %v2266, %v2264
      %v2305 = vpack.c.b16 %v2269, %v2267
      %v2306 = vpack.c.b16 %v2270, %v2268
      %v2307 = vpack.c.b16 %v2273, %v2271
      %v2308 = vpack.c.b16 %v2274, %v2272
      %v2309 = vpack.c.b16 %v2277, %v2275
      %v2310 = vpack.c.b16 %v2278, %v2276
      %2343 = vmatprep.subr.bf16.mxu0 %v2280
      %2344 = vmatpush1.bf16.msra.mxu0 %v2279
      %2345 = vmatprep.subr.bf16.mxu0 %v2282
      %2346 = vmatpush1.bf16.msra.mxu0 %v2281
      %2347 = vmatprep.subr.bf16.mxu0 %v2284
      %2348 = vmatpush1.bf16.msra.mxu0 %v2283
      %2349 = vmatprep.subr.bf16.mxu0 %v2286
      %2350 = vmatpush1.bf16.msra.mxu0 %v2285
      %2351 = vmatprep.subr.bf16.mxu0 %v2288
      %2352 = vmatpush1.bf16.msra.mxu0 %v2287
      %2353 = vmatprep.subr.bf16.mxu0 %v2290
      %2354 = vmatpush1.bf16.msra.mxu0 %v2289
      %2355 = vmatprep.subr.bf16.mxu0 %v2292
      %2356 = vmatpush1.bf16.msra.mxu0 %v2291
      %2357 = vmatprep.subr.bf16.mxu0 %v2294
      %2358 = vmatpush1.bf16.msra.mxu0 %v2293
      %2359 = vmatprep.subr.bf16.mxu0 %v2296
      %2360 = vmatpush1.bf16.msra.mxu0 %v2295
      %2361 = vmatprep.subr.bf16.mxu0 %v2298
      %2362 = vmatpush1.bf16.msra.mxu0 %v2297
      %2363 = vmatprep.subr.bf16.mxu0 %v2300
      %2364 = vmatpush1.bf16.msra.mxu0 %v2299
      %2365 = vmatprep.subr.bf16.mxu0 %v2302
      %2366 = vmatpush1.bf16.msra.mxu0 %v2301
      %2367 = vmatprep.subr.bf16.mxu0 %v2304
      %2368 = vmatpush1.bf16.msra.mxu0 %v2303
      %2369 = vmatprep.subr.bf16.mxu0 %v2306
      %2370 = vmatpush1.bf16.msra.mxu0 %v2305
      %2371 = vmatprep.subr.bf16.mxu0 %v2308
      %2372 = vmatpush1.bf16.msra.mxu0 %v2307
      %2373 = vmatprep.subr.bf16.mxu0 %v2310
      %2374 = vmatpush1.bf16.msra.mxu0 %v2309
      %2375 = vmatprep.mubr.bf16.mxu0 %v2138
      %2376 = vmatmul.mubr.bf16.gmra.mrb[0].mxu0 %v2137
      %v2377 = vpop.f32.mrb[0].mxu0
      %v2378 = vadd.f32 %v2176, %v2377
      %v2379 = vpop.f32.mrb[0].mxu0
      %v2380 = vadd.f32 %v2180, %v2379
      %v2381 = vpop.f32.mrb[0].mxu0
      %v2382 = vadd.f32 %v2176, %v2381
      %v2383 = vpop.f32.mrb[0].mxu0
      %v2384 = vadd.f32 %v2180, %v2383
      %2385 = vdwg.mxu0
      %v2386 = vadd.f32 %v158, %v2378
      %v2387 = vadd.f32 %v159, %v2380
      %v2388 = vadd.f32 %v160, %v2382
      %v2389 = vadd.f32 %v161, %v2384
      %2390 = vst [vmem:[#allocation2] sm:$0xff] %v2386
      %2391 = vst [vmem:[#allocation2 + $0x8] sm:$0xff] %v2387
      %2392 = vst [vmem:[#allocation2 + $0x10] sm:$0xff] %v2388
      %2393 = vst [vmem:[#allocation2 + $0x18] sm:$0xff] %v2389
      %v2394 = vld [vmem:[%s8] sm:$0x3]
      %v2395 = vld [vmem:[%s9] sm:$0x3]
      %v2396 = vadd.f32 %v2386, %v2387
      %2397 = vadd.xlane.f32.xlu0 %v2396
      %v2398 = vpop.xlane.xlu0 %2397
      %v2399 = vadd.f32 %v2388, %v2389
      %2400 = vadd.xlane.f32.xlu0 %v2399
      %v2401 = vpop.xlane.xlu0 %2400
      %v2402 = vmul.f32 %v2398, %v170
      %v2403 = vmul.f32 %v2401, %v170
      %v2404 = vsub.f32 %v2386, %v2402
      %v2405 = vsub.f32 %v2387, %v2402
      %v2406 = vsub.f32 %v2388, %v2403
      %v2407 = vsub.f32 %v2389, %v2403
      %v2408 = vmul.f32 %v2404, %v2404
      %v2409 = vmul.f32 %v2405, %v2405
      %v2410 = vmul.f32 %v2406, %v2406
      %v2411 = vmul.f32 %v2407, %v2407
      %v2412 = vadd.f32 %v2408, %v2409
      %2413 = vadd.xlane.f32.xlu0 %v2412
      %v2414 = vpop.xlane.xlu0 %2413
      %v2415 = vadd.f32 %v2410, %v2411
      %2416 = vadd.xlane.f32.xlu0 %v2415
      %v2417 = vpop.xlane.xlu0 %2416
      %v2418 = vmul.f32 %v2414, %v170
      %v2419 = vmul.f32 %v2417, %v170
      %v2420 = vadd.f32 %v2418, 1e-12
      %v2421 = vadd.f32 %v2419, 1e-12
      %v2422 = vrsqrt.pop %v2420
      %v2423 = vmul.f32 %v2420, %v2422
      %vm2424 = vcmp.eq.f32.partialorder %v2420, inf
      %v2425 = vsel %vm2424, %v2420, %v2423
      %vm2426 = vcmp.eq.f32.partialorder %v2420, 0.0
      %v2427 = vand.u32 %v2420, 2147483648
      %v2428 = vsel %vm2426, %v2427, %v2425
      %v2429 = vrsqrt.pop %v2421
      %v2430 = vmul.f32 %v2421, %v2429
      %vm2431 = vcmp.eq.f32.partialorder %v2421, inf
      %v2432 = vsel %vm2431, %v2421, %v2430
      %vm2433 = vcmp.eq.f32.partialorder %v2421, 0.0
      %v2434 = vand.u32 %v2421, 2147483648
      %v2435 = vsel %vm2433, %v2434, %v2432
      %v2436 = vrcp.pop %v2428
      %v2437 = vmul.f32 %v2404, %v2436
      %v2438 = vmul.f32 %v2405, %v2436
      %v2439 = vrcp.pop %v2435
      %v2440 = vmul.f32 %v2406, %v2439
      %v2441 = vmul.f32 %v2407, %v2439
      %v2443 = vlaneseq
      %v2444 = vshrl.u32 %v2443, 7
      %v2445 = vsub.s32 0, %v2444
      %v2446 = vrot.slane %v2394, %v2445
      %v2447 = vlaneseq
      %v2448 = vshrl.u32 %v2447, 7
      %v2449 = vsub.s32 1, %v2448
      %v2450 = vrot.slane %v2394, %v2449
      %v2453 = vmul.f32 %v2446, %v2437
      %v2454 = vmul.f32 %v2450, %v2438
      %v2455 = vmul.f32 %v2446, %v2440
      %v2456 = vmul.f32 %v2450, %v2441
      %v2458 = vlaneseq
      %v2459 = vshrl.u32 %v2458, 7
      %v2460 = vsub.s32 0, %v2459
      %v2461 = vrot.slane %v2395, %v2460
      %v2462 = vlaneseq
      %v2463 = vshrl.u32 %v2462, 7
      %v2464 = vsub.s32 1, %v2463
      %v2465 = vrot.slane %v2395, %v2464
      %v2468 = vadd.f32 %v2453, %v2461
      %v2469 = vadd.f32 %v2454, %v2465
      %v2470 = vadd.f32 %v2455, %v2461
      %v2471 = vadd.f32 %v2456, %v2465
      %v2472 = vpack.c.bf16 %v2470, %v2468
      %v2473 = vpack.c.bf16 %v2471, %v2469
      %2474 = vst [vmem:[#allocation3] sm:$0xff] %v2472
      %2475 = vst [vmem:[#allocation3 + $0x8] sm:$0xff] %v2473
      %v2476 = vld [vmem:[%s13] sm:$0x3]
      %v2478 = vlaneseq
      %v2479 = vshrl.u32 %v2478, 7
      %v2480 = vsub.s32 0, %v2479
      %v2481 = vrot.slane %v2476, %v2480
      %v2482 = vlaneseq
      %v2483 = vshrl.u32 %v2482, 7
      %v2484 = vsub.s32 1, %v2483
      %v2485 = vrot.slane %v2476, %v2484
      %2488 = vst [vmem:[#allocation4] sm:$0xff] %v2481
      %2489 = vst [vmem:[#allocation4 + $0x8] sm:$0xff] %v2485
      %2490 = vst [vmem:[#allocation4 + $0x10] sm:$0xff] %v2481
      %2491 = vst [vmem:[#allocation4 + $0x18] sm:$0xff] %v2485
    $region93: #{tpu_custom_call.1} parent=1 // pred_fallthru
      _
    %v2492 = vld [vmem:[#allocation3] sm:$0xff]
    %v2493 = vld [vmem:[#allocation3 + $0x8] sm:$0xff]
    %v2494 = vld [vmem:[#allocation16] sm:$0xff]
    %v2495 = vld [vmem:[#allocation16 + $0x8] sm:$0xff]
    %v2496 = vld [vmem:[#allocation16 + $0x10] sm:$0xff]
    %v2497 = vld [vmem:[#allocation16 + $0x18] sm:$0xff]
    %v2498 = vld [vmem:[#allocation16 + $0x20] sm:$0xff]
    %v2499 = vld [vmem:[#allocation16 + $0x28] sm:$0xff]
    %v2500 = vld [vmem:[#allocation16 + $0x30] sm:$0xff]
    %v2501 = vld [vmem:[#allocation16 + $0x38] sm:$0xff]
    %v2502 = vld [vmem:[#allocation16 + $0x40] sm:$0xff]
    %v2503 = vld [vmem:[#allocation16 + $0x48] sm:$0xff]
    %v2504 = vld [vmem:[#allocation16 + $0x50] sm:$0xff]
    %v2505 = vld [vmem:[#allocation16 + $0x58] sm:$0xff]
    %v2506 = vld [vmem:[#allocation16 + $0x60] sm:$0xff]
    %v2507 = vld [vmem:[#allocation16 + $0x68] sm:$0xff]
    %v2508 = vld [vmem:[#allocation16 + $0x70] sm:$0xff]
    %v2509 = vld [vmem:[#allocation16 + $0x78] sm:$0xff]
    %v2510 = vld [vmem:[#allocation16 + $0x80] sm:$0xff]
    %v2511 = vld [vmem:[#allocation16 + $0x88] sm:$0xff]
    %v2512 = vld [vmem:[#allocation16 + $0x90] sm:$0xff]
    %v2513 = vld [vmem:[#allocation16 + $0x98] sm:$0xff]
    %v2514 = vld [vmem:[#allocation16 + $0xa0] sm:$0xff]
    %v2515 = vld [vmem:[#allocation16 + $0xa8] sm:$0xff]
    %v2516 = vld [vmem:[#allocation16 + $0xb0] sm:$0xff]
    %v2517 = vld [vmem:[#allocation16 + $0xb8] sm:$0xff]
    %v2518 = vld [vmem:[#allocation16 + $0xc0] sm:$0xff]
    %v2519 = vld [vmem:[#allocation16 + $0xc8] sm:$0xff]
    %v2520 = vld [vmem:[#allocation16 + $0xd0] sm:$0xff]
    %v2521 = vld [vmem:[#allocation16 + $0xd8] sm:$0xff]
    %v2522 = vld [vmem:[#allocation16 + $0xe0] sm:$0xff]
    %v2523 = vld [vmem:[#allocation16 + $0xe8] sm:$0xff]
    %v2524 = vld [vmem:[#allocation16 + $0xf0] sm:$0xff]
    %v2525 = vld [vmem:[#allocation16 + $0xf8] sm:$0xff]
    %v2526 = vld [vmem:[#allocation16 + $0x100] sm:$0xff]
    %v2527 = vld [vmem:[#allocation16 + $0x108] sm:$0xff]
    %v2528 = vld [vmem:[#allocation16 + $0x110] sm:$0xff]
    %v2529 = vld [vmem:[#allocation16 + $0x118] sm:$0xff]
    %v2530 = vld [vmem:[#allocation16 + $0x120] sm:$0xff]
    %v2531 = vld [vmem:[#allocation16 + $0x128] sm:$0xff]
    %v2532 = vld [vmem:[#allocation16 + $0x130] sm:$0xff]
    %v2533 = vld [vmem:[#allocation16 + $0x138] sm:$0xff]
    %v2534 = vld [vmem:[#allocation16 + $0x140] sm:$0xff]
    %v2535 = vld [vmem:[#allocation16 + $0x148] sm:$0xff]
    %v2536 = vld [vmem:[#allocation16 + $0x150] sm:$0xff]
    %v2537 = vld [vmem:[#allocation16 + $0x158] sm:$0xff]
    %v2538 = vld [vmem:[#allocation16 + $0x160] sm:$0xff]
    %v2539 = vld [vmem:[#allocation16 + $0x168] sm:$0xff]
    %v2540 = vld [vmem:[#allocation16 + $0x170] sm:$0xff]
    %v2541 = vld [vmem:[#allocation16 + $0x178] sm:$0xff]
    %v2542 = vld [vmem:[#allocation16 + $0x180] sm:$0xff]
    %v2543 = vld [vmem:[#allocation16 + $0x188] sm:$0xff]
    %v2544 = vld [vmem:[#allocation16 + $0x190] sm:$0xff]
    %v2545 = vld [vmem:[#allocation16 + $0x198] sm:$0xff]
    %v2546 = vld [vmem:[#allocation16 + $0x1a0] sm:$0xff]
    %v2547 = vld [vmem:[#allocation16 + $0x1a8] sm:$0xff]
    %v2548 = vld [vmem:[#allocation16 + $0x1b0] sm:$0xff]
    %v2549 = vld [vmem:[#allocation16 + $0x1b8] sm:$0xff]
    %v2550 = vld [vmem:[#allocation16 + $0x1c0] sm:$0xff]
    %v2551 = vld [vmem:[#allocation16 + $0x1c8] sm:$0xff]
    %v2552 = vld [vmem:[#allocation16 + $0x1d0] sm:$0xff]
    %v2553 = vld [vmem:[#allocation16 + $0x1d8] sm:$0xff]
    %v2554 = vld [vmem:[#allocation16 + $0x1e0] sm:$0xff]
    %v2555 = vld [vmem:[#allocation16 + $0x1e8] sm:$0xff]
    %v2556 = vld [vmem:[#allocation16 + $0x1f0] sm:$0xff]
    %v2557 = vld [vmem:[#allocation16 + $0x1f8] sm:$0xff]
    %v2558 = vld [vmem:[#allocation16 + $0x200] sm:$0xff]
    %v2559 = vld [vmem:[#allocation16 + $0x208] sm:$0xff]
    %v2560 = vld [vmem:[#allocation16 + $0x210] sm:$0xff]
    %v2561 = vld [vmem:[#allocation16 + $0x218] sm:$0xff]
    %v2562 = vld [vmem:[#allocation16 + $0x220] sm:$0xff]
    %v2563 = vld [vmem:[#allocation16 + $0x228] sm:$0xff]
    %v2564 = vld [vmem:[#allocation16 + $0x230] sm:$0xff]
    %v2565 = vld [vmem:[#allocation16 + $0x238] sm:$0xff]
    %v2566 = vld [vmem:[#allocation16 + $0x240] sm:$0xff]
    %v2567 = vld [vmem:[#allocation16 + $0x248] sm:$0xff]
    %v2568 = vld [vmem:[#allocation16 + $0x250] sm:$0xff]
    %v2569 = vld [vmem:[#allocation16 + $0x258] sm:$0xff]
    %v2570 = vld [vmem:[#allocation16 + $0x260] sm:$0xff]
    %v2571 = vld [vmem:[#allocation16 + $0x268] sm:$0xff]
    %v2572 = vld [vmem:[#allocation16 + $0x270] sm:$0xff]
    %v2573 = vld [vmem:[#allocation16 + $0x278] sm:$0xff]
    %v2574 = vld [vmem:[#allocation16 + $0x280] sm:$0xff]
    %v2575 = vld [vmem:[#allocation16 + $0x288] sm:$0xff]
    %v2576 = vld [vmem:[#allocation16 + $0x290] sm:$0xff]
    %v2577 = vld [vmem:[#allocation16 + $0x298] sm:$0xff]
    %v2578 = vld [vmem:[#allocation16 + $0x2a0] sm:$0xff]
    %v2579 = vld [vmem:[#allocation16 + $0x2a8] sm:$0xff]
    %v2580 = vld [vmem:[#allocation16 + $0x2b0] sm:$0xff]
    %v2581 = vld [vmem:[#allocation16 + $0x2b8] sm:$0xff]
    %v2582 = vld [vmem:[#allocation16 + $0x2c0] sm:$0xff]
    %v2583 = vld [vmem:[#allocation16 + $0x2c8] sm:$0xff]
    %v2584 = vld [vmem:[#allocation16 + $0x2d0] sm:$0xff]
    %v2585 = vld [vmem:[#allocation16 + $0x2d8] sm:$0xff]
    %v2586 = vld [vmem:[#allocation16 + $0x2e0] sm:$0xff]
    %v2587 = vld [vmem:[#allocation16 + $0x2e8] sm:$0xff]
    %v2588 = vld [vmem:[#allocation16 + $0x2f0] sm:$0xff]
    %v2589 = vld [vmem:[#allocation16 + $0x2f8] sm:$0xff]
    %v2590 = vld [vmem:[#allocation16 + $0x300] sm:$0xff]
    %v2591 = vld [vmem:[#allocation16 + $0x308] sm:$0xff]
    %v2592 = vld [vmem:[#allocation16 + $0x310] sm:$0xff]
    %v2593 = vld [vmem:[#allocation16 + $0x318] sm:$0xff]
    %v2594 = vld [vmem:[#allocation16 + $0x320] sm:$0xff]
    %v2595 = vld [vmem:[#allocation16 + $0x328] sm:$0xff]
    %v2596 = vld [vmem:[#allocation16 + $0x330] sm:$0xff]
    %v2597 = vld [vmem:[#allocation16 + $0x338] sm:$0xff]
    %v2598 = vld [vmem:[#allocation16 + $0x340] sm:$0xff]
    %v2599 = vld [vmem:[#allocation16 + $0x348] sm:$0xff]
    %v2600 = vld [vmem:[#allocation16 + $0x350] sm:$0xff]
    %v2601 = vld [vmem:[#allocation16 + $0x358] sm:$0xff]
    %v2602 = vld [vmem:[#allocation16 + $0x360] sm:$0xff]
    %v2603 = vld [vmem:[#allocation16 + $0x368] sm:$0xff]
    %v2604 = vld [vmem:[#allocation16 + $0x370] sm:$0xff]
    %v2605 = vld [vmem:[#allocation16 + $0x378] sm:$0xff]
    %v2606 = vld [vmem:[#allocation16 + $0x380] sm:$0xff]
    %v2607 = vld [vmem:[#allocation16 + $0x388] sm:$0xff]
    %v2608 = vld [vmem:[#allocation16 + $0x390] sm:$0xff]
    %v2609 = vld [vmem:[#allocation16 + $0x398] sm:$0xff]
    %v2610 = vld [vmem:[#allocation16 + $0x3a0] sm:$0xff]
    %v2611 = vld [vmem:[#allocation16 + $0x3a8] sm:$0xff]
    %v2612 = vld [vmem:[#allocation16 + $0x3b0] sm:$0xff]
    %v2613 = vld [vmem:[#allocation16 + $0x3b8] sm:$0xff]
    %v2614 = vld [vmem:[#allocation16 + $0x3c0] sm:$0xff]
    %v2615 = vld [vmem:[#allocation16 + $0x3c8] sm:$0xff]
    %v2616 = vld [vmem:[#allocation16 + $0x3d0] sm:$0xff]
    %v2617 = vld [vmem:[#allocation16 + $0x3d8] sm:$0xff]
    %v2618 = vld [vmem:[#allocation16 + $0x3e0] sm:$0xff]
    %v2619 = vld [vmem:[#allocation16 + $0x3e8] sm:$0xff]
    %v2620 = vld [vmem:[#allocation16 + $0x3f0] sm:$0xff]
    %v2621 = vld [vmem:[#allocation16 + $0x3f8] sm:$0xff]
    %v2622 = vld [vmem:[%s11] sm:$0xff]
    %v2624 = vlaneseq
    %v2625 = vshrl.u32 %v2624, 7
    %v2626 = vsub.s32 0, %v2625
    %v2627 = vrot.slane %v2622, %v2626
    %v2628 = vlaneseq
    %v2629 = vshrl.u32 %v2628, 7
    %v2630 = vsub.s32 1, %v2629
    %v2631 = vrot.slane %v2622, %v2630
    %v2632 = vlaneseq
    %v2633 = vshrl.u32 %v2632, 7
    %v2634 = vsub.s32 2, %v2633
    %v2635 = vrot.slane %v2622, %v2634
    %v2636 = vlaneseq
    %v2637 = vshrl.u32 %v2636, 7
    %v2638 = vsub.s32 3, %v2637
    %v2639 = vrot.slane %v2622, %v2638
    %v2640 = vlaneseq
    %v2641 = vshrl.u32 %v2640, 7
    %v2642 = vsub.s32 4, %v2641
    %v2643 = vrot.slane %v2622, %v2642
    %v2644 = vlaneseq
    %v2645 = vshrl.u32 %v2644, 7
    %v2646 = vsub.s32 5, %v2645
    %v2647 = vrot.slane %v2622, %v2646
    %v2648 = vlaneseq
    %v2649 = vshrl.u32 %v2648, 7
    %v2650 = vsub.s32 6, %v2649
    %v2651 = vrot.slane %v2622, %v2650
    %v2652 = vlaneseq
    %v2653 = vshrl.u32 %v2652, 7
    %v2654 = vsub.s32 7, %v2653
    %v2655 = vrot.slane %v2622, %v2654
    %v2792 = vunpack.c.l.b16 %v2494
    %v2793 = vunpack.c.h.b16 %v2494
    %v2794 = vunpack.c.l.b16 %v2495
    %v2795 = vunpack.c.h.b16 %v2495
    %v2796 = vunpack.c.l.b16 %v2496
    %v2797 = vunpack.c.h.b16 %v2496
    %v2798 = vunpack.c.l.b16 %v2497
    %v2799 = vunpack.c.h.b16 %v2497
    %v2800 = vunpack.c.l.b16 %v2498
    %v2801 = vunpack.c.h.b16 %v2498
    %v2802 = vunpack.c.l.b16 %v2499
    %v2803 = vunpack.c.h.b16 %v2499
    %v2804 = vunpack.c.l.b16 %v2500
    %v2805 = vunpack.c.h.b16 %v2500
    %v2806 = vunpack.c.l.b16 %v2501
    %v2807 = vunpack.c.h.b16 %v2501
    %v2808 = vunpack.c.l.b16 %v2502
    %v2809 = vunpack.c.h.b16 %v2502
    %v2810 = vunpack.c.l.b16 %v2503
    %v2811 = vunpack.c.h.b16 %v2503
    %v2812 = vunpack.c.l.b16 %v2504
    %v2813 = vunpack.c.h.b16 %v2504
    %v2814 = vunpack.c.l.b16 %v2505
    %v2815 = vunpack.c.h.b16 %v2505
    %v2816 = vunpack.c.l.b16 %v2506
    %v2817 = vunpack.c.h.b16 %v2506
    %v2818 = vunpack.c.l.b16 %v2507
    %v2819 = vunpack.c.h.b16 %v2507
    %v2820 = vunpack.c.l.b16 %v2508
    %v2821 = vunpack.c.h.b16 %v2508
    %v2822 = vunpack.c.l.b16 %v2509
    %v2823 = vunpack.c.h.b16 %v2509
    %v2824 = vunpack.c.l.b16 %v2510
    %v2825 = vunpack.c.h.b16 %v2510
    %v2826 = vunpack.c.l.b16 %v2511
    %v2827 = vunpack.c.h.b16 %v2511
    %v2828 = vunpack.c.l.b16 %v2512
    %v2829 = vunpack.c.h.b16 %v2512
    %v2830 = vunpack.c.l.b16 %v2513
    %v2831 = vunpack.c.h.b16 %v2513
    %v2832 = vunpack.c.l.b16 %v2514
    %v2833 = vunpack.c.h.b16 %v2514
    %v2834 = vunpack.c.l.b16 %v2515
    %v2835 = vunpack.c.h.b16 %v2515
    %v2836 = vunpack.c.l.b16 %v2516
    %v2837 = vunpack.c.h.b16 %v2516
    %v2838 = vunpack.c.l.b16 %v2517
    %v2839 = vunpack.c.h.b16 %v2517
    %v2840 = vunpack.c.l.b16 %v2518
    %v2841 = vunpack.c.h.b16 %v2518
    %v2842 = vunpack.c.l.b16 %v2519
    %v2843 = vunpack.c.h.b16 %v2519
    %v2844 = vunpack.c.l.b16 %v2520
    %v2845 = vunpack.c.h.b16 %v2520
    %v2846 = vunpack.c.l.b16 %v2521
    %v2847 = vunpack.c.h.b16 %v2521
    %v2848 = vunpack.c.l.b16 %v2522
    %v2849 = vunpack.c.h.b16 %v2522
    %v2850 = vunpack.c.l.b16 %v2523
    %v2851 = vunpack.c.h.b16 %v2523
    %v2852 = vunpack.c.l.b16 %v2524
    %v2853 = vunpack.c.h.b16 %v2524
    %v2854 = vunpack.c.l.b16 %v2525
    %v2855 = vunpack.c.h.b16 %v2525
    %v2856 = vunpack.c.l.b16 %v2526
    %v2857 = vunpack.c.h.b16 %v2526
    %v2858 = vunpack.c.l.b16 %v2527
    %v2859 = vunpack.c.h.b16 %v2527
    %v2860 = vunpack.c.l.b16 %v2528
    %v2861 = vunpack.c.h.b16 %v2528
    %v2862 = vunpack.c.l.b16 %v2529
    %v2863 = vunpack.c.h.b16 %v2529
    %v2864 = vunpack.c.l.b16 %v2530
    %v2865 = vunpack.c.h.b16 %v2530
    %v2866 = vunpack.c.l.b16 %v2531
    %v2867 = vunpack.c.h.b16 %v2531
    %v2868 = vunpack.c.l.b16 %v2532
    %v2869 = vunpack.c.h.b16 %v2532
    %v2870 = vunpack.c.l.b16 %v2533
    %v2871 = vunpack.c.h.b16 %v2533
    %v2872 = vunpack.c.l.b16 %v2534
    %v2873 = vunpack.c.h.b16 %v2534
    %v2874 = vunpack.c.l.b16 %v2535
    %v2875 = vunpack.c.h.b16 %v2535
    %v2876 = vunpack.c.l.b16 %v2536
    %v2877 = vunpack.c.h.b16 %v2536
    %v2878 = vunpack.c.l.b16 %v2537
    %v2879 = vunpack.c.h.b16 %v2537
    %v2880 = vunpack.c.l.b16 %v2538
    %v2881 = vunpack.c.h.b16 %v2538
    %v2882 = vunpack.c.l.b16 %v2539
    %v2883 = vunpack.c.h.b16 %v2539
    %v2884 = vunpack.c.l.b16 %v2540
    %v2885 = vunpack.c.h.b16 %v2540
    %v2886 = vunpack.c.l.b16 %v2541
    %v2887 = vunpack.c.h.b16 %v2541
    %v2888 = vunpack.c.l.b16 %v2542
    %v2889 = vunpack.c.h.b16 %v2542
    %v2890 = vunpack.c.l.b16 %v2543
    %v2891 = vunpack.c.h.b16 %v2543
    %v2892 = vunpack.c.l.b16 %v2544
    %v2893 = vunpack.c.h.b16 %v2544
    %v2894 = vunpack.c.l.b16 %v2545
    %v2895 = vunpack.c.h.b16 %v2545
    %v2896 = vunpack.c.l.b16 %v2546
    %v2897 = vunpack.c.h.b16 %v2546
    %v2898 = vunpack.c.l.b16 %v2547
    %v2899 = vunpack.c.h.b16 %v2547
    %v2900 = vunpack.c.l.b16 %v2548
    %v2901 = vunpack.c.h.b16 %v2548
    %v2902 = vunpack.c.l.b16 %v2549
    %v2903 = vunpack.c.h.b16 %v2549
    %v2904 = vunpack.c.l.b16 %v2550
    %v2905 = vunpack.c.h.b16 %v2550
    %v2906 = vunpack.c.l.b16 %v2551
    %v2907 = vunpack.c.h.b16 %v2551
    %v2908 = vunpack.c.l.b16 %v2552
    %v2909 = vunpack.c.h.b16 %v2552
    %v2910 = vunpack.c.l.b16 %v2553
    %v2911 = vunpack.c.h.b16 %v2553
    %v2912 = vunpack.c.l.b16 %v2554
    %v2913 = vunpack.c.h.b16 %v2554
    %v2914 = vunpack.c.l.b16 %v2555
    %v2915 = vunpack.c.h.b16 %v2555
    %v2916 = vunpack.c.l.b16 %v2556
    %v2917 = vunpack.c.h.b16 %v2556
    %v2918 = vunpack.c.l.b16 %v2557
    %v2919 = vunpack.c.h.b16 %v2557
    %v2920 = vunpack.c.l.b16 %v2558
    %v2921 = vunpack.c.h.b16 %v2558
    %v2922 = vunpack.c.l.b16 %v2559
    %v2923 = vunpack.c.h.b16 %v2559
    %v2924 = vunpack.c.l.b16 %v2560
    %v2925 = vunpack.c.h.b16 %v2560
    %v2926 = vunpack.c.l.b16 %v2561
    %v2927 = vunpack.c.h.b16 %v2561
    %v2928 = vunpack.c.l.b16 %v2562
    %v2929 = vunpack.c.h.b16 %v2562
    %v2930 = vunpack.c.l.b16 %v2563
    %v2931 = vunpack.c.h.b16 %v2563
    %v2932 = vunpack.c.l.b16 %v2564
    %v2933 = vunpack.c.h.b16 %v2564
    %v2934 = vunpack.c.l.b16 %v2565
    %v2935 = vunpack.c.h.b16 %v2565
    %v2936 = vunpack.c.l.b16 %v2566
    %v2937 = vunpack.c.h.b16 %v2566
    %v2938 = vunpack.c.l.b16 %v2567
    %v2939 = vunpack.c.h.b16 %v2567
    %v2940 = vunpack.c.l.b16 %v2568
    %v2941 = vunpack.c.h.b16 %v2568
    %v2942 = vunpack.c.l.b16 %v2569
    %v2943 = vunpack.c.h.b16 %v2569
    %v2944 = vunpack.c.l.b16 %v2570
    %v2945 = vunpack.c.h.b16 %v2570
    %v2946 = vunpack.c.l.b16 %v2571
    %v2947 = vunpack.c.h.b16 %v2571
    %v2948 = vunpack.c.l.b16 %v2572
    %v2949 = vunpack.c.h.b16 %v2572
    %v2950 = vunpack.c.l.b16 %v2573
    %v2951 = vunpack.c.h.b16 %v2573
    %v2952 = vunpack.c.l.b16 %v2574
    %v2953 = vunpack.c.h.b16 %v2574
    %v2954 = vunpack.c.l.b16 %v2575
    %v2955 = vunpack.c.h.b16 %v2575
    %v2956 = vunpack.c.l.b16 %v2576
    %v2957 = vunpack.c.h.b16 %v2576
    %v2958 = vunpack.c.l.b16 %v2577
    %v2959 = vunpack.c.h.b16 %v2577
    %v2960 = vunpack.c.l.b16 %v2578
    %v2961 = vunpack.c.h.b16 %v2578
    %v2962 = vunpack.c.l.b16 %v2579
    %v2963 = vunpack.c.h.b16 %v2579
    %v2964 = vunpack.c.l.b16 %v2580
    %v2965 = vunpack.c.h.b16 %v2580
    %v2966 = vunpack.c.l.b16 %v2581
    %v2967 = vunpack.c.h.b16 %v2581
    %v2968 = vunpack.c.l.b16 %v2582
    %v2969 = vunpack.c.h.b16 %v2582
    %v2970 = vunpack.c.l.b16 %v2583
    %v2971 = vunpack.c.h.b16 %v2583
    %v2972 = vunpack.c.l.b16 %v2584
    %v2973 = vunpack.c.h.b16 %v2584
    %v2974 = vunpack.c.l.b16 %v2585
    %v2975 = vunpack.c.h.b16 %v2585
    %v2976 = vunpack.c.l.b16 %v2586
    %v2977 = vunpack.c.h.b16 %v2586
    %v2978 = vunpack.c.l.b16 %v2587
    %v2979 = vunpack.c.h.b16 %v2587
    %v2980 = vunpack.c.l.b16 %v2588
    %v2981 = vunpack.c.h.b16 %v2588
    %v2982 = vunpack.c.l.b16 %v2589
    %v2983 = vunpack.c.h.b16 %v2589
    %v2984 = vunpack.c.l.b16 %v2590
    %v2985 = vunpack.c.h.b16 %v2590
    %v2986 = vunpack.c.l.b16 %v2591
    %v2987 = vunpack.c.h.b16 %v2591
    %v2988 = vunpack.c.l.b16 %v2592
    %v2989 = vunpack.c.h.b16 %v2592
    %v2990 = vunpack.c.l.b16 %v2593
    %v2991 = vunpack.c.h.b16 %v2593
    %v2992 = vunpack.c.l.b16 %v2594
    %v2993 = vunpack.c.h.b16 %v2594
    %v2994 = vunpack.c.l.b16 %v2595
    %v2995 = vunpack.c.h.b16 %v2595
    %v2996 = vunpack.c.l.b16 %v2596
    %v2997 = vunpack.c.h.b16 %v2596
    %v2998 = vunpack.c.l.b16 %v2597
    %v2999 = vunpack.c.h.b16 %v2597
    %v3000 = vunpack.c.l.b16 %v2598
    %v3001 = vunpack.c.h.b16 %v2598
    %v3002 = vunpack.c.l.b16 %v2599
    %v3003 = vunpack.c.h.b16 %v2599
    %v3004 = vunpack.c.l.b16 %v2600
    %v3005 = vunpack.c.h.b16 %v2600
    %v3006 = vunpack.c.l.b16 %v2601
    %v3007 = vunpack.c.h.b16 %v2601
    %v3008 = vunpack.c.l.b16 %v2602
    %v3009 = vunpack.c.h.b16 %v2602
    %v3010 = vunpack.c.l.b16 %v2603
    %v3011 = vunpack.c.h.b16 %v2603
    %v3012 = vunpack.c.l.b16 %v2604
    %v3013 = vunpack.c.h.b16 %v2604
    %v3014 = vunpack.c.l.b16 %v2605
    %v3015 = vunpack.c.h.b16 %v2605
    %v3016 = vunpack.c.l.b16 %v2606
    %v3017 = vunpack.c.h.b16 %v2606
    %v3018 = vunpack.c.l.b16 %v2607
    %v3019 = vunpack.c.h.b16 %v2607
    %v3020 = vunpack.c.l.b16 %v2608
    %v3021 = vunpack.c.h.b16 %v2608
    %v3022 = vunpack.c.l.b16 %v2609
    %v3023 = vunpack.c.h.b16 %v2609
    %v3024 = vunpack.c.l.b16 %v2610
    %v3025 = vunpack.c.h.b16 %v2610
    %v3026 = vunpack.c.l.b16 %v2611
    %v3027 = vunpack.c.h.b16 %v2611
    %v3028 = vunpack.c.l.b16 %v2612
    %v3029 = vunpack.c.h.b16 %v2612
    %v3030 = vunpack.c.l.b16 %v2613
    %v3031 = vunpack.c.h.b16 %v2613
    %v3032 = vunpack.c.l.b16 %v2614
    %v3033 = vunpack.c.h.b16 %v2614
    %v3034 = vunpack.c.l.b16 %v2615
    %v3035 = vunpack.c.h.b16 %v2615
    %v3036 = vunpack.c.l.b16 %v2616
    %v3037 = vunpack.c.h.b16 %v2616
    %v3038 = vunpack.c.l.b16 %v2617
    %v3039 = vunpack.c.h.b16 %v2617
    %v3040 = vunpack.c.l.b16 %v2618
    %v3041 = vunpack.c.h.b16 %v2618
    %v3042 = vunpack.c.l.b16 %v2619
    %v3043 = vunpack.c.h.b16 %v2619
    %v3044 = vunpack.c.l.b16 %v2620
    %v3045 = vunpack.c.h.b16 %v2620
    %v3046 = vunpack.c.l.b16 %v2621
    %v3047 = vunpack.c.h.b16 %v2621
    %v3048 = vpack.c.b16 %v2800, %v2792
    %v3049 = vpack.c.b16 %v2801, %v2793
    %v3050 = vpack.c.b16 %v2802, %v2794
    %v3051 = vpack.c.b16 %v2803, %v2795
    %v3052 = vpack.c.b16 %v2804, %v2796
    %v3053 = vpack.c.b16 %v2805, %v2797
    %v3054 = vpack.c.b16 %v2806, %v2798
    %v3055 = vpack.c.b16 %v2807, %v2799
    %v3056 = vpack.c.b16 %v2816, %v2808
    %v3057 = vpack.c.b16 %v2817, %v2809
    %v3058 = vpack.c.b16 %v2818, %v2810
    %v3059 = vpack.c.b16 %v2819, %v2811
    %v3060 = vpack.c.b16 %v2820, %v2812
    %v3061 = vpack.c.b16 %v2821, %v2813
    %v3062 = vpack.c.b16 %v2822, %v2814
    %v3063 = vpack.c.b16 %v2823, %v2815
    %v3064 = vpack.c.b16 %v2832, %v2824
    %v3065 = vpack.c.b16 %v2833, %v2825
    %v3066 = vpack.c.b16 %v2834, %v2826
    %v3067 = vpack.c.b16 %v2835, %v2827
    %v3068 = vpack.c.b16 %v2836, %v2828
    %v3069 = vpack.c.b16 %v2837, %v2829
    %v3070 = vpack.c.b16 %v2838, %v2830
    %v3071 = vpack.c.b16 %v2839, %v2831
    %v3072 = vpack.c.b16 %v2848, %v2840
    %v3073 = vpack.c.b16 %v2849, %v2841
    %v3074 = vpack.c.b16 %v2850, %v2842
    %v3075 = vpack.c.b16 %v2851, %v2843
    %v3076 = vpack.c.b16 %v2852, %v2844
    %v3077 = vpack.c.b16 %v2853, %v2845
    %v3078 = vpack.c.b16 %v2854, %v2846
    %v3079 = vpack.c.b16 %v2855, %v2847
    %v3080 = vpack.c.b16 %v2864, %v2856
    %v3081 = vpack.c.b16 %v2865, %v2857
    %v3082 = vpack.c.b16 %v2866, %v2858
    %v3083 = vpack.c.b16 %v2867, %v2859
    %v3084 = vpack.c.b16 %v2868, %v2860
    %v3085 = vpack.c.b16 %v2869, %v2861
    %v3086 = vpack.c.b16 %v2870, %v2862
    %v3087 = vpack.c.b16 %v2871, %v2863
    %v3088 = vpack.c.b16 %v2880, %v2872
    %v3089 = vpack.c.b16 %v2881, %v2873
    %v3090 = vpack.c.b16 %v2882, %v2874
    %v3091 = vpack.c.b16 %v2883, %v2875
    %v3092 = vpack.c.b16 %v2884, %v2876
    %v3093 = vpack.c.b16 %v2885, %v2877
    %v3094 = vpack.c.b16 %v2886, %v2878
    %v3095 = vpack.c.b16 %v2887, %v2879
    %v3096 = vpack.c.b16 %v2896, %v2888
    %v3097 = vpack.c.b16 %v2897, %v2889
    %v3098 = vpack.c.b16 %v2898, %v2890
    %v3099 = vpack.c.b16 %v2899, %v2891
    %v3100 = vpack.c.b16 %v2900, %v2892
    %v3101 = vpack.c.b16 %v2901, %v2893
    %v3102 = vpack.c.b16 %v2902, %v2894
    %v3103 = vpack.c.b16 %v2903, %v2895
    %v3104 = vpack.c.b16 %v2912, %v2904
    %v3105 = vpack.c.b16 %v2913, %v2905
    %v3106 = vpack.c.b16 %v2914, %v2906
    %v3107 = vpack.c.b16 %v2915, %v2907
    %v3108 = vpack.c.b16 %v2916, %v2908
    %v3109 = vpack.c.b16 %v2917, %v2909
    %v3110 = vpack.c.b16 %v2918, %v2910
    %v3111 = vpack.c.b16 %v2919, %v2911
    %v3112 = vpack.c.b16 %v2928, %v2920
    %v3113 = vpack.c.b16 %v2929, %v2921
    %v3114 = vpack.c.b16 %v2930, %v2922
    %v3115 = vpack.c.b16 %v2931, %v2923
    %v3116 = vpack.c.b16 %v2932, %v2924
    %v3117 = vpack.c.b16 %v2933, %v2925
    %v3118 = vpack.c.b16 %v2934, %v2926
    %v3119 = vpack.c.b16 %v2935, %v2927
    %v3120 = vpack.c.b16 %v2944, %v2936
    %v3121 = vpack.c.b16 %v2945, %v2937
    %v3122 = vpack.c.b16 %v2946, %v2938
    %v3123 = vpack.c.b16 %v2947, %v2939
    %v3124 = vpack.c.b16 %v2948, %v2940
    %v3125 = vpack.c.b16 %v2949, %v2941
    %v3126 = vpack.c.b16 %v2950, %v2942
    %v3127 = vpack.c.b16 %v2951, %v2943
    %v3128 = vpack.c.b16 %v2960, %v2952
    %v3129 = vpack.c.b16 %v2961, %v2953
    %v3130 = vpack.c.b16 %v2962, %v2954
    %v3131 = vpack.c.b16 %v2963, %v2955
    %v3132 = vpack.c.b16 %v2964, %v2956
    %v3133 = vpack.c.b16 %v2965, %v2957
    %v3134 = vpack.c.b16 %v2966, %v2958
    %v3135 = vpack.c.b16 %v2967, %v2959
    %v3136 = vpack.c.b16 %v2976, %v2968
    %v3137 = vpack.c.b16 %v2977, %v2969
    %v3138 = vpack.c.b16 %v2978, %v2970
    %v3139 = vpack.c.b16 %v2979, %v2971
    %v3140 = vpack.c.b16 %v2980, %v2972
    %v3141 = vpack.c.b16 %v2981, %v2973
    %v3142 = vpack.c.b16 %v2982, %v2974
    %v3143 = vpack.c.b16 %v2983, %v2975
    %v3144 = vpack.c.b16 %v2992, %v2984
    %v3145 = vpack.c.b16 %v2993, %v2985
    %v3146 = vpack.c.b16 %v2994, %v2986
    %v3147 = vpack.c.b16 %v2995, %v2987
    %v3148 = vpack.c.b16 %v2996, %v2988
    %v3149 = vpack.c.b16 %v2997, %v2989
    %v3150 = vpack.c.b16 %v2998, %v2990
    %v3151 = vpack.c.b16 %v2999, %v2991
    %v3152 = vpack.c.b16 %v3008, %v3000
    %v3153 = vpack.c.b16 %v3009, %v3001
    %v3154 = vpack.c.b16 %v3010, %v3002
    %v3155 = vpack.c.b16 %v3011, %v3003
    %v3156 = vpack.c.b16 %v3012, %v3004
    %v3157 = vpack.c.b16 %v3013, %v3005
    %v3158 = vpack.c.b16 %v3014, %v3006
    %v3159 = vpack.c.b16 %v3015, %v3007
    %v3160 = vpack.c.b16 %v3024, %v3016
    %v3161 = vpack.c.b16 %v3025, %v3017
    %v3162 = vpack.c.b16 %v3026, %v3018
    %v3163 = vpack.c.b16 %v3027, %v3019
    %v3164 = vpack.c.b16 %v3028, %v3020
    %v3165 = vpack.c.b16 %v3029, %v3021
    %v3166 = vpack.c.b16 %v3030, %v3022
    %v3167 = vpack.c.b16 %v3031, %v3023
    %v3168 = vpack.c.b16 %v3040, %v3032
    %v3169 = vpack.c.b16 %v3041, %v3033
    %v3170 = vpack.c.b16 %v3042, %v3034
    %v3171 = vpack.c.b16 %v3043, %v3035
    %v3172 = vpack.c.b16 %v3044, %v3036
    %v3173 = vpack.c.b16 %v3045, %v3037
    %v3174 = vpack.c.b16 %v3046, %v3038
    %v3175 = vpack.c.b16 %v3047, %v3039
    %3304 = vmatprep.subr.bf16.mxu0 %v3049
    %3305 = vmatpush1.bf16.msra.mxu0 %v3048
    %3306 = vmatprep.subr.bf16.mxu0 %v3057
    %3307 = vmatpush1.bf16.msra.mxu0 %v3056
    %3308 = vmatprep.subr.bf16.mxu0 %v3065
    %3309 = vmatpush1.bf16.msra.mxu0 %v3064
    %3310 = vmatprep.subr.bf16.mxu0 %v3073
    %3311 = vmatpush1.bf16.msra.mxu0 %v3072
    %3312 = vmatprep.subr.bf16.mxu0 %v3081
    %3313 = vmatpush1.bf16.msra.mxu0 %v3080
    %3314 = vmatprep.subr.bf16.mxu0 %v3089
    %3315 = vmatpush1.bf16.msra.mxu0 %v3088
    %3316 = vmatprep.subr.bf16.mxu0 %v3097
    %3317 = vmatpush1.bf16.msra.mxu0 %v3096
    %3318 = vmatprep.subr.bf16.mxu0 %v3105
    %3319 = vmatpush1.bf16.msra.mxu0 %v3104
    %3320 = vmatprep.subr.bf16.mxu0 %v3113
    %3321 = vmatpush1.bf16.msra.mxu0 %v3112
    %3322 = vmatprep.subr.bf16.mxu0 %v3121
    %3323 = vmatpush1.bf16.msra.mxu0 %v3120
    %3324 = vmatprep.subr.bf16.mxu0 %v3129
    %3325 = vmatpush1.bf16.msra.mxu0 %v3128
    %3326 = vmatprep.subr.bf16.mxu0 %v3137
    %3327 = vmatpush1.bf16.msra.mxu0 %v3136
    %3328 = vmatprep.subr.bf16.mxu0 %v3145
    %3329 = vmatpush1.bf16.msra.mxu0 %v3144
    %3330 = vmatprep.subr.bf16.mxu0 %v3153
    %3331 = vmatpush1.bf16.msra.mxu0 %v3152
    %3332 = vmatprep.subr.bf16.mxu0 %v3161
    %3333 = vmatpush1.bf16.msra.mxu0 %v3160
    %3334 = vmatprep.subr.bf16.mxu0 %v3169
    %3335 = vmatpush1.bf16.msra.mxu0 %v3168
    %3336 = vmatprep.mubr.bf16.mxu0 %v2493
    %3337 = vmatmul.mubr.bf16.gmra.mrb[0].mxu0 %v2492
    %v3338 = vpop.f32.mrb[0].mxu0
    %v3339 = vadd.f32 %v2627, %v3338
    %v3340 = vpop.f32.mrb[0].mxu0
    %v3341 = vadd.f32 %v2631, %v3340
    %v3342 = vpop.f32.mrb[0].mxu0
    %v3343 = vadd.f32 %v2627, %v3342
    %v3344 = vpop.f32.mrb[0].mxu0
    %v3345 = vadd.f32 %v2631, %v3344
    %3346 = vdwg.mxu0
    %3347 = vmatprep.subr.bf16.mxu0 %v3051
    %3348 = vmatpush1.bf16.msra.mxu0 %v3050
    %3349 = vmatprep.subr.bf16.mxu0 %v3059
    %3350 = vmatpush1.bf16.msra.mxu0 %v3058
    %3351 = vmatprep.subr.bf16.mxu0 %v3067
    %3352 = vmatpush1.bf16.msra.mxu0 %v3066
    %3353 = vmatprep.subr.bf16.mxu0 %v3075
    %3354 = vmatpush1.bf16.msra.mxu0 %v3074
    %3355 = vmatprep.subr.bf16.mxu0 %v3083
    %3356 = vmatpush1.bf16.msra.mxu0 %v3082
    %3357 = vmatprep.subr.bf16.mxu0 %v3091
    %3358 = vmatpush1.bf16.msra.mxu0 %v3090
    %3359 = vmatprep.subr.bf16.mxu0 %v3099
    %3360 = vmatpush1.bf16.msra.mxu0 %v3098
    %3361 = vmatprep.subr.bf16.mxu0 %v3107
    %3362 = vmatpush1.bf16.msra.mxu0 %v3106
    %3363 = vmatprep.subr.bf16.mxu0 %v3115
    %3364 = vmatpush1.bf16.msra.mxu0 %v3114
    %3365 = vmatprep.subr.bf16.mxu0 %v3123
    %3366 = vmatpush1.bf16.msra.mxu0 %v3122
    %3367 = vmatprep.subr.bf16.mxu0 %v3131
    %3368 = vmatpush1.bf16.msra.mxu0 %v3130
    %3369 = vmatprep.subr.bf16.mxu0 %v3139
    %3370 = vmatpush1.bf16.msra.mxu0 %v3138
    %3371 = vmatprep.subr.bf16.mxu0 %v3147
    %3372 = vmatpush1.bf16.msra.mxu0 %v3146
    %3373 = vmatprep.subr.bf16.mxu0 %v3155
    %3374 = vmatpush1.bf16.msra.mxu0 %v3154
    %3375 = vmatprep.subr.bf16.mxu0 %v3163
    %3376 = vmatpush1.bf16.msra.mxu0 %v3162
    %3377 = vmatprep.subr.bf16.mxu0 %v3171
    %3378 = vmatpush1.bf16.msra.mxu0 %v3170
    %3379 = vmatprep.mubr.bf16.mxu0 %v2493
    %3380 = vmatmul.mubr.bf16.gmra.mrb[0].mxu0 %v2492
    %v3381 = vpop.f32.mrb[0].mxu0
    %v3382 = vadd.f32 %v2635, %v3381
    %v3383 = vpop.f32.mrb[0].mxu0
    %v3384 = vadd.f32 %v2639, %v3383
    %v3385 = vpop.f32.mrb[0].mxu0
    %v3386 = vadd.f32 %v2635, %v3385
    %v3387 = vpop.f32.mrb[0].mxu0
    %v3388 = vadd.f32 %v2639, %v3387
    %3389 = vdwg.mxu0
    %3390 = vmatprep.subr.bf16.mxu0 %v3053
    %3391 = vmatpush1.bf16.msra.mxu0 %v3052
    %3392 = vmatprep.subr.bf16.mxu0 %v3061
    %3393 = vmatpush1.bf16.msra.mxu0 %v3060
    %3394 = vmatprep.subr.bf16.mxu0 %v3069
    %3395 = vmatpush1.bf16.msra.mxu0 %v3068
    %3396 = vmatprep.subr.bf16.mxu0 %v3077
    %3397 = vmatpush1.bf16.msra.mxu0 %v3076
    %3398 = vmatprep.subr.bf16.mxu0 %v3085
    %3399 = vmatpush1.bf16.msra.mxu0 %v3084
    %3400 = vmatprep.subr.bf16.mxu0 %v3093
    %3401 = vmatpush1.bf16.msra.mxu0 %v3092
    %3402 = vmatprep.subr.bf16.mxu0 %v3101
    %3403 = vmatpush1.bf16.msra.mxu0 %v3100
    %3404 = vmatprep.subr.bf16.mxu0 %v3109
    %3405 = vmatpush1.bf16.msra.mxu0 %v3108
    %3406 = vmatprep.subr.bf16.mxu0 %v3117
    %3407 = vmatpush1.bf16.msra.mxu0 %v3116
    %3408 = vmatprep.subr.bf16.mxu0 %v3125
    %3409 = vmatpush1.bf16.msra.mxu0 %v3124
    %3410 = vmatprep.subr.bf16.mxu0 %v3133
    %3411 = vmatpush1.bf16.msra.mxu0 %v3132
    %3412 = vmatprep.subr.bf16.mxu0 %v3141
    %3413 = vmatpush1.bf16.msra.mxu0 %v3140
    %3414 = vmatprep.subr.bf16.mxu0 %v3149
    %3415 = vmatpush1.bf16.msra.mxu0 %v3148
    %3416 = vmatprep.subr.bf16.mxu0 %v3157
    %3417 = vmatpush1.bf16.msra.mxu0 %v3156
    %3418 = vmatprep.subr.bf16.mxu0 %v3165
    %3419 = vmatpush1.bf16.msra.mxu0 %v3164
    %3420 = vmatprep.subr.bf16.mxu0 %v3173
    %3421 = vmatpush1.bf16.msra.mxu0 %v3172
    %3422 = vmatprep.mubr.bf16.mxu0 %v2493
    %3423 = vmatmul.mubr.bf16.gmra.mrb[0].mxu0 %v2492
    %v3424 = vpop.f32.mrb[0].mxu0
    %v3425 = vadd.f32 %v2643, %v3424
    %v3426 = vpop.f32.mrb[0].mxu0
    %v3427 = vadd.f32 %v2647, %v3426
    %v3428 = vpop.f32.mrb[0].mxu0
    %v3429 = vadd.f32 %v2643, %v3428
    %v3430 = vpop.f32.mrb[0].mxu0
    %v3431 = vadd.f32 %v2647, %v3430
    %3432 = vdwg.mxu0
    %3433 = vmatprep.subr.bf16.mxu0 %v3055
    %3434 = vmatpush1.bf16.msra.mxu0 %v3054
    %3435 = vmatprep.subr.bf16.mxu0 %v3063
    %3436 = vmatpush1.bf16.msra.mxu0 %v3062
    %3437 = vmatprep.subr.bf16.mxu0 %v3071
    %3438 = vmatpush1.bf16.msra.mxu0 %v3070
    %3439 = vmatprep.subr.bf16.mxu0 %v3079
    %3440 = vmatpush1.bf16.msra.mxu0 %v3078
    %3441 = vmatprep.subr.bf16.mxu0 %v3087
    %3442 = vmatpush1.bf16.msra.mxu0 %v3086
    %3443 = vmatprep.subr.bf16.mxu0 %v3095
    %3444 = vmatpush1.bf16.msra.mxu0 %v3094
    %3445 = vmatprep.subr.bf16.mxu0 %v3103
    %3446 = vmatpush1.bf16.msra.mxu0 %v3102
    %3447 = vmatprep.subr.bf16.mxu0 %v3111
    %3448 = vmatpush1.bf16.msra.mxu0 %v3110
    %3449 = vmatprep.subr.bf16.mxu0 %v3119
    %3450 = vmatpush1.bf16.msra.mxu0 %v3118
    %3451 = vmatprep.subr.bf16.mxu0 %v3127
    %3452 = vmatpush1.bf16.msra.mxu0 %v3126
    %3453 = vmatprep.subr.bf16.mxu0 %v3135
    %3454 = vmatpush1.bf16.msra.mxu0 %v3134
    %3455 = vmatprep.subr.bf16.mxu0 %v3143
    %3456 = vmatpush1.bf16.msra.mxu0 %v3142
    %3457 = vmatprep.subr.bf16.mxu0 %v3151
    %3458 = vmatpush1.bf16.msra.mxu0 %v3150
    %3459 = vmatprep.subr.bf16.mxu0 %v3159
    %3460 = vmatpush1.bf16.msra.mxu0 %v3158
    %3461 = vmatprep.subr.bf16.mxu0 %v3167
    %3462 = vmatpush1.bf16.msra.mxu0 %v3166
    %3463 = vmatprep.subr.bf16.mxu0 %v3175
    %3464 = vmatpush1.bf16.msra.mxu0 %v3174
    %3465 = vmatprep.mubr.bf16.mxu0 %v2493
    %3466 = vmatmul.mubr.bf16.gmra.mrb[0].mxu0 %v2492
    %v3467 = vpop.f32.mrb[0].mxu0
    %v3468 = vadd.f32 %v2651, %v3467
    %v3469 = vpop.f32.mrb[0].mxu0
    %v3470 = vadd.f32 %v2655, %v3469
    %v3471 = vpop.f32.mrb[0].mxu0
    %v3472 = vadd.f32 %v2651, %v3471
    %v3473 = vpop.f32.mrb[0].mxu0
    %v3474 = vadd.f32 %v2655, %v3473
    %3475 = vdwg.mxu0
    %v3476 = vmul.f32 %v3339, 1.702
    %v3477 = vmul.f32 %v3341, 1.702
    %v3478 = vmul.f32 %v3382, 1.702
    %v3479 = vmul.f32 %v3384, 1.702
    %v3480 = vmul.f32 %v3425, 1.702
    %v3481 = vmul.f32 %v3427, 1.702
    %v3482 = vmul.f32 %v3468, 1.702
    %v3483 = vmul.f32 %v3470, 1.702
    %v3484 = vmul.f32 %v3343, 1.702
    %v3485 = vmul.f32 %v3345, 1.702
    %v3486 = vmul.f32 %v3386, 1.702
    %v3487 = vmul.f32 %v3388, 1.702
    %v3488 = vmul.f32 %v3429, 1.702
    %v3489 = vmul.f32 %v3431, 1.702
    %v3490 = vmul.f32 %v3472, 1.702
    %v3491 = vmul.f32 %v3474, 1.702
    %v3492 = vxor.u32 %v3476, 2147483648
    %v3493 = vxor.u32 %v3477, 2147483648
    %v3494 = vxor.u32 %v3478, 2147483648
    %v3495 = vxor.u32 %v3479, 2147483648
    %v3496 = vxor.u32 %v3480, 2147483648
    %v3497 = vxor.u32 %v3481, 2147483648
    %v3498 = vxor.u32 %v3482, 2147483648
    %v3499 = vxor.u32 %v3483, 2147483648
    %v3500 = vxor.u32 %v3484, 2147483648
    %v3501 = vxor.u32 %v3485, 2147483648
    %v3502 = vxor.u32 %v3486, 2147483648
    %v3503 = vxor.u32 %v3487, 2147483648
    %v3504 = vxor.u32 %v3488, 2147483648
    %v3505 = vxor.u32 %v3489, 2147483648
    %v3506 = vxor.u32 %v3490, 2147483648
    %v3507 = vxor.u32 %v3491, 2147483648
    %v3508 = vmul.f32 %v3492, 1.442695
    %v3509 = vpow.pop %v3508
    %v3510 = vmul.f32 %v3493, 1.442695
    %v3511 = vpow.pop %v3510
    %v3512 = vmul.f32 %v3494, 1.442695
    %v3513 = vpow.pop %v3512
    %v3514 = vmul.f32 %v3495, 1.442695
    %v3515 = vpow.pop %v3514
    %v3516 = vmul.f32 %v3496, 1.442695
    %v3517 = vpow.pop %v3516
    %v3518 = vmul.f32 %v3497, 1.442695
    %v3519 = vpow.pop %v3518
    %v3520 = vmul.f32 %v3498, 1.442695
    %v3521 = vpow.pop %v3520
    %v3522 = vmul.f32 %v3499, 1.442695
    %v3523 = vpow.pop %v3522
    %v3524 = vmul.f32 %v3500, 1.442695
    %v3525 = vpow.pop %v3524
    %v3526 = vmul.f32 %v3501, 1.442695
    %v3527 = vpow.pop %v3526
    %v3528 = vmul.f32 %v3502, 1.442695
    %v3529 = vpow.pop %v3528
    %v3530 = vmul.f32 %v3503, 1.442695
    %v3531 = vpow.pop %v3530
    %v3532 = vmul.f32 %v3504, 1.442695
    %v3533 = vpow.pop %v3532
    %v3534 = vmul.f32 %v3505, 1.442695
    %v3535 = vpow.pop %v3534
    %v3536 = vmul.f32 %v3506, 1.442695
    %v3537 = vpow.pop %v3536
    %v3538 = vmul.f32 %v3507, 1.442695
    %v3539 = vpow.pop %v3538
    %v3540 = vadd.f32 %v3509, 1.0
    %v3541 = vadd.f32 %v3511, 1.0
    %v3542 = vadd.f32 %v3513, 1.0
    %v3543 = vadd.f32 %v3515, 1.0
    %v3544 = vadd.f32 %v3517, 1.0
    %v3545 = vadd.f32 %v3519, 1.0
    %v3546 = vadd.f32 %v3521, 1.0
    %v3547 = vadd.f32 %v3523, 1.0
    %v3548 = vadd.f32 %v3525, 1.0
    %v3549 = vadd.f32 %v3527, 1.0
    %v3550 = vadd.f32 %v3529, 1.0
    %v3551 = vadd.f32 %v3531, 1.0
    %v3552 = vadd.f32 %v3533, 1.0
    %v3553 = vadd.f32 %v3535, 1.0
    %v3554 = vadd.f32 %v3537, 1.0
    %v3555 = vadd.f32 %v3539, 1.0
    %v3556 = vrcp.pop %v3540
    %v3557 = vmul.f32 1.0, %v3556
    %v3558 = vrcp.pop %v3541
    %v3559 = vmul.f32 1.0, %v3558
    %v3560 = vrcp.pop %v3542
    %v3561 = vmul.f32 1.0, %v3560
    %v3562 = vrcp.pop %v3543
    %v3563 = vmul.f32 1.0, %v3562
    %v3564 = vrcp.pop %v3544
    %v3565 = vmul.f32 1.0, %v3564
    %v3566 = vrcp.pop %v3545
    %v3567 = vmul.f32 1.0, %v3566
    %v3568 = vrcp.pop %v3546
    %v3569 = vmul.f32 1.0, %v3568
    %v3570 = vrcp.pop %v3547
    %v3571 = vmul.f32 1.0, %v3570
    %v3572 = vrcp.pop %v3548
    %v3573 = vmul.f32 1.0, %v3572
    %v3574 = vrcp.pop %v3549
    %v3575 = vmul.f32 1.0, %v3574
    %v3576 = vrcp.pop %v3550
    %v3577 = vmul.f32 1.0, %v3576
    %v3578 = vrcp.pop %v3551
    %v3579 = vmul.f32 1.0, %v3578
    %v3580 = vrcp.pop %v3552
    %v3581 = vmul.f32 1.0, %v3580
    %v3582 = vrcp.pop %v3553
    %v3583 = vmul.f32 1.0, %v3582
    %v3584 = vrcp.pop %v3554
    %v3585 = vmul.f32 1.0, %v3584
    %v3586 = vrcp.pop %v3555
    %v3587 = vmul.f32 1.0, %v3586
    %v3588 = vmul.f32 %v3339, %v3557
    %v3589 = vmul.f32 %v3341, %v3559
    %v3590 = vmul.f32 %v3382, %v3561
    %v3591 = vmul.f32 %v3384, %v3563
    %v3592 = vmul.f32 %v3425, %v3565
    %v3593 = vmul.f32 %v3427, %v3567
    %v3594 = vmul.f32 %v3468, %v3569
    %v3595 = vmul.f32 %v3470, %v3571
    %v3596 = vmul.f32 %v3343, %v3573
    %v3597 = vmul.f32 %v3345, %v3575
    %v3598 = vmul.f32 %v3386, %v3577
    %v3599 = vmul.f32 %v3388, %v3579
    %v3600 = vmul.f32 %v3429, %v3581
    %v3601 = vmul.f32 %v3431, %v3583
    %v3602 = vmul.f32 %v3472, %v3585
    %v3603 = vmul.f32 %v3474, %v3587
    %v3604 = vld [vmem:[#allocation4] sm:$0xff]
    %v3605 = vld [vmem:[#allocation4 + $0x8] sm:$0xff]
    %v3606 = vld [vmem:[#allocation4 + $0x10] sm:$0xff]
    %v3607 = vld [vmem:[#allocation4 + $0x18] sm:$0xff]
    %v3608 = vpack.c.bf16 %v3596, %v3588
    %v3609 = vpack.c.bf16 %v3597, %v3589
    %v3610 = vpack.c.bf16 %v3598, %v3590
    %v3611 = vpack.c.bf16 %v3599, %v3591
    %v3612 = vpack.c.bf16 %v3600, %v3592
    %v3613 = vpack.c.bf16 %v3601, %v3593
    %v3614 = vpack.c.bf16 %v3602, %v3594
    %v3615 = vpack.c.bf16 %v3603, %v3595
    %v3616 = vld [vmem:[#allocation17] sm:$0xff]
    %v3617 = vld [vmem:[#allocation17 + $0x8] sm:$0xff]
    %v3618 = vld [vmem:[#allocation17 + $0x10] sm:$0xff]
    %v3619 = vld [vmem:[#allocation17 + $0x18] sm:$0xff]
    %v3620 = vld [vmem:[#allocation17 + $0x20] sm:$0xff]
    %v3621 = vld [vmem:[#allocation17 + $0x28] sm:$0xff]
    %v3622 = vld [vmem:[#allocation17 + $0x30] sm:$0xff]
    %v3623 = vld [vmem:[#allocation17 + $0x38] sm:$0xff]
    %v3624 = vld [vmem:[#allocation17 + $0x40] sm:$0xff]
    %v3625 = vld [vmem:[#allocation17 + $0x48] sm:$0xff]
    %v3626 = vld [vmem:[#allocation17 + $0x50] sm:$0xff]
    %v3627 = vld [vmem:[#allocation17 + $0x58] sm:$0xff]
    %v3628 = vld [vmem:[#allocation17 + $0x60] sm:$0xff]
    %v3629 = vld [vmem:[#allocation17 + $0x68] sm:$0xff]
    %v3630 = vld [vmem:[#allocation17 + $0x70] sm:$0xff]
    %v3631 = vld [vmem:[#allocation17 + $0x78] sm:$0xff]
    %v3632 = vld [vmem:[#allocation17 + $0x80] sm:$0xff]
    %v3633 = vld [vmem:[#allocation17 + $0x88] sm:$0xff]
    %v3634 = vld [vmem:[#allocation17 + $0x90] sm:$0xff]
    %v3635 = vld [vmem:[#allocation17 + $0x98] sm:$0xff]
    %v3636 = vld [vmem:[#allocation17 + $0xa0] sm:$0xff]
    %v3637 = vld [vmem:[#allocation17 + $0xa8] sm:$0xff]
    %v3638 = vld [vmem:[#allocation17 + $0xb0] sm:$0xff]
    %v3639 = vld [vmem:[#allocation17 + $0xb8] sm:$0xff]
    %v3640 = vld [vmem:[#allocation17 + $0xc0] sm:$0xff]
    %v3641 = vld [vmem:[#allocation17 + $0xc8] sm:$0xff]
    %v3642 = vld [vmem:[#allocation17 + $0xd0] sm:$0xff]
    %v3643 = vld [vmem:[#allocation17 + $0xd8] sm:$0xff]
    %v3644 = vld [vmem:[#allocation17 + $0xe0] sm:$0xff]
    %v3645 = vld [vmem:[#allocation17 + $0xe8] sm:$0xff]
    %v3646 = vld [vmem:[#allocation17 + $0xf0] sm:$0xff]
    %v3647 = vld [vmem:[#allocation17 + $0xf8] sm:$0xff]
    %v3648 = vld [vmem:[#allocation17 + $0x100] sm:$0xff]
    %v3649 = vld [vmem:[#allocation17 + $0x108] sm:$0xff]
    %v3650 = vld [vmem:[#allocation17 + $0x110] sm:$0xff]
    %v3651 = vld [vmem:[#allocation17 + $0x118] sm:$0xff]
    %v3652 = vld [vmem:[#allocation17 + $0x120] sm:$0xff]
    %v3653 = vld [vmem:[#allocation17 + $0x128] sm:$0xff]
    %v3654 = vld [vmem:[#allocation17 + $0x130] sm:$0xff]
    %v3655 = vld [vmem:[#allocation17 + $0x138] sm:$0xff]
    %v3656 = vld [vmem:[#allocation17 + $0x140] sm:$0xff]
    %v3657 = vld [vmem:[#allocation17 + $0x148] sm:$0xff]
    %v3658 = vld [vmem:[#allocation17 + $0x150] sm:$0xff]
    %v3659 = vld [vmem:[#allocation17 + $0x158] sm:$0xff]
    %v3660 = vld [vmem:[#allocation17 + $0x160] sm:$0xff]
    %v3661 = vld [vmem:[#allocation17 + $0x168] sm:$0xff]
    %v3662 = vld [vmem:[#allocation17 + $0x170] sm:$0xff]
    %v3663 = vld [vmem:[#allocation17 + $0x178] sm:$0xff]
    %v3664 = vld [vmem:[#allocation17 + $0x180] sm:$0xff]
    %v3665 = vld [vmem:[#allocation17 + $0x188] sm:$0xff]
    %v3666 = vld [vmem:[#allocation17 + $0x190] sm:$0xff]
    %v3667 = vld [vmem:[#allocation17 + $0x198] sm:$0xff]
    %v3668 = vld [vmem:[#allocation17 + $0x1a0] sm:$0xff]
    %v3669 = vld [vmem:[#allocation17 + $0x1a8] sm:$0xff]
    %v3670 = vld [vmem:[#allocation17 + $0x1b0] sm:$0xff]
    %v3671 = vld [vmem:[#allocation17 + $0x1b8] sm:$0xff]
    %v3672 = vld [vmem:[#allocation17 + $0x1c0] sm:$0xff]
    %v3673 = vld [vmem:[#allocation17 + $0x1c8] sm:$0xff]
    %v3674 = vld [vmem:[#allocation17 + $0x1d0] sm:$0xff]
    %v3675 = vld [vmem:[#allocation17 + $0x1d8] sm:$0xff]
    %v3676 = vld [vmem:[#allocation17 + $0x1e0] sm:$0xff]
    %v3677 = vld [vmem:[#allocation17 + $0x1e8] sm:$0xff]
    %v3678 = vld [vmem:[#allocation17 + $0x1f0] sm:$0xff]
    %v3679 = vld [vmem:[#allocation17 + $0x1f8] sm:$0xff]
    %v3680 = vld [vmem:[#allocation17 + $0x200] sm:$0xff]
    %v3681 = vld [vmem:[#allocation17 + $0x208] sm:$0xff]
    %v3682 = vld [vmem:[#allocation17 + $0x210] sm:$0xff]
    %v3683 = vld [vmem:[#allocation17 + $0x218] sm:$0xff]
    %v3684 = vld [vmem:[#allocation17 + $0x220] sm:$0xff]
    %v3685 = vld [vmem:[#allocation17 + $0x228] sm:$0xff]
    %v3686 = vld [vmem:[#allocation17 + $0x230] sm:$0xff]
    %v3687 = vld [vmem:[#allocation17 + $0x238] sm:$0xff]
    %v3688 = vld [vmem:[#allocation17 + $0x240] sm:$0xff]
    %v3689 = vld [vmem:[#allocation17 + $0x248] sm:$0xff]
    %v3690 = vld [vmem:[#allocation17 + $0x250] sm:$0xff]
    %v3691 = vld [vmem:[#allocation17 + $0x258] sm:$0xff]
    %v3692 = vld [vmem:[#allocation17 + $0x260] sm:$0xff]
    %v3693 = vld [vmem:[#allocation17 + $0x268] sm:$0xff]
    %v3694 = vld [vmem:[#allocation17 + $0x270] sm:$0xff]
    %v3695 = vld [vmem:[#allocation17 + $0x278] sm:$0xff]
    %v3696 = vld [vmem:[#allocation17 + $0x280] sm:$0xff]
    %v3697 = vld [vmem:[#allocation17 + $0x288] sm:$0xff]
    %v3698 = vld [vmem:[#allocation17 + $0x290] sm:$0xff]
    %v3699 = vld [vmem:[#allocation17 + $0x298] sm:$0xff]
    %v3700 = vld [vmem:[#allocation17 + $0x2a0] sm:$0xff]
    %v3701 = vld [vmem:[#allocation17 + $0x2a8] sm:$0xff]
    %v3702 = vld [vmem:[#allocation17 + $0x2b0] sm:$0xff]
    %v3703 = vld [vmem:[#allocation17 + $0x2b8] sm:$0xff]
    %v3704 = vld [vmem:[#allocation17 + $0x2c0] sm:$0xff]
    %v3705 = vld [vmem:[#allocation17 + $0x2c8] sm:$0xff]
    %v3706 = vld [vmem:[#allocation17 + $0x2d0] sm:$0xff]
    %v3707 = vld [vmem:[#allocation17 + $0x2d8] sm:$0xff]
    %v3708 = vld [vmem:[#allocation17 + $0x2e0] sm:$0xff]
    %v3709 = vld [vmem:[#allocation17 + $0x2e8] sm:$0xff]
    %v3710 = vld [vmem:[#allocation17 + $0x2f0] sm:$0xff]
    %v3711 = vld [vmem:[#allocation17 + $0x2f8] sm:$0xff]
    %v3712 = vld [vmem:[#allocation17 + $0x300] sm:$0xff]
    %v3713 = vld [vmem:[#allocation17 + $0x308] sm:$0xff]
    %v3714 = vld [vmem:[#allocation17 + $0x310] sm:$0xff]
    %v3715 = vld [vmem:[#allocation17 + $0x318] sm:$0xff]
    %v3716 = vld [vmem:[#allocation17 + $0x320] sm:$0xff]
    %v3717 = vld [vmem:[#allocation17 + $0x328] sm:$0xff]
    %v3718 = vld [vmem:[#allocation17 + $0x330] sm:$0xff]
    %v3719 = vld [vmem:[#allocation17 + $0x338] sm:$0xff]
    %v3720 = vld [vmem:[#allocation17 + $0x340] sm:$0xff]
    %v3721 = vld [vmem:[#allocation17 + $0x348] sm:$0xff]
    %v3722 = vld [vmem:[#allocation17 + $0x350] sm:$0xff]
    %v3723 = vld [vmem:[#allocation17 + $0x358] sm:$0xff]
    %v3724 = vld [vmem:[#allocation17 + $0x360] sm:$0xff]
    %v3725 = vld [vmem:[#allocation17 + $0x368] sm:$0xff]
    %v3726 = vld [vmem:[#allocation17 + $0x370] sm:$0xff]
    %v3727 = vld [vmem:[#allocation17 + $0x378] sm:$0xff]
    %v3728 = vld [vmem:[#allocation17 + $0x380] sm:$0xff]
    %v3729 = vld [vmem:[#allocation17 + $0x388] sm:$0xff]
    %v3730 = vld [vmem:[#allocation17 + $0x390] sm:$0xff]
    %v3731 = vld [vmem:[#allocation17 + $0x398] sm:$0xff]
    %v3732 = vld [vmem:[#allocation17 + $0x3a0] sm:$0xff]
    %v3733 = vld [vmem:[#allocation17 + $0x3a8] sm:$0xff]
    %v3734 = vld [vmem:[#allocation17 + $0x3b0] sm:$0xff]
    %v3735 = vld [vmem:[#allocation17 + $0x3b8] sm:$0xff]
    %v3736 = vld [vmem:[#allocation17 + $0x3c0] sm:$0xff]
    %v3737 = vld [vmem:[#allocation17 + $0x3c8] sm:$0xff]
    %v3738 = vld [vmem:[#allocation17 + $0x3d0] sm:$0xff]
    %v3739 = vld [vmem:[#allocation17 + $0x3d8] sm:$0xff]
    %v3740 = vld [vmem:[#allocation17 + $0x3e0] sm:$0xff]
    %v3741 = vld [vmem:[#allocation17 + $0x3e8] sm:$0xff]
    %v3742 = vld [vmem:[#allocation17 + $0x3f0] sm:$0xff]
    %v3743 = vld [vmem:[#allocation17 + $0x3f8] sm:$0xff]
    %v3872 = vunpack.c.l.b16 %v3616
    %v3873 = vunpack.c.h.b16 %v3616
    %v3874 = vunpack.c.l.b16 %v3617
    %v3875 = vunpack.c.h.b16 %v3617
    %v3876 = vunpack.c.l.b16 %v3618
    %v3877 = vunpack.c.h.b16 %v3618
    %v3878 = vunpack.c.l.b16 %v3619
    %v3879 = vunpack.c.h.b16 %v3619
    %v3880 = vunpack.c.l.b16 %v3620
    %v3881 = vunpack.c.h.b16 %v3620
    %v3882 = vunpack.c.l.b16 %v3621
    %v3883 = vunpack.c.h.b16 %v3621
    %v3884 = vunpack.c.l.b16 %v3622
    %v3885 = vunpack.c.h.b16 %v3622
    %v3886 = vunpack.c.l.b16 %v3623
    %v3887 = vunpack.c.h.b16 %v3623
    %v3888 = vunpack.c.l.b16 %v3624
    %v3889 = vunpack.c.h.b16 %v3624
    %v3890 = vunpack.c.l.b16 %v3625
    %v3891 = vunpack.c.h.b16 %v3625
    %v3892 = vunpack.c.l.b16 %v3626
    %v3893 = vunpack.c.h.b16 %v3626
    %v3894 = vunpack.c.l.b16 %v3627
    %v3895 = vunpack.c.h.b16 %v3627
    %v3896 = vunpack.c.l.b16 %v3628
    %v3897 = vunpack.c.h.b16 %v3628
    %v3898 = vunpack.c.l.b16 %v3629
    %v3899 = vunpack.c.h.b16 %v3629
    %v3900 = vunpack.c.l.b16 %v3630
    %v3901 = vunpack.c.h.b16 %v3630
    %v3902 = vunpack.c.l.b16 %v3631
    %v3903 = vunpack.c.h.b16 %v3631
    %v3904 = vunpack.c.l.b16 %v3632
    %v3905 = vunpack.c.h.b16 %v3632
    %v3906 = vunpack.c.l.b16 %v3633
    %v3907 = vunpack.c.h.b16 %v3633
    %v3908 = vunpack.c.l.b16 %v3634
    %v3909 = vunpack.c.h.b16 %v3634
    %v3910 = vunpack.c.l.b16 %v3635
    %v3911 = vunpack.c.h.b16 %v3635
    %v3912 = vunpack.c.l.b16 %v3636
    %v3913 = vunpack.c.h.b16 %v3636
    %v3914 = vunpack.c.l.b16 %v3637
    %v3915 = vunpack.c.h.b16 %v3637
    %v3916 = vunpack.c.l.b16 %v3638
    %v3917 = vunpack.c.h.b16 %v3638
    %v3918 = vunpack.c.l.b16 %v3639
    %v3919 = vunpack.c.h.b16 %v3639
    %v3920 = vunpack.c.l.b16 %v3640
    %v3921 = vunpack.c.h.b16 %v3640
    %v3922 = vunpack.c.l.b16 %v3641
    %v3923 = vunpack.c.h.b16 %v3641
    %v3924 = vunpack.c.l.b16 %v3642
    %v3925 = vunpack.c.h.b16 %v3642
    %v3926 = vunpack.c.l.b16 %v3643
    %v3927 = vunpack.c.h.b16 %v3643
    %v3928 = vunpack.c.l.b16 %v3644
    %v3929 = vunpack.c.h.b16 %v3644
    %v3930 = vunpack.c.l.b16 %v3645
    %v3931 = vunpack.c.h.b16 %v3645
    %v3932 = vunpack.c.l.b16 %v3646
    %v3933 = vunpack.c.h.b16 %v3646
    %v3934 = vunpack.c.l.b16 %v3647
    %v3935 = vunpack.c.h.b16 %v3647
    %v3936 = vunpack.c.l.b16 %v3648
    %v3937 = vunpack.c.h.b16 %v3648
    %v3938 = vunpack.c.l.b16 %v3649
    %v3939 = vunpack.c.h.b16 %v3649
    %v3940 = vunpack.c.l.b16 %v3650
    %v3941 = vunpack.c.h.b16 %v3650
    %v3942 = vunpack.c.l.b16 %v3651
    %v3943 = vunpack.c.h.b16 %v3651
    %v3944 = vunpack.c.l.b16 %v3652
    %v3945 = vunpack.c.h.b16 %v3652
    %v3946 = vunpack.c.l.b16 %v3653
    %v3947 = vunpack.c.h.b16 %v3653
    %v3948 = vunpack.c.l.b16 %v3654
    %v3949 = vunpack.c.h.b16 %v3654
    %v3950 = vunpack.c.l.b16 %v3655
    %v3951 = vunpack.c.h.b16 %v3655
    %v3952 = vunpack.c.l.b16 %v3656
    %v3953 = vunpack.c.h.b16 %v3656
    %v3954 = vunpack.c.l.b16 %v3657
    %v3955 = vunpack.c.h.b16 %v3657
    %v3956 = vunpack.c.l.b16 %v3658
    %v3957 = vunpack.c.h.b16 %v3658
    %v3958 = vunpack.c.l.b16 %v3659
    %v3959 = vunpack.c.h.b16 %v3659
    %v3960 = vunpack.c.l.b16 %v3660
    %v3961 = vunpack.c.h.b16 %v3660
    %v3962 = vunpack.c.l.b16 %v3661
    %v3963 = vunpack.c.h.b16 %v3661
    %v3964 = vunpack.c.l.b16 %v3662
    %v3965 = vunpack.c.h.b16 %v3662
    %v3966 = vunpack.c.l.b16 %v3663
    %v3967 = vunpack.c.h.b16 %v3663
    %v3968 = vunpack.c.l.b16 %v3664
    %v3969 = vunpack.c.h.b16 %v3664
    %v3970 = vunpack.c.l.b16 %v3665
    %v3971 = vunpack.c.h.b16 %v3665
    %v3972 = vunpack.c.l.b16 %v3666
    %v3973 = vunpack.c.h.b16 %v3666
    %v3974 = vunpack.c.l.b16 %v3667
    %v3975 = vunpack.c.h.b16 %v3667
    %v3976 = vunpack.c.l.b16 %v3668
    %v3977 = vunpack.c.h.b16 %v3668
    %v3978 = vunpack.c.l.b16 %v3669
    %v3979 = vunpack.c.h.b16 %v3669
    %v3980 = vunpack.c.l.b16 %v3670
    %v3981 = vunpack.c.h.b16 %v3670
    %v3982 = vunpack.c.l.b16 %v3671
    %v3983 = vunpack.c.h.b16 %v3671
    %v3984 = vunpack.c.l.b16 %v3672
    %v3985 = vunpack.c.h.b16 %v3672
    %v3986 = vunpack.c.l.b16 %v3673
    %v3987 = vunpack.c.h.b16 %v3673
    %v3988 = vunpack.c.l.b16 %v3674
    %v3989 = vunpack.c.h.b16 %v3674
    %v3990 = vunpack.c.l.b16 %v3675
    %v3991 = vunpack.c.h.b16 %v3675
    %v3992 = vunpack.c.l.b16 %v3676
    %v3993 = vunpack.c.h.b16 %v3676
    %v3994 = vunpack.c.l.b16 %v3677
    %v3995 = vunpack.c.h.b16 %v3677
    %v3996 = vunpack.c.l.b16 %v3678
    %v3997 = vunpack.c.h.b16 %v3678
    %v3998 = vunpack.c.l.b16 %v3679
    %v3999 = vunpack.c.h.b16 %v3679
    %v4000 = vunpack.c.l.b16 %v3680
    %v4001 = vunpack.c.h.b16 %v3680
    %v4002 = vunpack.c.l.b16 %v3681
    %v4003 = vunpack.c.h.b16 %v3681
    %v4004 = vunpack.c.l.b16 %v3682
    %v4005 = vunpack.c.h.b16 %v3682
    %v4006 = vunpack.c.l.b16 %v3683
    %v4007 = vunpack.c.h.b16 %v3683
    %v4008 = vunpack.c.l.b16 %v3684
    %v4009 = vunpack.c.h.b16 %v3684
    %v4010 = vunpack.c.l.b16 %v3685
    %v4011 = vunpack.c.h.b16 %v3685
    %v4012 = vunpack.c.l.b16 %v3686
    %v4013 = vunpack.c.h.b16 %v3686
    %v4014 = vunpack.c.l.b16 %v3687
    %v4015 = vunpack.c.h.b16 %v3687
    %v4016 = vunpack.c.l.b16 %v3688
    %v4017 = vunpack.c.h.b16 %v3688
    %v4018 = vunpack.c.l.b16 %v3689
    %v4019 = vunpack.c.h.b16 %v3689
    %v4020 = vunpack.c.l.b16 %v3690
    %v4021 = vunpack.c.h.b16 %v3690
    %v4022 = vunpack.c.l.b16 %v3691
    %v4023 = vunpack.c.h.b16 %v3691
    %v4024 = vunpack.c.l.b16 %v3692
    %v4025 = vunpack.c.h.b16 %v3692
    %v4026 = vunpack.c.l.b16 %v3693
    %v4027 = vunpack.c.h.b16 %v3693
    %v4028 = vunpack.c.l.b16 %v3694
    %v4029 = vunpack.c.h.b16 %v3694
    %v4030 = vunpack.c.l.b16 %v3695
    %v4031 = vunpack.c.h.b16 %v3695
    %v4032 = vunpack.c.l.b16 %v3696
    %v4033 = vunpack.c.h.b16 %v3696
    %v4034 = vunpack.c.l.b16 %v3697
    %v4035 = vunpack.c.h.b16 %v3697
    %v4036 = vunpack.c.l.b16 %v3698
    %v4037 = vunpack.c.h.b16 %v3698
    %v4038 = vunpack.c.l.b16 %v3699
    %v4039 = vunpack.c.h.b16 %v3699
    %v4040 = vunpack.c.l.b16 %v3700
    %v4041 = vunpack.c.h.b16 %v3700
    %v4042 = vunpack.c.l.b16 %v3701
    %v4043 = vunpack.c.h.b16 %v3701
    %v4044 = vunpack.c.l.b16 %v3702
    %v4045 = vunpack.c.h.b16 %v3702
    %v4046 = vunpack.c.l.b16 %v3703
    %v4047 = vunpack.c.h.b16 %v3703
    %v4048 = vunpack.c.l.b16 %v3704
    %v4049 = vunpack.c.h.b16 %v3704
    %v4050 = vunpack.c.l.b16 %v3705
    %v4051 = vunpack.c.h.b16 %v3705
    %v4052 = vunpack.c.l.b16 %v3706
    %v4053 = vunpack.c.h.b16 %v3706
    %v4054 = vunpack.c.l.b16 %v3707
    %v4055 = vunpack.c.h.b16 %v3707
    %v4056 = vunpack.c.l.b16 %v3708
    %v4057 = vunpack.c.h.b16 %v3708
    %v4058 = vunpack.c.l.b16 %v3709
    %v4059 = vunpack.c.h.b16 %v3709
    %v4060 = vunpack.c.l.b16 %v3710
    %v4061 = vunpack.c.h.b16 %v3710
    %v4062 = vunpack.c.l.b16 %v3711
    %v4063 = vunpack.c.h.b16 %v3711
    %v4064 = vunpack.c.l.b16 %v3712
    %v4065 = vunpack.c.h.b16 %v3712
    %v4066 = vunpack.c.l.b16 %v3713
    %v4067 = vunpack.c.h.b16 %v3713
    %v4068 = vunpack.c.l.b16 %v3714
    %v4069 = vunpack.c.h.b16 %v3714
    %v4070 = vunpack.c.l.b16 %v3715
    %v4071 = vunpack.c.h.b16 %v3715
    %v4072 = vunpack.c.l.b16 %v3716
    %v4073 = vunpack.c.h.b16 %v3716
    %v4074 = vunpack.c.l.b16 %v3717
    %v4075 = vunpack.c.h.b16 %v3717
    %v4076 = vunpack.c.l.b16 %v3718
    %v4077 = vunpack.c.h.b16 %v3718
    %v4078 = vunpack.c.l.b16 %v3719
    %v4079 = vunpack.c.h.b16 %v3719
    %v4080 = vunpack.c.l.b16 %v3720
    %v4081 = vunpack.c.h.b16 %v3720
    %v4082 = vunpack.c.l.b16 %v3721
    %v4083 = vunpack.c.h.b16 %v3721
    %v4084 = vunpack.c.l.b16 %v3722
    %v4085 = vunpack.c.h.b16 %v3722
    %v4086 = vunpack.c.l.b16 %v3723
    %v4087 = vunpack.c.h.b16 %v3723
    %v4088 = vunpack.c.l.b16 %v3724
    %v4089 = vunpack.c.h.b16 %v3724
    %v4090 = vunpack.c.l.b16 %v3725
    %v4091 = vunpack.c.h.b16 %v3725
    %v4092 = vunpack.c.l.b16 %v3726
    %v4093 = vunpack.c.h.b16 %v3726
    %v4094 = vunpack.c.l.b16 %v3727
    %v4095 = vunpack.c.h.b16 %v3727
    %v4096 = vunpack.c.l.b16 %v3728
    %v4097 = vunpack.c.h.b16 %v3728
    %v4098 = vunpack.c.l.b16 %v3729
    %v4099 = vunpack.c.h.b16 %v3729
    %v4100 = vunpack.c.l.b16 %v3730
    %v4101 = vunpack.c.h.b16 %v3730
    %v4102 = vunpack.c.l.b16 %v3731
    %v4103 = vunpack.c.h.b16 %v3731
    %v4104 = vunpack.c.l.b16 %v3732
    %v4105 = vunpack.c.h.b16 %v3732
    %v4106 = vunpack.c.l.b16 %v3733
    %v4107 = vunpack.c.h.b16 %v3733
    %v4108 = vunpack.c.l.b16 %v3734
    %v4109 = vunpack.c.h.b16 %v3734
    %v4110 = vunpack.c.l.b16 %v3735
    %v4111 = vunpack.c.h.b16 %v3735
    %v4112 = vunpack.c.l.b16 %v3736
    %v4113 = vunpack.c.h.b16 %v3736
    %v4114 = vunpack.c.l.b16 %v3737
    %v4115 = vunpack.c.h.b16 %v3737
    %v4116 = vunpack.c.l.b16 %v3738
    %v4117 = vunpack.c.h.b16 %v3738
    %v4118 = vunpack.c.l.b16 %v3739
    %v4119 = vunpack.c.h.b16 %v3739
    %v4120 = vunpack.c.l.b16 %v3740
    %v4121 = vunpack.c.h.b16 %v3740
    %v4122 = vunpack.c.l.b16 %v3741
    %v4123 = vunpack.c.h.b16 %v3741
    %v4124 = vunpack.c.l.b16 %v3742
    %v4125 = vunpack.c.h.b16 %v3742
    %v4126 = vunpack.c.l.b16 %v3743
    %v4127 = vunpack.c.h.b16 %v3743
    %v4128 = vpack.c.b16 %v3874, %v3872
    %v4129 = vpack.c.b16 %v3875, %v3873
    %v4130 = vpack.c.b16 %v3878, %v3876
    %v4131 = vpack.c.b16 %v3879, %v3877
    %v4132 = vpack.c.b16 %v3882, %v3880
    %v4133 = vpack.c.b16 %v3883, %v3881
    %v4134 = vpack.c.b16 %v3886, %v3884
    %v4135 = vpack.c.b16 %v3887, %v3885
    %v4136 = vpack.c.b16 %v3890, %v3888
    %v4137 = vpack.c.b16 %v3891, %v3889
    %v4138 = vpack.c.b16 %v3894, %v3892
    %v4139 = vpack.c.b16 %v3895, %v3893
    %v4140 = vpack.c.b16 %v3898, %v3896
    %v4141 = vpack.c.b16 %v3899, %v3897
    %v4142 = vpack.c.b16 %v3902, %v3900
    %v4143 = vpack.c.b16 %v3903, %v3901
    %v4144 = vpack.c.b16 %v3906, %v3904
    %v4145 = vpack.c.b16 %v3907, %v3905
    %v4146 = vpack.c.b16 %v3910, %v3908
    %v4147 = vpack.c.b16 %v3911, %v3909
    %v4148 = vpack.c.b16 %v3914, %v3912
    %v4149 = vpack.c.b16 %v3915, %v3913
    %v4150 = vpack.c.b16 %v3918, %v3916
    %v4151 = vpack.c.b16 %v3919, %v3917
    %v4152 = vpack.c.b16 %v3922, %v3920
    %v4153 = vpack.c.b16 %v3923, %v3921
    %v4154 = vpack.c.b16 %v3926, %v3924
    %v4155 = vpack.c.b16 %v3927, %v3925
    %v4156 = vpack.c.b16 %v3930, %v3928
    %v4157 = vpack.c.b16 %v3931, %v3929
    %v4158 = vpack.c.b16 %v3934, %v3932
    %v4159 = vpack.c.b16 %v3935, %v3933
    %v4160 = vpack.c.b16 %v3938, %v3936
    %v4161 = vpack.c.b16 %v3939, %v3937
    %v4162 = vpack.c.b16 %v3942, %v3940
    %v4163 = vpack.c.b16 %v3943, %v3941
    %v4164 = vpack.c.b16 %v3946, %v3944
    %v4165 = vpack.c.b16 %v3947, %v3945
    %v4166 = vpack.c.b16 %v3950, %v3948
    %v4167 = vpack.c.b16 %v3951, %v3949
    %v4168 = vpack.c.b16 %v3954, %v3952
    %v4169 = vpack.c.b16 %v3955, %v3953
    %v4170 = vpack.c.b16 %v3958, %v3956
    %v4171 = vpack.c.b16 %v3959, %v3957
    %v4172 = vpack.c.b16 %v3962, %v3960
    %v4173 = vpack.c.b16 %v3963, %v3961
    %v4174 = vpack.c.b16 %v3966, %v3964
    %v4175 = vpack.c.b16 %v3967, %v3965
    %v4176 = vpack.c.b16 %v3970, %v3968
    %v4177 = vpack.c.b16 %v3971, %v3969
    %v4178 = vpack.c.b16 %v3974, %v3972
    %v4179 = vpack.c.b16 %v3975, %v3973
    %v4180 = vpack.c.b16 %v3978, %v3976
    %v4181 = vpack.c.b16 %v3979, %v3977
    %v4182 = vpack.c.b16 %v3982, %v3980
    %v4183 = vpack.c.b16 %v3983, %v3981
    %v4184 = vpack.c.b16 %v3986, %v3984
    %v4185 = vpack.c.b16 %v3987, %v3985
    %v4186 = vpack.c.b16 %v3990, %v3988
    %v4187 = vpack.c.b16 %v3991, %v3989
    %v4188 = vpack.c.b16 %v3994, %v3992
    %v4189 = vpack.c.b16 %v3995, %v3993
    %v4190 = vpack.c.b16 %v3998, %v3996
    %v4191 = vpack.c.b16 %v3999, %v3997
    %v4192 = vpack.c.b16 %v4002, %v4000
    %v4193 = vpack.c.b16 %v4003, %v4001
    %v4194 = vpack.c.b16 %v4006, %v4004
    %v4195 = vpack.c.b16 %v4007, %v4005
    %v4196 = vpack.c.b16 %v4010, %v4008
    %v4197 = vpack.c.b16 %v4011, %v4009
    %v4198 = vpack.c.b16 %v4014, %v4012
    %v4199 = vpack.c.b16 %v4015, %v4013
    %v4200 = vpack.c.b16 %v4018, %v4016
    %v4201 = vpack.c.b16 %v4019, %v4017
    %v4202 = vpack.c.b16 %v4022, %v4020
    %v4203 = vpack.c.b16 %v4023, %v4021
    %v4204 = vpack.c.b16 %v4026, %v4024
    %v4205 = vpack.c.b16 %v4027, %v4025
    %v4206 = vpack.c.b16 %v4030, %v4028
    %v4207 = vpack.c.b16 %v4031, %v4029
    %v4208 = vpack.c.b16 %v4034, %v4032
    %v4209 = vpack.c.b16 %v4035, %v4033
    %v4210 = vpack.c.b16 %v4038, %v4036
    %v4211 = vpack.c.b16 %v4039, %v4037
    %v4212 = vpack.c.b16 %v4042, %v4040
    %v4213 = vpack.c.b16 %v4043, %v4041
    %v4214 = vpack.c.b16 %v4046, %v4044
    %v4215 = vpack.c.b16 %v4047, %v4045
    %v4216 = vpack.c.b16 %v4050, %v4048
    %v4217 = vpack.c.b16 %v4051, %v4049
    %v4218 = vpack.c.b16 %v4054, %v4052
    %v4219 = vpack.c.b16 %v4055, %v4053
    %v4220 = vpack.c.b16 %v4058, %v4056
    %v4221 = vpack.c.b16 %v4059, %v4057
    %v4222 = vpack.c.b16 %v4062, %v4060
    %v4223 = vpack.c.b16 %v4063, %v4061
    %v4224 = vpack.c.b16 %v4066, %v4064
    %v4225 = vpack.c.b16 %v4067, %v4065
    %v4226 = vpack.c.b16 %v4070, %v4068
    %v4227 = vpack.c.b16 %v4071, %v4069
    %v4228 = vpack.c.b16 %v4074, %v4072
    %v4229 = vpack.c.b16 %v4075, %v4073
    %v4230 = vpack.c.b16 %v4078, %v4076
    %v4231 = vpack.c.b16 %v4079, %v4077
    %v4232 = vpack.c.b16 %v4082, %v4080
    %v4233 = vpack.c.b16 %v4083, %v4081
    %v4234 = vpack.c.b16 %v4086, %v4084
    %v4235 = vpack.c.b16 %v4087, %v4085
    %v4236 = vpack.c.b16 %v4090, %v4088
    %v4237 = vpack.c.b16 %v4091, %v4089
    %v4238 = vpack.c.b16 %v4094, %v4092
    %v4239 = vpack.c.b16 %v4095, %v4093
    %v4240 = vpack.c.b16 %v4098, %v4096
    %v4241 = vpack.c.b16 %v4099, %v4097
    %v4242 = vpack.c.b16 %v4102, %v4100
    %v4243 = vpack.c.b16 %v4103, %v4101
    %v4244 = vpack.c.b16 %v4106, %v4104
    %v4245 = vpack.c.b16 %v4107, %v4105
    %v4246 = vpack.c.b16 %v4110, %v4108
    %v4247 = vpack.c.b16 %v4111, %v4109
    %v4248 = vpack.c.b16 %v4114, %v4112
    %v4249 = vpack.c.b16 %v4115, %v4113
    %v4250 = vpack.c.b16 %v4118, %v4116
    %v4251 = vpack.c.b16 %v4119, %v4117
    %v4252 = vpack.c.b16 %v4122, %v4120
    %v4253 = vpack.c.b16 %v4123, %v4121
    %v4254 = vpack.c.b16 %v4126, %v4124
    %v4255 = vpack.c.b16 %v4127, %v4125
    %4384 = vmatprep.subr.bf16.mxu0 %v4129
    %4385 = vmatpush1.bf16.msra.mxu0 %v4128
    %4386 = vmatprep.subr.bf16.mxu0 %v4131
    %4387 = vmatpush1.bf16.msra.mxu0 %v4130
    %4388 = vmatprep.subr.bf16.mxu0 %v4133
    %4389 = vmatpush1.bf16.msra.mxu0 %v4132
    %4390 = vmatprep.subr.bf16.mxu0 %v4135
    %4391 = vmatpush1.bf16.msra.mxu0 %v4134
    %4392 = vmatprep.subr.bf16.mxu0 %v4137
    %4393 = vmatpush1.bf16.msra.mxu0 %v4136
    %4394 = vmatprep.subr.bf16.mxu0 %v4139
    %4395 = vmatpush1.bf16.msra.mxu0 %v4138
    %4396 = vmatprep.subr.bf16.mxu0 %v4141
    %4397 = vmatpush1.bf16.msra.mxu0 %v4140
    %4398 = vmatprep.subr.bf16.mxu0 %v4143
    %4399 = vmatpush1.bf16.msra.mxu0 %v4142
    %4400 = vmatprep.subr.bf16.mxu0 %v4145
    %4401 = vmatpush1.bf16.msra.mxu0 %v4144
    %4402 = vmatprep.subr.bf16.mxu0 %v4147
    %4403 = vmatpush1.bf16.msra.mxu0 %v4146
    %4404 = vmatprep.subr.bf16.mxu0 %v4149
    %4405 = vmatpush1.bf16.msra.mxu0 %v4148
    %4406 = vmatprep.subr.bf16.mxu0 %v4151
    %4407 = vmatpush1.bf16.msra.mxu0 %v4150
    %4408 = vmatprep.subr.bf16.mxu0 %v4153
    %4409 = vmatpush1.bf16.msra.mxu0 %v4152
    %4410 = vmatprep.subr.bf16.mxu0 %v4155
    %4411 = vmatpush1.bf16.msra.mxu0 %v4154
    %4412 = vmatprep.subr.bf16.mxu0 %v4157
    %4413 = vmatpush1.bf16.msra.mxu0 %v4156
    %4414 = vmatprep.subr.bf16.mxu0 %v4159
    %4415 = vmatpush1.bf16.msra.mxu0 %v4158
    %4416 = vmatprep.mubr.bf16.mxu0 %v3609
    %4417 = vmatmul.mubr.bf16.gmra.mrb[0].mxu0 %v3608
    %v4418 = vpop.f32.mrb[0].mxu0
    %v4419 = vadd.f32 0.0, %v4418
    %v4420 = vpop.f32.mrb[0].mxu0
    %v4421 = vadd.f32 0.0, %v4420
    %v4422 = vpop.f32.mrb[0].mxu0
    %v4423 = vadd.f32 0.0, %v4422
    %v4424 = vpop.f32.mrb[0].mxu0
    %v4425 = vadd.f32 0.0, %v4424
    %4426 = vdwg.mxu0
    %4427 = vmatprep.subr.bf16.mxu0 %v4161
    %4428 = vmatpush1.bf16.msra.mxu0 %v4160
    %4429 = vmatprep.subr.bf16.mxu0 %v4163
    %4430 = vmatpush1.bf16.msra.mxu0 %v4162
    %4431 = vmatprep.subr.bf16.mxu0 %v4165
    %4432 = vmatpush1.bf16.msra.mxu0 %v4164
    %4433 = vmatprep.subr.bf16.mxu0 %v4167
    %4434 = vmatpush1.bf16.msra.mxu0 %v4166
    %4435 = vmatprep.subr.bf16.mxu0 %v4169
    %4436 = vmatpush1.bf16.msra.mxu0 %v4168
    %4437 = vmatprep.subr.bf16.mxu0 %v4171
    %4438 = vmatpush1.bf16.msra.mxu0 %v4170
    %4439 = vmatprep.subr.bf16.mxu0 %v4173
    %4440 = vmatpush1.bf16.msra.mxu0 %v4172
    %4441 = vmatprep.subr.bf16.mxu0 %v4175
    %4442 = vmatpush1.bf16.msra.mxu0 %v4174
    %4443 = vmatprep.subr.bf16.mxu0 %v4177
    %4444 = vmatpush1.bf16.msra.mxu0 %v4176
    %4445 = vmatprep.subr.bf16.mxu0 %v4179
    %4446 = vmatpush1.bf16.msra.mxu0 %v4178
    %4447 = vmatprep.subr.bf16.mxu0 %v4181
    %4448 = vmatpush1.bf16.msra.mxu0 %v4180
    %4449 = vmatprep.subr.bf16.mxu0 %v4183
    %4450 = vmatpush1.bf16.msra.mxu0 %v4182
    %4451 = vmatprep.subr.bf16.mxu0 %v4185
    %4452 = vmatpush1.bf16.msra.mxu0 %v4184
    %4453 = vmatprep.subr.bf16.mxu0 %v4187
    %4454 = vmatpush1.bf16.msra.mxu0 %v4186
    %4455 = vmatprep.subr.bf16.mxu0 %v4189
    %4456 = vmatpush1.bf16.msra.mxu0 %v4188
    %4457 = vmatprep.subr.bf16.mxu0 %v4191
    %4458 = vmatpush1.bf16.msra.mxu0 %v4190
    %4459 = vmatprep.mubr.bf16.mxu0 %v3611
    %4460 = vmatmul.mubr.bf16.gmra.mrb[0].mxu0 %v3610
    %v4461 = vpop.f32.mrb[0].mxu0
    %v4462 = vadd.f32 %v4419, %v4461
    %v4463 = vpop.f32.mrb[0].mxu0
    %v4464 = vadd.f32 %v4421, %v4463
    %v4465 = vpop.f32.mrb[0].mxu0
    %v4466 = vadd.f32 %v4423, %v4465
    %v4467 = vpop.f32.mrb[0].mxu0
    %v4468 = vadd.f32 %v4425, %v4467
    %4469 = vdwg.mxu0
    %4470 = vmatprep.subr.bf16.mxu0 %v4193
    %4471 = vmatpush1.bf16.msra.mxu0 %v4192
    %4472 = vmatprep.subr.bf16.mxu0 %v4195
    %4473 = vmatpush1.bf16.msra.mxu0 %v4194
    %4474 = vmatprep.subr.bf16.mxu0 %v4197
    %4475 = vmatpush1.bf16.msra.mxu0 %v4196
    %4476 = vmatprep.subr.bf16.mxu0 %v4199
    %4477 = vmatpush1.bf16.msra.mxu0 %v4198
    %4478 = vmatprep.subr.bf16.mxu0 %v4201
    %4479 = vmatpush1.bf16.msra.mxu0 %v4200
    %4480 = vmatprep.subr.bf16.mxu0 %v4203
    %4481 = vmatpush1.bf16.msra.mxu0 %v4202
    %4482 = vmatprep.subr.bf16.mxu0 %v4205
    %4483 = vmatpush1.bf16.msra.mxu0 %v4204
    %4484 = vmatprep.subr.bf16.mxu0 %v4207
    %4485 = vmatpush1.bf16.msra.mxu0 %v4206
    %4486 = vmatprep.subr.bf16.mxu0 %v4209
    %4487 = vmatpush1.bf16.msra.mxu0 %v4208
    %4488 = vmatprep.subr.bf16.mxu0 %v4211
    %4489 = vmatpush1.bf16.msra.mxu0 %v4210
    %4490 = vmatprep.subr.bf16.mxu0 %v4213
    %4491 = vmatpush1.bf16.msra.mxu0 %v4212
    %4492 = vmatprep.subr.bf16.mxu0 %v4215
    %4493 = vmatpush1.bf16.msra.mxu0 %v4214
    %4494 = vmatprep.subr.bf16.mxu0 %v4217
    %4495 = vmatpush1.bf16.msra.mxu0 %v4216
    %4496 = vmatprep.subr.bf16.mxu0 %v4219
    %4497 = vmatpush1.bf16.msra.mxu0 %v4218
    %4498 = vmatprep.subr.bf16.mxu0 %v4221
    %4499 = vmatpush1.bf16.msra.mxu0 %v4220
    %4500 = vmatprep.subr.bf16.mxu0 %v4223
    %4501 = vmatpush1.bf16.msra.mxu0 %v4222
    %4502 = vmatprep.mubr.bf16.mxu0 %v3613
    %4503 = vmatmul.mubr.bf16.gmra.mrb[0].mxu0 %v3612
    %v4504 = vpop.f32.mrb[0].mxu0
    %v4505 = vadd.f32 %v4462, %v4504
    %v4506 = vpop.f32.mrb[0].mxu0
    %v4507 = vadd.f32 %v4464, %v4506
    %v4508 = vpop.f32.mrb[0].mxu0
    %v4509 = vadd.f32 %v4466, %v4508
    %v4510 = vpop.f32.mrb[0].mxu0
    %v4511 = vadd.f32 %v4468, %v4510
    %4512 = vdwg.mxu0
    %4513 = vmatprep.subr.bf16.mxu0 %v4225
    %4514 = vmatpush1.bf16.msra.mxu0 %v4224
    %4515 = vmatprep.subr.bf16.mxu0 %v4227
    %4516 = vmatpush1.bf16.msra.mxu0 %v4226
    %4517 = vmatprep.subr.bf16.mxu0 %v4229
    %4518 = vmatpush1.bf16.msra.mxu0 %v4228
    %4519 = vmatprep.subr.bf16.mxu0 %v4231
    %4520 = vmatpush1.bf16.msra.mxu0 %v4230
    %4521 = vmatprep.subr.bf16.mxu0 %v4233
    %4522 = vmatpush1.bf16.msra.mxu0 %v4232
    %4523 = vmatprep.subr.bf16.mxu0 %v4235
    %4524 = vmatpush1.bf16.msra.mxu0 %v4234
    %4525 = vmatprep.subr.bf16.mxu0 %v4237
    %4526 = vmatpush1.bf16.msra.mxu0 %v4236
    %4527 = vmatprep.subr.bf16.mxu0 %v4239
    %4528 = vmatpush1.bf16.msra.mxu0 %v4238
    %4529 = vmatprep.subr.bf16.mxu0 %v4241
    %4530 = vmatpush1.bf16.msra.mxu0 %v4240
    %4531 = vmatprep.subr.bf16.mxu0 %v4243
    %4532 = vmatpush1.bf16.msra.mxu0 %v4242
    %4533 = vmatprep.subr.bf16.mxu0 %v4245
    %4534 = vmatpush1.bf16.msra.mxu0 %v4244
    %4535 = vmatprep.subr.bf16.mxu0 %v4247
    %4536 = vmatpush1.bf16.msra.mxu0 %v4246
    %4537 = vmatprep.subr.bf16.mxu0 %v4249
    %4538 = vmatpush1.bf16.msra.mxu0 %v4248
    %4539 = vmatprep.subr.bf16.mxu0 %v4251
    %4540 = vmatpush1.bf16.msra.mxu0 %v4250
    %4541 = vmatprep.subr.bf16.mxu0 %v4253
    %4542 = vmatpush1.bf16.msra.mxu0 %v4252
    %4543 = vmatprep.subr.bf16.mxu0 %v4255
    %4544 = vmatpush1.bf16.msra.mxu0 %v4254
    %4545 = vmatprep.mubr.bf16.mxu0 %v3615
    %4546 = vmatmul.mubr.bf16.gmra.mrb[0].mxu0 %v3614
    %v4547 = vpop.f32.mrb[0].mxu0
    %v4548 = vadd.f32 %v4505, %v4547
    %v4549 = vpop.f32.mrb[0].mxu0
    %v4550 = vadd.f32 %v4507, %v4549
    %v4551 = vpop.f32.mrb[0].mxu0
    %v4552 = vadd.f32 %v4509, %v4551
    %v4553 = vpop.f32.mrb[0].mxu0
    %v4554 = vadd.f32 %v4511, %v4553
    %4555 = vdwg.mxu0
    %v4556 = vadd.f32 %v3604, %v4548
    %v4557 = vadd.f32 %v3605, %v4550
    %v4558 = vadd.f32 %v3606, %v4552
    %v4559 = vadd.f32 %v3607, %v4554
    %4560 = vst [vmem:[#allocation4] sm:$0xff] %v4556
    %4561 = vst [vmem:[#allocation4 + $0x8] sm:$0xff] %v4557
    %4562 = vst [vmem:[#allocation4 + $0x10] sm:$0xff] %v4558
    %4563 = vst [vmem:[#allocation4 + $0x18] sm:$0xff] %v4559
    // Predicated region
    $region94: #{tpu_custom_call.1} parent=1 // pred_check
      %p4564 = pneg %p154
    $region95: #{tpu_custom_call.1} parent=1 // pred_check_branch
      %4566 = sbr.rel (%p4564) target = $region97
    $region96: #{tpu_custom_call.1} parent=1 // pred_region
      %v4567 = vld [vmem:[#allocation2] sm:$0xff]
      %v4568 = vld [vmem:[#allocation2 + $0x8] sm:$0xff]
      %v4569 = vld [vmem:[#allocation2 + $0x10] sm:$0xff]
      %v4570 = vld [vmem:[#allocation2 + $0x18] sm:$0xff]
      %v4571 = vld [vmem:[#allocation4] sm:$0xff]
      %v4572 = vld [vmem:[#allocation4 + $0x8] sm:$0xff]
      %v4573 = vld [vmem:[#allocation4 + $0x10] sm:$0xff]
      %v4574 = vld [vmem:[#allocation4 + $0x18] sm:$0xff]
      %v4575 = vadd.f32 %v4567, %v4571
      %v4576 = vadd.f32 %v4568, %v4572
      %v4577 = vadd.f32 %v4569, %v4573
      %v4578 = vadd.f32 %v4570, %v4574
      %4579 = vst [vmem:[#allocation19] sm:$0xff] %v4575
      %4580 = vst [vmem:[#allocation19 + $0x8] sm:$0xff] %v4576
      %4581 = vst [vmem:[#allocation19 + $0x10] sm:$0xff] %v4577
      %4582 = vst [vmem:[#allocation19 + $0x18] sm:$0xff] %v4578
    $region97: #{tpu_custom_call.1} parent=1 // pred_fallthru
      _
    // Predicated region
    $region98: #{tpu_custom_call.1} parent=1 // pred_check
      _
    $region99: #{tpu_custom_call.1} parent=1 // pred_check_branch
      %4584 = sbr.rel (0) target = $region101
    $region100: #{tpu_custom_call.1} parent=1 // pred_region
      %s4586 = ssub.s32 512, 512
      %4587 = vsyncadd [#allocation7], %s4586
      %s4588 = sshll.u32 [#allocation19], 4
      %s4589 = int_to_ptr.vmem [resolvable:$true] %s4588
      %4594 = dma.vmem_to_hbm [thread:$0]  %s4589, 512, %s14, [#allocation7], 256, 256, 16
    $region101: #{tpu_custom_call.1} parent=1 // pred_fallthru
      _
    // Predicated region
    $region102: #{tpu_custom_call.1} parent=1 // pred_check
      _
    $region103: #{tpu_custom_call.1} parent=1 // pred_check_branch
      %4596 = sbr.rel (0) target = $region105
    $region104: #{tpu_custom_call.1} parent=1 // pred_region
      %4597 = dma.done [#allocation7], 512
    $region105: #{tpu_custom_call.1} parent=1 // pred_fallthru
      _
    %4598 = vsyncpa [#allocation6], 1
    %4599 = vsyncpa [#allocation9], 1
    %4600 = vsyncpa [#allocation12], 1
    %4601 = vsyncpa [#allocation15], 1
    %4602 = vsyncpa [#allocation18], 1
    %4603 = vsyncpa [#allocation7], 1

</llo_original>
